<compile_context>
chip_gen: v7x
topology: tpu7x:2x2x1
jax: 0.10.0
libtpu: 0.0.40
codegen_flags: <defaults>
</compile_context>

<pallas_src>
import numpy as np
import jax
import jax.numpy as jnp
from jax import lax
from jax.experimental import pallas as pl
from jax.experimental.pallas import tpu as pltpu

NEG_SLOPE = 0.01   # nn.LeakyReLU default
BN_EPS = 1e-5      # nn.BatchNorm2d default


def _leaky(x):
    return jnp.where(x >= 0, x, NEG_SLOPE * x)


# -----------------------------------------------------------------------------
# Small host-built constants (numpy, static shapes)
# -----------------------------------------------------------------------------
def _upsample_matrix(B, h_in, w_in, h_out, w_out):
    """0/1 matrix implementing nn.Upsample(mode='nearest'): out row (b,ho,wo) <- in row
    (b, ho*h_in//h_out, wo*w_in//w_out).  Rows/cols are (b, h, w) row-major."""
    U = np.zeros((B * h_out * w_out, B * h_in * w_in), np.float32)
    for b in range(B):
        for ho in range(h_out):
            hi = ho * h_in // h_out
            for wo in range(w_out):
                wi = wo * w_in // w_out
                U[b * h_out * w_out + ho * w_out + wo,
                  b * h_in * w_in + hi * w_in + wi] = 1.0
    return U


def _conv_valid_mask(B, H, W):
    """M[r, t] = 1 if output row r (= (b,h,w) row-major) has an in-bounds source pixel for the
    3x3 / pad=1 tap t = (dh+1)*3 + (dw+1).  (R, 9) — a few KB per stage."""
    M = np.zeros((B * H * W, 9), np.float32)
    for b in range(B):
        for h in range(H):
            for w in range(W):
                r = b * H * W + h * W + w
                for t in range(9):
                    dh, dw = t // 3 - 1, t % 3 - 1
                    if 0 <= h + dh < H and 0 <= w + dw < W:
                        M[r, t] = 1.0
    return M


# -----------------------------------------------------------------------------
# The single fused Pallas kernel
# -----------------------------------------------------------------------------
def _dsn_fused_kernel(xf_ref, ew_sh_ref, eb_sh_ref, ew_pr_ref, eb_pr_ref,
                      w1c_ref, up1_ref, aff1_ref,
                      w2_ref, m2_ref, up2_ref, aff2_ref,
                      w3_ref, m3_ref, up3_ref, aff3_ref,
                      w4_ref, b4_ref, m4_ref,
                      cw1_ref, cb1_ref, cw2_ref, cb2_ref,
                      shared_ref, private_ref, cls_ref, dec_ref):
    f32 = jnp.float32
    bf16 = jnp.bfloat16

    def dot32(a, b):
        return jnp.dot(a, b, preferred_element_type=f32)

    def shift_rows(y, off):
        # z[r] = y[r + off] with zero fill at the ends (static off).  Rows are (b,h,w)
        # row-major, so a pad-1 3x3 tap shift is off = dh*W + dw; boundary / cross-batch
        # validity is handled by the mask at the call site.
        if off == 0:
            return y
        _, C = y.shape
        pad = jnp.zeros((abs(off), C), y.dtype)
        if off > 0:
            return jnp.concatenate([y[off:, :], pad], axis=0)
        return jnp.concatenate([pad, y[:off, :]], axis=0)

    def conv3x3(x, w_ref, m_ref, width, out_ref=None, bias=None):
        # 3x3 / pad=1 conv on flattened (b,h,w) rows:
        #   out[r] = sum_t mask[r,t] * (x @ W[t])[r + offset_t]
        # Weights are bf16 MXU operands (f32 accumulation); the shift is a cheap sublane
        # slice (XLU/VPU), not a dense gather matmul.  If out_ref is given, accumulate
        # directly into the VMEM-resident output block (bounds vreg pressure, stage 4).
        xb = x.astype(bf16)
        m = m_ref[...]
        if out_ref is not None:
            out_ref[...] = jnp.broadcast_to(bias, out_ref.shape)
        acc = None
        for t in range(9):
            off = (t // 3 - 1) * width + (t % 3 - 1)
            y = m[:, t:t + 1] * shift_rows(dot32(xb, w_ref[t]), off)
            if out_ref is not None:
                out_ref[...] += y
            else:
                acc = y if acc is None else acc + y
        return acc

    def bn_leaky(y, aff):
        # BatchNorm with batch statistics: one-pass variance, gamma*rsqrt folded into one scale.
        # TODO(synk): eval-mode running statistics of the PyTorch module are not representable.
        gamma, beta = aff[0:1, :], aff[1:2, :]
        mean = jnp.mean(y, axis=0, keepdims=True)
        var = jnp.maximum(jnp.mean(y * y, axis=0, keepdims=True) - mean * mean, 0.0)
        scale = gamma * lax.rsqrt(var + BN_EPS)
        return _leaky(y * scale + (beta - mean * scale))

    # ---------------- encoders (11x11 valid conv == one matmul each, f32) ----------------
    x = xf_ref[...]
    shared = _leaky(dot32(x, ew_sh_ref[...]) + eb_sh_ref[...])     # (B, Cout)
    private = _leaky(dot32(x, ew_pr_ref[...]) + eb_pr_ref[...])    # (B, Cout)
    shared_ref[...] = shared
    private_ref[...] = private
    fused = shared + private                                       # torch.add(shared, private)

    # ---------------- shared_decoder ----------------
    # stage 1: 3x3 conv on a 1x1 map (pad 1) touches only the centre tap; upsample 1->3 is a
    # replicate matmul.  Conv biases of stages 1-3 are dropped: batch-stat BN cancels them exactly.
    u1 = dot32(up1_ref[...], dot32(fused, w1c_ref[...]))           # (B*9, 256)
    h1 = bn_leaky(u1, aff1_ref[...])
    # stage 2: conv(256->128) on 3x3, nearest upsample 3->6, BN, LeakyReLU
    h2 = bn_leaky(dot32(up2_ref[...], conv3x3(h1, w2_ref, m2_ref, 3)), aff2_ref[...])   # (B*36,128)
    # stage 3: conv(128->64) on 6x6, nearest upsample 6->11, BN, LeakyReLU
    h3 = bn_leaky(dot32(up3_ref[...], conv3x3(h2, w3_ref, m3_ref, 6)), aff3_ref[...])   # (B*121,64)
    # stage 4: conv(64->num_channels) on 11x11, bias kept, accumulated straight into dec_ref
    conv3x3(h3, w4_ref, m4_ref, 11, out_ref=dec_ref, bias=b4_ref[...])                  # (B*121,C)

    # ---------------- classifier (on shared features) ----------------
    c1 = _leaky(dot32(shared, cw1_ref[...]) + cb1_ref[...])
    cls_ref[...] = dot32(c1, cw2_ref[...]) + cb2_ref[...]          # (B, num_classes)


def _full_spec(shape):
    nd = len(shape)
    return pl.BlockSpec(shape, lambda i, _nd=nd: (0,) * _nd)


# -----------------------------------------------------------------------------
# Parameters (deterministic synthetic init — NOT a checkpoint load)
# -----------------------------------------------------------------------------
def init_params(key, num_channels, out_channels, num_classes, patch_size):
    ks = iter(jax.random.split(key, 24))

    def w(shape, scale=0.05):
        return jax.random.normal(next(ks), shape, jnp.float32) * scale

    enc_k = num_channels * patch_size * patch_size
    p = {}
    # TODO(synk): the `experts` modules are external; synthesized here as
    #   Conv2d(num_channels, out_channels, kernel_size=patch_size) + LeakyReLU
    #   (11x11 valid conv -> 1x1 feature map), expressed as a matmul.
    for name in ("shared", "src", "tgt"):
        p[f"enc_{name}_w"] = w((enc_k, out_channels))
        p[f"enc_{name}_b"] = w((out_channels,))

    # decoder 3x3 conv weights stored as (9 taps, C_in, C_out); tap t = (dh, dw) = (t//3, t%3)
    p["dec_w1"] = w((9, out_channels, 256)); p["dec_b1"] = w((256,))
    p["dec_w2"] = w((9, 256, 128));          p["dec_b2"] = w((128,))
    p["dec_w3"] = w((9, 128, 64));           p["dec_b3"] = w((64,))
    p["dec_w4"] = w((9, 64, num_channels));  p["dec_b4"] = w((num_channels,))
    # BatchNorm affine params (initialize_weights -> gamma=1, beta=0)
    p["bn1_g"] = jnp.ones((256,), jnp.float32); p["bn1_b"] = jnp.zeros((256,), jnp.float32)
    p["bn2_g"] = jnp.ones((128,), jnp.float32); p["bn2_b"] = jnp.zeros((128,), jnp.float32)
    p["bn3_g"] = jnp.ones((64,),  jnp.float32); p["bn3_b"] = jnp.zeros((64,),  jnp.float32)

    # TODO(synk): ImageClassifier is external; synthesized as flatten ->
    #   Linear(out_channels, 64) -> LeakyReLU -> Linear(64, num_classes); forward takes [-1].
    p["cls_w1"] = w((out_channels, 64)); p["cls_b1"] = w((64,))
    p["cls_w2"] = w((64, num_classes)); p["cls_b2"] = w((num_classes,))
    return p


def pack_kernel_inputs(params, B, num_channels, num_classes, patch):
    """One-time packing of params + tiny constant matrices into kernel-ready arrays."""
    bf16 = jnp.bfloat16
    pk = {}
    pk["ew_sh"] = params["enc_shared_w"]
    pk["eb_sh"] = params["enc_shared_b"].reshape(1, -1)
    pk["ew_src"] = params["enc_src_w"]
    pk["eb_src"] = params["enc_src_b"].reshape(1, -1)
    pk["ew_tgt"] = params["enc_tgt_w"]
    pk["eb_tgt"] = params["enc_tgt_b"].reshape(1, -1)

    # stage 1: centre tap only (3x3 conv on 1x1 map); 1x1 -> 3x3 nearest upsample matrix
    pk["w1c"] = params["dec_w1"][4]                                   # (C_in, 256) f32
    pk["up1"] = jnp.asarray(_upsample_matrix(B, 1, 1, 3, 3))          # (B*9, B)
    pk["aff1"] = jnp.stack([params["bn1_g"], params["bn1_b"]])        # (2, 256)
    # stage 2: bf16 conv weights, boundary mask, 3->6 upsample
    pk["w2"] = params["dec_w2"].astype(bf16)                          # (9, 256, 128) bf16
    pk["m2"] = jnp.asarray(_conv_valid_mask(B, 3, 3))                 # (B*9, 9)
    pk["up2"] = jnp.asarray(_upsample_matrix(B, 3, 3, 6, 6))          # (B*36, B*9)
    pk["aff2"] = jnp.stack([params["bn2_g"], params["bn2_b"]])
    # stage 3
    pk["w3"] = params["dec_w3"].astype(bf16)                          # (9, 128, 64) bf16
    pk["m3"] = jnp.asarray(_conv_valid_mask(B, 6, 6))                 # (B*36, 9)
    pk["up3"] = jnp.asarray(_upsample_matrix(B, 6, 6, patch, patch))  # (B*121, B*36)
    pk["aff3"] = jnp.stack([params["bn3_g"], params["bn3_b"]])
    # stage 4 (no BN; bias kept; output channels left at num_channels)
    pk["w4"] = params["dec_w4"].astype(bf16)                          # (9, 64, C) bf16
    pk["b4"] = params["dec_b4"].reshape(1, num_channels)
    pk["m4"] = jnp.asarray(_conv_valid_mask(B, patch, patch))         # (B*121, 9)

    pk["cw1"] = params["cls_w1"]
    pk["cb1"] = params["cls_b1"].reshape(1, -1)
    pk["cw2"] = params["cls_w2"]
    pk["cb2"] = params["cls_b2"].reshape(1, -1)
    return pk


# -----------------------------------------------------------------------------
# DSN_NoDis.forward  (single fused pallas_call)
# -----------------------------------------------------------------------------
def dsn_forward(packed, x_nchw, task_ind, num_classes):
    assert task_ind in (1, 2)
    B, C, H, W = x_nchw.shape
    xf = x_nchw.reshape(B, C * H * W)

    if task_ind == 1:
        ew_pr, eb_pr = packed["ew_src"], packed["eb_src"]
    else:
        ew_pr, eb_pr = packed["ew_tgt"], packed["eb_tgt"]

    args = (xf, packed["ew_sh"], packed["eb_sh"], ew_pr, eb_pr,
            packed["w1c"], packed["up1"], packed["aff1"],
            packed["w2"], packed["m2"], packed["up2"], packed["aff2"],
            packed["w3"], packed["m3"], packed["up3"], packed["aff3"],
            packed["w4"], packed["b4"], packed["m4"],
            packed["cw1"], packed["cb1"], packed["cw2"], packed["cb2"])

    out_ch = packed["ew_sh"].shape[1]
    out_shape = (
        jax.ShapeDtypeStruct((B, out_ch), jnp.float32),          # shared features
        jax.ShapeDtypeStruct((B, out_ch), jnp.float32),          # private features
        jax.ShapeDtypeStruct((B, num_classes), jnp.float32),     # class logits
        jax.ShapeDtypeStruct((B * H * W, C), jnp.float32),       # decoder rows (b,h,w) x C
    )
    in_specs = [_full_spec(a.shape) for a in args]
    out_specs = tuple(_full_spec(s.shape) for s in out_shape)

    shared, private, cls_out, dec = pl.pallas_call(
        _dsn_fused_kernel,
        out_shape=out_shape,
        grid=(1,),
        in_specs=in_specs,
        out_specs=out_specs,
        compiler_params=pltpu.CompilerParams(
            dimension_semantics=("arbitrary",),
            # ~3 MB actual footprint — comfortably inside v7x's 64 MiB as well as v5e/v6e.
            vmem_limit_bytes=32 * 1024 * 1024),
    )(*args)

    shared_features = shared.reshape(B, out_ch, 1, 1)
    private_features = private.reshape(B, out_ch, 1, 1)
    class_output = cls_out
    decoder_output = dec.reshape(B, H, W, C).transpose(0, 3, 1, 2)  # NCHW
    # TODO(synk): register_layer_hook only attaches hooks (no forward-math effect) — omitted.
    return shared_features, private_features, class_output, decoder_output


# -----------------------------------------------------------------------------
# Pure-JAX reference (same math, independent formulation) for a tolerance check
# -----------------------------------------------------------------------------
def ref_forward(params, x_nchw, task_ind, num_classes):
    B, C, H, W = x_nchw.shape
    hp = lax.Precision.HIGHEST

    def mm(a, b):
        return jnp.dot(a, b, precision=hp)

    def conv3x3(xn, w9, b):
        Bq, Hq, Wq, Cin = xn.shape
        xp = jnp.pad(xn, ((0, 0), (1, 1), (1, 1), (0, 0)))
        out = 0.0
        for t in range(9):
            dh, dw = t // 3, t % 3
            out = out + mm(xp[:, dh:dh + Hq, dw:dw + Wq, :].reshape(Bq * Hq * Wq, Cin), w9[t])
        return (out + b).reshape(Bq, Hq, Wq, -1)

    def up(xn, oh, ow):
        Bq, Hq, Wq, _ = xn.shape
        hi = (jnp.arange(oh) * Hq // oh).astype(jnp.int32)
        wi = (jnp.arange(ow) * Wq // ow).astype(jnp.int32)
        return xn[:, hi][:, :, wi]

    def bn_leaky(xn, g, bt):
        Bq, Hq, Wq, Cq = xn.shape
        xfm = xn.reshape(-1, Cq)
        mean = xfm.mean(0, keepdims=True)
        var = ((xfm - mean) ** 2).mean(0, keepdims=True)
        y = (xfm - mean) * lax.rsqrt(var + BN_EPS)
        return _leaky(y * g + bt).reshape(Bq, Hq, Wq, Cq)

    xf = x_nchw.reshape(B, -1)
    shared = _leaky(mm(xf, params["enc_shared_w"]) + params["enc_shared_b"])
    name = "src" if task_ind == 1 else "tgt"
    private = _leaky(mm(xf, params[f"enc_{name}_w"]) + params[f"enc_{name}_b"])
    h = (shared + private).reshape(B, 1, 1, -1)

    h = conv3x3(h, params["dec_w1"], params["dec_b1"])
    h = bn_leaky(up(h, 3, 3), params["bn1_g"], params["bn1_b"])
    h = conv3x3(h, params["dec_w2"], params["dec_b2"])
    h = bn_leaky(up(h, 6, 6), params["bn2_g"], params["bn2_b"])
    h = conv3x3(h, params["dec_w3"], params["dec_b3"])
    h = bn_leaky(up(h, 11, 11), params["bn3_g"], params["bn3_b"])
    h = conv3x3(h, params["dec_w4"], params["dec_b4"])
    decoder_output = jnp.transpose(h, (0, 3, 1, 2))

    c1 = _leaky(mm(shared, params["cls_w1"]) + params["cls_b1"])
    class_output = mm(c1, params["cls_w2"]) + params["cls_b2"]
    return (shared.reshape(B, -1, 1, 1), private.reshape(B, -1, 1, 1),
            class_output, decoder_output)


if __name__ == "__main__":
    PATCH = 11          # assert patch_size in [11]
    NUM_CHANNELS = 4
    OUT_CHANNELS = 32
    NUM_CLASSES = 5
    B = 2

    key = jax.random.PRNGKey(0)
    pkey, xkey = jax.random.split(key)
    params = init_params(pkey, NUM_CHANNELS, OUT_CHANNELS, NUM_CLASSES, PATCH)
    x = jax.random.normal(xkey, (B, NUM_CHANNELS, PATCH, PATCH), jnp.float32)

    packed = pack_kernel_inputs(params, B, NUM_CHANNELS, NUM_CLASSES, PATCH)

    fwd = jax.jit(dsn_forward, static_argnums=(2, 3))
    outs = fwd(packed, x, 1, NUM_CLASSES)
    jax.block_until_ready(outs)
    shared_f, private_f, class_out, dec_out = outs

    assert shared_f.shape == (B, OUT_CHANNELS, 1, 1)
    assert private_f.shape == (B, OUT_CHANNELS, 1, 1)
    assert class_out.shape == (B, NUM_CLASSES)
    assert dec_out.shape == (B, NUM_CHANNELS, PATCH, PATCH)

    # tolerance-asserted pure-JAX reference check (loose tol covers bf16 MXU operands)
    refs = ref_forward(params, x, 1, NUM_CLASSES)
    for got, want in zip(outs, refs):
        assert float(jnp.max(jnp.abs(got - want))) < 5e-2

    # second task branch exercises the private-target encoder path
    outs2 = fwd(packed, x, 2, NUM_CLASSES)
    jax.block_until_ready(outs2)
    refs2 = ref_forward(params, x, 2, NUM_CLASSES)
    for got, want in zip(outs2, refs2):
        assert float(jnp.max(jnp.abs(got - want))) < 5e-2

    print("KERNEL_OK")
</pallas_src>

<mosaic_0001>
module attributes {stable_mosaic.version = 11 : i64} {
  func.func @_dsn_fused_kernel(%arg0: i32, %arg1: memref<2x484xf32, #tpu.memory_space<vmem>>, %arg2: memref<484x32xf32, #tpu.memory_space<vmem>>, %arg3: memref<1x32xf32, #tpu.memory_space<vmem>>, %arg4: memref<484x32xf32, #tpu.memory_space<vmem>>, %arg5: memref<1x32xf32, #tpu.memory_space<vmem>>, %arg6: memref<32x256xf32, #tpu.memory_space<vmem>>, %arg7: memref<18x2xf32, #tpu.memory_space<vmem>>, %arg8: memref<2x256xf32, #tpu.memory_space<vmem>>, %arg9: memref<9x256x128xbf16, #tpu.memory_space<vmem>>, %arg10: memref<18x9xf32, #tpu.memory_space<vmem>>, %arg11: memref<72x18xf32, #tpu.memory_space<vmem>>, %arg12: memref<2x128xf32, #tpu.memory_space<vmem>>, %arg13: memref<9x128x64xbf16, #tpu.memory_space<vmem>>, %arg14: memref<72x9xf32, #tpu.memory_space<vmem>>, %arg15: memref<242x72xf32, #tpu.memory_space<vmem>>, %arg16: memref<2x64xf32, #tpu.memory_space<vmem>>, %arg17: memref<9x64x4xbf16, #tpu.memory_space<vmem>>, %arg18: memref<1x4xf32, #tpu.memory_space<vmem>>, %arg19: memref<242x9xf32, #tpu.memory_space<vmem>>, %arg20: memref<32x64xf32, #tpu.memory_space<vmem>>, %arg21: memref<1x64xf32, #tpu.memory_space<vmem>>, %arg22: memref<64x5xf32, #tpu.memory_space<vmem>>, %arg23: memref<1x5xf32, #tpu.memory_space<vmem>>, %arg24: memref<2x32xf32, #tpu.memory_space<vmem>>, %arg25: memref<2x32xf32, #tpu.memory_space<vmem>>, %arg26: memref<2x5xf32, #tpu.memory_space<vmem>>, %arg27: memref<242x4xf32, #tpu.memory_space<vmem>>) attributes {dimension_semantics = [#tpu.dimension_semantics<arbitrary>], iteration_bounds = array<i64: 1>, scalar_prefetch = 0 : i64, scratch_operands = 0 : i64, tpu.core_type = #tpu.core_type<tc>, window_params = [{pipeline_mode = #tpu.pipeline_mode<synchronous>, transform_indices = @transform_0, window_bounds = array<i64: 2, 484>}, {pipeline_mode = #tpu.pipeline_mode<synchronous>, transform_indices = @transform_1, window_bounds = array<i64: 484, 32>}, {pipeline_mode = #tpu.pipeline_mode<synchronous>, transform_indices = @transform_2, window_bounds = array<i64: 1, 32>}, {pipeline_mode = #tpu.pipeline_mode<synchronous>, transform_indices = @transform_3, window_bounds = array<i64: 484, 32>}, {pipeline_mode = #tpu.pipeline_mode<synchronous>, transform_indices = @transform_4, window_bounds = array<i64: 1, 32>}, {pipeline_mode = #tpu.pipeline_mode<synchronous>, transform_indices = @transform_5, window_bounds = array<i64: 32, 256>}, {pipeline_mode = #tpu.pipeline_mode<synchronous>, transform_indices = @transform_6, window_bounds = array<i64: 18, 2>}, {pipeline_mode = #tpu.pipeline_mode<synchronous>, transform_indices = @transform_7, window_bounds = array<i64: 2, 256>}, {pipeline_mode = #tpu.pipeline_mode<synchronous>, transform_indices = @transform_8, window_bounds = array<i64: 9, 256, 128>}, {pipeline_mode = #tpu.pipeline_mode<synchronous>, transform_indices = @transform_9, window_bounds = array<i64: 18, 9>}, {pipeline_mode = #tpu.pipeline_mode<synchronous>, transform_indices = @transform_10, window_bounds = array<i64: 72, 18>}, {pipeline_mode = #tpu.pipeline_mode<synchronous>, transform_indices = @transform_11, window_bounds = array<i64: 2, 128>}, {pipeline_mode = #tpu.pipeline_mode<synchronous>, transform_indices = @transform_12, window_bounds = array<i64: 9, 128, 64>}, {pipeline_mode = #tpu.pipeline_mode<synchronous>, transform_indices = @transform_13, window_bounds = array<i64: 72, 9>}, {pipeline_mode = #tpu.pipeline_mode<synchronous>, transform_indices = @transform_14, window_bounds = array<i64: 242, 72>}, {pipeline_mode = #tpu.pipeline_mode<synchronous>, transform_indices = @transform_15, window_bounds = array<i64: 2, 64>}, {pipeline_mode = #tpu.pipeline_mode<synchronous>, transform_indices = @transform_16, window_bounds = array<i64: 9, 64, 4>}, {pipeline_mode = #tpu.pipeline_mode<synchronous>, transform_indices = @transform_17, window_bounds = array<i64: 1, 4>}, {pipeline_mode = #tpu.pipeline_mode<synchronous>, transform_indices = @transform_18, window_bounds = array<i64: 242, 9>}, {pipeline_mode = #tpu.pipeline_mode<synchronous>, transform_indices = @transform_19, window_bounds = array<i64: 32, 64>}, {pipeline_mode = #tpu.pipeline_mode<synchronous>, transform_indices = @transform_20, window_bounds = array<i64: 1, 64>}, {pipeline_mode = #tpu.pipeline_mode<synchronous>, transform_indices = @transform_21, window_bounds = array<i64: 64, 5>}, {pipeline_mode = #tpu.pipeline_mode<synchronous>, transform_indices = @transform_22, window_bounds = array<i64: 1, 5>}, {pipeline_mode = #tpu.pipeline_mode<synchronous>, transform_indices = @transform_23, window_bounds = array<i64: 2, 32>}, {pipeline_mode = #tpu.pipeline_mode<synchronous>, transform_indices = @transform_24, window_bounds = array<i64: 2, 32>}, {pipeline_mode = #tpu.pipeline_mode<synchronous>, transform_indices = @transform_25, window_bounds = array<i64: 2, 5>}, {pipeline_mode = #tpu.pipeline_mode<synchronous>, transform_indices = @transform_26, window_bounds = array<i64: 242, 4>}]} {
    %c0 = arith.constant 0 : index
    %c0_0 = arith.constant 0 : index
    %0 = vector.load %arg1[%c0, %c0_0] : memref<2x484xf32, #tpu.memory_space<vmem>>, vector<2x484xf32>
    %c0_1 = arith.constant 0 : index
    %c0_2 = arith.constant 0 : index
    %1 = vector.load %arg2[%c0_1, %c0_2] : memref<484x32xf32, #tpu.memory_space<vmem>>, vector<484x32xf32>
    %cst = arith.constant dense<0.000000e+00> : vector<2x32xf32>
    %2 = tpu.matmul %0, %1, %cst {dimension_numbers = #tpu.dot_dimension_numbers<[1], [0], [0], [1], [0, 0, 1, 1], [], []>} : vector<2x484xf32>, vector<484x32xf32>, vector<2x32xf32> -> vector<2x32xf32>
    %c0_3 = arith.constant 0 : index
    %c0_4 = arith.constant 0 : index
    %3 = vector.load %arg3[%c0_3, %c0_4] : memref<1x32xf32, #tpu.memory_space<vmem>>, vector<1x32xf32>
    %4 = vector.broadcast %3 : vector<1x32xf32> to vector<2x32xf32>
    %5 = arith.addf %2, %4 : vector<2x32xf32>
    %cst_5 = arith.constant 0.000000e+00 : f32
    %6 = vector.broadcast %cst_5 : f32 to vector<2x32xf32>
    %7 = arith.cmpf oge, %5, %6 : vector<2x32xf32>
    %cst_6 = arith.constant 0.00999999977 : f32
    %8 = vector.broadcast %cst_6 : f32 to vector<2x32xf32>
    %9 = arith.mulf %8, %5 : vector<2x32xf32>
    %10 = arith.select %7, %5, %9 : vector<2x32xi1>, vector<2x32xf32>
    %c0_7 = arith.constant 0 : index
    %c0_8 = arith.constant 0 : index
    %11 = vector.load %arg4[%c0_7, %c0_8] : memref<484x32xf32, #tpu.memory_space<vmem>>, vector<484x32xf32>
    %cst_9 = arith.constant dense<0.000000e+00> : vector<2x32xf32>
    %12 = tpu.matmul %0, %11, %cst_9 {dimension_numbers = #tpu.dot_dimension_numbers<[1], [0], [0], [1], [0, 0, 1, 1], [], []>} : vector<2x484xf32>, vector<484x32xf32>, vector<2x32xf32> -> vector<2x32xf32>
    %c0_10 = arith.constant 0 : index
    %c0_11 = arith.constant 0 : index
    %13 = vector.load %arg5[%c0_10, %c0_11] : memref<1x32xf32, #tpu.memory_space<vmem>>, vector<1x32xf32>
    %14 = vector.broadcast %13 : vector<1x32xf32> to vector<2x32xf32>
    %15 = arith.addf %12, %14 : vector<2x32xf32>
    %cst_12 = arith.constant 0.000000e+00 : f32
    %16 = vector.broadcast %cst_12 : f32 to vector<2x32xf32>
    %17 = arith.cmpf oge, %15, %16 : vector<2x32xf32>
    %cst_13 = arith.constant 0.00999999977 : f32
    %18 = vector.broadcast %cst_13 : f32 to vector<2x32xf32>
    %19 = arith.mulf %18, %15 : vector<2x32xf32>
    %20 = arith.select %17, %15, %19 : vector<2x32xi1>, vector<2x32xf32>
    %c0_14 = arith.constant 0 : index
    %c0_15 = arith.constant 0 : index
    %21 = vector.load %arg24[%c0_14, %c0_15] : memref<2x32xf32, #tpu.memory_space<vmem>>, vector<2x32xf32>
    tpu.vector_store %arg24[%c0_14, %c0_15], %10 {strides = array<i32>} : memref<2x32xf32, #tpu.memory_space<vmem>>, vector<2x32xf32>,
    %c0_16 = arith.constant 0 : index
    %c0_17 = arith.constant 0 : index
    %22 = vector.load %arg25[%c0_16, %c0_17] : memref<2x32xf32, #tpu.memory_space<vmem>>, vector<2x32xf32>
    tpu.vector_store %arg25[%c0_16, %c0_17], %20 {strides = array<i32>} : memref<2x32xf32, #tpu.memory_space<vmem>>, vector<2x32xf32>,
    %23 = arith.addf %10, %20 : vector<2x32xf32>
    %c0_18 = arith.constant 0 : index
    %c0_19 = arith.constant 0 : index
    %24 = vector.load %arg7[%c0_18, %c0_19] : memref<18x2xf32, #tpu.memory_space<vmem>>, vector<18x2xf32>
    %c0_20 = arith.constant 0 : index
    %c0_21 = arith.constant 0 : index
    %25 = vector.load %arg6[%c0_20, %c0_21] : memref<32x256xf32, #tpu.memory_space<vmem>>, vector<32x256xf32>
    %cst_22 = arith.constant dense<0.000000e+00> : vector<2x256xf32>
    %26 = tpu.matmul %23, %25, %cst_22 {dimension_numbers = #tpu.dot_dimension_numbers<[1], [0], [0], [1], [0, 0, 1, 1], [], []>} : vector<2x32xf32>, vector<32x256xf32>, vector<2x256xf32> -> vector<2x256xf32>
    %cst_23 = arith.constant dense<0.000000e+00> : vector<18x256xf32>
    %27 = tpu.matmul %24, %26, %cst_23 {dimension_numbers = #tpu.dot_dimension_numbers<[1], [0], [0], [1], [0, 0, 1, 1], [], []>} : vector<18x2xf32>, vector<2x256xf32>, vector<18x256xf32> -> vector<18x256xf32>
    %c0_24 = arith.constant 0 : index
    %c0_25 = arith.constant 0 : index
    %28 = vector.load %arg8[%c0_24, %c0_25] : memref<2x256xf32, #tpu.memory_space<vmem>>, vector<2x256xf32>
    %29 = vector.extract_strided_slice %28 {offsets = [0, 0], sizes = [1, 256], strides = [1, 1]} : vector<2x256xf32> to vector<1x256xf32>
    %30 = vector.extract_strided_slice %28 {offsets = [1, 0], sizes = [1, 256], strides = [1, 1]} : vector<2x256xf32> to vector<1x256xf32>
    %cst_26 = arith.constant dense<0.000000e+00> : vector<256xf32>
    %31 = vector.multi_reduction <add>, %27, %cst_26 [0] : vector<18x256xf32> to vector<256xf32>
    %32 = vector.shape_cast %31 : vector<256xf32> to vector<1x256xf32>
    %cst_27 = arith.constant 1.800000e+01 : f32
    %33 = vector.broadcast %cst_27 : f32 to vector<1x256xf32>
    %34 = arith.divf %32, %33 : vector<1x256xf32>
    %35 = arith.mulf %27, %27 : vector<18x256xf32>
    %cst_28 = arith.constant dense<0.000000e+00> : vector<256xf32>
    %36 = vector.multi_reduction <add>, %35, %cst_28 [0] : vector<18x256xf32> to vector<256xf32>
    %37 = vector.shape_cast %36 : vector<256xf32> to vector<1x256xf32>
    %cst_29 = arith.constant 1.800000e+01 : f32
    %38 = vector.broadcast %cst_29 : f32 to vector<1x256xf32>
    %39 = arith.divf %37, %38 : vector<1x256xf32>
    %40 = arith.mulf %34, %34 : vector<1x256xf32>
    %41 = arith.subf %39, %40 : vector<1x256xf32>
    %cst_30 = arith.constant 0.000000e+00 : f32
    %42 = vector.broadcast %cst_30 : f32 to vector<1x256xf32>
    %43 = arith.maximumf %41, %42 : vector<1x256xf32>
    %cst_31 = arith.constant 9.99999974E-6 : f32
    %44 = vector.broadcast %cst_31 : f32 to vector<1x256xf32>
    %45 = arith.addf %43, %44 : vector<1x256xf32>
    %46 = math.rsqrt %45 : vector<1x256xf32>
    %47 = arith.mulf %29, %46 : vector<1x256xf32>
    %48 = vector.broadcast %47 : vector<1x256xf32> to vector<18x256xf32>
    %49 = arith.mulf %27, %48 : vector<18x256xf32>
    %50 = arith.mulf %34, %47 : vector<1x256xf32>
    %51 = arith.subf %30, %50 : vector<1x256xf32>
    %52 = vector.broadcast %51 : vector<1x256xf32> to vector<18x256xf32>
    %53 = arith.addf %49, %52 : vector<18x256xf32>
    %cst_32 = arith.constant 0.000000e+00 : f32
    %54 = vector.broadcast %cst_32 : f32 to vector<18x256xf32>
    %55 = arith.cmpf oge, %53, %54 : vector<18x256xf32>
    %cst_33 = arith.constant 0.00999999977 : f32
    %56 = vector.broadcast %cst_33 : f32 to vector<18x256xf32>
    %57 = arith.mulf %56, %53 : vector<18x256xf32>
    %58 = arith.select %55, %53, %57 : vector<18x256xi1>, vector<18x256xf32>
    %c0_34 = arith.constant 0 : index
    %c0_35 = arith.constant 0 : index
    %59 = vector.load %arg11[%c0_34, %c0_35] : memref<72x18xf32, #tpu.memory_space<vmem>>, vector<72x18xf32>
    %60 = arith.truncf %58 : vector<18x256xf32> to vector<18x256xbf16>
    %c0_36 = arith.constant 0 : index
    %c0_37 = arith.constant 0 : index
    %61 = vector.load %arg10[%c0_36, %c0_37] : memref<18x9xf32, #tpu.memory_space<vmem>>, vector<18x9xf32>
    %62 = vector.extract_strided_slice %61 {offsets = [0, 0], sizes = [18, 1], strides = [1, 1]} : vector<18x9xf32> to vector<18x1xf32>
    %c0_38 = arith.constant 0 : index
    %c0_39 = arith.constant 0 : index
    %c0_40 = arith.constant 0 : index
    %63 = vector.load %arg9[%c0_38, %c0_39, %c0_40] : memref<9x256x128xbf16, #tpu.memory_space<vmem>>, vector<1x256x128xbf16>
    %64 = vector.shape_cast %63 : vector<1x256x128xbf16> to vector<256x128xbf16>
    %cst_41 = arith.constant dense<0.000000e+00> : vector<18x128xf32>
    %65 = tpu.matmul %60, %64, %cst_41 {dimension_numbers = #tpu.dot_dimension_numbers<[1], [0], [0], [1], [0, 0, 1, 1], [], []>} : vector<18x256xbf16>, vector<256x128xbf16>, vector<18x128xf32> -> vector<18x128xf32>
    %cst_42 = arith.constant 0.000000e+00 : f32
    %66 = vector.broadcast %cst_42 : f32 to vector<4x128xf32>
    %67 = vector.extract_strided_slice %65 {offsets = [0, 0], sizes = [14, 128], strides = [1, 1]} : vector<18x128xf32> to vector<14x128xf32>
    %68 = tpu.concatenate %66, %67 in 0 : vector<4x128xf32>, vector<14x128xf32> -> vector<18x128xf32>
    %69 = vector.broadcast %62 : vector<18x1xf32> to vector<18x128xf32>
    %70 = arith.mulf %69, %68 : vector<18x128xf32>
    %71 = vector.extract_strided_slice %61 {offsets = [0, 1], sizes = [18, 1], strides = [1, 1]} : vector<18x9xf32> to vector<18x1xf32>
    %c1 = arith.constant 1 : index
    %c0_43 = arith.constant 0 : index
    %c0_44 = arith.constant 0 : index
    %72 = vector.load %arg9[%c1, %c0_43, %c0_44] : memref<9x256x128xbf16, #tpu.memory_space<vmem>>, vector<1x256x128xbf16>
    %73 = vector.shape_cast %72 : vector<1x256x128xbf16> to vector<256x128xbf16>
    %cst_45 = arith.constant dense<0.000000e+00> : vector<18x128xf32>
    %74 = tpu.matmul %60, %73, %cst_45 {dimension_numbers = #tpu.dot_dimension_numbers<[1], [0], [0], [1], [0, 0, 1, 1], [], []>} : vector<18x256xbf16>, vector<256x128xbf16>, vector<18x128xf32> -> vector<18x128xf32>
    %cst_46 = arith.constant 0.000000e+00 : f32
    %75 = vector.broadcast %cst_46 : f32 to vector<3x128xf32>
    %76 = vector.extract_strided_slice %74 {offsets = [0, 0], sizes = [15, 128], strides = [1, 1]} : vector<18x128xf32> to vector<15x128xf32>
    %77 = tpu.concatenate %75, %76 in 0 : vector<3x128xf32>, vector<15x128xf32> -> vector<18x128xf32>
    %78 = vector.broadcast %71 : vector<18x1xf32> to vector<18x128xf32>
    %79 = arith.mulf %78, %77 : vector<18x128xf32>
    %80 = arith.addf %70, %79 : vector<18x128xf32>
    %81 = vector.extract_strided_slice %61 {offsets = [0, 2], sizes = [18, 1], strides = [1, 1]} : vector<18x9xf32> to vector<18x1xf32>
    %c2 = arith.constant 2 : index
    %c0_47 = arith.constant 0 : index
    %c0_48 = arith.constant 0 : index
    %82 = vector.load %arg9[%c2, %c0_47, %c0_48] : memref<9x256x128xbf16, #tpu.memory_space<vmem>>, vector<1x256x128xbf16>
    %83 = vector.shape_cast %82 : vector<1x256x128xbf16> to vector<256x128xbf16>
    %cst_49 = arith.constant dense<0.000000e+00> : vector<18x128xf32>
    %84 = tpu.matmul %60, %83, %cst_49 {dimension_numbers = #tpu.dot_dimension_numbers<[1], [0], [0], [1], [0, 0, 1, 1], [], []>} : vector<18x256xbf16>, vector<256x128xbf16>, vector<18x128xf32> -> vector<18x128xf32>
    %cst_50 = arith.constant 0.000000e+00 : f32
    %85 = vector.broadcast %cst_50 : f32 to vector<2x128xf32>
    %86 = vector.extract_strided_slice %84 {offsets = [0, 0], sizes = [16, 128], strides = [1, 1]} : vector<18x128xf32> to vector<16x128xf32>
    %87 = tpu.concatenate %85, %86 in 0 : vector<2x128xf32>, vector<16x128xf32> -> vector<18x128xf32>
    %88 = vector.broadcast %81 : vector<18x1xf32> to vector<18x128xf32>
    %89 = arith.mulf %88, %87 : vector<18x128xf32>
    %90 = arith.addf %80, %89 : vector<18x128xf32>
    %91 = vector.extract_strided_slice %61 {offsets = [0, 3], sizes = [18, 1], strides = [1, 1]} : vector<18x9xf32> to vector<18x1xf32>
    %c3 = arith.constant 3 : index
    %c0_51 = arith.constant 0 : index
    %c0_52 = arith.constant 0 : index
    %92 = vector.load %arg9[%c3, %c0_51, %c0_52] : memref<9x256x128xbf16, #tpu.memory_space<vmem>>, vector<1x256x128xbf16>
    %93 = vector.shape_cast %92 : vector<1x256x128xbf16> to vector<256x128xbf16>
    %cst_53 = arith.constant dense<0.000000e+00> : vector<18x128xf32>
    %94 = tpu.matmul %60, %93, %cst_53 {dimension_numbers = #tpu.dot_dimension_numbers<[1], [0], [0], [1], [0, 0, 1, 1], [], []>} : vector<18x256xbf16>, vector<256x128xbf16>, vector<18x128xf32> -> vector<18x128xf32>
    %cst_54 = arith.constant 0.000000e+00 : f32
    %95 = vector.broadcast %cst_54 : f32 to vector<1x128xf32>
    %96 = vector.extract_strided_slice %94 {offsets = [0, 0], sizes = [17, 128], strides = [1, 1]} : vector<18x128xf32> to vector<17x128xf32>
    %97 = tpu.concatenate %95, %96 in 0 : vector<1x128xf32>, vector<17x128xf32> -> vector<18x128xf32>
    %98 = vector.broadcast %91 : vector<18x1xf32> to vector<18x128xf32>
    %99 = arith.mulf %98, %97 : vector<18x128xf32>
    %100 = arith.addf %90, %99 : vector<18x128xf32>
    %101 = vector.extract_strided_slice %61 {offsets = [0, 4], sizes = [18, 1], strides = [1, 1]} : vector<18x9xf32> to vector<18x1xf32>
    %c4 = arith.constant 4 : index
    %c0_55 = arith.constant 0 : index
    %c0_56 = arith.constant 0 : index
    %102 = vector.load %arg9[%c4, %c0_55, %c0_56] : memref<9x256x128xbf16, #tpu.memory_space<vmem>>, vector<1x256x128xbf16>
    %103 = vector.shape_cast %102 : vector<1x256x128xbf16> to vector<256x128xbf16>
    %cst_57 = arith.constant dense<0.000000e+00> : vector<18x128xf32>
    %104 = tpu.matmul %60, %103, %cst_57 {dimension_numbers = #tpu.dot_dimension_numbers<[1], [0], [0], [1], [0, 0, 1, 1], [], []>} : vector<18x256xbf16>, vector<256x128xbf16>, vector<18x128xf32> -> vector<18x128xf32>
    %105 = vector.broadcast %101 : vector<18x1xf32> to vector<18x128xf32>
    %106 = arith.mulf %105, %104 : vector<18x128xf32>
    %107 = arith.addf %100, %106 : vector<18x128xf32>
    %108 = vector.extract_strided_slice %61 {offsets = [0, 5], sizes = [18, 1], strides = [1, 1]} : vector<18x9xf32> to vector<18x1xf32>
    %c5 = arith.constant 5 : index
    %c0_58 = arith.constant 0 : index
    %c0_59 = arith.constant 0 : index
    %109 = vector.load %arg9[%c5, %c0_58, %c0_59] : memref<9x256x128xbf16, #tpu.memory_space<vmem>>, vector<1x256x128xbf16>
    %110 = vector.shape_cast %109 : vector<1x256x128xbf16> to vector<256x128xbf16>
    %cst_60 = arith.constant dense<0.000000e+00> : vector<18x128xf32>
    %111 = tpu.matmul %60, %110, %cst_60 {dimension_numbers = #tpu.dot_dimension_numbers<[1], [0], [0], [1], [0, 0, 1, 1], [], []>} : vector<18x256xbf16>, vector<256x128xbf16>, vector<18x128xf32> -> vector<18x128xf32>
    %cst_61 = arith.constant 0.000000e+00 : f32
    %112 = vector.broadcast %cst_61 : f32 to vector<1x128xf32>
    %113 = vector.extract_strided_slice %111 {offsets = [1, 0], sizes = [17, 128], strides = [1, 1]} : vector<18x128xf32> to vector<17x128xf32>
    %114 = tpu.concatenate %113, %112 in 0 : vector<17x128xf32>, vector<1x128xf32> -> vector<18x128xf32>
    %115 = vector.broadcast %108 : vector<18x1xf32> to vector<18x128xf32>
    %116 = arith.mulf %115, %114 : vector<18x128xf32>
    %117 = arith.addf %107, %116 : vector<18x128xf32>
    %118 = vector.extract_strided_slice %61 {offsets = [0, 6], sizes = [18, 1], strides = [1, 1]} : vector<18x9xf32> to vector<18x1xf32>
    %c6 = arith.constant 6 : index
    %c0_62 = arith.constant 0 : index
    %c0_63 = arith.constant 0 : index
    %119 = vector.load %arg9[%c6, %c0_62, %c0_63] : memref<9x256x128xbf16, #tpu.memory_space<vmem>>, vector<1x256x128xbf16>
    %120 = vector.shape_cast %119 : vector<1x256x128xbf16> to vector<256x128xbf16>
    %cst_64 = arith.constant dense<0.000000e+00> : vector<18x128xf32>
    %121 = tpu.matmul %60, %120, %cst_64 {dimension_numbers = #tpu.dot_dimension_numbers<[1], [0], [0], [1], [0, 0, 1, 1], [], []>} : vector<18x256xbf16>, vector<256x128xbf16>, vector<18x128xf32> -> vector<18x128xf32>
    %cst_65 = arith.constant 0.000000e+00 : f32
    %122 = vector.broadcast %cst_65 : f32 to vector<2x128xf32>
    %123 = vector.extract_strided_slice %121 {offsets = [2, 0], sizes = [16, 128], strides = [1, 1]} : vector<18x128xf32> to vector<16x128xf32>
    %124 = tpu.concatenate %123, %122 in 0 : vector<16x128xf32>, vector<2x128xf32> -> vector<18x128xf32>
    %125 = vector.broadcast %118 : vector<18x1xf32> to vector<18x128xf32>
    %126 = arith.mulf %125, %124 : vector<18x128xf32>
    %127 = arith.addf %117, %126 : vector<18x128xf32>
    %128 = vector.extract_strided_slice %61 {offsets = [0, 7], sizes = [18, 1], strides = [1, 1]} : vector<18x9xf32> to vector<18x1xf32>
    %c7 = arith.constant 7 : index
    %c0_66 = arith.constant 0 : index
    %c0_67 = arith.constant 0 : index
    %129 = vector.load %arg9[%c7, %c0_66, %c0_67] : memref<9x256x128xbf16, #tpu.memory_space<vmem>>, vector<1x256x128xbf16>
    %130 = vector.shape_cast %129 : vector<1x256x128xbf16> to vector<256x128xbf16>
    %cst_68 = arith.constant dense<0.000000e+00> : vector<18x128xf32>
    %131 = tpu.matmul %60, %130, %cst_68 {dimension_numbers = #tpu.dot_dimension_numbers<[1], [0], [0], [1], [0, 0, 1, 1], [], []>} : vector<18x256xbf16>, vector<256x128xbf16>, vector<18x128xf32> -> vector<18x128xf32>
    %cst_69 = arith.constant 0.000000e+00 : f32
    %132 = vector.broadcast %cst_69 : f32 to vector<3x128xf32>
    %133 = vector.extract_strided_slice %131 {offsets = [3, 0], sizes = [15, 128], strides = [1, 1]} : vector<18x128xf32> to vector<15x128xf32>
    %134 = tpu.concatenate %133, %132 in 0 : vector<15x128xf32>, vector<3x128xf32> -> vector<18x128xf32>
    %135 = vector.broadcast %128 : vector<18x1xf32> to vector<18x128xf32>
    %136 = arith.mulf %135, %134 : vector<18x128xf32>
    %137 = arith.addf %127, %136 : vector<18x128xf32>
    %138 = vector.extract_strided_slice %61 {offsets = [0, 8], sizes = [18, 1], strides = [1, 1]} : vector<18x9xf32> to vector<18x1xf32>
    %c8 = arith.constant 8 : index
    %c0_70 = arith.constant 0 : index
    %c0_71 = arith.constant 0 : index
    %139 = vector.load %arg9[%c8, %c0_70, %c0_71] : memref<9x256x128xbf16, #tpu.memory_space<vmem>>, vector<1x256x128xbf16>
    %140 = vector.shape_cast %139 : vector<1x256x128xbf16> to vector<256x128xbf16>
    %cst_72 = arith.constant dense<0.000000e+00> : vector<18x128xf32>
    %141 = tpu.matmul %60, %140, %cst_72 {dimension_numbers = #tpu.dot_dimension_numbers<[1], [0], [0], [1], [0, 0, 1, 1], [], []>} : vector<18x256xbf16>, vector<256x128xbf16>, vector<18x128xf32> -> vector<18x128xf32>
    %cst_73 = arith.constant 0.000000e+00 : f32
    %142 = vector.broadcast %cst_73 : f32 to vector<4x128xf32>
    %143 = vector.extract_strided_slice %141 {offsets = [4, 0], sizes = [14, 128], strides = [1, 1]} : vector<18x128xf32> to vector<14x128xf32>
    %144 = tpu.concatenate %143, %142 in 0 : vector<14x128xf32>, vector<4x128xf32> -> vector<18x128xf32>
    %145 = vector.broadcast %138 : vector<18x1xf32> to vector<18x128xf32>
    %146 = arith.mulf %145, %144 : vector<18x128xf32>
    %147 = arith.addf %137, %146 : vector<18x128xf32>
    %cst_74 = arith.constant dense<0.000000e+00> : vector<72x128xf32>
    %148 = tpu.matmul %59, %147, %cst_74 {dimension_numbers = #tpu.dot_dimension_numbers<[1], [0], [0], [1], [0, 0, 1, 1], [], []>} : vector<72x18xf32>, vector<18x128xf32>, vector<72x128xf32> -> vector<72x128xf32>
    %c0_75 = arith.constant 0 : index
    %c0_76 = arith.constant 0 : index
    %149 = vector.load %arg12[%c0_75, %c0_76] : memref<2x128xf32, #tpu.memory_space<vmem>>, vector<2x128xf32>
    %150 = vector.extract_strided_slice %149 {offsets = [0, 0], sizes = [1, 128], strides = [1, 1]} : vector<2x128xf32> to vector<1x128xf32>
    %151 = vector.extract_strided_slice %149 {offsets = [1, 0], sizes = [1, 128], strides = [1, 1]} : vector<2x128xf32> to vector<1x128xf32>
    %cst_77 = arith.constant dense<0.000000e+00> : vector<128xf32>
    %152 = vector.multi_reduction <add>, %148, %cst_77 [0] : vector<72x128xf32> to vector<128xf32>
    %153 = vector.shape_cast %152 : vector<128xf32> to vector<1x128xf32>
    %cst_78 = arith.constant 7.200000e+01 : f32
    %154 = vector.broadcast %cst_78 : f32 to vector<1x128xf32>
    %155 = arith.divf %153, %154 : vector<1x128xf32>
    %156 = arith.mulf %148, %148 : vector<72x128xf32>
    %cst_79 = arith.constant dense<0.000000e+00> : vector<128xf32>
    %157 = vector.multi_reduction <add>, %156, %cst_79 [0] : vector<72x128xf32> to vector<128xf32>
    %158 = vector.shape_cast %157 : vector<128xf32> to vector<1x128xf32>
    %cst_80 = arith.constant 7.200000e+01 : f32
    %159 = vector.broadcast %cst_80 : f32 to vector<1x128xf32>
    %160 = arith.divf %158, %159 : vector<1x128xf32>
    %161 = arith.mulf %155, %155 : vector<1x128xf32>
    %162 = arith.subf %160, %161 : vector<1x128xf32>
    %cst_81 = arith.constant 0.000000e+00 : f32
    %163 = vector.broadcast %cst_81 : f32 to vector<1x128xf32>
    %164 = arith.maximumf %162, %163 : vector<1x128xf32>
    %cst_82 = arith.constant 9.99999974E-6 : f32
    %165 = vector.broadcast %cst_82 : f32 to vector<1x128xf32>
    %166 = arith.addf %164, %165 : vector<1x128xf32>
    %167 = math.rsqrt %166 : vector<1x128xf32>
    %168 = arith.mulf %150, %167 : vector<1x128xf32>
    %169 = vector.broadcast %168 : vector<1x128xf32> to vector<72x128xf32>
    %170 = arith.mulf %148, %169 : vector<72x128xf32>
    %171 = arith.mulf %155, %168 : vector<1x128xf32>
    %172 = arith.subf %151, %171 : vector<1x128xf32>
    %173 = vector.broadcast %172 : vector<1x128xf32> to vector<72x128xf32>
    %174 = arith.addf %170, %173 : vector<72x128xf32>
    %cst_83 = arith.constant 0.000000e+00 : f32
    %175 = vector.broadcast %cst_83 : f32 to vector<72x128xf32>
    %176 = arith.cmpf oge, %174, %175 : vector<72x128xf32>
    %cst_84 = arith.constant 0.00999999977 : f32
    %177 = vector.broadcast %cst_84 : f32 to vector<72x128xf32>
    %178 = arith.mulf %177, %174 : vector<72x128xf32>
    %179 = arith.select %176, %174, %178 : vector<72x128xi1>, vector<72x128xf32>
    %c0_85 = arith.constant 0 : index
    %c0_86 = arith.constant 0 : index
    %180 = vector.load %arg15[%c0_85, %c0_86] : memref<242x72xf32, #tpu.memory_space<vmem>>, vector<242x72xf32>
    %181 = arith.truncf %179 : vector<72x128xf32> to vector<72x128xbf16>
    %c0_87 = arith.constant 0 : index
    %c0_88 = arith.constant 0 : index
    %182 = vector.load %arg14[%c0_87, %c0_88] : memref<72x9xf32, #tpu.memory_space<vmem>>, vector<72x9xf32>
    %183 = vector.extract_strided_slice %182 {offsets = [0, 0], sizes = [72, 1], strides = [1, 1]} : vector<72x9xf32> to vector<72x1xf32>
    %c0_89 = arith.constant 0 : index
    %c0_90 = arith.constant 0 : index
    %c0_91 = arith.constant 0 : index
    %184 = vector.load %arg13[%c0_89, %c0_90, %c0_91] : memref<9x128x64xbf16, #tpu.memory_space<vmem>>, vector<1x128x64xbf16>
    %185 = vector.shape_cast %184 : vector<1x128x64xbf16> to vector<128x64xbf16>
    %cst_92 = arith.constant dense<0.000000e+00> : vector<72x64xf32>
    %186 = tpu.matmul %181, %185, %cst_92 {dimension_numbers = #tpu.dot_dimension_numbers<[1], [0], [0], [1], [0, 0, 1, 1], [], []>} : vector<72x128xbf16>, vector<128x64xbf16>, vector<72x64xf32> -> vector<72x64xf32>
    %cst_93 = arith.constant 0.000000e+00 : f32
    %187 = vector.broadcast %cst_93 : f32 to vector<7x64xf32>
    %188 = vector.extract_strided_slice %186 {offsets = [0, 0], sizes = [65, 64], strides = [1, 1]} : vector<72x64xf32> to vector<65x64xf32>
    %189 = tpu.concatenate %187, %188 in 0 : vector<7x64xf32>, vector<65x64xf32> -> vector<72x64xf32>
    %190 = vector.broadcast %183 : vector<72x1xf32> to vector<72x64xf32>
    %191 = arith.mulf %190, %189 : vector<72x64xf32>
    %192 = vector.extract_strided_slice %182 {offsets = [0, 1], sizes = [72, 1], strides = [1, 1]} : vector<72x9xf32> to vector<72x1xf32>
    %c1_94 = arith.constant 1 : index
    %c0_95 = arith.constant 0 : index
    %c0_96 = arith.constant 0 : index
    %193 = vector.load %arg13[%c1_94, %c0_95, %c0_96] : memref<9x128x64xbf16, #tpu.memory_space<vmem>>, vector<1x128x64xbf16>
    %194 = vector.shape_cast %193 : vector<1x128x64xbf16> to vector<128x64xbf16>
    %cst_97 = arith.constant dense<0.000000e+00> : vector<72x64xf32>
    %195 = tpu.matmul %181, %194, %cst_97 {dimension_numbers = #tpu.dot_dimension_numbers<[1], [0], [0], [1], [0, 0, 1, 1], [], []>} : vector<72x128xbf16>, vector<128x64xbf16>, vector<72x64xf32> -> vector<72x64xf32>
    %cst_98 = arith.constant 0.000000e+00 : f32
    %196 = vector.broadcast %cst_98 : f32 to vector<6x64xf32>
    %197 = vector.extract_strided_slice %195 {offsets = [0, 0], sizes = [66, 64], strides = [1, 1]} : vector<72x64xf32> to vector<66x64xf32>
    %198 = tpu.concatenate %196, %197 in 0 : vector<6x64xf32>, vector<66x64xf32> -> vector<72x64xf32>
    %199 = vector.broadcast %192 : vector<72x1xf32> to vector<72x64xf32>
    %200 = arith.mulf %199, %198 : vector<72x64xf32>
    %201 = arith.addf %191, %200 : vector<72x64xf32>
    %202 = vector.extract_strided_slice %182 {offsets = [0, 2], sizes = [72, 1], strides = [1, 1]} : vector<72x9xf32> to vector<72x1xf32>
    %c2_99 = arith.constant 2 : index
    %c0_100 = arith.constant 0 : index
    %c0_101 = arith.constant 0 : index
    %203 = vector.load %arg13[%c2_99, %c0_100, %c0_101] : memref<9x128x64xbf16, #tpu.memory_space<vmem>>, vector<1x128x64xbf16>
    %204 = vector.shape_cast %203 : vector<1x128x64xbf16> to vector<128x64xbf16>
    %cst_102 = arith.constant dense<0.000000e+00> : vector<72x64xf32>
    %205 = tpu.matmul %181, %204, %cst_102 {dimension_numbers = #tpu.dot_dimension_numbers<[1], [0], [0], [1], [0, 0, 1, 1], [], []>} : vector<72x128xbf16>, vector<128x64xbf16>, vector<72x64xf32> -> vector<72x64xf32>
    %cst_103 = arith.constant 0.000000e+00 : f32
    %206 = vector.broadcast %cst_103 : f32 to vector<5x64xf32>
    %207 = vector.extract_strided_slice %205 {offsets = [0, 0], sizes = [67, 64], strides = [1, 1]} : vector<72x64xf32> to vector<67x64xf32>
    %208 = tpu.concatenate %206, %207 in 0 : vector<5x64xf32>, vector<67x64xf32> -> vector<72x64xf32>
    %209 = vector.broadcast %202 : vector<72x1xf32> to vector<72x64xf32>
    %210 = arith.mulf %209, %208 : vector<72x64xf32>
    %211 = arith.addf %201, %210 : vector<72x64xf32>
    %212 = vector.extract_strided_slice %182 {offsets = [0, 3], sizes = [72, 1], strides = [1, 1]} : vector<72x9xf32> to vector<72x1xf32>
    %c3_104 = arith.constant 3 : index
    %c0_105 = arith.constant 0 : index
    %c0_106 = arith.constant 0 : index
    %213 = vector.load %arg13[%c3_104, %c0_105, %c0_106] : memref<9x128x64xbf16, #tpu.memory_space<vmem>>, vector<1x128x64xbf16>
    %214 = vector.shape_cast %213 : vector<1x128x64xbf16> to vector<128x64xbf16>
    %cst_107 = arith.constant dense<0.000000e+00> : vector<72x64xf32>
    %215 = tpu.matmul %181, %214, %cst_107 {dimension_numbers = #tpu.dot_dimension_numbers<[1], [0], [0], [1], [0, 0, 1, 1], [], []>} : vector<72x128xbf16>, vector<128x64xbf16>, vector<72x64xf32> -> vector<72x64xf32>
    %cst_108 = arith.constant 0.000000e+00 : f32
    %216 = vector.broadcast %cst_108 : f32 to vector<1x64xf32>
    %217 = vector.extract_strided_slice %215 {offsets = [0, 0], sizes = [71, 64], strides = [1, 1]} : vector<72x64xf32> to vector<71x64xf32>
    %218 = tpu.concatenate %216, %217 in 0 : vector<1x64xf32>, vector<71x64xf32> -> vector<72x64xf32>
    %219 = vector.broadcast %212 : vector<72x1xf32> to vector<72x64xf32>
    %220 = arith.mulf %219, %218 : vector<72x64xf32>
    %221 = arith.addf %211, %220 : vector<72x64xf32>
    %222 = vector.extract_strided_slice %182 {offsets = [0, 4], sizes = [72, 1], strides = [1, 1]} : vector<72x9xf32> to vector<72x1xf32>
    %c4_109 = arith.constant 4 : index
    %c0_110 = arith.constant 0 : index
    %c0_111 = arith.constant 0 : index
    %223 = vector.load %arg13[%c4_109, %c0_110, %c0_111] : memref<9x128x64xbf16, #tpu.memory_space<vmem>>, vector<1x128x64xbf16>
    %224 = vector.shape_cast %223 : vector<1x128x64xbf16> to vector<128x64xbf16>
    %cst_112 = arith.constant dense<0.000000e+00> : vector<72x64xf32>
    %225 = tpu.matmul %181, %224, %cst_112 {dimension_numbers = #tpu.dot_dimension_numbers<[1], [0], [0], [1], [0, 0, 1, 1], [], []>} : vector<72x128xbf16>, vector<128x64xbf16>, vector<72x64xf32> -> vector<72x64xf32>
    %226 = vector.broadcast %222 : vector<72x1xf32> to vector<72x64xf32>
    %227 = arith.mulf %226, %225 : vector<72x64xf32>
    %228 = arith.addf %221, %227 : vector<72x64xf32>
    %229 = vector.extract_strided_slice %182 {offsets = [0, 5], sizes = [72, 1], strides = [1, 1]} : vector<72x9xf32> to vector<72x1xf32>
    %c5_113 = arith.constant 5 : index
    %c0_114 = arith.constant 0 : index
    %c0_115 = arith.constant 0 : index
    %230 = vector.load %arg13[%c5_113, %c0_114, %c0_115] : memref<9x128x64xbf16, #tpu.memory_space<vmem>>, vector<1x128x64xbf16>
    %231 = vector.shape_cast %230 : vector<1x128x64xbf16> to vector<128x64xbf16>
    %cst_116 = arith.constant dense<0.000000e+00> : vector<72x64xf32>
    %232 = tpu.matmul %181, %231, %cst_116 {dimension_numbers = #tpu.dot_dimension_numbers<[1], [0], [0], [1], [0, 0, 1, 1], [], []>} : vector<72x128xbf16>, vector<128x64xbf16>, vector<72x64xf32> -> vector<72x64xf32>
    %cst_117 = arith.constant 0.000000e+00 : f32
    %233 = vector.broadcast %cst_117 : f32 to vector<1x64xf32>
    %234 = vector.extract_strided_slice %232 {offsets = [1, 0], sizes = [71, 64], strides = [1, 1]} : vector<72x64xf32> to vector<71x64xf32>
    %235 = tpu.concatenate %234, %233 in 0 : vector<71x64xf32>, vector<1x64xf32> -> vector<72x64xf32>
    %236 = vector.broadcast %229 : vector<72x1xf32> to vector<72x64xf32>
    %237 = arith.mulf %236, %235 : vector<72x64xf32>
    %238 = arith.addf %228, %237 : vector<72x64xf32>
    %239 = vector.extract_strided_slice %182 {offsets = [0, 6], sizes = [72, 1], strides = [1, 1]} : vector<72x9xf32> to vector<72x1xf32>
    %c6_118 = arith.constant 6 : index
    %c0_119 = arith.constant 0 : index
    %c0_120 = arith.constant 0 : index
    %240 = vector.load %arg13[%c6_118, %c0_119, %c0_120] : memref<9x128x64xbf16, #tpu.memory_space<vmem>>, vector<1x128x64xbf16>
    %241 = vector.shape_cast %240 : vector<1x128x64xbf16> to vector<128x64xbf16>
    %cst_121 = arith.constant dense<0.000000e+00> : vector<72x64xf32>
    %242 = tpu.matmul %181, %241, %cst_121 {dimension_numbers = #tpu.dot_dimension_numbers<[1], [0], [0], [1], [0, 0, 1, 1], [], []>} : vector<72x128xbf16>, vector<128x64xbf16>, vector<72x64xf32> -> vector<72x64xf32>
    %cst_122 = arith.constant 0.000000e+00 : f32
    %243 = vector.broadcast %cst_122 : f32 to vector<5x64xf32>
    %244 = vector.extract_strided_slice %242 {offsets = [5, 0], sizes = [67, 64], strides = [1, 1]} : vector<72x64xf32> to vector<67x64xf32>
    %245 = tpu.concatenate %244, %243 in 0 : vector<67x64xf32>, vector<5x64xf32> -> vector<72x64xf32>
    %246 = vector.broadcast %239 : vector<72x1xf32> to vector<72x64xf32>
    %247 = arith.mulf %246, %245 : vector<72x64xf32>
    %248 = arith.addf %238, %247 : vector<72x64xf32>
    %249 = vector.extract_strided_slice %182 {offsets = [0, 7], sizes = [72, 1], strides = [1, 1]} : vector<72x9xf32> to vector<72x1xf32>
    %c7_123 = arith.constant 7 : index
    %c0_124 = arith.constant 0 : index
    %c0_125 = arith.constant 0 : index
    %250 = vector.load %arg13[%c7_123, %c0_124, %c0_125] : memref<9x128x64xbf16, #tpu.memory_space<vmem>>, vector<1x128x64xbf16>
    %251 = vector.shape_cast %250 : vector<1x128x64xbf16> to vector<128x64xbf16>
    %cst_126 = arith.constant dense<0.000000e+00> : vector<72x64xf32>
    %252 = tpu.matmul %181, %251, %cst_126 {dimension_numbers = #tpu.dot_dimension_numbers<[1], [0], [0], [1], [0, 0, 1, 1], [], []>} : vector<72x128xbf16>, vector<128x64xbf16>, vector<72x64xf32> -> vector<72x64xf32>
    %cst_127 = arith.constant 0.000000e+00 : f32
    %253 = vector.broadcast %cst_127 : f32 to vector<6x64xf32>
    %254 = vector.extract_strided_slice %252 {offsets = [6, 0], sizes = [66, 64], strides = [1, 1]} : vector<72x64xf32> to vector<66x64xf32>
    %255 = tpu.concatenate %254, %253 in 0 : vector<66x64xf32>, vector<6x64xf32> -> vector<72x64xf32>
    %256 = vector.broadcast %249 : vector<72x1xf32> to vector<72x64xf32>
    %257 = arith.mulf %256, %255 : vector<72x64xf32>
    %258 = arith.addf %248, %257 : vector<72x64xf32>
    %259 = vector.extract_strided_slice %182 {offsets = [0, 8], sizes = [72, 1], strides = [1, 1]} : vector<72x9xf32> to vector<72x1xf32>
    %c8_128 = arith.constant 8 : index
    %c0_129 = arith.constant 0 : index
    %c0_130 = arith.constant 0 : index
    %260 = vector.load %arg13[%c8_128, %c0_129, %c0_130] : memref<9x128x64xbf16, #tpu.memory_space<vmem>>, vector<1x128x64xbf16>
    %261 = vector.shape_cast %260 : vector<1x128x64xbf16> to vector<128x64xbf16>
    %cst_131 = arith.constant dense<0.000000e+00> : vector<72x64xf32>
    %262 = tpu.matmul %181, %261, %cst_131 {dimension_numbers = #tpu.dot_dimension_numbers<[1], [0], [0], [1], [0, 0, 1, 1], [], []>} : vector<72x128xbf16>, vector<128x64xbf16>, vector<72x64xf32> -> vector<72x64xf32>
    %cst_132 = arith.constant 0.000000e+00 : f32
    %263 = vector.broadcast %cst_132 : f32 to vector<7x64xf32>
    %264 = vector.extract_strided_slice %262 {offsets = [7, 0], sizes = [65, 64], strides = [1, 1]} : vector<72x64xf32> to vector<65x64xf32>
    %265 = tpu.concatenate %264, %263 in 0 : vector<65x64xf32>, vector<7x64xf32> -> vector<72x64xf32>
    %266 = vector.broadcast %259 : vector<72x1xf32> to vector<72x64xf32>
    %267 = arith.mulf %266, %265 : vector<72x64xf32>
    %268 = arith.addf %258, %267 : vector<72x64xf32>
    %cst_133 = arith.constant dense<0.000000e+00> : vector<242x64xf32>
    %269 = tpu.matmul %180, %268, %cst_133 {dimension_numbers = #tpu.dot_dimension_numbers<[1], [0], [0], [1], [0, 0, 1, 1], [], []>} : vector<242x72xf32>, vector<72x64xf32>, vector<242x64xf32> -> vector<242x64xf32>
    %c0_134 = arith.constant 0 : index
    %c0_135 = arith.constant 0 : index
    %270 = vector.load %arg16[%c0_134, %c0_135] : memref<2x64xf32, #tpu.memory_space<vmem>>, vector<2x64xf32>
    %271 = vector.extract_strided_slice %270 {offsets = [0, 0], sizes = [1, 64], strides = [1, 1]} : vector<2x64xf32> to vector<1x64xf32>
    %272 = vector.extract_strided_slice %270 {offsets = [1, 0], sizes = [1, 64], strides = [1, 1]} : vector<2x64xf32> to vector<1x64xf32>
    %cst_136 = arith.constant dense<0.000000e+00> : vector<64xf32>
    %273 = vector.multi_reduction <add>, %269, %cst_136 [0] : vector<242x64xf32> to vector<64xf32>
    %274 = vector.shape_cast %273 : vector<64xf32> to vector<1x64xf32>
    %cst_137 = arith.constant 2.420000e+02 : f32
    %275 = vector.broadcast %cst_137 : f32 to vector<1x64xf32>
    %276 = arith.divf %274, %275 : vector<1x64xf32>
    %277 = arith.mulf %269, %269 : vector<242x64xf32>
    %cst_138 = arith.constant dense<0.000000e+00> : vector<64xf32>
    %278 = vector.multi_reduction <add>, %277, %cst_138 [0] : vector<242x64xf32> to vector<64xf32>
    %279 = vector.shape_cast %278 : vector<64xf32> to vector<1x64xf32>
    %cst_139 = arith.constant 2.420000e+02 : f32
    %280 = vector.broadcast %cst_139 : f32 to vector<1x64xf32>
    %281 = arith.divf %279, %280 : vector<1x64xf32>
    %282 = arith.mulf %276, %276 : vector<1x64xf32>
    %283 = arith.subf %281, %282 : vector<1x64xf32>
    %cst_140 = arith.constant 0.000000e+00 : f32
    %284 = vector.broadcast %cst_140 : f32 to vector<1x64xf32>
    %285 = arith.maximumf %283, %284 : vector<1x64xf32>
    %cst_141 = arith.constant 9.99999974E-6 : f32
    %286 = vector.broadcast %cst_141 : f32 to vector<1x64xf32>
    %287 = arith.addf %285, %286 : vector<1x64xf32>
    %288 = math.rsqrt %287 : vector<1x64xf32>
    %289 = arith.mulf %271, %288 : vector<1x64xf32>
    %290 = vector.broadcast %289 : vector<1x64xf32> to vector<242x64xf32>
    %291 = arith.mulf %269, %290 : vector<242x64xf32>
    %292 = arith.mulf %276, %289 : vector<1x64xf32>
    %293 = arith.subf %272, %292 : vector<1x64xf32>
    %294 = vector.broadcast %293 : vector<1x64xf32> to vector<242x64xf32>
    %295 = arith.addf %291, %294 : vector<242x64xf32>
    %cst_142 = arith.constant 0.000000e+00 : f32
    %296 = vector.broadcast %cst_142 : f32 to vector<242x64xf32>
    %297 = arith.cmpf oge, %295, %296 : vector<242x64xf32>
    %cst_143 = arith.constant 0.00999999977 : f32
    %298 = vector.broadcast %cst_143 : f32 to vector<242x64xf32>
    %299 = arith.mulf %298, %295 : vector<242x64xf32>
    %300 = arith.select %297, %295, %299 : vector<242x64xi1>, vector<242x64xf32>
    %c0_144 = arith.constant 0 : index
    %c0_145 = arith.constant 0 : index
    %301 = vector.load %arg18[%c0_144, %c0_145] : memref<1x4xf32, #tpu.memory_space<vmem>>, vector<1x4xf32>
    %302 = arith.truncf %300 : vector<242x64xf32> to vector<242x64xbf16>
    %c0_146 = arith.constant 0 : index
    %c0_147 = arith.constant 0 : index
    %303 = vector.load %arg19[%c0_146, %c0_147] : memref<242x9xf32, #tpu.memory_space<vmem>>, vector<242x9xf32>
    %304 = vector.shape_cast %301 : vector<1x4xf32> to vector<1x4xf32>
    %305 = vector.broadcast %304 : vector<1x4xf32> to vector<242x4xf32>
    %c0_148 = arith.constant 0 : index
    %c0_149 = arith.constant 0 : index
    %306 = vector.load %arg27[%c0_148, %c0_149] : memref<242x4xf32, #tpu.memory_space<vmem>>, vector<242x4xf32>
    tpu.vector_store %arg27[%c0_148, %c0_149], %305 {strides = array<i32>} : memref<242x4xf32, #tpu.memory_space<vmem>>, vector<242x4xf32>,
    %307 = vector.extract_strided_slice %303 {offsets = [0, 0], sizes = [242, 1], strides = [1, 1]} : vector<242x9xf32> to vector<242x1xf32>
    %c0_150 = arith.constant 0 : index
    %c0_151 = arith.constant 0 : index
    %c0_152 = arith.constant 0 : index
    %308 = vector.load %arg17[%c0_150, %c0_151, %c0_152] : memref<9x64x4xbf16, #tpu.memory_space<vmem>>, vector<1x64x4xbf16>
    %309 = vector.shape_cast %308 : vector<1x64x4xbf16> to vector<64x4xbf16>
    %cst_153 = arith.constant dense<0.000000e+00> : vector<242x4xf32>
    %310 = tpu.matmul %302, %309, %cst_153 {dimension_numbers = #tpu.dot_dimension_numbers<[1], [0], [0], [1], [0, 0, 1, 1], [], []>} : vector<242x64xbf16>, vector<64x4xbf16>, vector<242x4xf32> -> vector<242x4xf32>
    %cst_154 = arith.constant 0.000000e+00 : f32
    %311 = vector.broadcast %cst_154 : f32 to vector<12x4xf32>
    %312 = vector.extract_strided_slice %310 {offsets = [0, 0], sizes = [230, 4], strides = [1, 1]} : vector<242x4xf32> to vector<230x4xf32>
    %313 = tpu.concatenate %311, %312 in 0 : vector<12x4xf32>, vector<230x4xf32> -> vector<242x4xf32>
    %314 = vector.broadcast %307 : vector<242x1xf32> to vector<242x4xf32>
    %315 = arith.mulf %314, %313 : vector<242x4xf32>
    %c0_155 = arith.constant 0 : index
    %c0_156 = arith.constant 0 : index
    %316 = vector.load %arg27[%c0_155, %c0_156] : memref<242x4xf32, #tpu.memory_space<vmem>>, vector<242x4xf32>
    %317 = arith.addf %316, %315 : vector<242x4xf32>
    %c0_157 = arith.constant 0 : index
    %c0_158 = arith.constant 0 : index
    %318 = vector.load %arg27[%c0_157, %c0_158] : memref<242x4xf32, #tpu.memory_space<vmem>>, vector<242x4xf32>
    tpu.vector_store %arg27[%c0_157, %c0_158], %317 {strides = array<i32>} : memref<242x4xf32, #tpu.memory_space<vmem>>, vector<242x4xf32>,
    %319 = vector.extract_strided_slice %303 {offsets = [0, 1], sizes = [242, 1], strides = [1, 1]} : vector<242x9xf32> to vector<242x1xf32>
    %c1_159 = arith.constant 1 : index
    %c0_160 = arith.constant 0 : index
    %c0_161 = arith.constant 0 : index
    %320 = vector.load %arg17[%c1_159, %c0_160, %c0_161] : memref<9x64x4xbf16, #tpu.memory_space<vmem>>, vector<1x64x4xbf16>
    %321 = vector.shape_cast %320 : vector<1x64x4xbf16> to vector<64x4xbf16>
    %cst_162 = arith.constant dense<0.000000e+00> : vector<242x4xf32>
    %322 = tpu.matmul %302, %321, %cst_162 {dimension_numbers = #tpu.dot_dimension_numbers<[1], [0], [0], [1], [0, 0, 1, 1], [], []>} : vector<242x64xbf16>, vector<64x4xbf16>, vector<242x4xf32> -> vector<242x4xf32>
    %cst_163 = arith.constant 0.000000e+00 : f32
    %323 = vector.broadcast %cst_163 : f32 to vector<11x4xf32>
    %324 = vector.extract_strided_slice %322 {offsets = [0, 0], sizes = [231, 4], strides = [1, 1]} : vector<242x4xf32> to vector<231x4xf32>
    %325 = tpu.concatenate %323, %324 in 0 : vector<11x4xf32>, vector<231x4xf32> -> vector<242x4xf32>
    %326 = vector.broadcast %319 : vector<242x1xf32> to vector<242x4xf32>
    %327 = arith.mulf %326, %325 : vector<242x4xf32>
    %c0_164 = arith.constant 0 : index
    %c0_165 = arith.constant 0 : index
    %328 = vector.load %arg27[%c0_164, %c0_165] : memref<242x4xf32, #tpu.memory_space<vmem>>, vector<242x4xf32>
    %329 = arith.addf %328, %327 : vector<242x4xf32>
    %c0_166 = arith.constant 0 : index
    %c0_167 = arith.constant 0 : index
    %330 = vector.load %arg27[%c0_166, %c0_167] : memref<242x4xf32, #tpu.memory_space<vmem>>, vector<242x4xf32>
    tpu.vector_store %arg27[%c0_166, %c0_167], %329 {strides = array<i32>} : memref<242x4xf32, #tpu.memory_space<vmem>>, vector<242x4xf32>,
    %331 = vector.extract_strided_slice %303 {offsets = [0, 2], sizes = [242, 1], strides = [1, 1]} : vector<242x9xf32> to vector<242x1xf32>
    %c2_168 = arith.constant 2 : index
    %c0_169 = arith.constant 0 : index
    %c0_170 = arith.constant 0 : index
    %332 = vector.load %arg17[%c2_168, %c0_169, %c0_170] : memref<9x64x4xbf16, #tpu.memory_space<vmem>>, vector<1x64x4xbf16>
    %333 = vector.shape_cast %332 : vector<1x64x4xbf16> to vector<64x4xbf16>
    %cst_171 = arith.constant dense<0.000000e+00> : vector<242x4xf32>
    %334 = tpu.matmul %302, %333, %cst_171 {dimension_numbers = #tpu.dot_dimension_numbers<[1], [0], [0], [1], [0, 0, 1, 1], [], []>} : vector<242x64xbf16>, vector<64x4xbf16>, vector<242x4xf32> -> vector<242x4xf32>
    %cst_172 = arith.constant 0.000000e+00 : f32
    %335 = vector.broadcast %cst_172 : f32 to vector<10x4xf32>
    %336 = vector.extract_strided_slice %334 {offsets = [0, 0], sizes = [232, 4], strides = [1, 1]} : vector<242x4xf32> to vector<232x4xf32>
    %337 = tpu.concatenate %335, %336 in 0 : vector<10x4xf32>, vector<232x4xf32> -> vector<242x4xf32>
    %338 = vector.broadcast %331 : vector<242x1xf32> to vector<242x4xf32>
    %339 = arith.mulf %338, %337 : vector<242x4xf32>
    %c0_173 = arith.constant 0 : index
    %c0_174 = arith.constant 0 : index
    %340 = vector.load %arg27[%c0_173, %c0_174] : memref<242x4xf32, #tpu.memory_space<vmem>>, vector<242x4xf32>
    %341 = arith.addf %340, %339 : vector<242x4xf32>
    %c0_175 = arith.constant 0 : index
    %c0_176 = arith.constant 0 : index
    %342 = vector.load %arg27[%c0_175, %c0_176] : memref<242x4xf32, #tpu.memory_space<vmem>>, vector<242x4xf32>
    tpu.vector_store %arg27[%c0_175, %c0_176], %341 {strides = array<i32>} : memref<242x4xf32, #tpu.memory_space<vmem>>, vector<242x4xf32>,
    %343 = vector.extract_strided_slice %303 {offsets = [0, 3], sizes = [242, 1], strides = [1, 1]} : vector<242x9xf32> to vector<242x1xf32>
    %c3_177 = arith.constant 3 : index
    %c0_178 = arith.constant 0 : index
    %c0_179 = arith.constant 0 : index
    %344 = vector.load %arg17[%c3_177, %c0_178, %c0_179] : memref<9x64x4xbf16, #tpu.memory_space<vmem>>, vector<1x64x4xbf16>
    %345 = vector.shape_cast %344 : vector<1x64x4xbf16> to vector<64x4xbf16>
    %cst_180 = arith.constant dense<0.000000e+00> : vector<242x4xf32>
    %346 = tpu.matmul %302, %345, %cst_180 {dimension_numbers = #tpu.dot_dimension_numbers<[1], [0], [0], [1], [0, 0, 1, 1], [], []>} : vector<242x64xbf16>, vector<64x4xbf16>, vector<242x4xf32> -> vector<242x4xf32>
    %cst_181 = arith.constant 0.000000e+00 : f32
    %347 = vector.broadcast %cst_181 : f32 to vector<1x4xf32>
    %348 = vector.extract_strided_slice %346 {offsets = [0, 0], sizes = [241, 4], strides = [1, 1]} : vector<242x4xf32> to vector<241x4xf32>
    %349 = tpu.concatenate %347, %348 in 0 : vector<1x4xf32>, vector<241x4xf32> -> vector<242x4xf32>
    %350 = vector.broadcast %343 : vector<242x1xf32> to vector<242x4xf32>
    %351 = arith.mulf %350, %349 : vector<242x4xf32>
    %c0_182 = arith.constant 0 : index
    %c0_183 = arith.constant 0 : index
    %352 = vector.load %arg27[%c0_182, %c0_183] : memref<242x4xf32, #tpu.memory_space<vmem>>, vector<242x4xf32>
    %353 = arith.addf %352, %351 : vector<242x4xf32>
    %c0_184 = arith.constant 0 : index
    %c0_185 = arith.constant 0 : index
    %354 = vector.load %arg27[%c0_184, %c0_185] : memref<242x4xf32, #tpu.memory_space<vmem>>, vector<242x4xf32>
    tpu.vector_store %arg27[%c0_184, %c0_185], %353 {strides = array<i32>} : memref<242x4xf32, #tpu.memory_space<vmem>>, vector<242x4xf32>,
    %355 = vector.extract_strided_slice %303 {offsets = [0, 4], sizes = [242, 1], strides = [1, 1]} : vector<242x9xf32> to vector<242x1xf32>
    %c4_186 = arith.constant 4 : index
    %c0_187 = arith.constant 0 : index
    %c0_188 = arith.constant 0 : index
    %356 = vector.load %arg17[%c4_186, %c0_187, %c0_188] : memref<9x64x4xbf16, #tpu.memory_space<vmem>>, vector<1x64x4xbf16>
    %357 = vector.shape_cast %356 : vector<1x64x4xbf16> to vector<64x4xbf16>
    %cst_189 = arith.constant dense<0.000000e+00> : vector<242x4xf32>
    %358 = tpu.matmul %302, %357, %cst_189 {dimension_numbers = #tpu.dot_dimension_numbers<[1], [0], [0], [1], [0, 0, 1, 1], [], []>} : vector<242x64xbf16>, vector<64x4xbf16>, vector<242x4xf32> -> vector<242x4xf32>
    %359 = vector.broadcast %355 : vector<242x1xf32> to vector<242x4xf32>
    %360 = arith.mulf %359, %358 : vector<242x4xf32>
    %c0_190 = arith.constant 0 : index
    %c0_191 = arith.constant 0 : index
    %361 = vector.load %arg27[%c0_190, %c0_191] : memref<242x4xf32, #tpu.memory_space<vmem>>, vector<242x4xf32>
    %362 = arith.addf %361, %360 : vector<242x4xf32>
    %c0_192 = arith.constant 0 : index
    %c0_193 = arith.constant 0 : index
    %363 = vector.load %arg27[%c0_192, %c0_193] : memref<242x4xf32, #tpu.memory_space<vmem>>, vector<242x4xf32>
    tpu.vector_store %arg27[%c0_192, %c0_193], %362 {strides = array<i32>} : memref<242x4xf32, #tpu.memory_space<vmem>>, vector<242x4xf32>,
    %364 = vector.extract_strided_slice %303 {offsets = [0, 5], sizes = [242, 1], strides = [1, 1]} : vector<242x9xf32> to vector<242x1xf32>
    %c5_194 = arith.constant 5 : index
    %c0_195 = arith.constant 0 : index
    %c0_196 = arith.constant 0 : index
    %365 = vector.load %arg17[%c5_194, %c0_195, %c0_196] : memref<9x64x4xbf16, #tpu.memory_space<vmem>>, vector<1x64x4xbf16>
    %366 = vector.shape_cast %365 : vector<1x64x4xbf16> to vector<64x4xbf16>
    %cst_197 = arith.constant dense<0.000000e+00> : vector<242x4xf32>
    %367 = tpu.matmul %302, %366, %cst_197 {dimension_numbers = #tpu.dot_dimension_numbers<[1], [0], [0], [1], [0, 0, 1, 1], [], []>} : vector<242x64xbf16>, vector<64x4xbf16>, vector<242x4xf32> -> vector<242x4xf32>
    %cst_198 = arith.constant 0.000000e+00 : f32
    %368 = vector.broadcast %cst_198 : f32 to vector<1x4xf32>
    %369 = vector.extract_strided_slice %367 {offsets = [1, 0], sizes = [241, 4], strides = [1, 1]} : vector<242x4xf32> to vector<241x4xf32>
    %370 = tpu.concatenate %369, %368 in 0 : vector<241x4xf32>, vector<1x4xf32> -> vector<242x4xf32>
    %371 = vector.broadcast %364 : vector<242x1xf32> to vector<242x4xf32>
    %372 = arith.mulf %371, %370 : vector<242x4xf32>
    %c0_199 = arith.constant 0 : index
    %c0_200 = arith.constant 0 : index
    %373 = vector.load %arg27[%c0_199, %c0_200] : memref<242x4xf32, #tpu.memory_space<vmem>>, vector<242x4xf32>
    %374 = arith.addf %373, %372 : vector<242x4xf32>
    %c0_201 = arith.constant 0 : index
    %c0_202 = arith.constant 0 : index
    %375 = vector.load %arg27[%c0_201, %c0_202] : memref<242x4xf32, #tpu.memory_space<vmem>>, vector<242x4xf32>
    tpu.vector_store %arg27[%c0_201, %c0_202], %374 {strides = array<i32>} : memref<242x4xf32, #tpu.memory_space<vmem>>, vector<242x4xf32>,
    %376 = vector.extract_strided_slice %303 {offsets = [0, 6], sizes = [242, 1], strides = [1, 1]} : vector<242x9xf32> to vector<242x1xf32>
    %c6_203 = arith.constant 6 : index
    %c0_204 = arith.constant 0 : index
    %c0_205 = arith.constant 0 : index
    %377 = vector.load %arg17[%c6_203, %c0_204, %c0_205] : memref<9x64x4xbf16, #tpu.memory_space<vmem>>, vector<1x64x4xbf16>
    %378 = vector.shape_cast %377 : vector<1x64x4xbf16> to vector<64x4xbf16>
    %cst_206 = arith.constant dense<0.000000e+00> : vector<242x4xf32>
    %379 = tpu.matmul %302, %378, %cst_206 {dimension_numbers = #tpu.dot_dimension_numbers<[1], [0], [0], [1], [0, 0, 1, 1], [], []>} : vector<242x64xbf16>, vector<64x4xbf16>, vector<242x4xf32> -> vector<242x4xf32>
    %cst_207 = arith.constant 0.000000e+00 : f32
    %380 = vector.broadcast %cst_207 : f32 to vector<10x4xf32>
    %381 = vector.extract_strided_slice %379 {offsets = [10, 0], sizes = [232, 4], strides = [1, 1]} : vector<242x4xf32> to vector<232x4xf32>
    %382 = tpu.concatenate %381, %380 in 0 : vector<232x4xf32>, vector<10x4xf32> -> vector<242x4xf32>
    %383 = vector.broadcast %376 : vector<242x1xf32> to vector<242x4xf32>
    %384 = arith.mulf %383, %382 : vector<242x4xf32>
    %c0_208 = arith.constant 0 : index
    %c0_209 = arith.constant 0 : index
    %385 = vector.load %arg27[%c0_208, %c0_209] : memref<242x4xf32, #tpu.memory_space<vmem>>, vector<242x4xf32>
    %386 = arith.addf %385, %384 : vector<242x4xf32>
    %c0_210 = arith.constant 0 : index
    %c0_211 = arith.constant 0 : index
    %387 = vector.load %arg27[%c0_210, %c0_211] : memref<242x4xf32, #tpu.memory_space<vmem>>, vector<242x4xf32>
    tpu.vector_store %arg27[%c0_210, %c0_211], %386 {strides = array<i32>} : memref<242x4xf32, #tpu.memory_space<vmem>>, vector<242x4xf32>,
    %388 = vector.extract_strided_slice %303 {offsets = [0, 7], sizes = [242, 1], strides = [1, 1]} : vector<242x9xf32> to vector<242x1xf32>
    %c7_212 = arith.constant 7 : index
    %c0_213 = arith.constant 0 : index
    %c0_214 = arith.constant 0 : index
    %389 = vector.load %arg17[%c7_212, %c0_213, %c0_214] : memref<9x64x4xbf16, #tpu.memory_space<vmem>>, vector<1x64x4xbf16>
    %390 = vector.shape_cast %389 : vector<1x64x4xbf16> to vector<64x4xbf16>
    %cst_215 = arith.constant dense<0.000000e+00> : vector<242x4xf32>
    %391 = tpu.matmul %302, %390, %cst_215 {dimension_numbers = #tpu.dot_dimension_numbers<[1], [0], [0], [1], [0, 0, 1, 1], [], []>} : vector<242x64xbf16>, vector<64x4xbf16>, vector<242x4xf32> -> vector<242x4xf32>
    %cst_216 = arith.constant 0.000000e+00 : f32
    %392 = vector.broadcast %cst_216 : f32 to vector<11x4xf32>
    %393 = vector.extract_strided_slice %391 {offsets = [11, 0], sizes = [231, 4], strides = [1, 1]} : vector<242x4xf32> to vector<231x4xf32>
    %394 = tpu.concatenate %393, %392 in 0 : vector<231x4xf32>, vector<11x4xf32> -> vector<242x4xf32>
    %395 = vector.broadcast %388 : vector<242x1xf32> to vector<242x4xf32>
    %396 = arith.mulf %395, %394 : vector<242x4xf32>
    %c0_217 = arith.constant 0 : index
    %c0_218 = arith.constant 0 : index
    %397 = vector.load %arg27[%c0_217, %c0_218] : memref<242x4xf32, #tpu.memory_space<vmem>>, vector<242x4xf32>
    %398 = arith.addf %397, %396 : vector<242x4xf32>
    %c0_219 = arith.constant 0 : index
    %c0_220 = arith.constant 0 : index
    %399 = vector.load %arg27[%c0_219, %c0_220] : memref<242x4xf32, #tpu.memory_space<vmem>>, vector<242x4xf32>
    tpu.vector_store %arg27[%c0_219, %c0_220], %398 {strides = array<i32>} : memref<242x4xf32, #tpu.memory_space<vmem>>, vector<242x4xf32>,
    %400 = vector.extract_strided_slice %303 {offsets = [0, 8], sizes = [242, 1], strides = [1, 1]} : vector<242x9xf32> to vector<242x1xf32>
    %c8_221 = arith.constant 8 : index
    %c0_222 = arith.constant 0 : index
    %c0_223 = arith.constant 0 : index
    %401 = vector.load %arg17[%c8_221, %c0_222, %c0_223] : memref<9x64x4xbf16, #tpu.memory_space<vmem>>, vector<1x64x4xbf16>
    %402 = vector.shape_cast %401 : vector<1x64x4xbf16> to vector<64x4xbf16>
    %cst_224 = arith.constant dense<0.000000e+00> : vector<242x4xf32>
    %403 = tpu.matmul %302, %402, %cst_224 {dimension_numbers = #tpu.dot_dimension_numbers<[1], [0], [0], [1], [0, 0, 1, 1], [], []>} : vector<242x64xbf16>, vector<64x4xbf16>, vector<242x4xf32> -> vector<242x4xf32>
    %cst_225 = arith.constant 0.000000e+00 : f32
    %404 = vector.broadcast %cst_225 : f32 to vector<12x4xf32>
    %405 = vector.extract_strided_slice %403 {offsets = [12, 0], sizes = [230, 4], strides = [1, 1]} : vector<242x4xf32> to vector<230x4xf32>
    %406 = tpu.concatenate %405, %404 in 0 : vector<230x4xf32>, vector<12x4xf32> -> vector<242x4xf32>
    %407 = vector.broadcast %400 : vector<242x1xf32> to vector<242x4xf32>
    %408 = arith.mulf %407, %406 : vector<242x4xf32>
    %c0_226 = arith.constant 0 : index
    %c0_227 = arith.constant 0 : index
    %409 = vector.load %arg27[%c0_226, %c0_227] : memref<242x4xf32, #tpu.memory_space<vmem>>, vector<242x4xf32>
    %410 = arith.addf %409, %408 : vector<242x4xf32>
    %c0_228 = arith.constant 0 : index
    %c0_229 = arith.constant 0 : index
    %411 = vector.load %arg27[%c0_228, %c0_229] : memref<242x4xf32, #tpu.memory_space<vmem>>, vector<242x4xf32>
    tpu.vector_store %arg27[%c0_228, %c0_229], %410 {strides = array<i32>} : memref<242x4xf32, #tpu.memory_space<vmem>>, vector<242x4xf32>,
    %c0_230 = arith.constant 0 : index
    %c0_231 = arith.constant 0 : index
    %412 = vector.load %arg20[%c0_230, %c0_231] : memref<32x64xf32, #tpu.memory_space<vmem>>, vector<32x64xf32>
    %cst_232 = arith.constant dense<0.000000e+00> : vector<2x64xf32>
    %413 = tpu.matmul %10, %412, %cst_232 {dimension_numbers = #tpu.dot_dimension_numbers<[1], [0], [0], [1], [0, 0, 1, 1], [], []>} : vector<2x32xf32>, vector<32x64xf32>, vector<2x64xf32> -> vector<2x64xf32>
    %c0_233 = arith.constant 0 : index
    %c0_234 = arith.constant 0 : index
    %414 = vector.load %arg21[%c0_233, %c0_234] : memref<1x64xf32, #tpu.memory_space<vmem>>, vector<1x64xf32>
    %415 = vector.broadcast %414 : vector<1x64xf32> to vector<2x64xf32>
    %416 = arith.addf %413, %415 : vector<2x64xf32>
    %cst_235 = arith.constant 0.000000e+00 : f32
    %417 = vector.broadcast %cst_235 : f32 to vector<2x64xf32>
    %418 = arith.cmpf oge, %416, %417 : vector<2x64xf32>
    %cst_236 = arith.constant 0.00999999977 : f32
    %419 = vector.broadcast %cst_236 : f32 to vector<2x64xf32>
    %420 = arith.mulf %419, %416 : vector<2x64xf32>
    %421 = arith.select %418, %416, %420 : vector<2x64xi1>, vector<2x64xf32>
    %c0_237 = arith.constant 0 : index
    %c0_238 = arith.constant 0 : index
    %422 = vector.load %arg22[%c0_237, %c0_238] : memref<64x5xf32, #tpu.memory_space<vmem>>, vector<64x5xf32>
    %cst_239 = arith.constant dense<0.000000e+00> : vector<2x5xf32>
    %423 = tpu.matmul %421, %422, %cst_239 {dimension_numbers = #tpu.dot_dimension_numbers<[1], [0], [0], [1], [0, 0, 1, 1], [], []>} : vector<2x64xf32>, vector<64x5xf32>, vector<2x5xf32> -> vector<2x5xf32>
    %c0_240 = arith.constant 0 : index
    %c0_241 = arith.constant 0 : index
    %424 = vector.load %arg23[%c0_240, %c0_241] : memref<1x5xf32, #tpu.memory_space<vmem>>, vector<1x5xf32>
    %425 = vector.broadcast %424 : vector<1x5xf32> to vector<2x5xf32>
    %426 = arith.addf %423, %425 : vector<2x5xf32>
    %c0_242 = arith.constant 0 : index
    %c0_243 = arith.constant 0 : index
    %427 = vector.load %arg26[%c0_242, %c0_243] : memref<2x5xf32, #tpu.memory_space<vmem>>, vector<2x5xf32>
    tpu.vector_store %arg26[%c0_242, %c0_243], %426 {strides = array<i32>} : memref<2x5xf32, #tpu.memory_space<vmem>>, vector<2x5xf32>,
    return
  }
  func.func @transform_0(%arg0: i32) -> (i32, i32) {
    %c0_i32 = arith.constant 0 : i32
    %c0_i32_0 = arith.constant 0 : i32
    %c0_i32_1 = arith.constant 0 : i32
    return %c0_i32, %c0_i32_0 : i32, i32
  }
  func.func @transform_1(%arg0: i32) -> (i32, i32) {
    %c0_i32 = arith.constant 0 : i32
    %c0_i32_0 = arith.constant 0 : i32
    %c0_i32_1 = arith.constant 0 : i32
    return %c0_i32, %c0_i32_0 : i32, i32
  }
  func.func @transform_2(%arg0: i32) -> (i32, i32) {
    %c0_i32 = arith.constant 0 : i32
    %c0_i32_0 = arith.constant 0 : i32
    %c0_i32_1 = arith.constant 0 : i32
    return %c0_i32, %c0_i32_0 : i32, i32
  }
  func.func @transform_3(%arg0: i32) -> (i32, i32) {
    %c0_i32 = arith.constant 0 : i32
    %c0_i32_0 = arith.constant 0 : i32
    %c0_i32_1 = arith.constant 0 : i32
    return %c0_i32, %c0_i32_0 : i32, i32
  }
  func.func @transform_4(%arg0: i32) -> (i32, i32) {
    %c0_i32 = arith.constant 0 : i32
    %c0_i32_0 = arith.constant 0 : i32
    %c0_i32_1 = arith.constant 0 : i32
    return %c0_i32, %c0_i32_0 : i32, i32
  }
  func.func @transform_5(%arg0: i32) -> (i32, i32) {
    %c0_i32 = arith.constant 0 : i32
    %c0_i32_0 = arith.constant 0 : i32
    %c0_i32_1 = arith.constant 0 : i32
    return %c0_i32, %c0_i32_0 : i32, i32
  }
  func.func @transform_6(%arg0: i32) -> (i32, i32) {
    %c0_i32 = arith.constant 0 : i32
    %c0_i32_0 = arith.constant 0 : i32
    %c0_i32_1 = arith.constant 0 : i32
    return %c0_i32, %c0_i32_0 : i32, i32
  }
  func.func @transform_7(%arg0: i32) -> (i32, i32) {
    %c0_i32 = arith.constant 0 : i32
    %c0_i32_0 = arith.constant 0 : i32
    %c0_i32_1 = arith.constant 0 : i32
    return %c0_i32, %c0_i32_0 : i32, i32
  }
  func.func @transform_8(%arg0: i32) -> (i32, i32, i32) {
    %c0_i32 = arith.constant 0 : i32
    %c0_i32_0 = arith.constant 0 : i32
    %c0_i32_1 = arith.constant 0 : i32
    %c0_i32_2 = arith.constant 0 : i32
    return %c0_i32, %c0_i32_0, %c0_i32_1 : i32, i32, i32
  }
  func.func @transform_9(%arg0: i32) -> (i32, i32) {
    %c0_i32 = arith.constant 0 : i32
    %c0_i32_0 = arith.constant 0 : i32
    %c0_i32_1 = arith.constant 0 : i32
    return %c0_i32, %c0_i32_0 : i32, i32
  }
  func.func @transform_10(%arg0: i32) -> (i32, i32) {
    %c0_i32 = arith.constant 0 : i32
    %c0_i32_0 = arith.constant 0 : i32
    %c0_i32_1 = arith.constant 0 : i32
    return %c0_i32, %c0_i32_0 : i32, i32
  }
  func.func @transform_11(%arg0: i32) -> (i32, i32) {
    %c0_i32 = arith.constant 0 : i32
    %c0_i32_0 = arith.constant 0 : i32
    %c0_i32_1 = arith.constant 0 : i32
    return %c0_i32, %c0_i32_0 : i32, i32
  }
  func.func @transform_12(%arg0: i32) -> (i32, i32, i32) {
    %c0_i32 = arith.constant 0 : i32
    %c0_i32_0 = arith.constant 0 : i32
    %c0_i32_1 = arith.constant 0 : i32
    %c0_i32_2 = arith.constant 0 : i32
    return %c0_i32, %c0_i32_0, %c0_i32_1 : i32, i32, i32
  }
  func.func @transform_13(%arg0: i32) -> (i32, i32) {
    %c0_i32 = arith.constant 0 : i32
    %c0_i32_0 = arith.constant 0 : i32
    %c0_i32_1 = arith.constant 0 : i32
    return %c0_i32, %c0_i32_0 : i32, i32
  }
  func.func @transform_14(%arg0: i32) -> (i32, i32) {
    %c0_i32 = arith.constant 0 : i32
    %c0_i32_0 = arith.constant 0 : i32
    %c0_i32_1 = arith.constant 0 : i32
    return %c0_i32, %c0_i32_0 : i32, i32
  }
  func.func @transform_15(%arg0: i32) -> (i32, i32) {
    %c0_i32 = arith.constant 0 : i32
    %c0_i32_0 = arith.constant 0 : i32
    %c0_i32_1 = arith.constant 0 : i32
    return %c0_i32, %c0_i32_0 : i32, i32
  }
  func.func @transform_16(%arg0: i32) -> (i32, i32, i32) {
    %c0_i32 = arith.constant 0 : i32
    %c0_i32_0 = arith.constant 0 : i32
    %c0_i32_1 = arith.constant 0 : i32
    %c0_i32_2 = arith.constant 0 : i32
    return %c0_i32, %c0_i32_0, %c0_i32_1 : i32, i32, i32
  }
  func.func @transform_17(%arg0: i32) -> (i32, i32) {
    %c0_i32 = arith.constant 0 : i32
    %c0_i32_0 = arith.constant 0 : i32
    %c0_i32_1 = arith.constant 0 : i32
    return %c0_i32, %c0_i32_0 : i32, i32
  }
  func.func @transform_18(%arg0: i32) -> (i32, i32) {
    %c0_i32 = arith.constant 0 : i32
    %c0_i32_0 = arith.constant 0 : i32
    %c0_i32_1 = arith.constant 0 : i32
    return %c0_i32, %c0_i32_0 : i32, i32
  }
  func.func @transform_19(%arg0: i32) -> (i32, i32) {
    %c0_i32 = arith.constant 0 : i32
    %c0_i32_0 = arith.constant 0 : i32
    %c0_i32_1 = arith.constant 0 : i32
    return %c0_i32, %c0_i32_0 : i32, i32
  }
  func.func @transform_20(%arg0: i32) -> (i32, i32) {
    %c0_i32 = arith.constant 0 : i32
    %c0_i32_0 = arith.constant 0 : i32
    %c0_i32_1 = arith.constant 0 : i32
    return %c0_i32, %c0_i32_0 : i32, i32
  }
  func.func @transform_21(%arg0: i32) -> (i32, i32) {
    %c0_i32 = arith.constant 0 : i32
    %c0_i32_0 = arith.constant 0 : i32
    %c0_i32_1 = arith.constant 0 : i32
    return %c0_i32, %c0_i32_0 : i32, i32
  }
  func.func @transform_22(%arg0: i32) -> (i32, i32) {
    %c0_i32 = arith.constant 0 : i32
    %c0_i32_0 = arith.constant 0 : i32
    %c0_i32_1 = arith.constant 0 : i32
    return %c0_i32, %c0_i32_0 : i32, i32
  }
  func.func @transform_23(%arg0: i32) -> (i32, i32) {
    %c0_i32 = arith.constant 0 : i32
    %c0_i32_0 = arith.constant 0 : i32
    %c0_i32_1 = arith.constant 0 : i32
    return %c0_i32, %c0_i32_0 : i32, i32
  }
  func.func @transform_24(%arg0: i32) -> (i32, i32) {
    %c0_i32 = arith.constant 0 : i32
    %c0_i32_0 = arith.constant 0 : i32
    %c0_i32_1 = arith.constant 0 : i32
    return %c0_i32, %c0_i32_0 : i32, i32
  }
  func.func @transform_25(%arg0: i32) -> (i32, i32) {
    %c0_i32 = arith.constant 0 : i32
    %c0_i32_0 = arith.constant 0 : i32
    %c0_i32_1 = arith.constant 0 : i32
    return %c0_i32, %c0_i32_0 : i32, i32
  }
  func.func @transform_26(%arg0: i32) -> (i32, i32) {
    %c0_i32 = arith.constant 0 : i32
    %c0_i32_0 = arith.constant 0 : i32
    %c0_i32_1 = arith.constant 0 : i32
    return %c0_i32, %c0_i32_0 : i32, i32
  }
}

</mosaic_0001>

<llo_original>
// kernel: dsn_forward.1
$region0: #{dsn_forward.1}
  #allocation0 [shape = 'u32[]', space=smem, size = 0x4, offset = 0x4, fixed_abs, tag = 'smem constant byte address 0x4 - core index']
  #allocation1 [shape = 'u32[144,128]{1,0:T(1,128)}', space=vmem, size = 0x12000, scoped, tag = 'internal scratch']
  %s0 = inlined_call_operand.vmem [shape: f32[2,484], index: 0, kind: input, shape index: {}]
  %s1 = inlined_call_operand.vmem [shape: f32[484,32], index: 1, kind: input, shape index: {}]
  %s2 = inlined_call_operand.vmem [shape: f32[1,32], index: 2, kind: input, shape index: {}]
  %s3 = inlined_call_operand.vmem [shape: f32[484,32], index: 3, kind: input, shape index: {}]
  %s4 = inlined_call_operand.vmem [shape: f32[1,32], index: 4, kind: input, shape index: {}]
  %s5 = inlined_call_operand.vmem [shape: f32[32,256], index: 5, kind: input, shape index: {}]
  %s6 = inlined_call_operand.vmem [shape: f32[18,2], index: 6, kind: input, shape index: {}]
  %s7 = inlined_call_operand.vmem [shape: f32[2,256], index: 7, kind: input, shape index: {}]
  %s8 = inlined_call_operand.vmem [shape: bf16[9,256,128], index: 8, kind: input, shape index: {}]
  %s9 = inlined_call_operand.vmem [shape: f32[18,9], index: 9, kind: input, shape index: {}]
  %s10 = inlined_call_operand.vmem [shape: f32[72,18], index: 10, kind: input, shape index: {}]
  %s11 = inlined_call_operand.vmem [shape: f32[2,128], index: 11, kind: input, shape index: {}]
  %s12 = inlined_call_operand.vmem [shape: bf16[9,128,64], index: 12, kind: input, shape index: {}]
  %s13 = inlined_call_operand.vmem [shape: f32[72,9], index: 13, kind: input, shape index: {}]
  %s14 = inlined_call_operand.vmem [shape: f32[242,72], index: 14, kind: input, shape index: {}]
  %s15 = inlined_call_operand.vmem [shape: f32[2,64], index: 15, kind: input, shape index: {}]
  %s16 = inlined_call_operand.vmem [shape: bf16[9,64,4], index: 16, kind: input, shape index: {}]
  %s17 = inlined_call_operand.vmem [shape: f32[1,4], index: 17, kind: input, shape index: {}]
  %s18 = inlined_call_operand.vmem [shape: f32[242,9], index: 18, kind: input, shape index: {}]
  %s19 = inlined_call_operand.vmem [shape: f32[32,64], index: 19, kind: input, shape index: {}]
  %s20 = inlined_call_operand.vmem [shape: f32[1,64], index: 20, kind: input, shape index: {}]
  %s21 = inlined_call_operand.vmem [shape: f32[64,5], index: 21, kind: input, shape index: {}]
  %s22 = inlined_call_operand.vmem [shape: f32[1,5], index: 22, kind: input, shape index: {}]
  %s23 = inlined_call_operand.hbm [shape: f32[2,32], index: 23, kind: output, shape index: {0}]
  %s24 = inlined_call_operand.hbm [shape: f32[2,32], index: 24, kind: output, shape index: {1}]
  %s25 = inlined_call_operand.hbm [shape: f32[2,5], index: 25, kind: output, shape index: {2}]
  %s26 = inlined_call_operand.vmem [shape: f32[242,4], index: 26, kind: output, shape index: {3}]
  %27 = xla_tuple %s23, %s24, %s25, %s26
  %s28 = sld [smem:[#allocation0]]
  $region126: #{dsn_forward.1} parent=0
    _
  %s30 = ssub.s32 1, %s28
  %s31 = scalar_select 0, %s30, %s28
  $region1: #{dsn_forward.1} parent=0
    #allocation2 [shape = 'u8[1024]{0}', space=vmem, size = 0x400, scoped, tag = 'output window, operand 0, single buffered']
    #allocation3 [shape = 's32[1]{0}', space=sflag, size = 0x4, scoped, tag = 'scoped memory for dsn_forward.1']
    #allocation4 [shape = 'u8[1024]{0}', space=vmem, size = 0x400, scoped, tag = 'output window, operand 1, single buffered']
    #allocation5 [shape = 's32[1]{0}', space=sflag, size = 0x4, scoped, tag = 'scoped memory for dsn_forward.1']
    #allocation6 [shape = 'u8[1024]{0}', space=vmem, size = 0x400, scoped, tag = 'output window, operand 2, single buffered']
    %32 = vsyncpa [#allocation3], 0
    %33 = vsyncpa [#allocation5], 0
    // Predicated region
    $region2: #{dsn_forward.1} parent=1 // pred_check
      _
    $region3: #{dsn_forward.1} parent=1 // pred_check_branch
      %35 = sbr.rel (0) target = $region5
    $region4: #{dsn_forward.1} parent=1 // pred_region
      _
    $region5: #{dsn_forward.1} parent=1 // pred_fallthru
      _
    // Predicated region
    $region6: #{dsn_forward.1} parent=1 // pred_check
      _
    $region7: #{dsn_forward.1} parent=1 // pred_check_branch
      %37 = sbr.rel (0) target = $region9
    $region8: #{dsn_forward.1} parent=1 // pred_region
      _
    $region9: #{dsn_forward.1} parent=1 // pred_fallthru
      _
    // Predicated region
    $region10: #{dsn_forward.1} parent=1 // pred_check
      _
    $region11: #{dsn_forward.1} parent=1 // pred_check_branch
      %39 = sbr.rel (0) target = $region13
    $region12: #{dsn_forward.1} parent=1 // pred_region
      _
    $region13: #{dsn_forward.1} parent=1 // pred_fallthru
      _
    // Predicated region
    $region14: #{dsn_forward.1} parent=1 // pred_check
      _
    $region15: #{dsn_forward.1} parent=1 // pred_check_branch
      %41 = sbr.rel (0) target = $region17
    $region16: #{dsn_forward.1} parent=1 // pred_region
      _
    $region17: #{dsn_forward.1} parent=1 // pred_fallthru
      _
    // Predicated region
    $region18: #{dsn_forward.1} parent=1 // pred_check
      _
    $region19: #{dsn_forward.1} parent=1 // pred_check_branch
      %43 = sbr.rel (0) target = $region21
    $region20: #{dsn_forward.1} parent=1 // pred_region
      _
    $region21: #{dsn_forward.1} parent=1 // pred_fallthru
      _
    // Predicated region
    $region22: #{dsn_forward.1} parent=1 // pred_check
      _
    $region23: #{dsn_forward.1} parent=1 // pred_check_branch
      %45 = sbr.rel (0) target = $region25
    $region24: #{dsn_forward.1} parent=1 // pred_region
      _
    $region25: #{dsn_forward.1} parent=1 // pred_fallthru
      _
    // Predicated region
    $region26: #{dsn_forward.1} parent=1 // pred_check
      _
    $region27: #{dsn_forward.1} parent=1 // pred_check_branch
      %47 = sbr.rel (0) target = $region29
    $region28: #{dsn_forward.1} parent=1 // pred_region
      _
    $region29: #{dsn_forward.1} parent=1 // pred_fallthru
      _
    // Predicated region
    $region30: #{dsn_forward.1} parent=1 // pred_check
      _
    $region31: #{dsn_forward.1} parent=1 // pred_check_branch
      %49 = sbr.rel (0) target = $region33
    $region32: #{dsn_forward.1} parent=1 // pred_region
      _
    $region33: #{dsn_forward.1} parent=1 // pred_fallthru
      _
    // Predicated region
    $region34: #{dsn_forward.1} parent=1 // pred_check
      _
    $region35: #{dsn_forward.1} parent=1 // pred_check_branch
      %51 = sbr.rel (0) target = $region37
    $region36: #{dsn_forward.1} parent=1 // pred_region
      _
    $region37: #{dsn_forward.1} parent=1 // pred_fallthru
      _
    // Predicated region
    $region38: #{dsn_forward.1} parent=1 // pred_check
      _
    $region39: #{dsn_forward.1} parent=1 // pred_check_branch
      %53 = sbr.rel (0) target = $region41
    $region40: #{dsn_forward.1} parent=1 // pred_region
      _
    $region41: #{dsn_forward.1} parent=1 // pred_fallthru
      _
    // Predicated region
    $region42: #{dsn_forward.1} parent=1 // pred_check
      _
    $region43: #{dsn_forward.1} parent=1 // pred_check_branch
      %55 = sbr.rel (0) target = $region45
    $region44: #{dsn_forward.1} parent=1 // pred_region
      _
    $region45: #{dsn_forward.1} parent=1 // pred_fallthru
      _
    // Predicated region
    $region46: #{dsn_forward.1} parent=1 // pred_check
      _
    $region47: #{dsn_forward.1} parent=1 // pred_check_branch
      %57 = sbr.rel (0) target = $region49
    $region48: #{dsn_forward.1} parent=1 // pred_region
      _
    $region49: #{dsn_forward.1} parent=1 // pred_fallthru
      _
    // Predicated region
    $region50: #{dsn_forward.1} parent=1 // pred_check
      _
    $region51: #{dsn_forward.1} parent=1 // pred_check_branch
      %59 = sbr.rel (0) target = $region53
    $region52: #{dsn_forward.1} parent=1 // pred_region
      _
    $region53: #{dsn_forward.1} parent=1 // pred_fallthru
      _
    // Predicated region
    $region54: #{dsn_forward.1} parent=1 // pred_check
      _
    $region55: #{dsn_forward.1} parent=1 // pred_check_branch
      %61 = sbr.rel (0) target = $region57
    $region56: #{dsn_forward.1} parent=1 // pred_region
      _
    $region57: #{dsn_forward.1} parent=1 // pred_fallthru
      _
    // Predicated region
    $region58: #{dsn_forward.1} parent=1 // pred_check
      _
    $region59: #{dsn_forward.1} parent=1 // pred_check_branch
      %63 = sbr.rel (0) target = $region61
    $region60: #{dsn_forward.1} parent=1 // pred_region
      _
    $region61: #{dsn_forward.1} parent=1 // pred_fallthru
      _
    // Predicated region
    $region62: #{dsn_forward.1} parent=1 // pred_check
      _
    $region63: #{dsn_forward.1} parent=1 // pred_check_branch
      %65 = sbr.rel (0) target = $region65
    $region64: #{dsn_forward.1} parent=1 // pred_region
      _
    $region65: #{dsn_forward.1} parent=1 // pred_fallthru
      _
    // Predicated region
    $region66: #{dsn_forward.1} parent=1 // pred_check
      _
    $region67: #{dsn_forward.1} parent=1 // pred_check_branch
      %67 = sbr.rel (0) target = $region69
    $region68: #{dsn_forward.1} parent=1 // pred_region
      _
    $region69: #{dsn_forward.1} parent=1 // pred_fallthru
      _
    // Predicated region
    $region70: #{dsn_forward.1} parent=1 // pred_check
      _
    $region71: #{dsn_forward.1} parent=1 // pred_check_branch
      %69 = sbr.rel (0) target = $region73
    $region72: #{dsn_forward.1} parent=1 // pred_region
      _
    $region73: #{dsn_forward.1} parent=1 // pred_fallthru
      _
    // Predicated region
    $region74: #{dsn_forward.1} parent=1 // pred_check
      _
    $region75: #{dsn_forward.1} parent=1 // pred_check_branch
      %71 = sbr.rel (0) target = $region77
    $region76: #{dsn_forward.1} parent=1 // pred_region
      _
    $region77: #{dsn_forward.1} parent=1 // pred_fallthru
      _
    // Predicated region
    $region78: #{dsn_forward.1} parent=1 // pred_check
      _
    $region79: #{dsn_forward.1} parent=1 // pred_check_branch
      %73 = sbr.rel (0) target = $region81
    $region80: #{dsn_forward.1} parent=1 // pred_region
      _
    $region81: #{dsn_forward.1} parent=1 // pred_fallthru
      _
    // Predicated region
    $region82: #{dsn_forward.1} parent=1 // pred_check
      _
    $region83: #{dsn_forward.1} parent=1 // pred_check_branch
      %75 = sbr.rel (0) target = $region85
    $region84: #{dsn_forward.1} parent=1 // pred_region
      _
    $region85: #{dsn_forward.1} parent=1 // pred_fallthru
      _
    // Predicated region
    $region86: #{dsn_forward.1} parent=1 // pred_check
      _
    $region87: #{dsn_forward.1} parent=1 // pred_check_branch
      %77 = sbr.rel (0) target = $region89
    $region88: #{dsn_forward.1} parent=1 // pred_region
      _
    $region89: #{dsn_forward.1} parent=1 // pred_fallthru
      _
    // Predicated region
    $region90: #{dsn_forward.1} parent=1 // pred_check
      _
    $region91: #{dsn_forward.1} parent=1 // pred_check_branch
      %79 = sbr.rel (0) target = $region93
    $region92: #{dsn_forward.1} parent=1 // pred_region
      _
    $region93: #{dsn_forward.1} parent=1 // pred_fallthru
      _
    %v81 = vld [vmem:[%s0] sm:$0xff]
    %v82 = vld [vmem:[%s1] sm:$0xff]
    %v83 = vld [vmem:[%s1 + $0x8] sm:$0xff]
    %v84 = vld [vmem:[%s1 + $0x10] sm:$0xff]
    %v85 = vld [vmem:[%s1 + $0x18] sm:$0xff]
    %v86 = vld [vmem:[%s1 + $0x20] sm:$0xff]
    %v87 = vld [vmem:[%s1 + $0x28] sm:$0xff]
    %v88 = vld [vmem:[%s1 + $0x30] sm:$0xff]
    %v89 = vld [vmem:[%s1 + $0x38] sm:$0xff]
    %v90 = vld [vmem:[%s1 + $0x40] sm:$0xff]
    %v91 = vld [vmem:[%s1 + $0x48] sm:$0xff]
    %v92 = vld [vmem:[%s1 + $0x50] sm:$0xff]
    %v93 = vld [vmem:[%s1 + $0x58] sm:$0xff]
    %v94 = vld [vmem:[%s1 + $0x60] sm:$0xff]
    %v95 = vld [vmem:[%s1 + $0x68] sm:$0xff]
    %v96 = vld [vmem:[%s1 + $0x70] sm:$0xff]
    %v97 = vld [vmem:[%s1 + $0x78] sm:$0xff]
    %v98 = vld [vmem:[%s1 + $0x80] sm:$0xff]
    %v99 = vld [vmem:[%s1 + $0x88] sm:$0xff]
    %v100 = vld [vmem:[%s1 + $0x90] sm:$0xff]
    %v101 = vld [vmem:[%s1 + $0x98] sm:$0xff]
    %v102 = vld [vmem:[%s1 + $0xa0] sm:$0xff]
    %v103 = vld [vmem:[%s1 + $0xa8] sm:$0xff]
    %v104 = vld [vmem:[%s1 + $0xb0] sm:$0xff]
    %v105 = vld [vmem:[%s1 + $0xb8] sm:$0xff]
    %v106 = vld [vmem:[%s1 + $0xc0] sm:$0xff]
    %v107 = vld [vmem:[%s1 + $0xc8] sm:$0xff]
    %v108 = vld [vmem:[%s1 + $0xd0] sm:$0xff]
    %v109 = vld [vmem:[%s1 + $0xd8] sm:$0xff]
    %v110 = vld [vmem:[%s1 + $0xe0] sm:$0xff]
    %v111 = vld [vmem:[%s1 + $0xe8] sm:$0xff]
    %v112 = vld [vmem:[%s1 + $0xf0] sm:$0xff]
    %v113 = vld [vmem:[%s1 + $0xf8] sm:$0xff]
    %v114 = vld [vmem:[%s1 + $0x100] sm:$0xff]
    %v115 = vld [vmem:[%s1 + $0x108] sm:$0xff]
    %v116 = vld [vmem:[%s1 + $0x110] sm:$0xff]
    %v117 = vld [vmem:[%s1 + $0x118] sm:$0xff]
    %v118 = vld [vmem:[%s1 + $0x120] sm:$0xff]
    %v119 = vld [vmem:[%s1 + $0x128] sm:$0xff]
    %v120 = vld [vmem:[%s1 + $0x130] sm:$0xff]
    %v121 = vld [vmem:[%s1 + $0x138] sm:$0xff]
    %v122 = vld [vmem:[%s1 + $0x140] sm:$0xff]
    %v123 = vld [vmem:[%s1 + $0x148] sm:$0xff]
    %v124 = vld [vmem:[%s1 + $0x150] sm:$0xff]
    %v125 = vld [vmem:[%s1 + $0x158] sm:$0xff]
    %v126 = vld [vmem:[%s1 + $0x160] sm:$0xff]
    %v127 = vld [vmem:[%s1 + $0x168] sm:$0xff]
    %v128 = vld [vmem:[%s1 + $0x170] sm:$0xff]
    %v129 = vld [vmem:[%s1 + $0x178] sm:$0xff]
    %v130 = vld [vmem:[%s1 + $0x180] sm:$0xff]
    %v131 = vld [vmem:[%s1 + $0x188] sm:$0xff]
    %v132 = vld [vmem:[%s1 + $0x190] sm:$0xff]
    %v133 = vld [vmem:[%s1 + $0x198] sm:$0xff]
    %v134 = vld [vmem:[%s1 + $0x1a0] sm:$0xff]
    %v135 = vld [vmem:[%s1 + $0x1a8] sm:$0xff]
    %v136 = vld [vmem:[%s1 + $0x1b0] sm:$0xff]
    %v137 = vld [vmem:[%s1 + $0x1b8] sm:$0xff]
    %v138 = vld [vmem:[%s1 + $0x1c0] sm:$0xff]
    %v139 = vld [vmem:[%s1 + $0x1c8] sm:$0xff]
    %v140 = vld [vmem:[%s1 + $0x1d0] sm:$0xff]
    %v141 = vld [vmem:[%s1 + $0x1d8] sm:$0xff]
    %v142 = vld [vmem:[%s1 + $0x1e0] sm:$0xf]
    %v143 = vld [vmem:[%s2] sm:$0x1]
    %v145 = vlaneseq
    %v146 = vshrl.u32 %v145, 7
    %v147 = vsub.s32 0, %v146
    %v148 = vrot.slane %v143, %v147
    %v151 = vcombine.high %v81, %v81
    %v153 = vunpack.c.l.s4 1983009808
    %v154 = vunpack.c.0.s8 %v153
    %v155 = vlaneseq
    %v156 = vshrl.u32 %v155, 7
    %v157 = vsub.s32 %v154, %v156
    %v158 = vrot.slane %v81, %v157
    %v160 = vunpack.c.l.s4 1983009808
    %v161 = vunpack.c.0.s8 %v160
    %v162 = vlaneseq
    %v163 = vshrl.u32 %v162, 7
    %v164 = vsub.s32 %v161, %v163
    %v165 = vrot.slane %v151, %v164
    %v166 = vcombine.high %v158, %v158
    %v167 = vcombine.high %v165, %v165
    %vm171 = vcmask 818176
    %v172 = vsel %vm171, %v167, 0
    %vm174 = vcmask 1043456
    %v176 = vsel %vm174, %v142, 0
    %178 = vmatprep.subr.mxu0 0.0
    %179 = vmatpush1.msra.mxu0 %v82
    %180 = vmatprep.subr.mxu0 0.0
    %181 = vmatpush1.msra.mxu0 %v83
    %182 = vmatprep.subr.mxu0 0.0
    %183 = vmatpush1.msra.mxu0 %v84
    %184 = vmatprep.subr.mxu0 0.0
    %185 = vmatpush1.msra.mxu0 %v85
    %186 = vmatprep.subr.mxu0 0.0
    %187 = vmatpush1.msra.mxu0 %v86
    %188 = vmatprep.subr.mxu0 0.0
    %189 = vmatpush1.msra.mxu0 %v87
    %190 = vmatprep.subr.mxu0 0.0
    %191 = vmatpush1.msra.mxu0 %v88
    %192 = vmatprep.subr.mxu0 0.0
    %193 = vmatpush1.msra.mxu0 %v89
    %194 = vmatprep.subr.mxu0 0.0
    %195 = vmatpush1.msra.mxu0 %v90
    %196 = vmatprep.subr.mxu0 0.0
    %197 = vmatpush1.msra.mxu0 %v91
    %198 = vmatprep.subr.mxu0 0.0
    %199 = vmatpush1.msra.mxu0 %v92
    %200 = vmatprep.subr.mxu0 0.0
    %201 = vmatpush1.msra.mxu0 %v93
    %202 = vmatprep.subr.mxu0 0.0
    %203 = vmatpush1.msra.mxu0 %v94
    %204 = vmatprep.subr.mxu0 0.0
    %205 = vmatpush1.msra.mxu0 %v95
    %206 = vmatprep.subr.mxu0 0.0
    %207 = vmatpush1.msra.mxu0 %v96
    %208 = vmatprep.subr.mxu0 0.0
    %209 = vmatpush1.msra.mxu0 %v97
    %210 = vmatprep.subr.mxu0 0.0
    %211 = vmatpush1.msra.mxu0 %v98
    %212 = vmatprep.subr.mxu0 0.0
    %213 = vmatpush1.msra.mxu0 %v99
    %214 = vmatprep.subr.mxu0 0.0
    %215 = vmatpush1.msra.mxu0 %v100
    %216 = vmatprep.subr.mxu0 0.0
    %217 = vmatpush1.msra.mxu0 %v101
    %218 = vmatprep.subr.mxu0 0.0
    %219 = vmatpush1.msra.mxu0 %v102
    %220 = vmatprep.subr.mxu0 0.0
    %221 = vmatpush1.msra.mxu0 %v103
    %222 = vmatprep.subr.mxu0 0.0
    %223 = vmatpush1.msra.mxu0 %v104
    %224 = vmatprep.subr.mxu0 0.0
    %225 = vmatpush1.msra.mxu0 %v105
    %226 = vmatprep.subr.mxu0 0.0
    %227 = vmatpush1.msra.mxu0 %v106
    %228 = vmatprep.subr.mxu0 0.0
    %229 = vmatpush1.msra.mxu0 %v107
    %230 = vmatprep.subr.mxu0 0.0
    %231 = vmatpush1.msra.mxu0 %v108
    %232 = vmatprep.subr.mxu0 0.0
    %233 = vmatpush1.msra.mxu0 %v109
    %234 = vmatprep.subr.mxu0 0.0
    %235 = vmatpush1.msra.mxu0 %v110
    %236 = vmatprep.subr.mxu0 0.0
    %237 = vmatpush1.msra.mxu0 %v111
    %238 = vmatprep.subr.mxu0 0.0
    %239 = vmatpush1.msra.mxu0 %v112
    %240 = vmatprep.subr.mxu0 0.0
    %241 = vmatpush1.msra.mxu0 %v113
    %242 = vmatprep.mubr.f32.mxu0 %v166
    %243 = vmatmul.mubr.f32.gmra.mrb[0].mxu0 %v158
    %v244 = vpop.f32.mrb[0].mxu0
    %v245 = vadd.f32 %v148, %v244
    %v246 = vpop.f32.mrb[0].mxu0
    %247 = vdwg.mxu0
    %248 = vmatprep.subr.mxu0 0.0
    %249 = vmatpush1.msra.mxu0 %v114
    %250 = vmatprep.subr.mxu0 0.0
    %251 = vmatpush1.msra.mxu0 %v115
    %252 = vmatprep.subr.mxu0 0.0
    %253 = vmatpush1.msra.mxu0 %v116
    %254 = vmatprep.subr.mxu0 0.0
    %255 = vmatpush1.msra.mxu0 %v117
    %256 = vmatprep.subr.mxu0 0.0
    %257 = vmatpush1.msra.mxu0 %v118
    %258 = vmatprep.subr.mxu0 0.0
    %259 = vmatpush1.msra.mxu0 %v119
    %260 = vmatprep.subr.mxu0 0.0
    %261 = vmatpush1.msra.mxu0 %v120
    %262 = vmatprep.subr.mxu0 0.0
    %263 = vmatpush1.msra.mxu0 %v121
    %264 = vmatprep.subr.mxu0 0.0
    %265 = vmatpush1.msra.mxu0 %v122
    %266 = vmatprep.subr.mxu0 0.0
    %267 = vmatpush1.msra.mxu0 %v123
    %268 = vmatprep.subr.mxu0 0.0
    %269 = vmatpush1.msra.mxu0 %v124
    %270 = vmatprep.subr.mxu0 0.0
    %271 = vmatpush1.msra.mxu0 %v125
    %272 = vmatprep.subr.mxu0 0.0
    %273 = vmatpush1.msra.mxu0 %v126
    %274 = vmatprep.subr.mxu0 0.0
    %275 = vmatpush1.msra.mxu0 %v127
    %276 = vmatprep.subr.mxu0 0.0
    %277 = vmatpush1.msra.mxu0 %v128
    %278 = vmatprep.subr.mxu0 0.0
    %279 = vmatpush1.msra.mxu0 %v129
    %280 = vmatprep.subr.mxu0 0.0
    %281 = vmatpush1.msra.mxu0 %v130
    %282 = vmatprep.subr.mxu0 0.0
    %283 = vmatpush1.msra.mxu0 %v131
    %284 = vmatprep.subr.mxu0 0.0
    %285 = vmatpush1.msra.mxu0 %v132
    %286 = vmatprep.subr.mxu0 0.0
    %287 = vmatpush1.msra.mxu0 %v133
    %288 = vmatprep.subr.mxu0 0.0
    %289 = vmatpush1.msra.mxu0 %v134
    %290 = vmatprep.subr.mxu0 0.0
    %291 = vmatpush1.msra.mxu0 %v135
    %292 = vmatprep.subr.mxu0 0.0
    %293 = vmatpush1.msra.mxu0 %v136
    %294 = vmatprep.subr.mxu0 0.0
    %295 = vmatpush1.msra.mxu0 %v137
    %296 = vmatprep.subr.mxu0 0.0
    %297 = vmatpush1.msra.mxu0 %v138
    %298 = vmatprep.subr.mxu0 0.0
    %299 = vmatpush1.msra.mxu0 %v139
    %300 = vmatprep.subr.mxu0 0.0
    %301 = vmatpush1.msra.mxu0 %v140
    %302 = vmatprep.subr.mxu0 0.0
    %303 = vmatpush1.msra.mxu0 %v141
    %304 = vmatprep.subr.mxu0 0.0
    %305 = vmatpush1.msra.mxu0 %v176
    %306 = vmatprep.subr.mxu0 0.0
    %307 = vmatpush1.msra.mxu0 0.0
    %308 = vmatprep.subr.mxu0 0.0
    %309 = vmatpush1.msra.mxu0 0.0
    %310 = vmatprep.subr.mxu0 0.0
    %311 = vmatpush1.msra.mxu0 0.0
    %312 = vmatprep.mubr.f32.mxu0 %v172
    %313 = vmatmul.mubr.f32.gmra.mrb[0].mxu0 %v165
    %v314 = vpop.f32.mrb[0].mxu0
    %v315 = vadd.f32 %v245, %v314
    %v316 = vpop.f32.mrb[0].mxu0
    %317 = vdwg.mxu0
    %vm318 = vcmp.ge.f32.partialorder %v315, 0.0
    %v319 = vmul.f32 %v315, 0.01
    %v320 = vsel %vm318, %v315, %v319
    %v321 = vld [vmem:[%s3] sm:$0xff]
    %v322 = vld [vmem:[%s3 + $0x8] sm:$0xff]
    %v323 = vld [vmem:[%s3 + $0x10] sm:$0xff]
    %v324 = vld [vmem:[%s3 + $0x18] sm:$0xff]
    %v325 = vld [vmem:[%s3 + $0x20] sm:$0xff]
    %v326 = vld [vmem:[%s3 + $0x28] sm:$0xff]
    %v327 = vld [vmem:[%s3 + $0x30] sm:$0xff]
    %v328 = vld [vmem:[%s3 + $0x38] sm:$0xff]
    %v329 = vld [vmem:[%s3 + $0x40] sm:$0xff]
    %v330 = vld [vmem:[%s3 + $0x48] sm:$0xff]
    %v331 = vld [vmem:[%s3 + $0x50] sm:$0xff]
    %v332 = vld [vmem:[%s3 + $0x58] sm:$0xff]
    %v333 = vld [vmem:[%s3 + $0x60] sm:$0xff]
    %v334 = vld [vmem:[%s3 + $0x68] sm:$0xff]
    %v335 = vld [vmem:[%s3 + $0x70] sm:$0xff]
    %v336 = vld [vmem:[%s3 + $0x78] sm:$0xff]
    %v337 = vld [vmem:[%s3 + $0x80] sm:$0xff]
    %v338 = vld [vmem:[%s3 + $0x88] sm:$0xff]
    %v339 = vld [vmem:[%s3 + $0x90] sm:$0xff]
    %v340 = vld [vmem:[%s3 + $0x98] sm:$0xff]
    %v341 = vld [vmem:[%s3 + $0xa0] sm:$0xff]
    %v342 = vld [vmem:[%s3 + $0xa8] sm:$0xff]
    %v343 = vld [vmem:[%s3 + $0xb0] sm:$0xff]
    %v344 = vld [vmem:[%s3 + $0xb8] sm:$0xff]
    %v345 = vld [vmem:[%s3 + $0xc0] sm:$0xff]
    %v346 = vld [vmem:[%s3 + $0xc8] sm:$0xff]
    %v347 = vld [vmem:[%s3 + $0xd0] sm:$0xff]
    %v348 = vld [vmem:[%s3 + $0xd8] sm:$0xff]
    %v349 = vld [vmem:[%s3 + $0xe0] sm:$0xff]
    %v350 = vld [vmem:[%s3 + $0xe8] sm:$0xff]
    %v351 = vld [vmem:[%s3 + $0xf0] sm:$0xff]
    %v352 = vld [vmem:[%s3 + $0xf8] sm:$0xff]
    %v353 = vld [vmem:[%s3 + $0x100] sm:$0xff]
    %v354 = vld [vmem:[%s3 + $0x108] sm:$0xff]
    %v355 = vld [vmem:[%s3 + $0x110] sm:$0xff]
    %v356 = vld [vmem:[%s3 + $0x118] sm:$0xff]
    %v357 = vld [vmem:[%s3 + $0x120] sm:$0xff]
    %v358 = vld [vmem:[%s3 + $0x128] sm:$0xff]
    %v359 = vld [vmem:[%s3 + $0x130] sm:$0xff]
    %v360 = vld [vmem:[%s3 + $0x138] sm:$0xff]
    %v361 = vld [vmem:[%s3 + $0x140] sm:$0xff]
    %v362 = vld [vmem:[%s3 + $0x148] sm:$0xff]
    %v363 = vld [vmem:[%s3 + $0x150] sm:$0xff]
    %v364 = vld [vmem:[%s3 + $0x158] sm:$0xff]
    %v365 = vld [vmem:[%s3 + $0x160] sm:$0xff]
    %v366 = vld [vmem:[%s3 + $0x168] sm:$0xff]
    %v367 = vld [vmem:[%s3 + $0x170] sm:$0xff]
    %v368 = vld [vmem:[%s3 + $0x178] sm:$0xff]
    %v369 = vld [vmem:[%s3 + $0x180] sm:$0xff]
    %v370 = vld [vmem:[%s3 + $0x188] sm:$0xff]
    %v371 = vld [vmem:[%s3 + $0x190] sm:$0xff]
    %v372 = vld [vmem:[%s3 + $0x198] sm:$0xff]
    %v373 = vld [vmem:[%s3 + $0x1a0] sm:$0xff]
    %v374 = vld [vmem:[%s3 + $0x1a8] sm:$0xff]
    %v375 = vld [vmem:[%s3 + $0x1b0] sm:$0xff]
    %v376 = vld [vmem:[%s3 + $0x1b8] sm:$0xff]
    %v377 = vld [vmem:[%s3 + $0x1c0] sm:$0xff]
    %v378 = vld [vmem:[%s3 + $0x1c8] sm:$0xff]
    %v379 = vld [vmem:[%s3 + $0x1d0] sm:$0xff]
    %v380 = vld [vmem:[%s3 + $0x1d8] sm:$0xff]
    %v381 = vld [vmem:[%s3 + $0x1e0] sm:$0xf]
    %v382 = vld [vmem:[%s4] sm:$0x1]
    %v384 = vlaneseq
    %v385 = vshrl.u32 %v384, 7
    %v386 = vsub.s32 0, %v385
    %v387 = vrot.slane %v382, %v386
    %v390 = vsel %vm174, %v381, 0
    %392 = vmatprep.subr.mxu0 0.0
    %393 = vmatpush1.msra.mxu0 %v321
    %394 = vmatprep.subr.mxu0 0.0
    %395 = vmatpush1.msra.mxu0 %v322
    %396 = vmatprep.subr.mxu0 0.0
    %397 = vmatpush1.msra.mxu0 %v323
    %398 = vmatprep.subr.mxu0 0.0
    %399 = vmatpush1.msra.mxu0 %v324
    %400 = vmatprep.subr.mxu0 0.0
    %401 = vmatpush1.msra.mxu0 %v325
    %402 = vmatprep.subr.mxu0 0.0
    %403 = vmatpush1.msra.mxu0 %v326
    %404 = vmatprep.subr.mxu0 0.0
    %405 = vmatpush1.msra.mxu0 %v327
    %406 = vmatprep.subr.mxu0 0.0
    %407 = vmatpush1.msra.mxu0 %v328
    %408 = vmatprep.subr.mxu0 0.0
    %409 = vmatpush1.msra.mxu0 %v329
    %410 = vmatprep.subr.mxu0 0.0
    %411 = vmatpush1.msra.mxu0 %v330
    %412 = vmatprep.subr.mxu0 0.0
    %413 = vmatpush1.msra.mxu0 %v331
    %414 = vmatprep.subr.mxu0 0.0
    %415 = vmatpush1.msra.mxu0 %v332
    %416 = vmatprep.subr.mxu0 0.0
    %417 = vmatpush1.msra.mxu0 %v333
    %418 = vmatprep.subr.mxu0 0.0
    %419 = vmatpush1.msra.mxu0 %v334
    %420 = vmatprep.subr.mxu0 0.0
    %421 = vmatpush1.msra.mxu0 %v335
    %422 = vmatprep.subr.mxu0 0.0
    %423 = vmatpush1.msra.mxu0 %v336
    %424 = vmatprep.subr.mxu0 0.0
    %425 = vmatpush1.msra.mxu0 %v337
    %426 = vmatprep.subr.mxu0 0.0
    %427 = vmatpush1.msra.mxu0 %v338
    %428 = vmatprep.subr.mxu0 0.0
    %429 = vmatpush1.msra.mxu0 %v339
    %430 = vmatprep.subr.mxu0 0.0
    %431 = vmatpush1.msra.mxu0 %v340
    %432 = vmatprep.subr.mxu0 0.0
    %433 = vmatpush1.msra.mxu0 %v341
    %434 = vmatprep.subr.mxu0 0.0
    %435 = vmatpush1.msra.mxu0 %v342
    %436 = vmatprep.subr.mxu0 0.0
    %437 = vmatpush1.msra.mxu0 %v343
    %438 = vmatprep.subr.mxu0 0.0
    %439 = vmatpush1.msra.mxu0 %v344
    %440 = vmatprep.subr.mxu0 0.0
    %441 = vmatpush1.msra.mxu0 %v345
    %442 = vmatprep.subr.mxu0 0.0
    %443 = vmatpush1.msra.mxu0 %v346
    %444 = vmatprep.subr.mxu0 0.0
    %445 = vmatpush1.msra.mxu0 %v347
    %446 = vmatprep.subr.mxu0 0.0
    %447 = vmatpush1.msra.mxu0 %v348
    %448 = vmatprep.subr.mxu0 0.0
    %449 = vmatpush1.msra.mxu0 %v349
    %450 = vmatprep.subr.mxu0 0.0
    %451 = vmatpush1.msra.mxu0 %v350
    %452 = vmatprep.subr.mxu0 0.0
    %453 = vmatpush1.msra.mxu0 %v351
    %454 = vmatprep.subr.mxu0 0.0
    %455 = vmatpush1.msra.mxu0 %v352
    %456 = vmatprep.mubr.f32.mxu0 %v166
    %457 = vmatmul.mubr.f32.gmra.mrb[0].mxu0 %v158
    %v458 = vpop.f32.mrb[0].mxu0
    %v459 = vadd.f32 %v387, %v458
    %v460 = vpop.f32.mrb[0].mxu0
    %461 = vdwg.mxu0
    %462 = vmatprep.subr.mxu0 0.0
    %463 = vmatpush1.msra.mxu0 %v353
    %464 = vmatprep.subr.mxu0 0.0
    %465 = vmatpush1.msra.mxu0 %v354
    %466 = vmatprep.subr.mxu0 0.0
    %467 = vmatpush1.msra.mxu0 %v355
    %468 = vmatprep.subr.mxu0 0.0
    %469 = vmatpush1.msra.mxu0 %v356
    %470 = vmatprep.subr.mxu0 0.0
    %471 = vmatpush1.msra.mxu0 %v357
    %472 = vmatprep.subr.mxu0 0.0
    %473 = vmatpush1.msra.mxu0 %v358
    %474 = vmatprep.subr.mxu0 0.0
    %475 = vmatpush1.msra.mxu0 %v359
    %476 = vmatprep.subr.mxu0 0.0
    %477 = vmatpush1.msra.mxu0 %v360
    %478 = vmatprep.subr.mxu0 0.0
    %479 = vmatpush1.msra.mxu0 %v361
    %480 = vmatprep.subr.mxu0 0.0
    %481 = vmatpush1.msra.mxu0 %v362
    %482 = vmatprep.subr.mxu0 0.0
    %483 = vmatpush1.msra.mxu0 %v363
    %484 = vmatprep.subr.mxu0 0.0
    %485 = vmatpush1.msra.mxu0 %v364
    %486 = vmatprep.subr.mxu0 0.0
    %487 = vmatpush1.msra.mxu0 %v365
    %488 = vmatprep.subr.mxu0 0.0
    %489 = vmatpush1.msra.mxu0 %v366
    %490 = vmatprep.subr.mxu0 0.0
    %491 = vmatpush1.msra.mxu0 %v367
    %492 = vmatprep.subr.mxu0 0.0
    %493 = vmatpush1.msra.mxu0 %v368
    %494 = vmatprep.subr.mxu0 0.0
    %495 = vmatpush1.msra.mxu0 %v369
    %496 = vmatprep.subr.mxu0 0.0
    %497 = vmatpush1.msra.mxu0 %v370
    %498 = vmatprep.subr.mxu0 0.0
    %499 = vmatpush1.msra.mxu0 %v371
    %500 = vmatprep.subr.mxu0 0.0
    %501 = vmatpush1.msra.mxu0 %v372
    %502 = vmatprep.subr.mxu0 0.0
    %503 = vmatpush1.msra.mxu0 %v373
    %504 = vmatprep.subr.mxu0 0.0
    %505 = vmatpush1.msra.mxu0 %v374
    %506 = vmatprep.subr.mxu0 0.0
    %507 = vmatpush1.msra.mxu0 %v375
    %508 = vmatprep.subr.mxu0 0.0
    %509 = vmatpush1.msra.mxu0 %v376
    %510 = vmatprep.subr.mxu0 0.0
    %511 = vmatpush1.msra.mxu0 %v377
    %512 = vmatprep.subr.mxu0 0.0
    %513 = vmatpush1.msra.mxu0 %v378
    %514 = vmatprep.subr.mxu0 0.0
    %515 = vmatpush1.msra.mxu0 %v379
    %516 = vmatprep.subr.mxu0 0.0
    %517 = vmatpush1.msra.mxu0 %v380
    %518 = vmatprep.subr.mxu0 0.0
    %519 = vmatpush1.msra.mxu0 %v390
    %520 = vmatprep.subr.mxu0 0.0
    %521 = vmatpush1.msra.mxu0 0.0
    %522 = vmatprep.subr.mxu0 0.0
    %523 = vmatpush1.msra.mxu0 0.0
    %524 = vmatprep.subr.mxu0 0.0
    %525 = vmatpush1.msra.mxu0 0.0
    %526 = vmatprep.mubr.f32.mxu0 %v172
    %527 = vmatmul.mubr.f32.gmra.mrb[0].mxu0 %v165
    %v528 = vpop.f32.mrb[0].mxu0
    %v529 = vadd.f32 %v459, %v528
    %v530 = vpop.f32.mrb[0].mxu0
    %531 = vdwg.mxu0
    %vm532 = vcmp.ge.f32.partialorder %v529, 0.0
    %v533 = vmul.f32 %v529, 0.01
    %v534 = vsel %vm532, %v529, %v533
    %vm535 = vcmask 254976
    %536 = vst.msk [vmem:[#allocation2] sm:$0x3] %vm535, %v320
    %537 = vst.msk [vmem:[#allocation4] sm:$0x3] %vm535, %v534
    %v538 = vadd.f32 %v320, %v534
    %v539 = vld [vmem:[%s6] sm:$0xff]
    %v540 = vld [vmem:[%s6 + $0x8] sm:$0xff]
    %v541 = vld [vmem:[%s6 + $0x10] sm:$0x3]
    %v542 = vld [vmem:[%s5] sm:$0xff]
    %v543 = vld [vmem:[%s5 + $0x8] sm:$0xff]
    %v544 = vld [vmem:[%s5 + $0x10] sm:$0xff]
    %v545 = vld [vmem:[%s5 + $0x18] sm:$0xff]
    %v546 = vld [vmem:[%s5 + $0x20] sm:$0xff]
    %v547 = vld [vmem:[%s5 + $0x28] sm:$0xff]
    %v548 = vld [vmem:[%s5 + $0x30] sm:$0xff]
    %v549 = vld [vmem:[%s5 + $0x38] sm:$0xff]
    %vm550 = vcmask 261120
    %v552 = vsel %vm550, %v538, 0
    %554 = vmatprep.subr.mxu0 %v543
    %555 = vmatpush1.msra.mxu0 %v542
    %556 = vmatprep.subr.mxu0 %v545
    %557 = vmatpush1.msra.mxu0 %v544
    %558 = vmatprep.subr.mxu0 %v547
    %559 = vmatpush1.msra.mxu0 %v546
    %560 = vmatprep.subr.mxu0 %v549
    %561 = vmatpush1.msra.mxu0 %v548
    %562 = vmatprep.subr.mxu0 0.0
    %563 = vmatpush1.msra.mxu0 0.0
    %564 = vmatprep.subr.mxu0 0.0
    %565 = vmatpush1.msra.mxu0 0.0
    %566 = vmatprep.subr.mxu0 0.0
    %567 = vmatpush1.msra.mxu0 0.0
    %568 = vmatprep.subr.mxu0 0.0
    %569 = vmatpush1.msra.mxu0 0.0
    %570 = vmatprep.subr.mxu0 0.0
    %571 = vmatpush1.msra.mxu0 0.0
    %572 = vmatprep.subr.mxu0 0.0
    %573 = vmatpush1.msra.mxu0 0.0
    %574 = vmatprep.subr.mxu0 0.0
    %575 = vmatpush1.msra.mxu0 0.0
    %576 = vmatprep.subr.mxu0 0.0
    %577 = vmatpush1.msra.mxu0 0.0
    %578 = vmatprep.subr.mxu0 0.0
    %579 = vmatpush1.msra.mxu0 0.0
    %580 = vmatprep.subr.mxu0 0.0
    %581 = vmatpush1.msra.mxu0 0.0
    %582 = vmatprep.subr.mxu0 0.0
    %583 = vmatpush1.msra.mxu0 0.0
    %584 = vmatprep.subr.mxu0 0.0
    %585 = vmatpush1.msra.mxu0 0.0
    %586 = vmatprep.subr.mxu0 0.0
    %587 = vmatpush1.msra.mxu0 0.0
    %588 = vmatprep.subr.mxu0 0.0
    %589 = vmatpush1.msra.mxu0 0.0
    %590 = vmatprep.subr.mxu0 0.0
    %591 = vmatpush1.msra.mxu0 0.0
    %592 = vmatprep.subr.mxu0 0.0
    %593 = vmatpush1.msra.mxu0 0.0
    %594 = vmatprep.subr.mxu0 0.0
    %595 = vmatpush1.msra.mxu0 0.0
    %596 = vmatprep.subr.mxu0 0.0
    %597 = vmatpush1.msra.mxu0 0.0
    %598 = vmatprep.subr.mxu0 0.0
    %599 = vmatpush1.msra.mxu0 0.0
    %600 = vmatprep.subr.mxu0 0.0
    %601 = vmatpush1.msra.mxu0 0.0
    %602 = vmatprep.subr.mxu0 0.0
    %603 = vmatpush1.msra.mxu0 0.0
    %604 = vmatprep.subr.mxu0 0.0
    %605 = vmatpush1.msra.mxu0 0.0
    %606 = vmatprep.subr.mxu0 0.0
    %607 = vmatpush1.msra.mxu0 0.0
    %608 = vmatprep.subr.mxu0 0.0
    %609 = vmatpush1.msra.mxu0 0.0
    %610 = vmatprep.subr.mxu0 0.0
    %611 = vmatpush1.msra.mxu0 0.0
    %612 = vmatprep.subr.mxu0 0.0
    %613 = vmatpush1.msra.mxu0 0.0
    %614 = vmatprep.subr.mxu0 0.0
    %615 = vmatpush1.msra.mxu0 0.0
    %616 = vmatprep.subr.mxu0 0.0
    %617 = vmatpush1.msra.mxu0 0.0
    %618 = vmatprep.mubr.f32.mxu0 0.0
    %619 = vmatmul.mubr.f32.gmra.mrb[0].mxu0 %v552
    %v620 = vpop.f32.mrb[0].mxu0
    %v621 = vadd.f32 0.0, %v620
    %v622 = vpop.f32.mrb[0].mxu0
    %v623 = vadd.f32 0.0, %v622
    %624 = vdwg.mxu0
    %vm625 = vcmask 15360
    %v627 = vsel %vm625, %v539, 0
    %v630 = vsel %vm625, %v540, 0
    %v633 = vsel %vm625, %v541, 0
    %vm635 = vcmask 1041408
    %v637 = vsel %vm635, %v621, 0
    %v640 = vsel %vm635, %v623, 0
    %642 = vmatprep.subr.mxu0 %v640
    %643 = vmatpush1.msra.mxu0 %v637
    %644 = vmatprep.subr.mxu0 0.0
    %645 = vmatpush1.msra.mxu0 0.0
    %646 = vmatprep.subr.mxu0 0.0
    %647 = vmatpush1.msra.mxu0 0.0
    %648 = vmatprep.subr.mxu0 0.0
    %649 = vmatpush1.msra.mxu0 0.0
    %650 = vmatprep.subr.mxu0 0.0
    %651 = vmatpush1.msra.mxu0 0.0
    %652 = vmatprep.subr.mxu0 0.0
    %653 = vmatpush1.msra.mxu0 0.0
    %654 = vmatprep.subr.mxu0 0.0
    %655 = vmatpush1.msra.mxu0 0.0
    %656 = vmatprep.subr.mxu0 0.0
    %657 = vmatpush1.msra.mxu0 0.0
    %658 = vmatprep.subr.mxu0 0.0
    %659 = vmatpush1.msra.mxu0 0.0
    %660 = vmatprep.subr.mxu0 0.0
    %661 = vmatpush1.msra.mxu0 0.0
    %662 = vmatprep.subr.mxu0 0.0
    %663 = vmatpush1.msra.mxu0 0.0
    %664 = vmatprep.subr.mxu0 0.0
    %665 = vmatpush1.msra.mxu0 0.0
    %666 = vmatprep.subr.mxu0 0.0
    %667 = vmatpush1.msra.mxu0 0.0
    %668 = vmatprep.subr.mxu0 0.0
    %669 = vmatpush1.msra.mxu0 0.0
    %670 = vmatprep.subr.mxu0 0.0
    %671 = vmatpush1.msra.mxu0 0.0
    %672 = vmatprep.subr.mxu0 0.0
    %673 = vmatpush1.msra.mxu0 0.0
    %674 = vmatprep.subr.mxu0 0.0
    %675 = vmatpush1.msra.mxu0 0.0
    %676 = vmatprep.subr.mxu0 0.0
    %677 = vmatpush1.msra.mxu0 0.0
    %678 = vmatprep.subr.mxu0 0.0
    %679 = vmatpush1.msra.mxu0 0.0
    %680 = vmatprep.subr.mxu0 0.0
    %681 = vmatpush1.msra.mxu0 0.0
    %682 = vmatprep.subr.mxu0 0.0
    %683 = vmatpush1.msra.mxu0 0.0
    %684 = vmatprep.subr.mxu0 0.0
    %685 = vmatpush1.msra.mxu0 0.0
    %686 = vmatprep.subr.mxu0 0.0
    %687 = vmatpush1.msra.mxu0 0.0
    %688 = vmatprep.subr.mxu0 0.0
    %689 = vmatpush1.msra.mxu0 0.0
    %690 = vmatprep.subr.mxu0 0.0
    %691 = vmatpush1.msra.mxu0 0.0
    %692 = vmatprep.subr.mxu0 0.0
    %693 = vmatpush1.msra.mxu0 0.0
    %694 = vmatprep.subr.mxu0 0.0
    %695 = vmatpush1.msra.mxu0 0.0
    %696 = vmatprep.subr.mxu0 0.0
    %697 = vmatpush1.msra.mxu0 0.0
    %698 = vmatprep.subr.mxu0 0.0
    %699 = vmatpush1.msra.mxu0 0.0
    %700 = vmatprep.subr.mxu0 0.0
    %701 = vmatpush1.msra.mxu0 0.0
    %702 = vmatprep.subr.mxu0 0.0
    %703 = vmatpush1.msra.mxu0 0.0
    %704 = vmatprep.subr.mxu0 0.0
    %705 = vmatpush1.msra.mxu0 0.0
    %706 = vmatprep.mubr.f32.mxu0 0.0
    %707 = vmatmul.mubr.f32.gmra.mrb[0].mxu0 %v627
    %v708 = vpop.f32.mrb[0].mxu0
    %v709 = vadd.f32 0.0, %v708
    %v710 = vpop.f32.mrb[0].mxu0
    %v711 = vadd.f32 0.0, %v710
    %712 = vmatprep.mubr.f32.mxu0 0.0
    %713 = vmatmul.mubr.f32.gmra.mrb[0].mxu0 %v630
    %v714 = vpop.f32.mrb[0].mxu0
    %v715 = vadd.f32 0.0, %v714
    %v716 = vpop.f32.mrb[0].mxu0
    %v717 = vadd.f32 0.0, %v716
    %718 = vmatprep.mubr.f32.mxu0 0.0
    %719 = vmatmul.mubr.f32.gmra.mrb[0].mxu0 %v633
    %v720 = vpop.f32.mrb[0].mxu0
    %v721 = vadd.f32 0.0, %v720
    %v722 = vpop.f32.mrb[0].mxu0
    %v723 = vadd.f32 0.0, %v722
    %724 = vdwg.mxu0
    %v725 = vld [vmem:[%s7] sm:$0xf]
    %v726 = vadd.f32 %v709, %v715
    %v727 = vsel %vm635, %v721, 0.0
    %v728 = vadd.f32 %v726, %v727
    %v729 = vrot.slane %v728, 4
    %v730 = vadd.f32 %v728, %v729
    %v731 = vrot.slane %v730, 2
    %v732 = vadd.f32 %v730, %v731
    %v733 = vrot.slane %v732, 1
    %v734 = vadd.f32 %v732, %v733
    %v735 = vadd.f32 %v711, %v717
    %v736 = vsel %vm635, %v723, 0.0
    %v737 = vadd.f32 %v735, %v736
    %v738 = vrot.slane %v737, 4
    %v739 = vadd.f32 %v737, %v738
    %v740 = vrot.slane %v739, 2
    %v741 = vadd.f32 %v739, %v740
    %v742 = vrot.slane %v741, 1
    %v743 = vadd.f32 %v741, %v742
    %v744 = vrcp.pop 18.0
    %v745 = vmul.f32 %v734, %v744
    %v746 = vmul.f32 %v743, %v744
    %v747 = vmul.f32 %v709, %v709
    %v748 = vmul.f32 %v711, %v711
    %v749 = vmul.f32 %v715, %v715
    %v750 = vmul.f32 %v717, %v717
    %v751 = vmul.f32 %v721, %v721
    %v752 = vmul.f32 %v723, %v723
    %v753 = vadd.f32 %v747, %v749
    %v754 = vsel %vm635, %v751, 0.0
    %v755 = vadd.f32 %v753, %v754
    %v756 = vrot.slane %v755, 4
    %v757 = vadd.f32 %v755, %v756
    %v758 = vrot.slane %v757, 2
    %v759 = vadd.f32 %v757, %v758
    %v760 = vrot.slane %v759, 1
    %v761 = vadd.f32 %v759, %v760
    %v762 = vadd.f32 %v748, %v750
    %v763 = vsel %vm635, %v752, 0.0
    %v764 = vadd.f32 %v762, %v763
    %v765 = vrot.slane %v764, 4
    %v766 = vadd.f32 %v764, %v765
    %v767 = vrot.slane %v766, 2
    %v768 = vadd.f32 %v766, %v767
    %v769 = vrot.slane %v768, 1
    %v770 = vadd.f32 %v768, %v769
    %v771 = vmul.f32 %v761, %v744
    %v772 = vmul.f32 %v770, %v744
    %v773 = vmul.f32 %v745, %v745
    %v774 = vmul.f32 %v746, %v746
    %v775 = vsub.f32 %v771, %v773
    %v776 = vsub.f32 %v772, %v774
    %v777 = vmax.f32 %v775, 0.0
    %v778 = vmax.f32 %v776, 0.0
    %v779 = vadd.f32 %v777, 1e-05
    %v780 = vadd.f32 %v778, 1e-05
    %v781 = vrsqrt.pop %v779
    %v782 = vrsqrt.pop %v780
    %v785 = vcombine.low %v781, %v782
    %v787 = vunpack.c.l.s4 1983009808
    %v788 = vunpack.c.0.s8 %v787
    %v789 = vlaneseq
    %v790 = vshrl.u32 %v789, 7
    %v791 = vsub.s32 %v788, %v790
    %v792 = vrot.slane %v785, %v791
    %v794 = vmul.f32 %v725, %v792
    %v796 = vlaneseq
    %v797 = vshrl.u32 %v796, 7
    %v798 = vsub.s32 0, %v797
    %v799 = vrot.slane %v794, %v798
    %v800 = vlaneseq
    %v801 = vshrl.u32 %v800, 7
    %v802 = vsub.s32 2, %v801
    %v803 = vrot.slane %v794, %v802
    %v806 = vlaneseq
    %v807 = vshrl.u32 %v806, 7
    %v808 = vsub.s32 0, %v807
    %v809 = vrot.slane %v799, %v808
    %v810 = vlaneseq
    %v811 = vshrl.u32 %v810, 7
    %v812 = vsub.s32 0, %v811
    %v813 = vrot.slane %v803, %v812
    %v814 = vmul.f32 %v709, %v809
    %v815 = vmul.f32 %v711, %v813
    %v816 = vmul.f32 %v715, %v809
    %v817 = vmul.f32 %v717, %v813
    %v818 = vmul.f32 %v721, %v809
    %v819 = vmul.f32 %v723, %v813
    %v820 = vmul.f32 %v745, %v799
    %v821 = vmul.f32 %v746, %v803
    %v824 = vcombine.low %v820, %v821
    %v826 = vunpack.c.l.s4 1983009808
    %v827 = vunpack.c.0.s8 %v826
    %v828 = vlaneseq
    %v829 = vshrl.u32 %v828, 7
    %v830 = vsub.s32 %v827, %v829
    %v831 = vrot.slane %v824, %v830
    %v832 = vrot.slane %v831, 7
    %v834 = vsub.f32 %v725, %v832
    %v836 = vlaneseq
    %v837 = vshrl.u32 %v836, 7
    %v838 = vsub.s32 1, %v837
    %v839 = vrot.slane %v834, %v838
    %v840 = vlaneseq
    %v841 = vshrl.u32 %v840, 7
    %v842 = vsub.s32 3, %v841
    %v843 = vrot.slane %v834, %v842
    %v846 = vlaneseq
    %v847 = vshrl.u32 %v846, 7
    %v848 = vsub.s32 1, %v847
    %v849 = vrot.slane %v839, %v848
    %v850 = vlaneseq
    %v851 = vshrl.u32 %v850, 7
    %v852 = vsub.s32 1, %v851
    %v853 = vrot.slane %v843, %v852
    %v854 = vadd.f32 %v814, %v849
    %v855 = vadd.f32 %v815, %v853
    %v856 = vadd.f32 %v816, %v849
    %v857 = vadd.f32 %v817, %v853
    %v858 = vadd.f32 %v818, %v849
    %v859 = vadd.f32 %v819, %v853
    %vm860 = vcmp.ge.f32.partialorder %v854, 0.0
    %vm861 = vcmp.ge.f32.partialorder %v855, 0.0
    %vm862 = vcmp.ge.f32.partialorder %v856, 0.0
    %vm863 = vcmp.ge.f32.partialorder %v857, 0.0
    %vm864 = vcmp.ge.f32.partialorder %v858, 0.0
    %vm865 = vcmp.ge.f32.partialorder %v859, 0.0
    %v866 = vmul.f32 %v854, 0.01
    %v867 = vmul.f32 %v855, 0.01
    %v868 = vmul.f32 %v856, 0.01
    %v869 = vmul.f32 %v857, 0.01
    %v870 = vmul.f32 %v858, 0.01
    %v871 = vmul.f32 %v859, 0.01
    %v872 = vsel %vm860, %v854, %v866
    %v873 = vsel %vm861, %v855, %v867
    %v874 = vsel %vm862, %v856, %v868
    %v875 = vsel %vm863, %v857, %v869
    %v876 = vsel %vm864, %v858, %v870
    %v877 = vsel %vm865, %v859, %v871
    %v878 = vld [vmem:[%s10] sm:$0xff]
    %v879 = vld [vmem:[%s10 + $0x8] sm:$0xff]
    %v880 = vld [vmem:[%s10 + $0x10] sm:$0xff]
    %v881 = vld [vmem:[%s10 + $0x18] sm:$0xff]
    %v882 = vld [vmem:[%s10 + $0x20] sm:$0xff]
    %v883 = vld [vmem:[%s10 + $0x28] sm:$0xff]
    %v884 = vld [vmem:[%s10 + $0x30] sm:$0xff]
    %v885 = vld [vmem:[%s10 + $0x38] sm:$0xff]
    %v886 = vld [vmem:[%s10 + $0x40] sm:$0xff]
    %v887 = vpack.c.bf16 %v874, %v872
    %v888 = vpack.c.bf16 %v875, %v873
    %v889 = vpack.c.bf16 %v876, %v876
    %v890 = vpack.c.bf16 %v877, %v877
    %v891 = vld [vmem:[%s9] sm:$0xff]
    %v892 = vld [vmem:[%s9 + $0x8] sm:$0xff]
    %v893 = vld [vmem:[%s9 + $0x10] sm:$0x3]
    %v894 = vld [vmem:[%s8] sm:$0xf]
    %v895 = vld [vmem:[%s8 + $0x4] sm:$0xf]
    %v896 = vld [vmem:[%s8 + $0x8] sm:$0xf]
    %v897 = vld [vmem:[%s8 + $0xc] sm:$0xf]
    %v898 = vld [vmem:[%s8 + $0x10] sm:$0xf]
    %v899 = vld [vmem:[%s8 + $0x14] sm:$0xf]
    %v900 = vld [vmem:[%s8 + $0x18] sm:$0xf]
    %v901 = vld [vmem:[%s8 + $0x1c] sm:$0xf]
    %v902 = vld [vmem:[%s8 + $0x20] sm:$0xf]
    %v903 = vld [vmem:[%s8 + $0x24] sm:$0xf]
    %v904 = vld [vmem:[%s8 + $0x28] sm:$0xf]
    %v905 = vld [vmem:[%s8 + $0x2c] sm:$0xf]
    %v906 = vld [vmem:[%s8 + $0x30] sm:$0xf]
    %v907 = vld [vmem:[%s8 + $0x34] sm:$0xf]
    %v908 = vld [vmem:[%s8 + $0x38] sm:$0xf]
    %v909 = vld [vmem:[%s8 + $0x3c] sm:$0xf]
    %v910 = vld [vmem:[%s8 + $0x40] sm:$0xf]
    %v911 = vld [vmem:[%s8 + $0x44] sm:$0xf]
    %v912 = vld [vmem:[%s8 + $0x48] sm:$0xf]
    %v913 = vld [vmem:[%s8 + $0x4c] sm:$0xf]
    %v914 = vld [vmem:[%s8 + $0x50] sm:$0xf]
    %v915 = vld [vmem:[%s8 + $0x54] sm:$0xf]
    %v916 = vld [vmem:[%s8 + $0x58] sm:$0xf]
    %v917 = vld [vmem:[%s8 + $0x5c] sm:$0xf]
    %v918 = vld [vmem:[%s8 + $0x60] sm:$0xf]
    %v919 = vld [vmem:[%s8 + $0x64] sm:$0xf]
    %v920 = vld [vmem:[%s8 + $0x68] sm:$0xf]
    %v921 = vld [vmem:[%s8 + $0x6c] sm:$0xf]
    %v922 = vld [vmem:[%s8 + $0x70] sm:$0xf]
    %v923 = vld [vmem:[%s8 + $0x74] sm:$0xf]
    %v924 = vld [vmem:[%s8 + $0x78] sm:$0xf]
    %v925 = vld [vmem:[%s8 + $0x7c] sm:$0xf]
    %v958 = vunpack.c.l.b16 %v894
    %v959 = vunpack.c.l.b16 %v895
    %v960 = vunpack.c.l.b16 %v896
    %v961 = vunpack.c.l.b16 %v897
    %v962 = vunpack.c.l.b16 %v898
    %v963 = vunpack.c.l.b16 %v899
    %v964 = vunpack.c.l.b16 %v900
    %v965 = vunpack.c.l.b16 %v901
    %v966 = vunpack.c.l.b16 %v902
    %v967 = vunpack.c.l.b16 %v903
    %v968 = vunpack.c.l.b16 %v904
    %v969 = vunpack.c.l.b16 %v905
    %v970 = vunpack.c.l.b16 %v906
    %v971 = vunpack.c.l.b16 %v907
    %v972 = vunpack.c.l.b16 %v908
    %v973 = vunpack.c.l.b16 %v909
    %v974 = vunpack.c.l.b16 %v910
    %v975 = vunpack.c.l.b16 %v911
    %v976 = vunpack.c.l.b16 %v912
    %v977 = vunpack.c.l.b16 %v913
    %v978 = vunpack.c.l.b16 %v914
    %v979 = vunpack.c.l.b16 %v915
    %v980 = vunpack.c.l.b16 %v916
    %v981 = vunpack.c.l.b16 %v917
    %v982 = vunpack.c.l.b16 %v918
    %v983 = vunpack.c.l.b16 %v919
    %v984 = vunpack.c.l.b16 %v920
    %v985 = vunpack.c.l.b16 %v921
    %v986 = vunpack.c.l.b16 %v922
    %v987 = vunpack.c.l.b16 %v923
    %v988 = vunpack.c.l.b16 %v924
    %v989 = vunpack.c.l.b16 %v925
    %v990 = vpack.c.b16 %v959, %v958
    %v991 = vpack.c.b16 %v961, %v960
    %v992 = vpack.c.b16 %v963, %v962
    %v993 = vpack.c.b16 %v965, %v964
    %v994 = vpack.c.b16 %v967, %v966
    %v995 = vpack.c.b16 %v969, %v968
    %v996 = vpack.c.b16 %v971, %v970
    %v997 = vpack.c.b16 %v973, %v972
    %v998 = vpack.c.b16 %v975, %v974
    %v999 = vpack.c.b16 %v977, %v976
    %v1000 = vpack.c.b16 %v979, %v978
    %v1001 = vpack.c.b16 %v981, %v980
    %v1002 = vpack.c.b16 %v983, %v982
    %v1003 = vpack.c.b16 %v985, %v984
    %v1004 = vpack.c.b16 %v987, %v986
    %v1005 = vpack.c.b16 %v989, %v988
    %1022 = vmatprep.subr.bf16.mxu0 0
    %1023 = vmatpush1.bf16.msra.mxu0 %v990
    %1024 = vmatprep.subr.bf16.mxu0 0
    %1025 = vmatpush1.bf16.msra.mxu0 %v991
    %1026 = vmatprep.subr.bf16.mxu0 0
    %1027 = vmatpush1.bf16.msra.mxu0 %v992
    %1028 = vmatprep.subr.bf16.mxu0 0
    %1029 = vmatpush1.bf16.msra.mxu0 %v993
    %1030 = vmatprep.subr.bf16.mxu0 0
    %1031 = vmatpush1.bf16.msra.mxu0 %v994
    %1032 = vmatprep.subr.bf16.mxu0 0
    %1033 = vmatpush1.bf16.msra.mxu0 %v995
    %1034 = vmatprep.subr.bf16.mxu0 0
    %1035 = vmatpush1.bf16.msra.mxu0 %v996
    %1036 = vmatprep.subr.bf16.mxu0 0
    %1037 = vmatpush1.bf16.msra.mxu0 %v997
    %1038 = vmatprep.subr.bf16.mxu0 0
    %1039 = vmatpush1.bf16.msra.mxu0 %v998
    %1040 = vmatprep.subr.bf16.mxu0 0
    %1041 = vmatpush1.bf16.msra.mxu0 %v999
    %1042 = vmatprep.subr.bf16.mxu0 0
    %1043 = vmatpush1.bf16.msra.mxu0 %v1000
    %1044 = vmatprep.subr.bf16.mxu0 0
    %1045 = vmatpush1.bf16.msra.mxu0 %v1001
    %1046 = vmatprep.subr.bf16.mxu0 0
    %1047 = vmatpush1.bf16.msra.mxu0 %v1002
    %1048 = vmatprep.subr.bf16.mxu0 0
    %1049 = vmatpush1.bf16.msra.mxu0 %v1003
    %1050 = vmatprep.subr.bf16.mxu0 0
    %1051 = vmatpush1.bf16.msra.mxu0 %v1004
    %1052 = vmatprep.subr.bf16.mxu0 0
    %1053 = vmatpush1.bf16.msra.mxu0 %v1005
    %1054 = vmatprep.mubr.bf16.mxu0 %v888
    %1055 = vmatmul.mubr.bf16.gmra.mrb[0].mxu0 %v887
    %v1056 = vpop.f32.mrb[0].mxu0
    %v1057 = vadd.f32 0.0, %v1056
    %v1058 = vpop.f32.mrb[0].mxu0
    %v1059 = vpop.f32.mrb[0].mxu0
    %v1060 = vadd.f32 0.0, %v1059
    %v1061 = vpop.f32.mrb[0].mxu0
    %1062 = vmatprep.mubr.bf16.mxu0 %v890
    %1063 = vmatmul.mubr.bf16.gmra.mrb[0].mxu0 %v889
    %v1064 = vpop.f32.mrb[0].mxu0
    %v1065 = vpop.f32.mrb[0].mxu0
    %v1066 = vpop.f32.mrb[0].mxu0
    %v1067 = vpop.f32.mrb[0].mxu0
    %1068 = vdwg.mxu0
    %v1071 = vrot.slane %v1057, 4
    %v1072 = vrot.slane %v1060, 4
    %v1073 = vsel %vm174, %v1071, %v1072
    %v1077 = vsel %vm174, 0.0, %v1071
    %1079 = vset.pattern.permute.xlu0 0
    %1080 = vperm.xlu0 %1079, %v891
    %v1081 = vpop.permute.xlu0 %1080
    %1084 = vset.pattern.permute.xlu0 0
    %1085 = vperm.xlu0 %1084, %v892
    %v1086 = vpop.permute.xlu0 %1085
    %1089 = vset.pattern.permute.xlu0 0
    %1090 = vperm.xlu0 %1089, %v893
    %v1091 = vpop.permute.xlu0 %1090
    %v1093 = vmul.f32 %v1081, %v1077
    %v1094 = vmul.f32 %v1086, %v1073
    %v1095 = vmul.f32 %v1091, %v1072
    %s1096 = scalar_lea.vmem %s8, 128
    %v1097 = vld [vmem:[%s1096] sm:$0xf]
    %v1098 = vld [vmem:[%s1096 + $0x4] sm:$0xf]
    %v1099 = vld [vmem:[%s1096 + $0x8] sm:$0xf]
    %v1100 = vld [vmem:[%s1096 + $0xc] sm:$0xf]
    %v1101 = vld [vmem:[%s1096 + $0x10] sm:$0xf]
    %v1102 = vld [vmem:[%s1096 + $0x14] sm:$0xf]
    %v1103 = vld [vmem:[%s1096 + $0x18] sm:$0xf]
    %v1104 = vld [vmem:[%s1096 + $0x1c] sm:$0xf]
    %v1105 = vld [vmem:[%s1096 + $0x20] sm:$0xf]
    %v1106 = vld [vmem:[%s1096 + $0x24] sm:$0xf]
    %v1107 = vld [vmem:[%s1096 + $0x28] sm:$0xf]
    %v1108 = vld [vmem:[%s1096 + $0x2c] sm:$0xf]
    %v1109 = vld [vmem:[%s1096 + $0x30] sm:$0xf]
    %v1110 = vld [vmem:[%s1096 + $0x34] sm:$0xf]
    %v1111 = vld [vmem:[%s1096 + $0x38] sm:$0xf]
    %v1112 = vld [vmem:[%s1096 + $0x3c] sm:$0xf]
    %v1113 = vld [vmem:[%s1096 + $0x40] sm:$0xf]
    %v1114 = vld [vmem:[%s1096 + $0x44] sm:$0xf]
    %v1115 = vld [vmem:[%s1096 + $0x48] sm:$0xf]
    %v1116 = vld [vmem:[%s1096 + $0x4c] sm:$0xf]
    %v1117 = vld [vmem:[%s1096 + $0x50] sm:$0xf]
    %v1118 = vld [vmem:[%s1096 + $0x54] sm:$0xf]
    %v1119 = vld [vmem:[%s1096 + $0x58] sm:$0xf]
    %v1120 = vld [vmem:[%s1096 + $0x5c] sm:$0xf]
    %v1121 = vld [vmem:[%s1096 + $0x60] sm:$0xf]
    %v1122 = vld [vmem:[%s1096 + $0x64] sm:$0xf]
    %v1123 = vld [vmem:[%s1096 + $0x68] sm:$0xf]
    %v1124 = vld [vmem:[%s1096 + $0x6c] sm:$0xf]
    %v1125 = vld [vmem:[%s1096 + $0x70] sm:$0xf]
    %v1126 = vld [vmem:[%s1096 + $0x74] sm:$0xf]
    %v1127 = vld [vmem:[%s1096 + $0x78] sm:$0xf]
    %v1128 = vld [vmem:[%s1096 + $0x7c] sm:$0xf]
    %v1161 = vunpack.c.l.b16 %v1097
    %v1162 = vunpack.c.l.b16 %v1098
    %v1163 = vunpack.c.l.b16 %v1099
    %v1164 = vunpack.c.l.b16 %v1100
    %v1165 = vunpack.c.l.b16 %v1101
    %v1166 = vunpack.c.l.b16 %v1102
    %v1167 = vunpack.c.l.b16 %v1103
    %v1168 = vunpack.c.l.b16 %v1104
    %v1169 = vunpack.c.l.b16 %v1105
    %v1170 = vunpack.c.l.b16 %v1106
    %v1171 = vunpack.c.l.b16 %v1107
    %v1172 = vunpack.c.l.b16 %v1108
    %v1173 = vunpack.c.l.b16 %v1109
    %v1174 = vunpack.c.l.b16 %v1110
    %v1175 = vunpack.c.l.b16 %v1111
    %v1176 = vunpack.c.l.b16 %v1112
    %v1177 = vunpack.c.l.b16 %v1113
    %v1178 = vunpack.c.l.b16 %v1114
    %v1179 = vunpack.c.l.b16 %v1115
    %v1180 = vunpack.c.l.b16 %v1116
    %v1181 = vunpack.c.l.b16 %v1117
    %v1182 = vunpack.c.l.b16 %v1118
    %v1183 = vunpack.c.l.b16 %v1119
    %v1184 = vunpack.c.l.b16 %v1120
    %v1185 = vunpack.c.l.b16 %v1121
    %v1186 = vunpack.c.l.b16 %v1122
    %v1187 = vunpack.c.l.b16 %v1123
    %v1188 = vunpack.c.l.b16 %v1124
    %v1189 = vunpack.c.l.b16 %v1125
    %v1190 = vunpack.c.l.b16 %v1126
    %v1191 = vunpack.c.l.b16 %v1127
    %v1192 = vunpack.c.l.b16 %v1128
    %v1193 = vpack.c.b16 %v1162, %v1161
    %v1194 = vpack.c.b16 %v1164, %v1163
    %v1195 = vpack.c.b16 %v1166, %v1165
    %v1196 = vpack.c.b16 %v1168, %v1167
    %v1197 = vpack.c.b16 %v1170, %v1169
    %v1198 = vpack.c.b16 %v1172, %v1171
    %v1199 = vpack.c.b16 %v1174, %v1173
    %v1200 = vpack.c.b16 %v1176, %v1175
    %v1201 = vpack.c.b16 %v1178, %v1177
    %v1202 = vpack.c.b16 %v1180, %v1179
    %v1203 = vpack.c.b16 %v1182, %v1181
    %v1204 = vpack.c.b16 %v1184, %v1183
    %v1205 = vpack.c.b16 %v1186, %v1185
    %v1206 = vpack.c.b16 %v1188, %v1187
    %v1207 = vpack.c.b16 %v1190, %v1189
    %v1208 = vpack.c.b16 %v1192, %v1191
    %1225 = vmatprep.subr.bf16.mxu0 0
    %1226 = vmatpush1.bf16.msra.mxu0 %v1193
    %1227 = vmatprep.subr.bf16.mxu0 0
    %1228 = vmatpush1.bf16.msra.mxu0 %v1194
    %1229 = vmatprep.subr.bf16.mxu0 0
    %1230 = vmatpush1.bf16.msra.mxu0 %v1195
    %1231 = vmatprep.subr.bf16.mxu0 0
    %1232 = vmatpush1.bf16.msra.mxu0 %v1196
    %1233 = vmatprep.subr.bf16.mxu0 0
    %1234 = vmatpush1.bf16.msra.mxu0 %v1197
    %1235 = vmatprep.subr.bf16.mxu0 0
    %1236 = vmatpush1.bf16.msra.mxu0 %v1198
    %1237 = vmatprep.subr.bf16.mxu0 0
    %1238 = vmatpush1.bf16.msra.mxu0 %v1199
    %1239 = vmatprep.subr.bf16.mxu0 0
    %1240 = vmatpush1.bf16.msra.mxu0 %v1200
    %1241 = vmatprep.subr.bf16.mxu0 0
    %1242 = vmatpush1.bf16.msra.mxu0 %v1201
    %1243 = vmatprep.subr.bf16.mxu0 0
    %1244 = vmatpush1.bf16.msra.mxu0 %v1202
    %1245 = vmatprep.subr.bf16.mxu0 0
    %1246 = vmatpush1.bf16.msra.mxu0 %v1203
    %1247 = vmatprep.subr.bf16.mxu0 0
    %1248 = vmatpush1.bf16.msra.mxu0 %v1204
    %1249 = vmatprep.subr.bf16.mxu0 0
    %1250 = vmatpush1.bf16.msra.mxu0 %v1205
    %1251 = vmatprep.subr.bf16.mxu0 0
    %1252 = vmatpush1.bf16.msra.mxu0 %v1206
    %1253 = vmatprep.subr.bf16.mxu0 0
    %1254 = vmatpush1.bf16.msra.mxu0 %v1207
    %1255 = vmatprep.subr.bf16.mxu0 0
    %1256 = vmatpush1.bf16.msra.mxu0 %v1208
    %1257 = vmatprep.mubr.bf16.mxu0 %v888
    %1258 = vmatmul.mubr.bf16.gmra.mrb[0].mxu0 %v887
    %v1259 = vpop.f32.mrb[0].mxu0
    %v1260 = vadd.f32 0.0, %v1259
    %v1261 = vpop.f32.mrb[0].mxu0
    %v1262 = vpop.f32.mrb[0].mxu0
    %v1263 = vadd.f32 0.0, %v1262
    %v1264 = vpop.f32.mrb[0].mxu0
    %1265 = vmatprep.mubr.bf16.mxu0 %v890
    %1266 = vmatmul.mubr.bf16.gmra.mrb[0].mxu0 %v889
    %v1267 = vpop.f32.mrb[0].mxu0
    %v1268 = vpop.f32.mrb[0].mxu0
    %v1269 = vpop.f32.mrb[0].mxu0
    %v1270 = vpop.f32.mrb[0].mxu0
    %1271 = vdwg.mxu0
    %vm1274 = vcmask 1042432
    %v1275 = vrot.slane %v1260, 5
    %v1276 = vrot.slane %v1263, 5
    %v1277 = vsel %vm1274, %v1275, %v1276
    %v1281 = vsel %vm1274, 0.0, %v1275
    %1282 = vset.pattern.permute.xlu0 1
    %1283 = vperm.xlu0 %1282, %v891
    %v1284 = vpop.permute.xlu0 %1283
    %1286 = vset.pattern.permute.xlu0 1
    %1287 = vperm.xlu0 %1286, %v892
    %v1288 = vpop.permute.xlu0 %1287
    %1290 = vset.pattern.permute.xlu0 1
    %1291 = vperm.xlu0 %1290, %v893
    %v1292 = vpop.permute.xlu0 %1291
    %v1294 = vmul.f32 %v1284, %v1281
    %v1295 = vmul.f32 %v1288, %v1277
    %v1296 = vmul.f32 %v1292, %v1276
    %v1297 = vadd.f32 %v1093, %v1294
    %v1298 = vadd.f32 %v1094, %v1295
    %v1299 = vadd.f32 %v1095, %v1296
    %s1300 = scalar_lea.vmem %s8, 256
    %v1301 = vld [vmem:[%s1300] sm:$0xf]
    %v1302 = vld [vmem:[%s1300 + $0x4] sm:$0xf]
    %v1303 = vld [vmem:[%s1300 + $0x8] sm:$0xf]
    %v1304 = vld [vmem:[%s1300 + $0xc] sm:$0xf]
    %v1305 = vld [vmem:[%s1300 + $0x10] sm:$0xf]
    %v1306 = vld [vmem:[%s1300 + $0x14] sm:$0xf]
    %v1307 = vld [vmem:[%s1300 + $0x18] sm:$0xf]
    %v1308 = vld [vmem:[%s1300 + $0x1c] sm:$0xf]
    %v1309 = vld [vmem:[%s1300 + $0x20] sm:$0xf]
    %v1310 = vld [vmem:[%s1300 + $0x24] sm:$0xf]
    %v1311 = vld [vmem:[%s1300 + $0x28] sm:$0xf]
    %v1312 = vld [vmem:[%s1300 + $0x2c] sm:$0xf]
    %v1313 = vld [vmem:[%s1300 + $0x30] sm:$0xf]
    %v1314 = vld [vmem:[%s1300 + $0x34] sm:$0xf]
    %v1315 = vld [vmem:[%s1300 + $0x38] sm:$0xf]
    %v1316 = vld [vmem:[%s1300 + $0x3c] sm:$0xf]
    %v1317 = vld [vmem:[%s1300 + $0x40] sm:$0xf]
    %v1318 = vld [vmem:[%s1300 + $0x44] sm:$0xf]
    %v1319 = vld [vmem:[%s1300 + $0x48] sm:$0xf]
    %v1320 = vld [vmem:[%s1300 + $0x4c] sm:$0xf]
    %v1321 = vld [vmem:[%s1300 + $0x50] sm:$0xf]
    %v1322 = vld [vmem:[%s1300 + $0x54] sm:$0xf]
    %v1323 = vld [vmem:[%s1300 + $0x58] sm:$0xf]
    %v1324 = vld [vmem:[%s1300 + $0x5c] sm:$0xf]
    %v1325 = vld [vmem:[%s1300 + $0x60] sm:$0xf]
    %v1326 = vld [vmem:[%s1300 + $0x64] sm:$0xf]
    %v1327 = vld [vmem:[%s1300 + $0x68] sm:$0xf]
    %v1328 = vld [vmem:[%s1300 + $0x6c] sm:$0xf]
    %v1329 = vld [vmem:[%s1300 + $0x70] sm:$0xf]
    %v1330 = vld [vmem:[%s1300 + $0x74] sm:$0xf]
    %v1331 = vld [vmem:[%s1300 + $0x78] sm:$0xf]
    %v1332 = vld [vmem:[%s1300 + $0x7c] sm:$0xf]
    %v1365 = vunpack.c.l.b16 %v1301
    %v1366 = vunpack.c.l.b16 %v1302
    %v1367 = vunpack.c.l.b16 %v1303
    %v1368 = vunpack.c.l.b16 %v1304
    %v1369 = vunpack.c.l.b16 %v1305
    %v1370 = vunpack.c.l.b16 %v1306
    %v1371 = vunpack.c.l.b16 %v1307
    %v1372 = vunpack.c.l.b16 %v1308
    %v1373 = vunpack.c.l.b16 %v1309
    %v1374 = vunpack.c.l.b16 %v1310
    %v1375 = vunpack.c.l.b16 %v1311
    %v1376 = vunpack.c.l.b16 %v1312
    %v1377 = vunpack.c.l.b16 %v1313
    %v1378 = vunpack.c.l.b16 %v1314
    %v1379 = vunpack.c.l.b16 %v1315
    %v1380 = vunpack.c.l.b16 %v1316
    %v1381 = vunpack.c.l.b16 %v1317
    %v1382 = vunpack.c.l.b16 %v1318
    %v1383 = vunpack.c.l.b16 %v1319
    %v1384 = vunpack.c.l.b16 %v1320
    %v1385 = vunpack.c.l.b16 %v1321
    %v1386 = vunpack.c.l.b16 %v1322
    %v1387 = vunpack.c.l.b16 %v1323
    %v1388 = vunpack.c.l.b16 %v1324
    %v1389 = vunpack.c.l.b16 %v1325
    %v1390 = vunpack.c.l.b16 %v1326
    %v1391 = vunpack.c.l.b16 %v1327
    %v1392 = vunpack.c.l.b16 %v1328
    %v1393 = vunpack.c.l.b16 %v1329
    %v1394 = vunpack.c.l.b16 %v1330
    %v1395 = vunpack.c.l.b16 %v1331
    %v1396 = vunpack.c.l.b16 %v1332
    %v1397 = vpack.c.b16 %v1366, %v1365
    %v1398 = vpack.c.b16 %v1368, %v1367
    %v1399 = vpack.c.b16 %v1370, %v1369
    %v1400 = vpack.c.b16 %v1372, %v1371
    %v1401 = vpack.c.b16 %v1374, %v1373
    %v1402 = vpack.c.b16 %v1376, %v1375
    %v1403 = vpack.c.b16 %v1378, %v1377
    %v1404 = vpack.c.b16 %v1380, %v1379
    %v1405 = vpack.c.b16 %v1382, %v1381
    %v1406 = vpack.c.b16 %v1384, %v1383
    %v1407 = vpack.c.b16 %v1386, %v1385
    %v1408 = vpack.c.b16 %v1388, %v1387
    %v1409 = vpack.c.b16 %v1390, %v1389
    %v1410 = vpack.c.b16 %v1392, %v1391
    %v1411 = vpack.c.b16 %v1394, %v1393
    %v1412 = vpack.c.b16 %v1396, %v1395
    %1429 = vmatprep.subr.bf16.mxu0 0
    %1430 = vmatpush1.bf16.msra.mxu0 %v1397
    %1431 = vmatprep.subr.bf16.mxu0 0
    %1432 = vmatpush1.bf16.msra.mxu0 %v1398
    %1433 = vmatprep.subr.bf16.mxu0 0
    %1434 = vmatpush1.bf16.msra.mxu0 %v1399
    %1435 = vmatprep.subr.bf16.mxu0 0
    %1436 = vmatpush1.bf16.msra.mxu0 %v1400
    %1437 = vmatprep.subr.bf16.mxu0 0
    %1438 = vmatpush1.bf16.msra.mxu0 %v1401
    %1439 = vmatprep.subr.bf16.mxu0 0
    %1440 = vmatpush1.bf16.msra.mxu0 %v1402
    %1441 = vmatprep.subr.bf16.mxu0 0
    %1442 = vmatpush1.bf16.msra.mxu0 %v1403
    %1443 = vmatprep.subr.bf16.mxu0 0
    %1444 = vmatpush1.bf16.msra.mxu0 %v1404
    %1445 = vmatprep.subr.bf16.mxu0 0
    %1446 = vmatpush1.bf16.msra.mxu0 %v1405
    %1447 = vmatprep.subr.bf16.mxu0 0
    %1448 = vmatpush1.bf16.msra.mxu0 %v1406
    %1449 = vmatprep.subr.bf16.mxu0 0
    %1450 = vmatpush1.bf16.msra.mxu0 %v1407
    %1451 = vmatprep.subr.bf16.mxu0 0
    %1452 = vmatpush1.bf16.msra.mxu0 %v1408
    %1453 = vmatprep.subr.bf16.mxu0 0
    %1454 = vmatpush1.bf16.msra.mxu0 %v1409
    %1455 = vmatprep.subr.bf16.mxu0 0
    %1456 = vmatpush1.bf16.msra.mxu0 %v1410
    %1457 = vmatprep.subr.bf16.mxu0 0
    %1458 = vmatpush1.bf16.msra.mxu0 %v1411
    %1459 = vmatprep.subr.bf16.mxu0 0
    %1460 = vmatpush1.bf16.msra.mxu0 %v1412
    %1461 = vmatprep.mubr.bf16.mxu0 %v888
    %1462 = vmatmul.mubr.bf16.gmra.mrb[0].mxu0 %v887
    %v1463 = vpop.f32.mrb[0].mxu0
    %v1464 = vadd.f32 0.0, %v1463
    %v1465 = vpop.f32.mrb[0].mxu0
    %v1466 = vpop.f32.mrb[0].mxu0
    %v1467 = vadd.f32 0.0, %v1466
    %v1468 = vpop.f32.mrb[0].mxu0
    %1469 = vmatprep.mubr.bf16.mxu0 %v890
    %1470 = vmatmul.mubr.bf16.gmra.mrb[0].mxu0 %v889
    %v1471 = vpop.f32.mrb[0].mxu0
    %v1472 = vpop.f32.mrb[0].mxu0
    %v1473 = vpop.f32.mrb[0].mxu0
    %v1474 = vpop.f32.mrb[0].mxu0
    %1475 = vdwg.mxu0
    %v1478 = vrot.slane %v1464, 6
    %v1479 = vrot.slane %v1467, 6
    %v1480 = vsel %vm635, %v1478, %v1479
    %v1484 = vsel %vm635, 0.0, %v1478
    %1485 = vset.pattern.permute.xlu0 2
    %1486 = vperm.xlu0 %1485, %v891
    %v1487 = vpop.permute.xlu0 %1486
    %1489 = vset.pattern.permute.xlu0 2
    %1490 = vperm.xlu0 %1489, %v892
    %v1491 = vpop.permute.xlu0 %1490
    %1493 = vset.pattern.permute.xlu0 2
    %1494 = vperm.xlu0 %1493, %v893
    %v1495 = vpop.permute.xlu0 %1494
    %v1497 = vmul.f32 %v1487, %v1484
    %v1498 = vmul.f32 %v1491, %v1480
    %v1499 = vmul.f32 %v1495, %v1479
    %v1500 = vadd.f32 %v1297, %v1497
    %v1501 = vadd.f32 %v1298, %v1498
    %v1502 = vadd.f32 %v1299, %v1499
    %s1503 = scalar_lea.vmem %s8, 384
    %v1504 = vld [vmem:[%s1503] sm:$0xf]
    %v1505 = vld [vmem:[%s1503 + $0x4] sm:$0xf]
    %v1506 = vld [vmem:[%s1503 + $0x8] sm:$0xf]
    %v1507 = vld [vmem:[%s1503 + $0xc] sm:$0xf]
    %v1508 = vld [vmem:[%s1503 + $0x10] sm:$0xf]
    %v1509 = vld [vmem:[%s1503 + $0x14] sm:$0xf]
    %v1510 = vld [vmem:[%s1503 + $0x18] sm:$0xf]
    %v1511 = vld [vmem:[%s1503 + $0x1c] sm:$0xf]
    %v1512 = vld [vmem:[%s1503 + $0x20] sm:$0xf]
    %v1513 = vld [vmem:[%s1503 + $0x24] sm:$0xf]
    %v1514 = vld [vmem:[%s1503 + $0x28] sm:$0xf]
    %v1515 = vld [vmem:[%s1503 + $0x2c] sm:$0xf]
    %v1516 = vld [vmem:[%s1503 + $0x30] sm:$0xf]
    %v1517 = vld [vmem:[%s1503 + $0x34] sm:$0xf]
    %v1518 = vld [vmem:[%s1503 + $0x38] sm:$0xf]
    %v1519 = vld [vmem:[%s1503 + $0x3c] sm:$0xf]
    %v1520 = vld [vmem:[%s1503 + $0x40] sm:$0xf]
    %v1521 = vld [vmem:[%s1503 + $0x44] sm:$0xf]
    %v1522 = vld [vmem:[%s1503 + $0x48] sm:$0xf]
    %v1523 = vld [vmem:[%s1503 + $0x4c] sm:$0xf]
    %v1524 = vld [vmem:[%s1503 + $0x50] sm:$0xf]
    %v1525 = vld [vmem:[%s1503 + $0x54] sm:$0xf]
    %v1526 = vld [vmem:[%s1503 + $0x58] sm:$0xf]
    %v1527 = vld [vmem:[%s1503 + $0x5c] sm:$0xf]
    %v1528 = vld [vmem:[%s1503 + $0x60] sm:$0xf]
    %v1529 = vld [vmem:[%s1503 + $0x64] sm:$0xf]
    %v1530 = vld [vmem:[%s1503 + $0x68] sm:$0xf]
    %v1531 = vld [vmem:[%s1503 + $0x6c] sm:$0xf]
    %v1532 = vld [vmem:[%s1503 + $0x70] sm:$0xf]
    %v1533 = vld [vmem:[%s1503 + $0x74] sm:$0xf]
    %v1534 = vld [vmem:[%s1503 + $0x78] sm:$0xf]
    %v1535 = vld [vmem:[%s1503 + $0x7c] sm:$0xf]
    %v1568 = vunpack.c.l.b16 %v1504
    %v1569 = vunpack.c.l.b16 %v1505
    %v1570 = vunpack.c.l.b16 %v1506
    %v1571 = vunpack.c.l.b16 %v1507
    %v1572 = vunpack.c.l.b16 %v1508
    %v1573 = vunpack.c.l.b16 %v1509
    %v1574 = vunpack.c.l.b16 %v1510
    %v1575 = vunpack.c.l.b16 %v1511
    %v1576 = vunpack.c.l.b16 %v1512
    %v1577 = vunpack.c.l.b16 %v1513
    %v1578 = vunpack.c.l.b16 %v1514
    %v1579 = vunpack.c.l.b16 %v1515
    %v1580 = vunpack.c.l.b16 %v1516
    %v1581 = vunpack.c.l.b16 %v1517
    %v1582 = vunpack.c.l.b16 %v1518
    %v1583 = vunpack.c.l.b16 %v1519
    %v1584 = vunpack.c.l.b16 %v1520
    %v1585 = vunpack.c.l.b16 %v1521
    %v1586 = vunpack.c.l.b16 %v1522
    %v1587 = vunpack.c.l.b16 %v1523
    %v1588 = vunpack.c.l.b16 %v1524
    %v1589 = vunpack.c.l.b16 %v1525
    %v1590 = vunpack.c.l.b16 %v1526
    %v1591 = vunpack.c.l.b16 %v1527
    %v1592 = vunpack.c.l.b16 %v1528
    %v1593 = vunpack.c.l.b16 %v1529
    %v1594 = vunpack.c.l.b16 %v1530
    %v1595 = vunpack.c.l.b16 %v1531
    %v1596 = vunpack.c.l.b16 %v1532
    %v1597 = vunpack.c.l.b16 %v1533
    %v1598 = vunpack.c.l.b16 %v1534
    %v1599 = vunpack.c.l.b16 %v1535
    %v1600 = vpack.c.b16 %v1569, %v1568
    %v1601 = vpack.c.b16 %v1571, %v1570
    %v1602 = vpack.c.b16 %v1573, %v1572
    %v1603 = vpack.c.b16 %v1575, %v1574
    %v1604 = vpack.c.b16 %v1577, %v1576
    %v1605 = vpack.c.b16 %v1579, %v1578
    %v1606 = vpack.c.b16 %v1581, %v1580
    %v1607 = vpack.c.b16 %v1583, %v1582
    %v1608 = vpack.c.b16 %v1585, %v1584
    %v1609 = vpack.c.b16 %v1587, %v1586
    %v1610 = vpack.c.b16 %v1589, %v1588
    %v1611 = vpack.c.b16 %v1591, %v1590
    %v1612 = vpack.c.b16 %v1593, %v1592
    %v1613 = vpack.c.b16 %v1595, %v1594
    %v1614 = vpack.c.b16 %v1597, %v1596
    %v1615 = vpack.c.b16 %v1599, %v1598
    %1632 = vmatprep.subr.bf16.mxu0 0
    %1633 = vmatpush1.bf16.msra.mxu0 %v1600
    %1634 = vmatprep.subr.bf16.mxu0 0
    %1635 = vmatpush1.bf16.msra.mxu0 %v1601
    %1636 = vmatprep.subr.bf16.mxu0 0
    %1637 = vmatpush1.bf16.msra.mxu0 %v1602
    %1638 = vmatprep.subr.bf16.mxu0 0
    %1639 = vmatpush1.bf16.msra.mxu0 %v1603
    %1640 = vmatprep.subr.bf16.mxu0 0
    %1641 = vmatpush1.bf16.msra.mxu0 %v1604
    %1642 = vmatprep.subr.bf16.mxu0 0
    %1643 = vmatpush1.bf16.msra.mxu0 %v1605
    %1644 = vmatprep.subr.bf16.mxu0 0
    %1645 = vmatpush1.bf16.msra.mxu0 %v1606
    %1646 = vmatprep.subr.bf16.mxu0 0
    %1647 = vmatpush1.bf16.msra.mxu0 %v1607
    %1648 = vmatprep.subr.bf16.mxu0 0
    %1649 = vmatpush1.bf16.msra.mxu0 %v1608
    %1650 = vmatprep.subr.bf16.mxu0 0
    %1651 = vmatpush1.bf16.msra.mxu0 %v1609
    %1652 = vmatprep.subr.bf16.mxu0 0
    %1653 = vmatpush1.bf16.msra.mxu0 %v1610
    %1654 = vmatprep.subr.bf16.mxu0 0
    %1655 = vmatpush1.bf16.msra.mxu0 %v1611
    %1656 = vmatprep.subr.bf16.mxu0 0
    %1657 = vmatpush1.bf16.msra.mxu0 %v1612
    %1658 = vmatprep.subr.bf16.mxu0 0
    %1659 = vmatpush1.bf16.msra.mxu0 %v1613
    %1660 = vmatprep.subr.bf16.mxu0 0
    %1661 = vmatpush1.bf16.msra.mxu0 %v1614
    %1662 = vmatprep.subr.bf16.mxu0 0
    %1663 = vmatpush1.bf16.msra.mxu0 %v1615
    %1664 = vmatprep.mubr.bf16.mxu0 %v888
    %1665 = vmatmul.mubr.bf16.gmra.mrb[0].mxu0 %v887
    %v1666 = vpop.f32.mrb[0].mxu0
    %v1667 = vadd.f32 0.0, %v1666
    %v1668 = vpop.f32.mrb[0].mxu0
    %v1669 = vpop.f32.mrb[0].mxu0
    %v1670 = vadd.f32 0.0, %v1669
    %v1671 = vpop.f32.mrb[0].mxu0
    %1672 = vmatprep.mubr.bf16.mxu0 %v890
    %1673 = vmatmul.mubr.bf16.gmra.mrb[0].mxu0 %v889
    %v1674 = vpop.f32.mrb[0].mxu0
    %v1675 = vadd.f32 0.0, %v1674
    %v1676 = vpop.f32.mrb[0].mxu0
    %v1677 = vpop.f32.mrb[0].mxu0
    %v1678 = vpop.f32.mrb[0].mxu0
    %1679 = vdwg.mxu0
    %vm1683 = vcmask 1040384
    %v1684 = vrot.slane %v1667, 7
    %v1685 = vrot.slane %v1670, 7
    %v1686 = vsel %vm1683, %v1684, %v1685
    %v1687 = vrot.slane %v1675, 7
    %v1688 = vsel %vm1683, %v1685, %v1687
    %v1692 = vsel %vm1683, 0.0, %v1684
    %1693 = vset.pattern.permute.xlu0 3
    %1694 = vperm.xlu0 %1693, %v891
    %v1695 = vpop.permute.xlu0 %1694
    %1697 = vset.pattern.permute.xlu0 3
    %1698 = vperm.xlu0 %1697, %v892
    %v1699 = vpop.permute.xlu0 %1698
    %1701 = vset.pattern.permute.xlu0 3
    %1702 = vperm.xlu0 %1701, %v893
    %v1703 = vpop.permute.xlu0 %1702
    %v1705 = vmul.f32 %v1695, %v1692
    %v1706 = vmul.f32 %v1699, %v1686
    %v1707 = vmul.f32 %v1703, %v1688
    %v1708 = vadd.f32 %v1500, %v1705
    %v1709 = vadd.f32 %v1501, %v1706
    %v1710 = vadd.f32 %v1502, %v1707
    %s1711 = scalar_lea.vmem %s8, 512
    %v1712 = vld [vmem:[%s1711] sm:$0xf]
    %v1713 = vld [vmem:[%s1711 + $0x4] sm:$0xf]
    %v1714 = vld [vmem:[%s1711 + $0x8] sm:$0xf]
    %v1715 = vld [vmem:[%s1711 + $0xc] sm:$0xf]
    %v1716 = vld [vmem:[%s1711 + $0x10] sm:$0xf]
    %v1717 = vld [vmem:[%s1711 + $0x14] sm:$0xf]
    %v1718 = vld [vmem:[%s1711 + $0x18] sm:$0xf]
    %v1719 = vld [vmem:[%s1711 + $0x1c] sm:$0xf]
    %v1720 = vld [vmem:[%s1711 + $0x20] sm:$0xf]
    %v1721 = vld [vmem:[%s1711 + $0x24] sm:$0xf]
    %v1722 = vld [vmem:[%s1711 + $0x28] sm:$0xf]
    %v1723 = vld [vmem:[%s1711 + $0x2c] sm:$0xf]
    %v1724 = vld [vmem:[%s1711 + $0x30] sm:$0xf]
    %v1725 = vld [vmem:[%s1711 + $0x34] sm:$0xf]
    %v1726 = vld [vmem:[%s1711 + $0x38] sm:$0xf]
    %v1727 = vld [vmem:[%s1711 + $0x3c] sm:$0xf]
    %v1728 = vld [vmem:[%s1711 + $0x40] sm:$0xf]
    %v1729 = vld [vmem:[%s1711 + $0x44] sm:$0xf]
    %v1730 = vld [vmem:[%s1711 + $0x48] sm:$0xf]
    %v1731 = vld [vmem:[%s1711 + $0x4c] sm:$0xf]
    %v1732 = vld [vmem:[%s1711 + $0x50] sm:$0xf]
    %v1733 = vld [vmem:[%s1711 + $0x54] sm:$0xf]
    %v1734 = vld [vmem:[%s1711 + $0x58] sm:$0xf]
    %v1735 = vld [vmem:[%s1711 + $0x5c] sm:$0xf]
    %v1736 = vld [vmem:[%s1711 + $0x60] sm:$0xf]
    %v1737 = vld [vmem:[%s1711 + $0x64] sm:$0xf]
    %v1738 = vld [vmem:[%s1711 + $0x68] sm:$0xf]
    %v1739 = vld [vmem:[%s1711 + $0x6c] sm:$0xf]
    %v1740 = vld [vmem:[%s1711 + $0x70] sm:$0xf]
    %v1741 = vld [vmem:[%s1711 + $0x74] sm:$0xf]
    %v1742 = vld [vmem:[%s1711 + $0x78] sm:$0xf]
    %v1743 = vld [vmem:[%s1711 + $0x7c] sm:$0xf]
    %v1776 = vunpack.c.l.b16 %v1712
    %v1777 = vunpack.c.l.b16 %v1713
    %v1778 = vunpack.c.l.b16 %v1714
    %v1779 = vunpack.c.l.b16 %v1715
    %v1780 = vunpack.c.l.b16 %v1716
    %v1781 = vunpack.c.l.b16 %v1717
    %v1782 = vunpack.c.l.b16 %v1718
    %v1783 = vunpack.c.l.b16 %v1719
    %v1784 = vunpack.c.l.b16 %v1720
    %v1785 = vunpack.c.l.b16 %v1721
    %v1786 = vunpack.c.l.b16 %v1722
    %v1787 = vunpack.c.l.b16 %v1723
    %v1788 = vunpack.c.l.b16 %v1724
    %v1789 = vunpack.c.l.b16 %v1725
    %v1790 = vunpack.c.l.b16 %v1726
    %v1791 = vunpack.c.l.b16 %v1727
    %v1792 = vunpack.c.l.b16 %v1728
    %v1793 = vunpack.c.l.b16 %v1729
    %v1794 = vunpack.c.l.b16 %v1730
    %v1795 = vunpack.c.l.b16 %v1731
    %v1796 = vunpack.c.l.b16 %v1732
    %v1797 = vunpack.c.l.b16 %v1733
    %v1798 = vunpack.c.l.b16 %v1734
    %v1799 = vunpack.c.l.b16 %v1735
    %v1800 = vunpack.c.l.b16 %v1736
    %v1801 = vunpack.c.l.b16 %v1737
    %v1802 = vunpack.c.l.b16 %v1738
    %v1803 = vunpack.c.l.b16 %v1739
    %v1804 = vunpack.c.l.b16 %v1740
    %v1805 = vunpack.c.l.b16 %v1741
    %v1806 = vunpack.c.l.b16 %v1742
    %v1807 = vunpack.c.l.b16 %v1743
    %v1808 = vpack.c.b16 %v1777, %v1776
    %v1809 = vpack.c.b16 %v1779, %v1778
    %v1810 = vpack.c.b16 %v1781, %v1780
    %v1811 = vpack.c.b16 %v1783, %v1782
    %v1812 = vpack.c.b16 %v1785, %v1784
    %v1813 = vpack.c.b16 %v1787, %v1786
    %v1814 = vpack.c.b16 %v1789, %v1788
    %v1815 = vpack.c.b16 %v1791, %v1790
    %v1816 = vpack.c.b16 %v1793, %v1792
    %v1817 = vpack.c.b16 %v1795, %v1794
    %v1818 = vpack.c.b16 %v1797, %v1796
    %v1819 = vpack.c.b16 %v1799, %v1798
    %v1820 = vpack.c.b16 %v1801, %v1800
    %v1821 = vpack.c.b16 %v1803, %v1802
    %v1822 = vpack.c.b16 %v1805, %v1804
    %v1823 = vpack.c.b16 %v1807, %v1806
    %1840 = vmatprep.subr.bf16.mxu0 0
    %1841 = vmatpush1.bf16.msra.mxu0 %v1808
    %1842 = vmatprep.subr.bf16.mxu0 0
    %1843 = vmatpush1.bf16.msra.mxu0 %v1809
    %1844 = vmatprep.subr.bf16.mxu0 0
    %1845 = vmatpush1.bf16.msra.mxu0 %v1810
    %1846 = vmatprep.subr.bf16.mxu0 0
    %1847 = vmatpush1.bf16.msra.mxu0 %v1811
    %1848 = vmatprep.subr.bf16.mxu0 0
    %1849 = vmatpush1.bf16.msra.mxu0 %v1812
    %1850 = vmatprep.subr.bf16.mxu0 0
    %1851 = vmatpush1.bf16.msra.mxu0 %v1813
    %1852 = vmatprep.subr.bf16.mxu0 0
    %1853 = vmatpush1.bf16.msra.mxu0 %v1814
    %1854 = vmatprep.subr.bf16.mxu0 0
    %1855 = vmatpush1.bf16.msra.mxu0 %v1815
    %1856 = vmatprep.subr.bf16.mxu0 0
    %1857 = vmatpush1.bf16.msra.mxu0 %v1816
    %1858 = vmatprep.subr.bf16.mxu0 0
    %1859 = vmatpush1.bf16.msra.mxu0 %v1817
    %1860 = vmatprep.subr.bf16.mxu0 0
    %1861 = vmatpush1.bf16.msra.mxu0 %v1818
    %1862 = vmatprep.subr.bf16.mxu0 0
    %1863 = vmatpush1.bf16.msra.mxu0 %v1819
    %1864 = vmatprep.subr.bf16.mxu0 0
    %1865 = vmatpush1.bf16.msra.mxu0 %v1820
    %1866 = vmatprep.subr.bf16.mxu0 0
    %1867 = vmatpush1.bf16.msra.mxu0 %v1821
    %1868 = vmatprep.subr.bf16.mxu0 0
    %1869 = vmatpush1.bf16.msra.mxu0 %v1822
    %1870 = vmatprep.subr.bf16.mxu0 0
    %1871 = vmatpush1.bf16.msra.mxu0 %v1823
    %1872 = vmatprep.mubr.bf16.mxu0 %v888
    %1873 = vmatmul.mubr.bf16.gmra.mrb[0].mxu0 %v887
    %v1874 = vpop.f32.mrb[0].mxu0
    %v1875 = vadd.f32 0.0, %v1874
    %v1876 = vpop.f32.mrb[0].mxu0
    %v1877 = vpop.f32.mrb[0].mxu0
    %v1878 = vadd.f32 0.0, %v1877
    %v1879 = vpop.f32.mrb[0].mxu0
    %1880 = vmatprep.mubr.bf16.mxu0 %v890
    %1881 = vmatmul.mubr.bf16.gmra.mrb[0].mxu0 %v889
    %v1882 = vpop.f32.mrb[0].mxu0
    %v1883 = vadd.f32 0.0, %v1882
    %v1884 = vpop.f32.mrb[0].mxu0
    %v1885 = vpop.f32.mrb[0].mxu0
    %v1886 = vpop.f32.mrb[0].mxu0
    %1887 = vdwg.mxu0
    %1888 = vset.pattern.permute.xlu0 4
    %1889 = vperm.xlu0 %1888, %v891
    %v1890 = vpop.permute.xlu0 %1889
    %1892 = vset.pattern.permute.xlu0 4
    %1893 = vperm.xlu0 %1892, %v892
    %v1894 = vpop.permute.xlu0 %1893
    %1896 = vset.pattern.permute.xlu0 4
    %1897 = vperm.xlu0 %1896, %v893
    %v1898 = vpop.permute.xlu0 %1897
    %v1900 = vmul.f32 %v1890, %v1875
    %v1901 = vmul.f32 %v1894, %v1878
    %v1902 = vmul.f32 %v1898, %v1883
    %v1903 = vadd.f32 %v1708, %v1900
    %v1904 = vadd.f32 %v1709, %v1901
    %v1905 = vadd.f32 %v1710, %v1902
    %s1906 = scalar_lea.vmem %s8, 640
    %v1907 = vld [vmem:[%s1906] sm:$0xf]
    %v1908 = vld [vmem:[%s1906 + $0x4] sm:$0xf]
    %v1909 = vld [vmem:[%s1906 + $0x8] sm:$0xf]
    %v1910 = vld [vmem:[%s1906 + $0xc] sm:$0xf]
    %v1911 = vld [vmem:[%s1906 + $0x10] sm:$0xf]
    %v1912 = vld [vmem:[%s1906 + $0x14] sm:$0xf]
    %v1913 = vld [vmem:[%s1906 + $0x18] sm:$0xf]
    %v1914 = vld [vmem:[%s1906 + $0x1c] sm:$0xf]
    %v1915 = vld [vmem:[%s1906 + $0x20] sm:$0xf]
    %v1916 = vld [vmem:[%s1906 + $0x24] sm:$0xf]
    %v1917 = vld [vmem:[%s1906 + $0x28] sm:$0xf]
    %v1918 = vld [vmem:[%s1906 + $0x2c] sm:$0xf]
    %v1919 = vld [vmem:[%s1906 + $0x30] sm:$0xf]
    %v1920 = vld [vmem:[%s1906 + $0x34] sm:$0xf]
    %v1921 = vld [vmem:[%s1906 + $0x38] sm:$0xf]
    %v1922 = vld [vmem:[%s1906 + $0x3c] sm:$0xf]
    %v1923 = vld [vmem:[%s1906 + $0x40] sm:$0xf]
    %v1924 = vld [vmem:[%s1906 + $0x44] sm:$0xf]
    %v1925 = vld [vmem:[%s1906 + $0x48] sm:$0xf]
    %v1926 = vld [vmem:[%s1906 + $0x4c] sm:$0xf]
    %v1927 = vld [vmem:[%s1906 + $0x50] sm:$0xf]
    %v1928 = vld [vmem:[%s1906 + $0x54] sm:$0xf]
    %v1929 = vld [vmem:[%s1906 + $0x58] sm:$0xf]
    %v1930 = vld [vmem:[%s1906 + $0x5c] sm:$0xf]
    %v1931 = vld [vmem:[%s1906 + $0x60] sm:$0xf]
    %v1932 = vld [vmem:[%s1906 + $0x64] sm:$0xf]
    %v1933 = vld [vmem:[%s1906 + $0x68] sm:$0xf]
    %v1934 = vld [vmem:[%s1906 + $0x6c] sm:$0xf]
    %v1935 = vld [vmem:[%s1906 + $0x70] sm:$0xf]
    %v1936 = vld [vmem:[%s1906 + $0x74] sm:$0xf]
    %v1937 = vld [vmem:[%s1906 + $0x78] sm:$0xf]
    %v1938 = vld [vmem:[%s1906 + $0x7c] sm:$0xf]
    %v1971 = vunpack.c.l.b16 %v1907
    %v1972 = vunpack.c.l.b16 %v1908
    %v1973 = vunpack.c.l.b16 %v1909
    %v1974 = vunpack.c.l.b16 %v1910
    %v1975 = vunpack.c.l.b16 %v1911
    %v1976 = vunpack.c.l.b16 %v1912
    %v1977 = vunpack.c.l.b16 %v1913
    %v1978 = vunpack.c.l.b16 %v1914
    %v1979 = vunpack.c.l.b16 %v1915
    %v1980 = vunpack.c.l.b16 %v1916
    %v1981 = vunpack.c.l.b16 %v1917
    %v1982 = vunpack.c.l.b16 %v1918
    %v1983 = vunpack.c.l.b16 %v1919
    %v1984 = vunpack.c.l.b16 %v1920
    %v1985 = vunpack.c.l.b16 %v1921
    %v1986 = vunpack.c.l.b16 %v1922
    %v1987 = vunpack.c.l.b16 %v1923
    %v1988 = vunpack.c.l.b16 %v1924
    %v1989 = vunpack.c.l.b16 %v1925
    %v1990 = vunpack.c.l.b16 %v1926
    %v1991 = vunpack.c.l.b16 %v1927
    %v1992 = vunpack.c.l.b16 %v1928
    %v1993 = vunpack.c.l.b16 %v1929
    %v1994 = vunpack.c.l.b16 %v1930
    %v1995 = vunpack.c.l.b16 %v1931
    %v1996 = vunpack.c.l.b16 %v1932
    %v1997 = vunpack.c.l.b16 %v1933
    %v1998 = vunpack.c.l.b16 %v1934
    %v1999 = vunpack.c.l.b16 %v1935
    %v2000 = vunpack.c.l.b16 %v1936
    %v2001 = vunpack.c.l.b16 %v1937
    %v2002 = vunpack.c.l.b16 %v1938
    %v2003 = vpack.c.b16 %v1972, %v1971
    %v2004 = vpack.c.b16 %v1974, %v1973
    %v2005 = vpack.c.b16 %v1976, %v1975
    %v2006 = vpack.c.b16 %v1978, %v1977
    %v2007 = vpack.c.b16 %v1980, %v1979
    %v2008 = vpack.c.b16 %v1982, %v1981
    %v2009 = vpack.c.b16 %v1984, %v1983
    %v2010 = vpack.c.b16 %v1986, %v1985
    %v2011 = vpack.c.b16 %v1988, %v1987
    %v2012 = vpack.c.b16 %v1990, %v1989
    %v2013 = vpack.c.b16 %v1992, %v1991
    %v2014 = vpack.c.b16 %v1994, %v1993
    %v2015 = vpack.c.b16 %v1996, %v1995
    %v2016 = vpack.c.b16 %v1998, %v1997
    %v2017 = vpack.c.b16 %v2000, %v1999
    %v2018 = vpack.c.b16 %v2002, %v2001
    %2035 = vmatprep.subr.bf16.mxu0 0
    %2036 = vmatpush1.bf16.msra.mxu0 %v2003
    %2037 = vmatprep.subr.bf16.mxu0 0
    %2038 = vmatpush1.bf16.msra.mxu0 %v2004
    %2039 = vmatprep.subr.bf16.mxu0 0
    %2040 = vmatpush1.bf16.msra.mxu0 %v2005
    %2041 = vmatprep.subr.bf16.mxu0 0
    %2042 = vmatpush1.bf16.msra.mxu0 %v2006
    %2043 = vmatprep.subr.bf16.mxu0 0
    %2044 = vmatpush1.bf16.msra.mxu0 %v2007
    %2045 = vmatprep.subr.bf16.mxu0 0
    %2046 = vmatpush1.bf16.msra.mxu0 %v2008
    %2047 = vmatprep.subr.bf16.mxu0 0
    %2048 = vmatpush1.bf16.msra.mxu0 %v2009
    %2049 = vmatprep.subr.bf16.mxu0 0
    %2050 = vmatpush1.bf16.msra.mxu0 %v2010
    %2051 = vmatprep.subr.bf16.mxu0 0
    %2052 = vmatpush1.bf16.msra.mxu0 %v2011
    %2053 = vmatprep.subr.bf16.mxu0 0
    %2054 = vmatpush1.bf16.msra.mxu0 %v2012
    %2055 = vmatprep.subr.bf16.mxu0 0
    %2056 = vmatpush1.bf16.msra.mxu0 %v2013
    %2057 = vmatprep.subr.bf16.mxu0 0
    %2058 = vmatpush1.bf16.msra.mxu0 %v2014
    %2059 = vmatprep.subr.bf16.mxu0 0
    %2060 = vmatpush1.bf16.msra.mxu0 %v2015
    %2061 = vmatprep.subr.bf16.mxu0 0
    %2062 = vmatpush1.bf16.msra.mxu0 %v2016
    %2063 = vmatprep.subr.bf16.mxu0 0
    %2064 = vmatpush1.bf16.msra.mxu0 %v2017
    %2065 = vmatprep.subr.bf16.mxu0 0
    %2066 = vmatpush1.bf16.msra.mxu0 %v2018
    %2067 = vmatprep.mubr.bf16.mxu0 %v888
    %2068 = vmatmul.mubr.bf16.gmra.mrb[0].mxu0 %v887
    %v2069 = vpop.f32.mrb[0].mxu0
    %v2070 = vadd.f32 0.0, %v2069
    %v2071 = vpop.f32.mrb[0].mxu0
    %v2072 = vpop.f32.mrb[0].mxu0
    %v2073 = vadd.f32 0.0, %v2072
    %v2074 = vpop.f32.mrb[0].mxu0
    %2075 = vmatprep.mubr.bf16.mxu0 %v890
    %2076 = vmatmul.mubr.bf16.gmra.mrb[0].mxu0 %v889
    %v2077 = vpop.f32.mrb[0].mxu0
    %v2078 = vadd.f32 0.0, %v2077
    %v2079 = vpop.f32.mrb[0].mxu0
    %v2080 = vpop.f32.mrb[0].mxu0
    %v2081 = vpop.f32.mrb[0].mxu0
    %2082 = vdwg.mxu0
    %vm2086 = vcmask 1046528
    %v2087 = vrot.slane %v2070, 1
    %v2088 = vrot.slane %v2073, 1
    %v2089 = vsel %vm2086, %v2087, %v2088
    %v2090 = vrot.slane %v2078, 1
    %v2091 = vsel %vm2086, %v2088, %v2090
    %v2095 = vsel %vm1683, %v2090, 0.0
    %2096 = vset.pattern.permute.xlu0 5
    %2097 = vperm.xlu0 %2096, %v891
    %v2098 = vpop.permute.xlu0 %2097
    %2100 = vset.pattern.permute.xlu0 5
    %2101 = vperm.xlu0 %2100, %v892
    %v2102 = vpop.permute.xlu0 %2101
    %2104 = vset.pattern.permute.xlu0 5
    %2105 = vperm.xlu0 %2104, %v893
    %v2106 = vpop.permute.xlu0 %2105
    %v2108 = vmul.f32 %v2098, %v2089
    %v2109 = vmul.f32 %v2102, %v2091
    %v2110 = vmul.f32 %v2106, %v2095
    %v2111 = vadd.f32 %v1903, %v2108
    %v2112 = vadd.f32 %v1904, %v2109
    %v2113 = vadd.f32 %v1905, %v2110
    %s2114 = scalar_lea.vmem %s8, 768
    %v2115 = vld [vmem:[%s2114] sm:$0xf]
    %v2116 = vld [vmem:[%s2114 + $0x4] sm:$0xf]
    %v2117 = vld [vmem:[%s2114 + $0x8] sm:$0xf]
    %v2118 = vld [vmem:[%s2114 + $0xc] sm:$0xf]
    %v2119 = vld [vmem:[%s2114 + $0x10] sm:$0xf]
    %v2120 = vld [vmem:[%s2114 + $0x14] sm:$0xf]
    %v2121 = vld [vmem:[%s2114 + $0x18] sm:$0xf]
    %v2122 = vld [vmem:[%s2114 + $0x1c] sm:$0xf]
    %v2123 = vld [vmem:[%s2114 + $0x20] sm:$0xf]
    %v2124 = vld [vmem:[%s2114 + $0x24] sm:$0xf]
    %v2125 = vld [vmem:[%s2114 + $0x28] sm:$0xf]
    %v2126 = vld [vmem:[%s2114 + $0x2c] sm:$0xf]
    %v2127 = vld [vmem:[%s2114 + $0x30] sm:$0xf]
    %v2128 = vld [vmem:[%s2114 + $0x34] sm:$0xf]
    %v2129 = vld [vmem:[%s2114 + $0x38] sm:$0xf]
    %v2130 = vld [vmem:[%s2114 + $0x3c] sm:$0xf]
    %v2131 = vld [vmem:[%s2114 + $0x40] sm:$0xf]
    %v2132 = vld [vmem:[%s2114 + $0x44] sm:$0xf]
    %v2133 = vld [vmem:[%s2114 + $0x48] sm:$0xf]
    %v2134 = vld [vmem:[%s2114 + $0x4c] sm:$0xf]
    %v2135 = vld [vmem:[%s2114 + $0x50] sm:$0xf]
    %v2136 = vld [vmem:[%s2114 + $0x54] sm:$0xf]
    %v2137 = vld [vmem:[%s2114 + $0x58] sm:$0xf]
    %v2138 = vld [vmem:[%s2114 + $0x5c] sm:$0xf]
    %v2139 = vld [vmem:[%s2114 + $0x60] sm:$0xf]
    %v2140 = vld [vmem:[%s2114 + $0x64] sm:$0xf]
    %v2141 = vld [vmem:[%s2114 + $0x68] sm:$0xf]
    %v2142 = vld [vmem:[%s2114 + $0x6c] sm:$0xf]
    %v2143 = vld [vmem:[%s2114 + $0x70] sm:$0xf]
    %v2144 = vld [vmem:[%s2114 + $0x74] sm:$0xf]
    %v2145 = vld [vmem:[%s2114 + $0x78] sm:$0xf]
    %v2146 = vld [vmem:[%s2114 + $0x7c] sm:$0xf]
    %v2179 = vunpack.c.l.b16 %v2115
    %v2180 = vunpack.c.l.b16 %v2116
    %v2181 = vunpack.c.l.b16 %v2117
    %v2182 = vunpack.c.l.b16 %v2118
    %v2183 = vunpack.c.l.b16 %v2119
    %v2184 = vunpack.c.l.b16 %v2120
    %v2185 = vunpack.c.l.b16 %v2121
    %v2186 = vunpack.c.l.b16 %v2122
    %v2187 = vunpack.c.l.b16 %v2123
    %v2188 = vunpack.c.l.b16 %v2124
    %v2189 = vunpack.c.l.b16 %v2125
    %v2190 = vunpack.c.l.b16 %v2126
    %v2191 = vunpack.c.l.b16 %v2127
    %v2192 = vunpack.c.l.b16 %v2128
    %v2193 = vunpack.c.l.b16 %v2129
    %v2194 = vunpack.c.l.b16 %v2130
    %v2195 = vunpack.c.l.b16 %v2131
    %v2196 = vunpack.c.l.b16 %v2132
    %v2197 = vunpack.c.l.b16 %v2133
    %v2198 = vunpack.c.l.b16 %v2134
    %v2199 = vunpack.c.l.b16 %v2135
    %v2200 = vunpack.c.l.b16 %v2136
    %v2201 = vunpack.c.l.b16 %v2137
    %v2202 = vunpack.c.l.b16 %v2138
    %v2203 = vunpack.c.l.b16 %v2139
    %v2204 = vunpack.c.l.b16 %v2140
    %v2205 = vunpack.c.l.b16 %v2141
    %v2206 = vunpack.c.l.b16 %v2142
    %v2207 = vunpack.c.l.b16 %v2143
    %v2208 = vunpack.c.l.b16 %v2144
    %v2209 = vunpack.c.l.b16 %v2145
    %v2210 = vunpack.c.l.b16 %v2146
    %v2211 = vpack.c.b16 %v2180, %v2179
    %v2212 = vpack.c.b16 %v2182, %v2181
    %v2213 = vpack.c.b16 %v2184, %v2183
    %v2214 = vpack.c.b16 %v2186, %v2185
    %v2215 = vpack.c.b16 %v2188, %v2187
    %v2216 = vpack.c.b16 %v2190, %v2189
    %v2217 = vpack.c.b16 %v2192, %v2191
    %v2218 = vpack.c.b16 %v2194, %v2193
    %v2219 = vpack.c.b16 %v2196, %v2195
    %v2220 = vpack.c.b16 %v2198, %v2197
    %v2221 = vpack.c.b16 %v2200, %v2199
    %v2222 = vpack.c.b16 %v2202, %v2201
    %v2223 = vpack.c.b16 %v2204, %v2203
    %v2224 = vpack.c.b16 %v2206, %v2205
    %v2225 = vpack.c.b16 %v2208, %v2207
    %v2226 = vpack.c.b16 %v2210, %v2209
    %2243 = vmatprep.subr.bf16.mxu0 0
    %2244 = vmatpush1.bf16.msra.mxu0 %v2211
    %2245 = vmatprep.subr.bf16.mxu0 0
    %2246 = vmatpush1.bf16.msra.mxu0 %v2212
    %2247 = vmatprep.subr.bf16.mxu0 0
    %2248 = vmatpush1.bf16.msra.mxu0 %v2213
    %2249 = vmatprep.subr.bf16.mxu0 0
    %2250 = vmatpush1.bf16.msra.mxu0 %v2214
    %2251 = vmatprep.subr.bf16.mxu0 0
    %2252 = vmatpush1.bf16.msra.mxu0 %v2215
    %2253 = vmatprep.subr.bf16.mxu0 0
    %2254 = vmatpush1.bf16.msra.mxu0 %v2216
    %2255 = vmatprep.subr.bf16.mxu0 0
    %2256 = vmatpush1.bf16.msra.mxu0 %v2217
    %2257 = vmatprep.subr.bf16.mxu0 0
    %2258 = vmatpush1.bf16.msra.mxu0 %v2218
    %2259 = vmatprep.subr.bf16.mxu0 0
    %2260 = vmatpush1.bf16.msra.mxu0 %v2219
    %2261 = vmatprep.subr.bf16.mxu0 0
    %2262 = vmatpush1.bf16.msra.mxu0 %v2220
    %2263 = vmatprep.subr.bf16.mxu0 0
    %2264 = vmatpush1.bf16.msra.mxu0 %v2221
    %2265 = vmatprep.subr.bf16.mxu0 0
    %2266 = vmatpush1.bf16.msra.mxu0 %v2222
    %2267 = vmatprep.subr.bf16.mxu0 0
    %2268 = vmatpush1.bf16.msra.mxu0 %v2223
    %2269 = vmatprep.subr.bf16.mxu0 0
    %2270 = vmatpush1.bf16.msra.mxu0 %v2224
    %2271 = vmatprep.subr.bf16.mxu0 0
    %2272 = vmatpush1.bf16.msra.mxu0 %v2225
    %2273 = vmatprep.subr.bf16.mxu0 0
    %2274 = vmatpush1.bf16.msra.mxu0 %v2226
    %2275 = vmatprep.mubr.bf16.mxu0 %v888
    %2276 = vmatmul.mubr.bf16.gmra.mrb[0].mxu0 %v887
    %v2277 = vpop.f32.mrb[0].mxu0
    %v2278 = vadd.f32 0.0, %v2277
    %v2279 = vpop.f32.mrb[0].mxu0
    %v2280 = vpop.f32.mrb[0].mxu0
    %v2281 = vadd.f32 0.0, %v2280
    %v2282 = vpop.f32.mrb[0].mxu0
    %2283 = vmatprep.mubr.bf16.mxu0 %v890
    %2284 = vmatmul.mubr.bf16.gmra.mrb[0].mxu0 %v889
    %v2285 = vpop.f32.mrb[0].mxu0
    %v2286 = vadd.f32 0.0, %v2285
    %v2287 = vpop.f32.mrb[0].mxu0
    %v2288 = vpop.f32.mrb[0].mxu0
    %v2289 = vpop.f32.mrb[0].mxu0
    %2290 = vdwg.mxu0
    %vm2294 = vcmask 1045504
    %v2295 = vrot.slane %v2278, 2
    %v2296 = vrot.slane %v2281, 2
    %v2297 = vsel %vm2294, %v2295, %v2296
    %v2298 = vrot.slane %v2286, 2
    %v2299 = vsel %vm2294, %v2296, %v2298
    %2302 = vset.pattern.permute.xlu0 6
    %2303 = vperm.xlu0 %2302, %v891
    %v2304 = vpop.permute.xlu0 %2303
    %2306 = vset.pattern.permute.xlu0 6
    %2307 = vperm.xlu0 %2306, %v892
    %v2308 = vpop.permute.xlu0 %2307
    %2310 = vset.pattern.permute.xlu0 6
    %2311 = vperm.xlu0 %2310, %v893
    %v2312 = vpop.permute.xlu0 %2311
    %v2314 = vmul.f32 %v2304, %v2297
    %v2315 = vmul.f32 %v2308, %v2299
    %v2316 = vmul.f32 %v2312, 0.0
    %v2317 = vadd.f32 %v2111, %v2314
    %v2318 = vadd.f32 %v2112, %v2315
    %v2319 = vadd.f32 %v2113, %v2316
    %s2320 = scalar_lea.vmem %s8, 896
    %v2321 = vld [vmem:[%s2320] sm:$0xf]
    %v2322 = vld [vmem:[%s2320 + $0x4] sm:$0xf]
    %v2323 = vld [vmem:[%s2320 + $0x8] sm:$0xf]
    %v2324 = vld [vmem:[%s2320 + $0xc] sm:$0xf]
    %v2325 = vld [vmem:[%s2320 + $0x10] sm:$0xf]
    %v2326 = vld [vmem:[%s2320 + $0x14] sm:$0xf]
    %v2327 = vld [vmem:[%s2320 + $0x18] sm:$0xf]
    %v2328 = vld [vmem:[%s2320 + $0x1c] sm:$0xf]
    %v2329 = vld [vmem:[%s2320 + $0x20] sm:$0xf]
    %v2330 = vld [vmem:[%s2320 + $0x24] sm:$0xf]
    %v2331 = vld [vmem:[%s2320 + $0x28] sm:$0xf]
    %v2332 = vld [vmem:[%s2320 + $0x2c] sm:$0xf]
    %v2333 = vld [vmem:[%s2320 + $0x30] sm:$0xf]
    %v2334 = vld [vmem:[%s2320 + $0x34] sm:$0xf]
    %v2335 = vld [vmem:[%s2320 + $0x38] sm:$0xf]
    %v2336 = vld [vmem:[%s2320 + $0x3c] sm:$0xf]
    %v2337 = vld [vmem:[%s2320 + $0x40] sm:$0xf]
    %v2338 = vld [vmem:[%s2320 + $0x44] sm:$0xf]
    %v2339 = vld [vmem:[%s2320 + $0x48] sm:$0xf]
    %v2340 = vld [vmem:[%s2320 + $0x4c] sm:$0xf]
    %v2341 = vld [vmem:[%s2320 + $0x50] sm:$0xf]
    %v2342 = vld [vmem:[%s2320 + $0x54] sm:$0xf]
    %v2343 = vld [vmem:[%s2320 + $0x58] sm:$0xf]
    %v2344 = vld [vmem:[%s2320 + $0x5c] sm:$0xf]
    %v2345 = vld [vmem:[%s2320 + $0x60] sm:$0xf]
    %v2346 = vld [vmem:[%s2320 + $0x64] sm:$0xf]
    %v2347 = vld [vmem:[%s2320 + $0x68] sm:$0xf]
    %v2348 = vld [vmem:[%s2320 + $0x6c] sm:$0xf]
    %v2349 = vld [vmem:[%s2320 + $0x70] sm:$0xf]
    %v2350 = vld [vmem:[%s2320 + $0x74] sm:$0xf]
    %v2351 = vld [vmem:[%s2320 + $0x78] sm:$0xf]
    %v2352 = vld [vmem:[%s2320 + $0x7c] sm:$0xf]
    %v2385 = vunpack.c.l.b16 %v2321
    %v2386 = vunpack.c.l.b16 %v2322
    %v2387 = vunpack.c.l.b16 %v2323
    %v2388 = vunpack.c.l.b16 %v2324
    %v2389 = vunpack.c.l.b16 %v2325
    %v2390 = vunpack.c.l.b16 %v2326
    %v2391 = vunpack.c.l.b16 %v2327
    %v2392 = vunpack.c.l.b16 %v2328
    %v2393 = vunpack.c.l.b16 %v2329
    %v2394 = vunpack.c.l.b16 %v2330
    %v2395 = vunpack.c.l.b16 %v2331
    %v2396 = vunpack.c.l.b16 %v2332
    %v2397 = vunpack.c.l.b16 %v2333
    %v2398 = vunpack.c.l.b16 %v2334
    %v2399 = vunpack.c.l.b16 %v2335
    %v2400 = vunpack.c.l.b16 %v2336
    %v2401 = vunpack.c.l.b16 %v2337
    %v2402 = vunpack.c.l.b16 %v2338
    %v2403 = vunpack.c.l.b16 %v2339
    %v2404 = vunpack.c.l.b16 %v2340
    %v2405 = vunpack.c.l.b16 %v2341
    %v2406 = vunpack.c.l.b16 %v2342
    %v2407 = vunpack.c.l.b16 %v2343
    %v2408 = vunpack.c.l.b16 %v2344
    %v2409 = vunpack.c.l.b16 %v2345
    %v2410 = vunpack.c.l.b16 %v2346
    %v2411 = vunpack.c.l.b16 %v2347
    %v2412 = vunpack.c.l.b16 %v2348
    %v2413 = vunpack.c.l.b16 %v2349
    %v2414 = vunpack.c.l.b16 %v2350
    %v2415 = vunpack.c.l.b16 %v2351
    %v2416 = vunpack.c.l.b16 %v2352
    %v2417 = vpack.c.b16 %v2386, %v2385
    %v2418 = vpack.c.b16 %v2388, %v2387
    %v2419 = vpack.c.b16 %v2390, %v2389
    %v2420 = vpack.c.b16 %v2392, %v2391
    %v2421 = vpack.c.b16 %v2394, %v2393
    %v2422 = vpack.c.b16 %v2396, %v2395
    %v2423 = vpack.c.b16 %v2398, %v2397
    %v2424 = vpack.c.b16 %v2400, %v2399
    %v2425 = vpack.c.b16 %v2402, %v2401
    %v2426 = vpack.c.b16 %v2404, %v2403
    %v2427 = vpack.c.b16 %v2406, %v2405
    %v2428 = vpack.c.b16 %v2408, %v2407
    %v2429 = vpack.c.b16 %v2410, %v2409
    %v2430 = vpack.c.b16 %v2412, %v2411
    %v2431 = vpack.c.b16 %v2414, %v2413
    %v2432 = vpack.c.b16 %v2416, %v2415
    %2449 = vmatprep.subr.bf16.mxu0 0
    %2450 = vmatpush1.bf16.msra.mxu0 %v2417
    %2451 = vmatprep.subr.bf16.mxu0 0
    %2452 = vmatpush1.bf16.msra.mxu0 %v2418
    %2453 = vmatprep.subr.bf16.mxu0 0
    %2454 = vmatpush1.bf16.msra.mxu0 %v2419
    %2455 = vmatprep.subr.bf16.mxu0 0
    %2456 = vmatpush1.bf16.msra.mxu0 %v2420
    %2457 = vmatprep.subr.bf16.mxu0 0
    %2458 = vmatpush1.bf16.msra.mxu0 %v2421
    %2459 = vmatprep.subr.bf16.mxu0 0
    %2460 = vmatpush1.bf16.msra.mxu0 %v2422
    %2461 = vmatprep.subr.bf16.mxu0 0
    %2462 = vmatpush1.bf16.msra.mxu0 %v2423
    %2463 = vmatprep.subr.bf16.mxu0 0
    %2464 = vmatpush1.bf16.msra.mxu0 %v2424
    %2465 = vmatprep.subr.bf16.mxu0 0
    %2466 = vmatpush1.bf16.msra.mxu0 %v2425
    %2467 = vmatprep.subr.bf16.mxu0 0
    %2468 = vmatpush1.bf16.msra.mxu0 %v2426
    %2469 = vmatprep.subr.bf16.mxu0 0
    %2470 = vmatpush1.bf16.msra.mxu0 %v2427
    %2471 = vmatprep.subr.bf16.mxu0 0
    %2472 = vmatpush1.bf16.msra.mxu0 %v2428
    %2473 = vmatprep.subr.bf16.mxu0 0
    %2474 = vmatpush1.bf16.msra.mxu0 %v2429
    %2475 = vmatprep.subr.bf16.mxu0 0
    %2476 = vmatpush1.bf16.msra.mxu0 %v2430
    %2477 = vmatprep.subr.bf16.mxu0 0
    %2478 = vmatpush1.bf16.msra.mxu0 %v2431
    %2479 = vmatprep.subr.bf16.mxu0 0
    %2480 = vmatpush1.bf16.msra.mxu0 %v2432
    %2481 = vmatprep.mubr.bf16.mxu0 %v888
    %2482 = vmatmul.mubr.bf16.gmra.mrb[0].mxu0 %v887
    %v2483 = vpop.f32.mrb[0].mxu0
    %v2484 = vadd.f32 0.0, %v2483
    %v2485 = vpop.f32.mrb[0].mxu0
    %v2486 = vpop.f32.mrb[0].mxu0
    %v2487 = vadd.f32 0.0, %v2486
    %v2488 = vpop.f32.mrb[0].mxu0
    %2489 = vmatprep.mubr.bf16.mxu0 %v890
    %2490 = vmatmul.mubr.bf16.gmra.mrb[0].mxu0 %v889
    %v2491 = vpop.f32.mrb[0].mxu0
    %v2492 = vadd.f32 0.0, %v2491
    %v2493 = vpop.f32.mrb[0].mxu0
    %v2494 = vpop.f32.mrb[0].mxu0
    %v2495 = vpop.f32.mrb[0].mxu0
    %2496 = vdwg.mxu0
    %vm2500 = vcmask 1044480
    %v2501 = vrot.slane %v2484, 3
    %v2502 = vrot.slane %v2487, 3
    %v2503 = vsel %vm2500, %v2501, %v2502
    %v2504 = vrot.slane %v2492, 3
    %v2505 = vsel %vm2500, %v2502, %v2504
    %v2508 = vsel %vm2086, %v2505, 0.0
    %2509 = vset.pattern.permute.xlu0 7
    %2510 = vperm.xlu0 %2509, %v891
    %v2511 = vpop.permute.xlu0 %2510
    %2513 = vset.pattern.permute.xlu0 7
    %2514 = vperm.xlu0 %2513, %v892
    %v2515 = vpop.permute.xlu0 %2514
    %2517 = vset.pattern.permute.xlu0 7
    %2518 = vperm.xlu0 %2517, %v893
    %v2519 = vpop.permute.xlu0 %2518
    %v2521 = vmul.f32 %v2511, %v2503
    %v2522 = vmul.f32 %v2515, %v2508
    %v2523 = vmul.f32 %v2519, 0.0
    %v2524 = vadd.f32 %v2317, %v2521
    %v2525 = vadd.f32 %v2318, %v2522
    %v2526 = vadd.f32 %v2319, %v2523
    %s2527 = scalar_lea.vmem %s8, 1024
    %v2528 = vld [vmem:[%s2527] sm:$0xf]
    %v2529 = vld [vmem:[%s2527 + $0x4] sm:$0xf]
    %v2530 = vld [vmem:[%s2527 + $0x8] sm:$0xf]
    %v2531 = vld [vmem:[%s2527 + $0xc] sm:$0xf]
    %v2532 = vld [vmem:[%s2527 + $0x10] sm:$0xf]
    %v2533 = vld [vmem:[%s2527 + $0x14] sm:$0xf]
    %v2534 = vld [vmem:[%s2527 + $0x18] sm:$0xf]
    %v2535 = vld [vmem:[%s2527 + $0x1c] sm:$0xf]
    %v2536 = vld [vmem:[%s2527 + $0x20] sm:$0xf]
    %v2537 = vld [vmem:[%s2527 + $0x24] sm:$0xf]
    %v2538 = vld [vmem:[%s2527 + $0x28] sm:$0xf]
    %v2539 = vld [vmem:[%s2527 + $0x2c] sm:$0xf]
    %v2540 = vld [vmem:[%s2527 + $0x30] sm:$0xf]
    %v2541 = vld [vmem:[%s2527 + $0x34] sm:$0xf]
    %v2542 = vld [vmem:[%s2527 + $0x38] sm:$0xf]
    %v2543 = vld [vmem:[%s2527 + $0x3c] sm:$0xf]
    %v2544 = vld [vmem:[%s2527 + $0x40] sm:$0xf]
    %v2545 = vld [vmem:[%s2527 + $0x44] sm:$0xf]
    %v2546 = vld [vmem:[%s2527 + $0x48] sm:$0xf]
    %v2547 = vld [vmem:[%s2527 + $0x4c] sm:$0xf]
    %v2548 = vld [vmem:[%s2527 + $0x50] sm:$0xf]
    %v2549 = vld [vmem:[%s2527 + $0x54] sm:$0xf]
    %v2550 = vld [vmem:[%s2527 + $0x58] sm:$0xf]
    %v2551 = vld [vmem:[%s2527 + $0x5c] sm:$0xf]
    %v2552 = vld [vmem:[%s2527 + $0x60] sm:$0xf]
    %v2553 = vld [vmem:[%s2527 + $0x64] sm:$0xf]
    %v2554 = vld [vmem:[%s2527 + $0x68] sm:$0xf]
    %v2555 = vld [vmem:[%s2527 + $0x6c] sm:$0xf]
    %v2556 = vld [vmem:[%s2527 + $0x70] sm:$0xf]
    %v2557 = vld [vmem:[%s2527 + $0x74] sm:$0xf]
    %v2558 = vld [vmem:[%s2527 + $0x78] sm:$0xf]
    %v2559 = vld [vmem:[%s2527 + $0x7c] sm:$0xf]
    %v2592 = vunpack.c.l.b16 %v2528
    %v2593 = vunpack.c.l.b16 %v2529
    %v2594 = vunpack.c.l.b16 %v2530
    %v2595 = vunpack.c.l.b16 %v2531
    %v2596 = vunpack.c.l.b16 %v2532
    %v2597 = vunpack.c.l.b16 %v2533
    %v2598 = vunpack.c.l.b16 %v2534
    %v2599 = vunpack.c.l.b16 %v2535
    %v2600 = vunpack.c.l.b16 %v2536
    %v2601 = vunpack.c.l.b16 %v2537
    %v2602 = vunpack.c.l.b16 %v2538
    %v2603 = vunpack.c.l.b16 %v2539
    %v2604 = vunpack.c.l.b16 %v2540
    %v2605 = vunpack.c.l.b16 %v2541
    %v2606 = vunpack.c.l.b16 %v2542
    %v2607 = vunpack.c.l.b16 %v2543
    %v2608 = vunpack.c.l.b16 %v2544
    %v2609 = vunpack.c.l.b16 %v2545
    %v2610 = vunpack.c.l.b16 %v2546
    %v2611 = vunpack.c.l.b16 %v2547
    %v2612 = vunpack.c.l.b16 %v2548
    %v2613 = vunpack.c.l.b16 %v2549
    %v2614 = vunpack.c.l.b16 %v2550
    %v2615 = vunpack.c.l.b16 %v2551
    %v2616 = vunpack.c.l.b16 %v2552
    %v2617 = vunpack.c.l.b16 %v2553
    %v2618 = vunpack.c.l.b16 %v2554
    %v2619 = vunpack.c.l.b16 %v2555
    %v2620 = vunpack.c.l.b16 %v2556
    %v2621 = vunpack.c.l.b16 %v2557
    %v2622 = vunpack.c.l.b16 %v2558
    %v2623 = vunpack.c.l.b16 %v2559
    %v2624 = vpack.c.b16 %v2593, %v2592
    %v2625 = vpack.c.b16 %v2595, %v2594
    %v2626 = vpack.c.b16 %v2597, %v2596
    %v2627 = vpack.c.b16 %v2599, %v2598
    %v2628 = vpack.c.b16 %v2601, %v2600
    %v2629 = vpack.c.b16 %v2603, %v2602
    %v2630 = vpack.c.b16 %v2605, %v2604
    %v2631 = vpack.c.b16 %v2607, %v2606
    %v2632 = vpack.c.b16 %v2609, %v2608
    %v2633 = vpack.c.b16 %v2611, %v2610
    %v2634 = vpack.c.b16 %v2613, %v2612
    %v2635 = vpack.c.b16 %v2615, %v2614
    %v2636 = vpack.c.b16 %v2617, %v2616
    %v2637 = vpack.c.b16 %v2619, %v2618
    %v2638 = vpack.c.b16 %v2621, %v2620
    %v2639 = vpack.c.b16 %v2623, %v2622
    %2656 = vmatprep.subr.bf16.mxu0 0
    %2657 = vmatpush1.bf16.msra.mxu0 %v2624
    %2658 = vmatprep.subr.bf16.mxu0 0
    %2659 = vmatpush1.bf16.msra.mxu0 %v2625
    %2660 = vmatprep.subr.bf16.mxu0 0
    %2661 = vmatpush1.bf16.msra.mxu0 %v2626
    %2662 = vmatprep.subr.bf16.mxu0 0
    %2663 = vmatpush1.bf16.msra.mxu0 %v2627
    %2664 = vmatprep.subr.bf16.mxu0 0
    %2665 = vmatpush1.bf16.msra.mxu0 %v2628
    %2666 = vmatprep.subr.bf16.mxu0 0
    %2667 = vmatpush1.bf16.msra.mxu0 %v2629
    %2668 = vmatprep.subr.bf16.mxu0 0
    %2669 = vmatpush1.bf16.msra.mxu0 %v2630
    %2670 = vmatprep.subr.bf16.mxu0 0
    %2671 = vmatpush1.bf16.msra.mxu0 %v2631
    %2672 = vmatprep.subr.bf16.mxu0 0
    %2673 = vmatpush1.bf16.msra.mxu0 %v2632
    %2674 = vmatprep.subr.bf16.mxu0 0
    %2675 = vmatpush1.bf16.msra.mxu0 %v2633
    %2676 = vmatprep.subr.bf16.mxu0 0
    %2677 = vmatpush1.bf16.msra.mxu0 %v2634
    %2678 = vmatprep.subr.bf16.mxu0 0
    %2679 = vmatpush1.bf16.msra.mxu0 %v2635
    %2680 = vmatprep.subr.bf16.mxu0 0
    %2681 = vmatpush1.bf16.msra.mxu0 %v2636
    %2682 = vmatprep.subr.bf16.mxu0 0
    %2683 = vmatpush1.bf16.msra.mxu0 %v2637
    %2684 = vmatprep.subr.bf16.mxu0 0
    %2685 = vmatpush1.bf16.msra.mxu0 %v2638
    %2686 = vmatprep.subr.bf16.mxu0 0
    %2687 = vmatpush1.bf16.msra.mxu0 %v2639
    %2688 = vmatprep.mubr.bf16.mxu0 %v888
    %2689 = vmatmul.mubr.bf16.gmra.mrb[0].mxu0 %v887
    %v2690 = vpop.f32.mrb[0].mxu0
    %v2691 = vadd.f32 0.0, %v2690
    %v2692 = vpop.f32.mrb[0].mxu0
    %v2693 = vpop.f32.mrb[0].mxu0
    %v2694 = vadd.f32 0.0, %v2693
    %v2695 = vpop.f32.mrb[0].mxu0
    %2696 = vmatprep.mubr.bf16.mxu0 %v890
    %2697 = vmatmul.mubr.bf16.gmra.mrb[0].mxu0 %v889
    %v2698 = vpop.f32.mrb[0].mxu0
    %v2699 = vadd.f32 0.0, %v2698
    %v2700 = vpop.f32.mrb[0].mxu0
    %v2701 = vpop.f32.mrb[0].mxu0
    %v2702 = vpop.f32.mrb[0].mxu0
    %2703 = vdwg.mxu0
    %v2707 = vrot.slane %v2691, 4
    %v2708 = vrot.slane %v2694, 4
    %v2709 = vsel %vm174, %v2707, %v2708
    %v2710 = vrot.slane %v2699, 4
    %v2711 = vsel %vm174, %v2708, %v2710
    %v2714 = vsel %vm2294, %v2711, 0.0
    %2715 = vset.pattern.permute.xlu0 8
    %2716 = vperm.xlu0 %2715, %v891
    %v2717 = vpop.permute.xlu0 %2716
    %2719 = vset.pattern.permute.xlu0 8
    %2720 = vperm.xlu0 %2719, %v892
    %v2721 = vpop.permute.xlu0 %2720
    %2723 = vset.pattern.permute.xlu0 8
    %2724 = vperm.xlu0 %2723, %v893
    %v2725 = vpop.permute.xlu0 %2724
    %v2727 = vmul.f32 %v2717, %v2709
    %v2728 = vmul.f32 %v2721, %v2714
    %v2729 = vmul.f32 %v2725, 0.0
    %v2730 = vadd.f32 %v2524, %v2727
    %v2731 = vadd.f32 %v2525, %v2728
    %v2732 = vadd.f32 %v2526, %v2729
    %vm2733 = vcmask 146432
    %v2735 = vsel %vm2733, %v878, 0
    %v2738 = vsel %vm2733, %v879, 0
    %v2741 = vsel %vm2733, %v880, 0
    %v2744 = vsel %vm2733, %v881, 0
    %v2747 = vsel %vm2733, %v882, 0
    %v2750 = vsel %vm2733, %v883, 0
    %v2753 = vsel %vm2733, %v884, 0
    %v2756 = vsel %vm2733, %v885, 0
    %v2759 = vsel %vm2733, %v886, 0
    %v2762 = vsel %vm635, %v2732, 0
    %2764 = vmatprep.subr.mxu0 0.0
    %2765 = vmatpush1.msra.mxu0 %v2730
    %2766 = vmatprep.subr.mxu0 0.0
    %2767 = vmatpush1.msra.mxu0 %v2731
    %2768 = vmatprep.subr.mxu0 0.0
    %2769 = vmatpush1.msra.mxu0 %v2762
    %2770 = vmatprep.subr.mxu0 0.0
    %2771 = vmatpush1.msra.mxu0 0.0
    %2772 = vmatprep.subr.mxu0 0.0
    %2773 = vmatpush1.msra.mxu0 0.0
    %2774 = vmatprep.subr.mxu0 0.0
    %2775 = vmatpush1.msra.mxu0 0.0
    %2776 = vmatprep.subr.mxu0 0.0
    %2777 = vmatpush1.msra.mxu0 0.0
    %2778 = vmatprep.subr.mxu0 0.0
    %2779 = vmatpush1.msra.mxu0 0.0
    %2780 = vmatprep.subr.mxu0 0.0
    %2781 = vmatpush1.msra.mxu0 0.0
    %2782 = vmatprep.subr.mxu0 0.0
    %2783 = vmatpush1.msra.mxu0 0.0
    %2784 = vmatprep.subr.mxu0 0.0
    %2785 = vmatpush1.msra.mxu0 0.0
    %2786 = vmatprep.subr.mxu0 0.0
    %2787 = vmatpush1.msra.mxu0 0.0
    %2788 = vmatprep.subr.mxu0 0.0
    %2789 = vmatpush1.msra.mxu0 0.0
    %2790 = vmatprep.subr.mxu0 0.0
    %2791 = vmatpush1.msra.mxu0 0.0
    %2792 = vmatprep.subr.mxu0 0.0
    %2793 = vmatpush1.msra.mxu0 0.0
    %2794 = vmatprep.subr.mxu0 0.0
    %2795 = vmatpush1.msra.mxu0 0.0
    %2796 = vmatprep.subr.mxu0 0.0
    %2797 = vmatpush1.msra.mxu0 0.0
    %2798 = vmatprep.subr.mxu0 0.0
    %2799 = vmatpush1.msra.mxu0 0.0
    %2800 = vmatprep.subr.mxu0 0.0
    %2801 = vmatpush1.msra.mxu0 0.0
    %2802 = vmatprep.subr.mxu0 0.0
    %2803 = vmatpush1.msra.mxu0 0.0
    %2804 = vmatprep.subr.mxu0 0.0
    %2805 = vmatpush1.msra.mxu0 0.0
    %2806 = vmatprep.subr.mxu0 0.0
    %2807 = vmatpush1.msra.mxu0 0.0
    %2808 = vmatprep.subr.mxu0 0.0
    %2809 = vmatpush1.msra.mxu0 0.0
    %2810 = vmatprep.subr.mxu0 0.0
    %2811 = vmatpush1.msra.mxu0 0.0
    %2812 = vmatprep.subr.mxu0 0.0
    %2813 = vmatpush1.msra.mxu0 0.0
    %2814 = vmatprep.subr.mxu0 0.0
    %2815 = vmatpush1.msra.mxu0 0.0
    %2816 = vmatprep.subr.mxu0 0.0
    %2817 = vmatpush1.msra.mxu0 0.0
    %2818 = vmatprep.subr.mxu0 0.0
    %2819 = vmatpush1.msra.mxu0 0.0
    %2820 = vmatprep.subr.mxu0 0.0
    %2821 = vmatpush1.msra.mxu0 0.0
    %2822 = vmatprep.subr.mxu0 0.0
    %2823 = vmatpush1.msra.mxu0 0.0
    %2824 = vmatprep.subr.mxu0 0.0
    %2825 = vmatpush1.msra.mxu0 0.0
    %2826 = vmatprep.subr.mxu0 0.0
    %2827 = vmatpush1.msra.mxu0 0.0
    %2828 = vmatprep.mubr.f32.mxu0 0.0
    %2829 = vmatmul.mubr.f32.gmra.mrb[0].mxu0 %v2735
    %v2830 = vpop.f32.mrb[0].mxu0
    %v2831 = vadd.f32 0.0, %v2830
    %v2832 = vpop.f32.mrb[0].mxu0
    %2833 = vmatprep.mubr.f32.mxu0 0.0
    %2834 = vmatmul.mubr.f32.gmra.mrb[0].mxu0 %v2738
    %v2835 = vpop.f32.mrb[0].mxu0
    %v2836 = vadd.f32 0.0, %v2835
    %v2837 = vpop.f32.mrb[0].mxu0
    %2838 = vmatprep.mubr.f32.mxu0 0.0
    %2839 = vmatmul.mubr.f32.gmra.mrb[0].mxu0 %v2741
    %v2840 = vpop.f32.mrb[0].mxu0
    %v2841 = vadd.f32 0.0, %v2840
    %v2842 = vpop.f32.mrb[0].mxu0
    %2843 = vmatprep.mubr.f32.mxu0 0.0
    %2844 = vmatmul.mubr.f32.gmra.mrb[0].mxu0 %v2744
    %v2845 = vpop.f32.mrb[0].mxu0
    %v2846 = vadd.f32 0.0, %v2845
    %v2847 = vpop.f32.mrb[0].mxu0
    %2848 = vmatprep.mubr.f32.mxu0 0.0
    %2849 = vmatmul.mubr.f32.gmra.mrb[0].mxu0 %v2747
    %v2850 = vpop.f32.mrb[0].mxu0
    %v2851 = vadd.f32 0.0, %v2850
    %v2852 = vpop.f32.mrb[0].mxu0
    %2853 = vmatprep.mubr.f32.mxu0 0.0
    %2854 = vmatmul.mubr.f32.gmra.mrb[0].mxu0 %v2750
    %v2855 = vpop.f32.mrb[0].mxu0
    %v2856 = vadd.f32 0.0, %v2855
    %v2857 = vpop.f32.mrb[0].mxu0
    %2858 = vmatprep.mubr.f32.mxu0 0.0
    %2859 = vmatmul.mubr.f32.gmra.mrb[0].mxu0 %v2753
    %v2860 = vpop.f32.mrb[0].mxu0
    %v2861 = vadd.f32 0.0, %v2860
    %v2862 = vpop.f32.mrb[0].mxu0
    %2863 = vmatprep.mubr.f32.mxu0 0.0
    %2864 = vmatmul.mubr.f32.gmra.mrb[0].mxu0 %v2756
    %v2865 = vpop.f32.mrb[0].mxu0
    %v2866 = vadd.f32 0.0, %v2865
    %v2867 = vpop.f32.mrb[0].mxu0
    %2868 = vmatprep.mubr.f32.mxu0 0.0
    %2869 = vmatmul.mubr.f32.gmra.mrb[0].mxu0 %v2759
    %v2870 = vpop.f32.mrb[0].mxu0
    %v2871 = vadd.f32 0.0, %v2870
    %v2872 = vpop.f32.mrb[0].mxu0
    %2873 = vdwg.mxu0
    %v2874 = vld [vmem:[%s11] sm:$0x3]
    %v2875 = vadd.f32 %v2831, %v2836
    %v2876 = vadd.f32 %v2875, %v2841
    %v2877 = vadd.f32 %v2876, %v2846
    %v2878 = vadd.f32 %v2877, %v2851
    %v2879 = vadd.f32 %v2878, %v2856
    %v2880 = vadd.f32 %v2879, %v2861
    %v2881 = vadd.f32 %v2880, %v2866
    %v2882 = vadd.f32 %v2881, %v2871
    %v2883 = vrot.slane %v2882, 4
    %v2884 = vadd.f32 %v2882, %v2883
    %v2885 = vrot.slane %v2884, 2
    %v2886 = vadd.f32 %v2884, %v2885
    %v2887 = vrot.slane %v2886, 1
    %v2888 = vadd.f32 %v2886, %v2887
    %v2889 = vrcp.pop 72.0
    %v2890 = vmul.f32 %v2888, %v2889
    %v2891 = vmul.f32 %v2831, %v2831
    %v2892 = vmul.f32 %v2836, %v2836
    %v2893 = vmul.f32 %v2841, %v2841
    %v2894 = vmul.f32 %v2846, %v2846
    %v2895 = vmul.f32 %v2851, %v2851
    %v2896 = vmul.f32 %v2856, %v2856
    %v2897 = vmul.f32 %v2861, %v2861
    %v2898 = vmul.f32 %v2866, %v2866
    %v2899 = vmul.f32 %v2871, %v2871
    %v2900 = vadd.f32 %v2891, %v2892
    %v2901 = vadd.f32 %v2900, %v2893
    %v2902 = vadd.f32 %v2901, %v2894
    %v2903 = vadd.f32 %v2902, %v2895
    %v2904 = vadd.f32 %v2903, %v2896
    %v2905 = vadd.f32 %v2904, %v2897
    %v2906 = vadd.f32 %v2905, %v2898
    %v2907 = vadd.f32 %v2906, %v2899
    %v2908 = vrot.slane %v2907, 4
    %v2909 = vadd.f32 %v2907, %v2908
    %v2910 = vrot.slane %v2909, 2
    %v2911 = vadd.f32 %v2909, %v2910
    %v2912 = vrot.slane %v2911, 1
    %v2913 = vadd.f32 %v2911, %v2912
    %v2914 = vmul.f32 %v2913, %v2889
    %v2915 = vmul.f32 %v2890, %v2890
    %v2916 = vsub.f32 %v2914, %v2915
    %v2917 = vmax.f32 %v2916, 0.0
    %v2918 = vadd.f32 %v2917, 1e-05
    %v2919 = vrsqrt.pop %v2918
    %v2920 = vmul.f32 %v2874, %v2919
    %v2921 = vlaneseq
    %v2922 = vshrl.u32 %v2921, 7
    %v2923 = vsub.s32 0, %v2922
    %v2924 = vrot.slane %v2920, %v2923
    %v2925 = vmul.f32 %v2831, %v2924
    %v2926 = vmul.f32 %v2836, %v2924
    %v2927 = vmul.f32 %v2841, %v2924
    %v2928 = vmul.f32 %v2846, %v2924
    %v2929 = vmul.f32 %v2851, %v2924
    %v2930 = vmul.f32 %v2856, %v2924
    %v2931 = vmul.f32 %v2861, %v2924
    %v2932 = vmul.f32 %v2866, %v2924
    %v2933 = vmul.f32 %v2871, %v2924
    %v2934 = vmul.f32 %v2890, %v2920
    %v2936 = vrot.slane %v2934, 7
    %v2938 = vsub.f32 %v2874, %v2936
    %v2939 = vlaneseq
    %v2940 = vshrl.u32 %v2939, 7
    %v2941 = vsub.s32 1, %v2940
    %v2942 = vrot.slane %v2938, %v2941
    %v2943 = vadd.f32 %v2925, %v2942
    %v2944 = vadd.f32 %v2926, %v2942
    %v2945 = vadd.f32 %v2927, %v2942
    %v2946 = vadd.f32 %v2928, %v2942
    %v2947 = vadd.f32 %v2929, %v2942
    %v2948 = vadd.f32 %v2930, %v2942
    %v2949 = vadd.f32 %v2931, %v2942
    %v2950 = vadd.f32 %v2932, %v2942
    %v2951 = vadd.f32 %v2933, %v2942
    %vm2952 = vcmp.ge.f32.partialorder %v2943, 0.0
    %vm2953 = vcmp.ge.f32.partialorder %v2944, 0.0
    %vm2954 = vcmp.ge.f32.partialorder %v2945, 0.0
    %vm2955 = vcmp.ge.f32.partialorder %v2946, 0.0
    %vm2956 = vcmp.ge.f32.partialorder %v2947, 0.0
    %vm2957 = vcmp.ge.f32.partialorder %v2948, 0.0
    %vm2958 = vcmp.ge.f32.partialorder %v2949, 0.0
    %vm2959 = vcmp.ge.f32.partialorder %v2950, 0.0
    %vm2960 = vcmp.ge.f32.partialorder %v2951, 0.0
    %v2961 = vmul.f32 %v2943, 0.01
    %v2962 = vmul.f32 %v2944, 0.01
    %v2963 = vmul.f32 %v2945, 0.01
    %v2964 = vmul.f32 %v2946, 0.01
    %v2965 = vmul.f32 %v2947, 0.01
    %v2966 = vmul.f32 %v2948, 0.01
    %v2967 = vmul.f32 %v2949, 0.01
    %v2968 = vmul.f32 %v2950, 0.01
    %v2969 = vmul.f32 %v2951, 0.01
    %v2970 = vsel %vm2952, %v2943, %v2961
    %v2971 = vsel %vm2953, %v2944, %v2962
    %v2972 = vsel %vm2954, %v2945, %v2963
    %v2973 = vsel %vm2955, %v2946, %v2964
    %v2974 = vsel %vm2956, %v2947, %v2965
    %v2975 = vsel %vm2957, %v2948, %v2966
    %v2976 = vsel %vm2958, %v2949, %v2967
    %v2977 = vsel %vm2959, %v2950, %v2968
    %v2978 = vsel %vm2960, %v2951, %v2969
    %v2979 = vld [vmem:[%s14] sm:$0xff]
    %v2980 = vld [vmem:[%s14 + $0x8] sm:$0xff]
    %v2981 = vld [vmem:[%s14 + $0x10] sm:$0xff]
    %v2982 = vld [vmem:[%s14 + $0x18] sm:$0xff]
    %v2983 = vld [vmem:[%s14 + $0x20] sm:$0xff]
    %v2984 = vld [vmem:[%s14 + $0x28] sm:$0xff]
    %v2985 = vld [vmem:[%s14 + $0x30] sm:$0xff]
    %v2986 = vld [vmem:[%s14 + $0x38] sm:$0xff]
    %v2987 = vld [vmem:[%s14 + $0x40] sm:$0xff]
    %v2988 = vld [vmem:[%s14 + $0x48] sm:$0xff]
    %v2989 = vld [vmem:[%s14 + $0x50] sm:$0xff]
    %v2990 = vld [vmem:[%s14 + $0x58] sm:$0xff]
    %v2991 = vld [vmem:[%s14 + $0x60] sm:$0xff]
    %v2992 = vld [vmem:[%s14 + $0x68] sm:$0xff]
    %v2993 = vld [vmem:[%s14 + $0x70] sm:$0xff]
    %v2994 = vld [vmem:[%s14 + $0x78] sm:$0xff]
    %v2995 = vld [vmem:[%s14 + $0x80] sm:$0xff]
    %v2996 = vld [vmem:[%s14 + $0x88] sm:$0xff]
    %v2997 = vld [vmem:[%s14 + $0x90] sm:$0xff]
    %v2998 = vld [vmem:[%s14 + $0x98] sm:$0xff]
    %v2999 = vld [vmem:[%s14 + $0xa0] sm:$0xff]
    %v3000 = vld [vmem:[%s14 + $0xa8] sm:$0xff]
    %v3001 = vld [vmem:[%s14 + $0xb0] sm:$0xff]
    %v3002 = vld [vmem:[%s14 + $0xb8] sm:$0xff]
    %v3003 = vld [vmem:[%s14 + $0xc0] sm:$0xff]
    %v3004 = vld [vmem:[%s14 + $0xc8] sm:$0xff]
    %v3005 = vld [vmem:[%s14 + $0xd0] sm:$0xff]
    %v3006 = vld [vmem:[%s14 + $0xd8] sm:$0xff]
    %v3007 = vld [vmem:[%s14 + $0xe0] sm:$0xff]
    %v3008 = vld [vmem:[%s14 + $0xe8] sm:$0xff]
    %v3009 = vld [vmem:[%s14 + $0xf0] sm:$0x3]
    %v3010 = vpack.c.bf16 %v2971, %v2970
    %v3011 = vpack.c.bf16 %v2973, %v2972
    %v3012 = vpack.c.bf16 %v2975, %v2974
    %v3013 = vpack.c.bf16 %v2977, %v2976
    %v3014 = vpack.c.bf16 %v2978, %v2978
    %v3015 = vld [vmem:[%s13] sm:$0xff]
    %v3016 = vld [vmem:[%s13 + $0x8] sm:$0xff]
    %v3017 = vld [vmem:[%s13 + $0x10] sm:$0xff]
    %v3018 = vld [vmem:[%s13 + $0x18] sm:$0xff]
    %v3019 = vld [vmem:[%s13 + $0x20] sm:$0xff]
    %v3020 = vld [vmem:[%s13 + $0x28] sm:$0xff]
    %v3021 = vld [vmem:[%s13 + $0x30] sm:$0xff]
    %v3022 = vld [vmem:[%s13 + $0x38] sm:$0xff]
    %v3023 = vld [vmem:[%s13 + $0x40] sm:$0xff]
    %v3024 = vld [vmem:[%s12] sm:$0xf]
    %v3025 = vld [vmem:[%s12 + $0x4] sm:$0xf]
    %v3026 = vld [vmem:[%s12 + $0x8] sm:$0xf]
    %v3027 = vld [vmem:[%s12 + $0xc] sm:$0xf]
    %v3028 = vld [vmem:[%s12 + $0x10] sm:$0xf]
    %v3029 = vld [vmem:[%s12 + $0x14] sm:$0xf]
    %v3030 = vld [vmem:[%s12 + $0x18] sm:$0xf]
    %v3031 = vld [vmem:[%s12 + $0x1c] sm:$0xf]
    %v3032 = vld [vmem:[%s12 + $0x20] sm:$0xf]
    %v3033 = vld [vmem:[%s12 + $0x24] sm:$0xf]
    %v3034 = vld [vmem:[%s12 + $0x28] sm:$0xf]
    %v3035 = vld [vmem:[%s12 + $0x2c] sm:$0xf]
    %v3036 = vld [vmem:[%s12 + $0x30] sm:$0xf]
    %v3037 = vld [vmem:[%s12 + $0x34] sm:$0xf]
    %v3038 = vld [vmem:[%s12 + $0x38] sm:$0xf]
    %v3039 = vld [vmem:[%s12 + $0x3c] sm:$0xf]
    %v3056 = vunpack.c.l.b16 %v3024
    %v3057 = vunpack.c.l.b16 %v3025
    %v3058 = vunpack.c.l.b16 %v3026
    %v3059 = vunpack.c.l.b16 %v3027
    %v3060 = vunpack.c.l.b16 %v3028
    %v3061 = vunpack.c.l.b16 %v3029
    %v3062 = vunpack.c.l.b16 %v3030
    %v3063 = vunpack.c.l.b16 %v3031
    %v3064 = vunpack.c.l.b16 %v3032
    %v3065 = vunpack.c.l.b16 %v3033
    %v3066 = vunpack.c.l.b16 %v3034
    %v3067 = vunpack.c.l.b16 %v3035
    %v3068 = vunpack.c.l.b16 %v3036
    %v3069 = vunpack.c.l.b16 %v3037
    %v3070 = vunpack.c.l.b16 %v3038
    %v3071 = vunpack.c.l.b16 %v3039
    %v3072 = vpack.c.b16 %v3057, %v3056
    %v3073 = vpack.c.b16 %v3059, %v3058
    %v3074 = vpack.c.b16 %v3061, %v3060
    %v3075 = vpack.c.b16 %v3063, %v3062
    %v3076 = vpack.c.b16 %v3065, %v3064
    %v3077 = vpack.c.b16 %v3067, %v3066
    %v3078 = vpack.c.b16 %v3069, %v3068
    %v3079 = vpack.c.b16 %v3071, %v3070
    %3088 = vmatprep.subr.bf16.mxu0 0
    %3089 = vmatpush1.bf16.msra.mxu0 %v3072
    %3090 = vmatprep.subr.bf16.mxu0 0
    %3091 = vmatpush1.bf16.msra.mxu0 %v3073
    %3092 = vmatprep.subr.bf16.mxu0 0
    %3093 = vmatpush1.bf16.msra.mxu0 %v3074
    %3094 = vmatprep.subr.bf16.mxu0 0
    %3095 = vmatpush1.bf16.msra.mxu0 %v3075
    %3096 = vmatprep.subr.bf16.mxu0 0
    %3097 = vmatpush1.bf16.msra.mxu0 %v3076
    %3098 = vmatprep.subr.bf16.mxu0 0
    %3099 = vmatpush1.bf16.msra.mxu0 %v3077
    %3100 = vmatprep.subr.bf16.mxu0 0
    %3101 = vmatpush1.bf16.msra.mxu0 %v3078
    %3102 = vmatprep.subr.bf16.mxu0 0
    %3103 = vmatpush1.bf16.msra.mxu0 %v3079
    %3104 = vmatprep.subr.bf16.mxu0 0
    %3105 = vmatpush1.bf16.msra.mxu0 0
    %3106 = vmatprep.subr.bf16.mxu0 0
    %3107 = vmatpush1.bf16.msra.mxu0 0
    %3108 = vmatprep.subr.bf16.mxu0 0
    %3109 = vmatpush1.bf16.msra.mxu0 0
    %3110 = vmatprep.subr.bf16.mxu0 0
    %3111 = vmatpush1.bf16.msra.mxu0 0
    %3112 = vmatprep.subr.bf16.mxu0 0
    %3113 = vmatpush1.bf16.msra.mxu0 0
    %3114 = vmatprep.subr.bf16.mxu0 0
    %3115 = vmatpush1.bf16.msra.mxu0 0
    %3116 = vmatprep.subr.bf16.mxu0 0
    %3117 = vmatpush1.bf16.msra.mxu0 0
    %3118 = vmatprep.subr.bf16.mxu0 0
    %3119 = vmatpush1.bf16.msra.mxu0 0
    %3120 = vmatprep.mubr.bf16.mxu0 0
    %3121 = vmatmul.mubr.bf16.gmra.mrb[0].mxu0 %v3010
    %v3122 = vpop.f32.mrb[0].mxu0
    %v3123 = vadd.f32 0.0, %v3122
    %v3124 = vpop.f32.mrb[0].mxu0
    %v3125 = vpop.f32.mrb[0].mxu0
    %v3126 = vadd.f32 0.0, %v3125
    %v3127 = vpop.f32.mrb[0].mxu0
    %3128 = vmatprep.mubr.bf16.mxu0 0
    %3129 = vmatmul.mubr.bf16.gmra.mrb[0].mxu0 %v3011
    %v3130 = vpop.f32.mrb[0].mxu0
    %v3131 = vadd.f32 0.0, %v3130
    %v3132 = vpop.f32.mrb[0].mxu0
    %v3133 = vpop.f32.mrb[0].mxu0
    %v3134 = vadd.f32 0.0, %v3133
    %v3135 = vpop.f32.mrb[0].mxu0
    %3136 = vmatprep.mubr.bf16.mxu0 0
    %3137 = vmatmul.mubr.bf16.gmra.mrb[0].mxu0 %v3012
    %v3138 = vpop.f32.mrb[0].mxu0
    %v3139 = vadd.f32 0.0, %v3138
    %v3140 = vpop.f32.mrb[0].mxu0
    %v3141 = vpop.f32.mrb[0].mxu0
    %v3142 = vadd.f32 0.0, %v3141
    %v3143 = vpop.f32.mrb[0].mxu0
    %3144 = vmatprep.mubr.bf16.mxu0 0
    %3145 = vmatmul.mubr.bf16.gmra.mrb[0].mxu0 %v3013
    %v3146 = vpop.f32.mrb[0].mxu0
    %v3147 = vadd.f32 0.0, %v3146
    %v3148 = vpop.f32.mrb[0].mxu0
    %v3149 = vpop.f32.mrb[0].mxu0
    %v3150 = vadd.f32 0.0, %v3149
    %v3151 = vpop.f32.mrb[0].mxu0
    %3152 = vmatprep.mubr.bf16.mxu0 0
    %3153 = vmatmul.mubr.bf16.gmra.mrb[0].mxu0 %v3014
    %v3154 = vpop.f32.mrb[0].mxu0
    %v3155 = vadd.f32 0.0, %v3154
    %v3156 = vpop.f32.mrb[0].mxu0
    %v3157 = vpop.f32.mrb[0].mxu0
    %v3158 = vpop.f32.mrb[0].mxu0
    %3159 = vdwg.mxu0
    %v3169 = vrot.slane %v3123, 1
    %v3170 = vrot.slane %v3126, 1
    %v3171 = vsel %vm2086, %v3169, %v3170
    %v3172 = vrot.slane %v3131, 1
    %v3173 = vsel %vm2086, %v3170, %v3172
    %v3174 = vrot.slane %v3134, 1
    %v3175 = vsel %vm2086, %v3172, %v3174
    %v3176 = vrot.slane %v3139, 1
    %v3177 = vsel %vm2086, %v3174, %v3176
    %v3178 = vrot.slane %v3142, 1
    %v3179 = vsel %vm2086, %v3176, %v3178
    %v3180 = vrot.slane %v3147, 1
    %v3181 = vsel %vm2086, %v3178, %v3180
    %v3182 = vrot.slane %v3150, 1
    %v3183 = vsel %vm2086, %v3180, %v3182
    %v3184 = vrot.slane %v3155, 1
    %v3185 = vsel %vm2086, %v3182, %v3184
    %v3195 = vsel %vm2086, 0.0, %v3169
    %3197 = vset.pattern.permute.xlu0 0
    %3198 = vperm.xlu0 %3197, %v3015
    %v3199 = vpop.permute.xlu0 %3198
    %3202 = vset.pattern.permute.xlu0 0
    %3203 = vperm.xlu0 %3202, %v3016
    %v3204 = vpop.permute.xlu0 %3203
    %3207 = vset.pattern.permute.xlu0 0
    %3208 = vperm.xlu0 %3207, %v3017
    %v3209 = vpop.permute.xlu0 %3208
    %3212 = vset.pattern.permute.xlu0 0
    %3213 = vperm.xlu0 %3212, %v3018
    %v3214 = vpop.permute.xlu0 %3213
    %3217 = vset.pattern.permute.xlu0 0
    %3218 = vperm.xlu0 %3217, %v3019
    %v3219 = vpop.permute.xlu0 %3218
    %3222 = vset.pattern.permute.xlu0 0
    %3223 = vperm.xlu0 %3222, %v3020
    %v3224 = vpop.permute.xlu0 %3223
    %3227 = vset.pattern.permute.xlu0 0
    %3228 = vperm.xlu0 %3227, %v3021
    %v3229 = vpop.permute.xlu0 %3228
    %3232 = vset.pattern.permute.xlu0 0
    %3233 = vperm.xlu0 %3232, %v3022
    %v3234 = vpop.permute.xlu0 %3233
    %3237 = vset.pattern.permute.xlu0 0
    %3238 = vperm.xlu0 %3237, %v3023
    %v3239 = vpop.permute.xlu0 %3238
    %v3241 = vmul.f32 %v3199, %v3195
    %v3242 = vmul.f32 %v3204, %v3171
    %v3243 = vmul.f32 %v3209, %v3173
    %v3244 = vmul.f32 %v3214, %v3175
    %v3245 = vmul.f32 %v3219, %v3177
    %v3246 = vmul.f32 %v3224, %v3179
    %v3247 = vmul.f32 %v3229, %v3181
    %v3248 = vmul.f32 %v3234, %v3183
    %v3249 = vmul.f32 %v3239, %v3185
    %s3250 = scalar_lea.vmem %s12, 64
    %v3251 = vld [vmem:[%s3250] sm:$0xf]
    %v3252 = vld [vmem:[%s3250 + $0x4] sm:$0xf]
    %v3253 = vld [vmem:[%s3250 + $0x8] sm:$0xf]
    %v3254 = vld [vmem:[%s3250 + $0xc] sm:$0xf]
    %v3255 = vld [vmem:[%s3250 + $0x10] sm:$0xf]
    %v3256 = vld [vmem:[%s3250 + $0x14] sm:$0xf]
    %v3257 = vld [vmem:[%s3250 + $0x18] sm:$0xf]
    %v3258 = vld [vmem:[%s3250 + $0x1c] sm:$0xf]
    %v3259 = vld [vmem:[%s3250 + $0x20] sm:$0xf]
    %v3260 = vld [vmem:[%s3250 + $0x24] sm:$0xf]
    %v3261 = vld [vmem:[%s3250 + $0x28] sm:$0xf]
    %v3262 = vld [vmem:[%s3250 + $0x2c] sm:$0xf]
    %v3263 = vld [vmem:[%s3250 + $0x30] sm:$0xf]
    %v3264 = vld [vmem:[%s3250 + $0x34] sm:$0xf]
    %v3265 = vld [vmem:[%s3250 + $0x38] sm:$0xf]
    %v3266 = vld [vmem:[%s3250 + $0x3c] sm:$0xf]
    %v3283 = vunpack.c.l.b16 %v3251
    %v3284 = vunpack.c.l.b16 %v3252
    %v3285 = vunpack.c.l.b16 %v3253
    %v3286 = vunpack.c.l.b16 %v3254
    %v3287 = vunpack.c.l.b16 %v3255
    %v3288 = vunpack.c.l.b16 %v3256
    %v3289 = vunpack.c.l.b16 %v3257
    %v3290 = vunpack.c.l.b16 %v3258
    %v3291 = vunpack.c.l.b16 %v3259
    %v3292 = vunpack.c.l.b16 %v3260
    %v3293 = vunpack.c.l.b16 %v3261
    %v3294 = vunpack.c.l.b16 %v3262
    %v3295 = vunpack.c.l.b16 %v3263
    %v3296 = vunpack.c.l.b16 %v3264
    %v3297 = vunpack.c.l.b16 %v3265
    %v3298 = vunpack.c.l.b16 %v3266
    %v3299 = vpack.c.b16 %v3284, %v3283
    %v3300 = vpack.c.b16 %v3286, %v3285
    %v3301 = vpack.c.b16 %v3288, %v3287
    %v3302 = vpack.c.b16 %v3290, %v3289
    %v3303 = vpack.c.b16 %v3292, %v3291
    %v3304 = vpack.c.b16 %v3294, %v3293
    %v3305 = vpack.c.b16 %v3296, %v3295
    %v3306 = vpack.c.b16 %v3298, %v3297
    %3315 = vmatprep.subr.bf16.mxu0 0
    %3316 = vmatpush1.bf16.msra.mxu0 %v3299
    %3317 = vmatprep.subr.bf16.mxu0 0
    %3318 = vmatpush1.bf16.msra.mxu0 %v3300
    %3319 = vmatprep.subr.bf16.mxu0 0
    %3320 = vmatpush1.bf16.msra.mxu0 %v3301
    %3321 = vmatprep.subr.bf16.mxu0 0
    %3322 = vmatpush1.bf16.msra.mxu0 %v3302
    %3323 = vmatprep.subr.bf16.mxu0 0
    %3324 = vmatpush1.bf16.msra.mxu0 %v3303
    %3325 = vmatprep.subr.bf16.mxu0 0
    %3326 = vmatpush1.bf16.msra.mxu0 %v3304
    %3327 = vmatprep.subr.bf16.mxu0 0
    %3328 = vmatpush1.bf16.msra.mxu0 %v3305
    %3329 = vmatprep.subr.bf16.mxu0 0
    %3330 = vmatpush1.bf16.msra.mxu0 %v3306
    %3331 = vmatprep.subr.bf16.mxu0 0
    %3332 = vmatpush1.bf16.msra.mxu0 0
    %3333 = vmatprep.subr.bf16.mxu0 0
    %3334 = vmatpush1.bf16.msra.mxu0 0
    %3335 = vmatprep.subr.bf16.mxu0 0
    %3336 = vmatpush1.bf16.msra.mxu0 0
    %3337 = vmatprep.subr.bf16.mxu0 0
    %3338 = vmatpush1.bf16.msra.mxu0 0
    %3339 = vmatprep.subr.bf16.mxu0 0
    %3340 = vmatpush1.bf16.msra.mxu0 0
    %3341 = vmatprep.subr.bf16.mxu0 0
    %3342 = vmatpush1.bf16.msra.mxu0 0
    %3343 = vmatprep.subr.bf16.mxu0 0
    %3344 = vmatpush1.bf16.msra.mxu0 0
    %3345 = vmatprep.subr.bf16.mxu0 0
    %3346 = vmatpush1.bf16.msra.mxu0 0
    %3347 = vmatprep.mubr.bf16.mxu0 0
    %3348 = vmatmul.mubr.bf16.gmra.mrb[0].mxu0 %v3010
    %v3349 = vpop.f32.mrb[0].mxu0
    %v3350 = vadd.f32 0.0, %v3349
    %v3351 = vpop.f32.mrb[0].mxu0
    %v3352 = vpop.f32.mrb[0].mxu0
    %v3353 = vadd.f32 0.0, %v3352
    %v3354 = vpop.f32.mrb[0].mxu0
    %3355 = vmatprep.mubr.bf16.mxu0 0
    %3356 = vmatmul.mubr.bf16.gmra.mrb[0].mxu0 %v3011
    %v3357 = vpop.f32.mrb[0].mxu0
    %v3358 = vadd.f32 0.0, %v3357
    %v3359 = vpop.f32.mrb[0].mxu0
    %v3360 = vpop.f32.mrb[0].mxu0
    %v3361 = vadd.f32 0.0, %v3360
    %v3362 = vpop.f32.mrb[0].mxu0
    %3363 = vmatprep.mubr.bf16.mxu0 0
    %3364 = vmatmul.mubr.bf16.gmra.mrb[0].mxu0 %v3012
    %v3365 = vpop.f32.mrb[0].mxu0
    %v3366 = vadd.f32 0.0, %v3365
    %v3367 = vpop.f32.mrb[0].mxu0
    %v3368 = vpop.f32.mrb[0].mxu0
    %v3369 = vadd.f32 0.0, %v3368
    %v3370 = vpop.f32.mrb[0].mxu0
    %3371 = vmatprep.mubr.bf16.mxu0 0
    %3372 = vmatmul.mubr.bf16.gmra.mrb[0].mxu0 %v3013
    %v3373 = vpop.f32.mrb[0].mxu0
    %v3374 = vadd.f32 0.0, %v3373
    %v3375 = vpop.f32.mrb[0].mxu0
    %v3376 = vpop.f32.mrb[0].mxu0
    %v3377 = vadd.f32 0.0, %v3376
    %v3378 = vpop.f32.mrb[0].mxu0
    %3379 = vmatprep.mubr.bf16.mxu0 0
    %3380 = vmatmul.mubr.bf16.gmra.mrb[0].mxu0 %v3014
    %v3381 = vpop.f32.mrb[0].mxu0
    %v3382 = vadd.f32 0.0, %v3381
    %v3383 = vpop.f32.mrb[0].mxu0
    %v3384 = vpop.f32.mrb[0].mxu0
    %v3385 = vpop.f32.mrb[0].mxu0
    %3386 = vdwg.mxu0
    %v3396 = vrot.slane %v3350, 2
    %v3397 = vrot.slane %v3353, 2
    %v3398 = vsel %vm2294, %v3396, %v3397
    %v3399 = vrot.slane %v3358, 2
    %v3400 = vsel %vm2294, %v3397, %v3399
    %v3401 = vrot.slane %v3361, 2
    %v3402 = vsel %vm2294, %v3399, %v3401
    %v3403 = vrot.slane %v3366, 2
    %v3404 = vsel %vm2294, %v3401, %v3403
    %v3405 = vrot.slane %v3369, 2
    %v3406 = vsel %vm2294, %v3403, %v3405
    %v3407 = vrot.slane %v3374, 2
    %v3408 = vsel %vm2294, %v3405, %v3407
    %v3409 = vrot.slane %v3377, 2
    %v3410 = vsel %vm2294, %v3407, %v3409
    %v3411 = vrot.slane %v3382, 2
    %v3412 = vsel %vm2294, %v3409, %v3411
    %v3422 = vsel %vm2294, 0.0, %v3396
    %3423 = vset.pattern.permute.xlu0 1
    %3424 = vperm.xlu0 %3423, %v3015
    %v3425 = vpop.permute.xlu0 %3424
    %3427 = vset.pattern.permute.xlu0 1
    %3428 = vperm.xlu0 %3427, %v3016
    %v3429 = vpop.permute.xlu0 %3428
    %3431 = vset.pattern.permute.xlu0 1
    %3432 = vperm.xlu0 %3431, %v3017
    %v3433 = vpop.permute.xlu0 %3432
    %3435 = vset.pattern.permute.xlu0 1
    %3436 = vperm.xlu0 %3435, %v3018
    %v3437 = vpop.permute.xlu0 %3436
    %3439 = vset.pattern.permute.xlu0 1
    %3440 = vperm.xlu0 %3439, %v3019
    %v3441 = vpop.permute.xlu0 %3440
    %3443 = vset.pattern.permute.xlu0 1
    %3444 = vperm.xlu0 %3443, %v3020
    %v3445 = vpop.permute.xlu0 %3444
    %3447 = vset.pattern.permute.xlu0 1
    %3448 = vperm.xlu0 %3447, %v3021
    %v3449 = vpop.permute.xlu0 %3448
    %3451 = vset.pattern.permute.xlu0 1
    %3452 = vperm.xlu0 %3451, %v3022
    %v3453 = vpop.permute.xlu0 %3452
    %3455 = vset.pattern.permute.xlu0 1
    %3456 = vperm.xlu0 %3455, %v3023
    %v3457 = vpop.permute.xlu0 %3456
    %v3459 = vmul.f32 %v3425, %v3422
    %v3460 = vmul.f32 %v3429, %v3398
    %v3461 = vmul.f32 %v3433, %v3400
    %v3462 = vmul.f32 %v3437, %v3402
    %v3463 = vmul.f32 %v3441, %v3404
    %v3464 = vmul.f32 %v3445, %v3406
    %v3465 = vmul.f32 %v3449, %v3408
    %v3466 = vmul.f32 %v3453, %v3410
    %v3467 = vmul.f32 %v3457, %v3412
    %v3468 = vadd.f32 %v3241, %v3459
    %v3469 = vadd.f32 %v3242, %v3460
    %v3470 = vadd.f32 %v3243, %v3461
    %v3471 = vadd.f32 %v3244, %v3462
    %v3472 = vadd.f32 %v3245, %v3463
    %v3473 = vadd.f32 %v3246, %v3464
    %v3474 = vadd.f32 %v3247, %v3465
    %v3475 = vadd.f32 %v3248, %v3466
    %v3476 = vadd.f32 %v3249, %v3467
    %s3477 = scalar_lea.vmem %s12, 128
    %v3478 = vld [vmem:[%s3477] sm:$0xf]
    %v3479 = vld [vmem:[%s3477 + $0x4] sm:$0xf]
    %v3480 = vld [vmem:[%s3477 + $0x8] sm:$0xf]
    %v3481 = vld [vmem:[%s3477 + $0xc] sm:$0xf]
    %v3482 = vld [vmem:[%s3477 + $0x10] sm:$0xf]
    %v3483 = vld [vmem:[%s3477 + $0x14] sm:$0xf]
    %v3484 = vld [vmem:[%s3477 + $0x18] sm:$0xf]
    %v3485 = vld [vmem:[%s3477 + $0x1c] sm:$0xf]
    %v3486 = vld [vmem:[%s3477 + $0x20] sm:$0xf]
    %v3487 = vld [vmem:[%s3477 + $0x24] sm:$0xf]
    %v3488 = vld [vmem:[%s3477 + $0x28] sm:$0xf]
    %v3489 = vld [vmem:[%s3477 + $0x2c] sm:$0xf]
    %v3490 = vld [vmem:[%s3477 + $0x30] sm:$0xf]
    %v3491 = vld [vmem:[%s3477 + $0x34] sm:$0xf]
    %v3492 = vld [vmem:[%s3477 + $0x38] sm:$0xf]
    %v3493 = vld [vmem:[%s3477 + $0x3c] sm:$0xf]
    %v3510 = vunpack.c.l.b16 %v3478
    %v3511 = vunpack.c.l.b16 %v3479
    %v3512 = vunpack.c.l.b16 %v3480
    %v3513 = vunpack.c.l.b16 %v3481
    %v3514 = vunpack.c.l.b16 %v3482
    %v3515 = vunpack.c.l.b16 %v3483
    %v3516 = vunpack.c.l.b16 %v3484
    %v3517 = vunpack.c.l.b16 %v3485
    %v3518 = vunpack.c.l.b16 %v3486
    %v3519 = vunpack.c.l.b16 %v3487
    %v3520 = vunpack.c.l.b16 %v3488
    %v3521 = vunpack.c.l.b16 %v3489
    %v3522 = vunpack.c.l.b16 %v3490
    %v3523 = vunpack.c.l.b16 %v3491
    %v3524 = vunpack.c.l.b16 %v3492
    %v3525 = vunpack.c.l.b16 %v3493
    %v3526 = vpack.c.b16 %v3511, %v3510
    %v3527 = vpack.c.b16 %v3513, %v3512
    %v3528 = vpack.c.b16 %v3515, %v3514
    %v3529 = vpack.c.b16 %v3517, %v3516
    %v3530 = vpack.c.b16 %v3519, %v3518
    %v3531 = vpack.c.b16 %v3521, %v3520
    %v3532 = vpack.c.b16 %v3523, %v3522
    %v3533 = vpack.c.b16 %v3525, %v3524
    %3542 = vmatprep.subr.bf16.mxu0 0
    %3543 = vmatpush1.bf16.msra.mxu0 %v3526
    %3544 = vmatprep.subr.bf16.mxu0 0
    %3545 = vmatpush1.bf16.msra.mxu0 %v3527
    %3546 = vmatprep.subr.bf16.mxu0 0
    %3547 = vmatpush1.bf16.msra.mxu0 %v3528
    %3548 = vmatprep.subr.bf16.mxu0 0
    %3549 = vmatpush1.bf16.msra.mxu0 %v3529
    %3550 = vmatprep.subr.bf16.mxu0 0
    %3551 = vmatpush1.bf16.msra.mxu0 %v3530
    %3552 = vmatprep.subr.bf16.mxu0 0
    %3553 = vmatpush1.bf16.msra.mxu0 %v3531
    %3554 = vmatprep.subr.bf16.mxu0 0
    %3555 = vmatpush1.bf16.msra.mxu0 %v3532
    %3556 = vmatprep.subr.bf16.mxu0 0
    %3557 = vmatpush1.bf16.msra.mxu0 %v3533
    %3558 = vmatprep.subr.bf16.mxu0 0
    %3559 = vmatpush1.bf16.msra.mxu0 0
    %3560 = vmatprep.subr.bf16.mxu0 0
    %3561 = vmatpush1.bf16.msra.mxu0 0
    %3562 = vmatprep.subr.bf16.mxu0 0
    %3563 = vmatpush1.bf16.msra.mxu0 0
    %3564 = vmatprep.subr.bf16.mxu0 0
    %3565 = vmatpush1.bf16.msra.mxu0 0
    %3566 = vmatprep.subr.bf16.mxu0 0
    %3567 = vmatpush1.bf16.msra.mxu0 0
    %3568 = vmatprep.subr.bf16.mxu0 0
    %3569 = vmatpush1.bf16.msra.mxu0 0
    %3570 = vmatprep.subr.bf16.mxu0 0
    %3571 = vmatpush1.bf16.msra.mxu0 0
    %3572 = vmatprep.subr.bf16.mxu0 0
    %3573 = vmatpush1.bf16.msra.mxu0 0
    %3574 = vmatprep.mubr.bf16.mxu0 0
    %3575 = vmatmul.mubr.bf16.gmra.mrb[0].mxu0 %v3010
    %v3576 = vpop.f32.mrb[0].mxu0
    %v3577 = vadd.f32 0.0, %v3576
    %v3578 = vpop.f32.mrb[0].mxu0
    %v3579 = vpop.f32.mrb[0].mxu0
    %v3580 = vadd.f32 0.0, %v3579
    %v3581 = vpop.f32.mrb[0].mxu0
    %3582 = vmatprep.mubr.bf16.mxu0 0
    %3583 = vmatmul.mubr.bf16.gmra.mrb[0].mxu0 %v3011
    %v3584 = vpop.f32.mrb[0].mxu0
    %v3585 = vadd.f32 0.0, %v3584
    %v3586 = vpop.f32.mrb[0].mxu0
    %v3587 = vpop.f32.mrb[0].mxu0
    %v3588 = vadd.f32 0.0, %v3587
    %v3589 = vpop.f32.mrb[0].mxu0
    %3590 = vmatprep.mubr.bf16.mxu0 0
    %3591 = vmatmul.mubr.bf16.gmra.mrb[0].mxu0 %v3012
    %v3592 = vpop.f32.mrb[0].mxu0
    %v3593 = vadd.f32 0.0, %v3592
    %v3594 = vpop.f32.mrb[0].mxu0
    %v3595 = vpop.f32.mrb[0].mxu0
    %v3596 = vadd.f32 0.0, %v3595
    %v3597 = vpop.f32.mrb[0].mxu0
    %3598 = vmatprep.mubr.bf16.mxu0 0
    %3599 = vmatmul.mubr.bf16.gmra.mrb[0].mxu0 %v3013
    %v3600 = vpop.f32.mrb[0].mxu0
    %v3601 = vadd.f32 0.0, %v3600
    %v3602 = vpop.f32.mrb[0].mxu0
    %v3603 = vpop.f32.mrb[0].mxu0
    %v3604 = vadd.f32 0.0, %v3603
    %v3605 = vpop.f32.mrb[0].mxu0
    %3606 = vmatprep.mubr.bf16.mxu0 0
    %3607 = vmatmul.mubr.bf16.gmra.mrb[0].mxu0 %v3014
    %v3608 = vpop.f32.mrb[0].mxu0
    %v3609 = vadd.f32 0.0, %v3608
    %v3610 = vpop.f32.mrb[0].mxu0
    %v3611 = vpop.f32.mrb[0].mxu0
    %v3612 = vpop.f32.mrb[0].mxu0
    %3613 = vdwg.mxu0
    %v3623 = vrot.slane %v3577, 3
    %v3624 = vrot.slane %v3580, 3
    %v3625 = vsel %vm2500, %v3623, %v3624
    %v3626 = vrot.slane %v3585, 3
    %v3627 = vsel %vm2500, %v3624, %v3626
    %v3628 = vrot.slane %v3588, 3
    %v3629 = vsel %vm2500, %v3626, %v3628
    %v3630 = vrot.slane %v3593, 3
    %v3631 = vsel %vm2500, %v3628, %v3630
    %v3632 = vrot.slane %v3596, 3
    %v3633 = vsel %vm2500, %v3630, %v3632
    %v3634 = vrot.slane %v3601, 3
    %v3635 = vsel %vm2500, %v3632, %v3634
    %v3636 = vrot.slane %v3604, 3
    %v3637 = vsel %vm2500, %v3634, %v3636
    %v3638 = vrot.slane %v3609, 3
    %v3639 = vsel %vm2500, %v3636, %v3638
    %v3649 = vsel %vm2500, 0.0, %v3623
    %3650 = vset.pattern.permute.xlu0 2
    %3651 = vperm.xlu0 %3650, %v3015
    %v3652 = vpop.permute.xlu0 %3651
    %3654 = vset.pattern.permute.xlu0 2
    %3655 = vperm.xlu0 %3654, %v3016
    %v3656 = vpop.permute.xlu0 %3655
    %3658 = vset.pattern.permute.xlu0 2
    %3659 = vperm.xlu0 %3658, %v3017
    %v3660 = vpop.permute.xlu0 %3659
    %3662 = vset.pattern.permute.xlu0 2
    %3663 = vperm.xlu0 %3662, %v3018
    %v3664 = vpop.permute.xlu0 %3663
    %3666 = vset.pattern.permute.xlu0 2
    %3667 = vperm.xlu0 %3666, %v3019
    %v3668 = vpop.permute.xlu0 %3667
    %3670 = vset.pattern.permute.xlu0 2
    %3671 = vperm.xlu0 %3670, %v3020
    %v3672 = vpop.permute.xlu0 %3671
    %3674 = vset.pattern.permute.xlu0 2
    %3675 = vperm.xlu0 %3674, %v3021
    %v3676 = vpop.permute.xlu0 %3675
    %3678 = vset.pattern.permute.xlu0 2
    %3679 = vperm.xlu0 %3678, %v3022
    %v3680 = vpop.permute.xlu0 %3679
    %3682 = vset.pattern.permute.xlu0 2
    %3683 = vperm.xlu0 %3682, %v3023
    %v3684 = vpop.permute.xlu0 %3683
    %v3686 = vmul.f32 %v3652, %v3649
    %v3687 = vmul.f32 %v3656, %v3625
    %v3688 = vmul.f32 %v3660, %v3627
    %v3689 = vmul.f32 %v3664, %v3629
    %v3690 = vmul.f32 %v3668, %v3631
    %v3691 = vmul.f32 %v3672, %v3633
    %v3692 = vmul.f32 %v3676, %v3635
    %v3693 = vmul.f32 %v3680, %v3637
    %v3694 = vmul.f32 %v3684, %v3639
    %v3695 = vadd.f32 %v3468, %v3686
    %v3696 = vadd.f32 %v3469, %v3687
    %v3697 = vadd.f32 %v3470, %v3688
    %v3698 = vadd.f32 %v3471, %v3689
    %v3699 = vadd.f32 %v3472, %v3690
    %v3700 = vadd.f32 %v3473, %v3691
    %v3701 = vadd.f32 %v3474, %v3692
    %v3702 = vadd.f32 %v3475, %v3693
    %v3703 = vadd.f32 %v3476, %v3694
    %s3704 = scalar_lea.vmem %s12, 192
    %v3705 = vld [vmem:[%s3704] sm:$0xf]
    %v3706 = vld [vmem:[%s3704 + $0x4] sm:$0xf]
    %v3707 = vld [vmem:[%s3704 + $0x8] sm:$0xf]
    %v3708 = vld [vmem:[%s3704 + $0xc] sm:$0xf]
    %v3709 = vld [vmem:[%s3704 + $0x10] sm:$0xf]
    %v3710 = vld [vmem:[%s3704 + $0x14] sm:$0xf]
    %v3711 = vld [vmem:[%s3704 + $0x18] sm:$0xf]
    %v3712 = vld [vmem:[%s3704 + $0x1c] sm:$0xf]
    %v3713 = vld [vmem:[%s3704 + $0x20] sm:$0xf]
    %v3714 = vld [vmem:[%s3704 + $0x24] sm:$0xf]
    %v3715 = vld [vmem:[%s3704 + $0x28] sm:$0xf]
    %v3716 = vld [vmem:[%s3704 + $0x2c] sm:$0xf]
    %v3717 = vld [vmem:[%s3704 + $0x30] sm:$0xf]
    %v3718 = vld [vmem:[%s3704 + $0x34] sm:$0xf]
    %v3719 = vld [vmem:[%s3704 + $0x38] sm:$0xf]
    %v3720 = vld [vmem:[%s3704 + $0x3c] sm:$0xf]
    %v3737 = vunpack.c.l.b16 %v3705
    %v3738 = vunpack.c.l.b16 %v3706
    %v3739 = vunpack.c.l.b16 %v3707
    %v3740 = vunpack.c.l.b16 %v3708
    %v3741 = vunpack.c.l.b16 %v3709
    %v3742 = vunpack.c.l.b16 %v3710
    %v3743 = vunpack.c.l.b16 %v3711
    %v3744 = vunpack.c.l.b16 %v3712
    %v3745 = vunpack.c.l.b16 %v3713
    %v3746 = vunpack.c.l.b16 %v3714
    %v3747 = vunpack.c.l.b16 %v3715
    %v3748 = vunpack.c.l.b16 %v3716
    %v3749 = vunpack.c.l.b16 %v3717
    %v3750 = vunpack.c.l.b16 %v3718
    %v3751 = vunpack.c.l.b16 %v3719
    %v3752 = vunpack.c.l.b16 %v3720
    %v3753 = vpack.c.b16 %v3738, %v3737
    %v3754 = vpack.c.b16 %v3740, %v3739
    %v3755 = vpack.c.b16 %v3742, %v3741
    %v3756 = vpack.c.b16 %v3744, %v3743
    %v3757 = vpack.c.b16 %v3746, %v3745
    %v3758 = vpack.c.b16 %v3748, %v3747
    %v3759 = vpack.c.b16 %v3750, %v3749
    %v3760 = vpack.c.b16 %v3752, %v3751
    %3769 = vmatprep.subr.bf16.mxu0 0
    %3770 = vmatpush1.bf16.msra.mxu0 %v3753
    %3771 = vmatprep.subr.bf16.mxu0 0
    %3772 = vmatpush1.bf16.msra.mxu0 %v3754
    %3773 = vmatprep.subr.bf16.mxu0 0
    %3774 = vmatpush1.bf16.msra.mxu0 %v3755
    %3775 = vmatprep.subr.bf16.mxu0 0
    %3776 = vmatpush1.bf16.msra.mxu0 %v3756
    %3777 = vmatprep.subr.bf16.mxu0 0
    %3778 = vmatpush1.bf16.msra.mxu0 %v3757
    %3779 = vmatprep.subr.bf16.mxu0 0
    %3780 = vmatpush1.bf16.msra.mxu0 %v3758
    %3781 = vmatprep.subr.bf16.mxu0 0
    %3782 = vmatpush1.bf16.msra.mxu0 %v3759
    %3783 = vmatprep.subr.bf16.mxu0 0
    %3784 = vmatpush1.bf16.msra.mxu0 %v3760
    %3785 = vmatprep.subr.bf16.mxu0 0
    %3786 = vmatpush1.bf16.msra.mxu0 0
    %3787 = vmatprep.subr.bf16.mxu0 0
    %3788 = vmatpush1.bf16.msra.mxu0 0
    %3789 = vmatprep.subr.bf16.mxu0 0
    %3790 = vmatpush1.bf16.msra.mxu0 0
    %3791 = vmatprep.subr.bf16.mxu0 0
    %3792 = vmatpush1.bf16.msra.mxu0 0
    %3793 = vmatprep.subr.bf16.mxu0 0
    %3794 = vmatpush1.bf16.msra.mxu0 0
    %3795 = vmatprep.subr.bf16.mxu0 0
    %3796 = vmatpush1.bf16.msra.mxu0 0
    %3797 = vmatprep.subr.bf16.mxu0 0
    %3798 = vmatpush1.bf16.msra.mxu0 0
    %3799 = vmatprep.subr.bf16.mxu0 0
    %3800 = vmatpush1.bf16.msra.mxu0 0
    %3801 = vmatprep.mubr.bf16.mxu0 0
    %3802 = vmatmul.mubr.bf16.gmra.mrb[0].mxu0 %v3010
    %v3803 = vpop.f32.mrb[0].mxu0
    %v3804 = vadd.f32 0.0, %v3803
    %v3805 = vpop.f32.mrb[0].mxu0
    %v3806 = vpop.f32.mrb[0].mxu0
    %v3807 = vadd.f32 0.0, %v3806
    %v3808 = vpop.f32.mrb[0].mxu0
    %3809 = vmatprep.mubr.bf16.mxu0 0
    %3810 = vmatmul.mubr.bf16.gmra.mrb[0].mxu0 %v3011
    %v3811 = vpop.f32.mrb[0].mxu0
    %v3812 = vadd.f32 0.0, %v3811
    %v3813 = vpop.f32.mrb[0].mxu0
    %v3814 = vpop.f32.mrb[0].mxu0
    %v3815 = vadd.f32 0.0, %v3814
    %v3816 = vpop.f32.mrb[0].mxu0
    %3817 = vmatprep.mubr.bf16.mxu0 0
    %3818 = vmatmul.mubr.bf16.gmra.mrb[0].mxu0 %v3012
    %v3819 = vpop.f32.mrb[0].mxu0
    %v3820 = vadd.f32 0.0, %v3819
    %v3821 = vpop.f32.mrb[0].mxu0
    %v3822 = vpop.f32.mrb[0].mxu0
    %v3823 = vadd.f32 0.0, %v3822
    %v3824 = vpop.f32.mrb[0].mxu0
    %3825 = vmatprep.mubr.bf16.mxu0 0
    %3826 = vmatmul.mubr.bf16.gmra.mrb[0].mxu0 %v3013
    %v3827 = vpop.f32.mrb[0].mxu0
    %v3828 = vadd.f32 0.0, %v3827
    %v3829 = vpop.f32.mrb[0].mxu0
    %v3830 = vpop.f32.mrb[0].mxu0
    %v3831 = vadd.f32 0.0, %v3830
    %v3832 = vpop.f32.mrb[0].mxu0
    %3833 = vmatprep.mubr.bf16.mxu0 0
    %3834 = vmatmul.mubr.bf16.gmra.mrb[0].mxu0 %v3014
    %v3835 = vpop.f32.mrb[0].mxu0
    %v3836 = vadd.f32 0.0, %v3835
    %v3837 = vpop.f32.mrb[0].mxu0
    %v3838 = vpop.f32.mrb[0].mxu0
    %v3839 = vpop.f32.mrb[0].mxu0
    %3840 = vdwg.mxu0
    %v3850 = vrot.slane %v3804, 7
    %v3851 = vrot.slane %v3807, 7
    %v3852 = vsel %vm1683, %v3850, %v3851
    %v3853 = vrot.slane %v3812, 7
    %v3854 = vsel %vm1683, %v3851, %v3853
    %v3855 = vrot.slane %v3815, 7
    %v3856 = vsel %vm1683, %v3853, %v3855
    %v3857 = vrot.slane %v3820, 7
    %v3858 = vsel %vm1683, %v3855, %v3857
    %v3859 = vrot.slane %v3823, 7
    %v3860 = vsel %vm1683, %v3857, %v3859
    %v3861 = vrot.slane %v3828, 7
    %v3862 = vsel %vm1683, %v3859, %v3861
    %v3863 = vrot.slane %v3831, 7
    %v3864 = vsel %vm1683, %v3861, %v3863
    %v3865 = vrot.slane %v3836, 7
    %v3866 = vsel %vm1683, %v3863, %v3865
    %v3876 = vsel %vm1683, 0.0, %v3850
    %3877 = vset.pattern.permute.xlu0 3
    %3878 = vperm.xlu0 %3877, %v3015
    %v3879 = vpop.permute.xlu0 %3878
    %3881 = vset.pattern.permute.xlu0 3
    %3882 = vperm.xlu0 %3881, %v3016
    %v3883 = vpop.permute.xlu0 %3882
    %3885 = vset.pattern.permute.xlu0 3
    %3886 = vperm.xlu0 %3885, %v3017
    %v3887 = vpop.permute.xlu0 %3886
    %3889 = vset.pattern.permute.xlu0 3
    %3890 = vperm.xlu0 %3889, %v3018
    %v3891 = vpop.permute.xlu0 %3890
    %3893 = vset.pattern.permute.xlu0 3
    %3894 = vperm.xlu0 %3893, %v3019
    %v3895 = vpop.permute.xlu0 %3894
    %3897 = vset.pattern.permute.xlu0 3
    %3898 = vperm.xlu0 %3897, %v3020
    %v3899 = vpop.permute.xlu0 %3898
    %3901 = vset.pattern.permute.xlu0 3
    %3902 = vperm.xlu0 %3901, %v3021
    %v3903 = vpop.permute.xlu0 %3902
    %3905 = vset.pattern.permute.xlu0 3
    %3906 = vperm.xlu0 %3905, %v3022
    %v3907 = vpop.permute.xlu0 %3906
    %3909 = vset.pattern.permute.xlu0 3
    %3910 = vperm.xlu0 %3909, %v3023
    %v3911 = vpop.permute.xlu0 %3910
    %v3913 = vmul.f32 %v3879, %v3876
    %v3914 = vmul.f32 %v3883, %v3852
    %v3915 = vmul.f32 %v3887, %v3854
    %v3916 = vmul.f32 %v3891, %v3856
    %v3917 = vmul.f32 %v3895, %v3858
    %v3918 = vmul.f32 %v3899, %v3860
    %v3919 = vmul.f32 %v3903, %v3862
    %v3920 = vmul.f32 %v3907, %v3864
    %v3921 = vmul.f32 %v3911, %v3866
    %v3922 = vadd.f32 %v3695, %v3913
    %v3923 = vadd.f32 %v3696, %v3914
    %v3924 = vadd.f32 %v3697, %v3915
    %v3925 = vadd.f32 %v3698, %v3916
    %v3926 = vadd.f32 %v3699, %v3917
    %v3927 = vadd.f32 %v3700, %v3918
    %v3928 = vadd.f32 %v3701, %v3919
    %v3929 = vadd.f32 %v3702, %v3920
    %v3930 = vadd.f32 %v3703, %v3921
    %s3931 = scalar_lea.vmem %s12, 256
    %v3932 = vld [vmem:[%s3931] sm:$0xf]
    %v3933 = vld [vmem:[%s3931 + $0x4] sm:$0xf]
    %v3934 = vld [vmem:[%s3931 + $0x8] sm:$0xf]
    %v3935 = vld [vmem:[%s3931 + $0xc] sm:$0xf]
    %v3936 = vld [vmem:[%s3931 + $0x10] sm:$0xf]
    %v3937 = vld [vmem:[%s3931 + $0x14] sm:$0xf]
    %v3938 = vld [vmem:[%s3931 + $0x18] sm:$0xf]
    %v3939 = vld [vmem:[%s3931 + $0x1c] sm:$0xf]
    %v3940 = vld [vmem:[%s3931 + $0x20] sm:$0xf]
    %v3941 = vld [vmem:[%s3931 + $0x24] sm:$0xf]
    %v3942 = vld [vmem:[%s3931 + $0x28] sm:$0xf]
    %v3943 = vld [vmem:[%s3931 + $0x2c] sm:$0xf]
    %v3944 = vld [vmem:[%s3931 + $0x30] sm:$0xf]
    %v3945 = vld [vmem:[%s3931 + $0x34] sm:$0xf]
    %v3946 = vld [vmem:[%s3931 + $0x38] sm:$0xf]
    %v3947 = vld [vmem:[%s3931 + $0x3c] sm:$0xf]
    %v3964 = vunpack.c.l.b16 %v3932
    %v3965 = vunpack.c.l.b16 %v3933
    %v3966 = vunpack.c.l.b16 %v3934
    %v3967 = vunpack.c.l.b16 %v3935
    %v3968 = vunpack.c.l.b16 %v3936
    %v3969 = vunpack.c.l.b16 %v3937
    %v3970 = vunpack.c.l.b16 %v3938
    %v3971 = vunpack.c.l.b16 %v3939
    %v3972 = vunpack.c.l.b16 %v3940
    %v3973 = vunpack.c.l.b16 %v3941
    %v3974 = vunpack.c.l.b16 %v3942
    %v3975 = vunpack.c.l.b16 %v3943
    %v3976 = vunpack.c.l.b16 %v3944
    %v3977 = vunpack.c.l.b16 %v3945
    %v3978 = vunpack.c.l.b16 %v3946
    %v3979 = vunpack.c.l.b16 %v3947
    %v3980 = vpack.c.b16 %v3965, %v3964
    %v3981 = vpack.c.b16 %v3967, %v3966
    %v3982 = vpack.c.b16 %v3969, %v3968
    %v3983 = vpack.c.b16 %v3971, %v3970
    %v3984 = vpack.c.b16 %v3973, %v3972
    %v3985 = vpack.c.b16 %v3975, %v3974
    %v3986 = vpack.c.b16 %v3977, %v3976
    %v3987 = vpack.c.b16 %v3979, %v3978
    %3996 = vmatprep.subr.bf16.mxu0 0
    %3997 = vmatpush1.bf16.msra.mxu0 %v3980
    %3998 = vmatprep.subr.bf16.mxu0 0
    %3999 = vmatpush1.bf16.msra.mxu0 %v3981
    %4000 = vmatprep.subr.bf16.mxu0 0
    %4001 = vmatpush1.bf16.msra.mxu0 %v3982
    %4002 = vmatprep.subr.bf16.mxu0 0
    %4003 = vmatpush1.bf16.msra.mxu0 %v3983
    %4004 = vmatprep.subr.bf16.mxu0 0
    %4005 = vmatpush1.bf16.msra.mxu0 %v3984
    %4006 = vmatprep.subr.bf16.mxu0 0
    %4007 = vmatpush1.bf16.msra.mxu0 %v3985
    %4008 = vmatprep.subr.bf16.mxu0 0
    %4009 = vmatpush1.bf16.msra.mxu0 %v3986
    %4010 = vmatprep.subr.bf16.mxu0 0
    %4011 = vmatpush1.bf16.msra.mxu0 %v3987
    %4012 = vmatprep.subr.bf16.mxu0 0
    %4013 = vmatpush1.bf16.msra.mxu0 0
    %4014 = vmatprep.subr.bf16.mxu0 0
    %4015 = vmatpush1.bf16.msra.mxu0 0
    %4016 = vmatprep.subr.bf16.mxu0 0
    %4017 = vmatpush1.bf16.msra.mxu0 0
    %4018 = vmatprep.subr.bf16.mxu0 0
    %4019 = vmatpush1.bf16.msra.mxu0 0
    %4020 = vmatprep.subr.bf16.mxu0 0
    %4021 = vmatpush1.bf16.msra.mxu0 0
    %4022 = vmatprep.subr.bf16.mxu0 0
    %4023 = vmatpush1.bf16.msra.mxu0 0
    %4024 = vmatprep.subr.bf16.mxu0 0
    %4025 = vmatpush1.bf16.msra.mxu0 0
    %4026 = vmatprep.subr.bf16.mxu0 0
    %4027 = vmatpush1.bf16.msra.mxu0 0
    %4028 = vmatprep.mubr.bf16.mxu0 0
    %4029 = vmatmul.mubr.bf16.gmra.mrb[0].mxu0 %v3010
    %v4030 = vpop.f32.mrb[0].mxu0
    %v4031 = vadd.f32 0.0, %v4030
    %v4032 = vpop.f32.mrb[0].mxu0
    %v4033 = vpop.f32.mrb[0].mxu0
    %v4034 = vadd.f32 0.0, %v4033
    %v4035 = vpop.f32.mrb[0].mxu0
    %4036 = vmatprep.mubr.bf16.mxu0 0
    %4037 = vmatmul.mubr.bf16.gmra.mrb[0].mxu0 %v3011
    %v4038 = vpop.f32.mrb[0].mxu0
    %v4039 = vadd.f32 0.0, %v4038
    %v4040 = vpop.f32.mrb[0].mxu0
    %v4041 = vpop.f32.mrb[0].mxu0
    %v4042 = vadd.f32 0.0, %v4041
    %v4043 = vpop.f32.mrb[0].mxu0
    %4044 = vmatprep.mubr.bf16.mxu0 0
    %4045 = vmatmul.mubr.bf16.gmra.mrb[0].mxu0 %v3012
    %v4046 = vpop.f32.mrb[0].mxu0
    %v4047 = vadd.f32 0.0, %v4046
    %v4048 = vpop.f32.mrb[0].mxu0
    %v4049 = vpop.f32.mrb[0].mxu0
    %v4050 = vadd.f32 0.0, %v4049
    %v4051 = vpop.f32.mrb[0].mxu0
    %4052 = vmatprep.mubr.bf16.mxu0 0
    %4053 = vmatmul.mubr.bf16.gmra.mrb[0].mxu0 %v3013
    %v4054 = vpop.f32.mrb[0].mxu0
    %v4055 = vadd.f32 0.0, %v4054
    %v4056 = vpop.f32.mrb[0].mxu0
    %v4057 = vpop.f32.mrb[0].mxu0
    %v4058 = vadd.f32 0.0, %v4057
    %v4059 = vpop.f32.mrb[0].mxu0
    %4060 = vmatprep.mubr.bf16.mxu0 0
    %4061 = vmatmul.mubr.bf16.gmra.mrb[0].mxu0 %v3014
    %v4062 = vpop.f32.mrb[0].mxu0
    %v4063 = vadd.f32 0.0, %v4062
    %v4064 = vpop.f32.mrb[0].mxu0
    %v4065 = vpop.f32.mrb[0].mxu0
    %v4066 = vpop.f32.mrb[0].mxu0
    %4067 = vdwg.mxu0
    %4068 = vset.pattern.permute.xlu0 4
    %4069 = vperm.xlu0 %4068, %v3015
    %v4070 = vpop.permute.xlu0 %4069
    %4072 = vset.pattern.permute.xlu0 4
    %4073 = vperm.xlu0 %4072, %v3016
    %v4074 = vpop.permute.xlu0 %4073
    %4076 = vset.pattern.permute.xlu0 4
    %4077 = vperm.xlu0 %4076, %v3017
    %v4078 = vpop.permute.xlu0 %4077
    %4080 = vset.pattern.permute.xlu0 4
    %4081 = vperm.xlu0 %4080, %v3018
    %v4082 = vpop.permute.xlu0 %4081
    %4084 = vset.pattern.permute.xlu0 4
    %4085 = vperm.xlu0 %4084, %v3019
    %v4086 = vpop.permute.xlu0 %4085
    %4088 = vset.pattern.permute.xlu0 4
    %4089 = vperm.xlu0 %4088, %v3020
    %v4090 = vpop.permute.xlu0 %4089
    %4092 = vset.pattern.permute.xlu0 4
    %4093 = vperm.xlu0 %4092, %v3021
    %v4094 = vpop.permute.xlu0 %4093
    %4096 = vset.pattern.permute.xlu0 4
    %4097 = vperm.xlu0 %4096, %v3022
    %v4098 = vpop.permute.xlu0 %4097
    %4100 = vset.pattern.permute.xlu0 4
    %4101 = vperm.xlu0 %4100, %v3023
    %v4102 = vpop.permute.xlu0 %4101
    %v4104 = vmul.f32 %v4070, %v4031
    %v4105 = vmul.f32 %v4074, %v4034
    %v4106 = vmul.f32 %v4078, %v4039
    %v4107 = vmul.f32 %v4082, %v4042
    %v4108 = vmul.f32 %v4086, %v4047
    %v4109 = vmul.f32 %v4090, %v4050
    %v4110 = vmul.f32 %v4094, %v4055
    %v4111 = vmul.f32 %v4098, %v4058
    %v4112 = vmul.f32 %v4102, %v4063
    %v4113 = vadd.f32 %v3922, %v4104
    %v4114 = vadd.f32 %v3923, %v4105
    %v4115 = vadd.f32 %v3924, %v4106
    %v4116 = vadd.f32 %v3925, %v4107
    %v4117 = vadd.f32 %v3926, %v4108
    %v4118 = vadd.f32 %v3927, %v4109
    %v4119 = vadd.f32 %v3928, %v4110
    %v4120 = vadd.f32 %v3929, %v4111
    %v4121 = vadd.f32 %v3930, %v4112
    %s4122 = scalar_lea.vmem %s12, 320
    %v4123 = vld [vmem:[%s4122] sm:$0xf]
    %v4124 = vld [vmem:[%s4122 + $0x4] sm:$0xf]
    %v4125 = vld [vmem:[%s4122 + $0x8] sm:$0xf]
    %v4126 = vld [vmem:[%s4122 + $0xc] sm:$0xf]
    %v4127 = vld [vmem:[%s4122 + $0x10] sm:$0xf]
    %v4128 = vld [vmem:[%s4122 + $0x14] sm:$0xf]
    %v4129 = vld [vmem:[%s4122 + $0x18] sm:$0xf]
    %v4130 = vld [vmem:[%s4122 + $0x1c] sm:$0xf]
    %v4131 = vld [vmem:[%s4122 + $0x20] sm:$0xf]
    %v4132 = vld [vmem:[%s4122 + $0x24] sm:$0xf]
    %v4133 = vld [vmem:[%s4122 + $0x28] sm:$0xf]
    %v4134 = vld [vmem:[%s4122 + $0x2c] sm:$0xf]
    %v4135 = vld [vmem:[%s4122 + $0x30] sm:$0xf]
    %v4136 = vld [vmem:[%s4122 + $0x34] sm:$0xf]
    %v4137 = vld [vmem:[%s4122 + $0x38] sm:$0xf]
    %v4138 = vld [vmem:[%s4122 + $0x3c] sm:$0xf]
    %v4155 = vunpack.c.l.b16 %v4123
    %v4156 = vunpack.c.l.b16 %v4124
    %v4157 = vunpack.c.l.b16 %v4125
    %v4158 = vunpack.c.l.b16 %v4126
    %v4159 = vunpack.c.l.b16 %v4127
    %v4160 = vunpack.c.l.b16 %v4128
    %v4161 = vunpack.c.l.b16 %v4129
    %v4162 = vunpack.c.l.b16 %v4130
    %v4163 = vunpack.c.l.b16 %v4131
    %v4164 = vunpack.c.l.b16 %v4132
    %v4165 = vunpack.c.l.b16 %v4133
    %v4166 = vunpack.c.l.b16 %v4134
    %v4167 = vunpack.c.l.b16 %v4135
    %v4168 = vunpack.c.l.b16 %v4136
    %v4169 = vunpack.c.l.b16 %v4137
    %v4170 = vunpack.c.l.b16 %v4138
    %v4171 = vpack.c.b16 %v4156, %v4155
    %v4172 = vpack.c.b16 %v4158, %v4157
    %v4173 = vpack.c.b16 %v4160, %v4159
    %v4174 = vpack.c.b16 %v4162, %v4161
    %v4175 = vpack.c.b16 %v4164, %v4163
    %v4176 = vpack.c.b16 %v4166, %v4165
    %v4177 = vpack.c.b16 %v4168, %v4167
    %v4178 = vpack.c.b16 %v4170, %v4169
    %4187 = vmatprep.subr.bf16.mxu0 0
    %4188 = vmatpush1.bf16.msra.mxu0 %v4171
    %4189 = vmatprep.subr.bf16.mxu0 0
    %4190 = vmatpush1.bf16.msra.mxu0 %v4172
    %4191 = vmatprep.subr.bf16.mxu0 0
    %4192 = vmatpush1.bf16.msra.mxu0 %v4173
    %4193 = vmatprep.subr.bf16.mxu0 0
    %4194 = vmatpush1.bf16.msra.mxu0 %v4174
    %4195 = vmatprep.subr.bf16.mxu0 0
    %4196 = vmatpush1.bf16.msra.mxu0 %v4175
    %4197 = vmatprep.subr.bf16.mxu0 0
    %4198 = vmatpush1.bf16.msra.mxu0 %v4176
    %4199 = vmatprep.subr.bf16.mxu0 0
    %4200 = vmatpush1.bf16.msra.mxu0 %v4177
    %4201 = vmatprep.subr.bf16.mxu0 0
    %4202 = vmatpush1.bf16.msra.mxu0 %v4178
    %4203 = vmatprep.subr.bf16.mxu0 0
    %4204 = vmatpush1.bf16.msra.mxu0 0
    %4205 = vmatprep.subr.bf16.mxu0 0
    %4206 = vmatpush1.bf16.msra.mxu0 0
    %4207 = vmatprep.subr.bf16.mxu0 0
    %4208 = vmatpush1.bf16.msra.mxu0 0
    %4209 = vmatprep.subr.bf16.mxu0 0
    %4210 = vmatpush1.bf16.msra.mxu0 0
    %4211 = vmatprep.subr.bf16.mxu0 0
    %4212 = vmatpush1.bf16.msra.mxu0 0
    %4213 = vmatprep.subr.bf16.mxu0 0
    %4214 = vmatpush1.bf16.msra.mxu0 0
    %4215 = vmatprep.subr.bf16.mxu0 0
    %4216 = vmatpush1.bf16.msra.mxu0 0
    %4217 = vmatprep.subr.bf16.mxu0 0
    %4218 = vmatpush1.bf16.msra.mxu0 0
    %4219 = vmatprep.mubr.bf16.mxu0 0
    %4220 = vmatmul.mubr.bf16.gmra.mrb[0].mxu0 %v3010
    %v4221 = vpop.f32.mrb[0].mxu0
    %v4222 = vadd.f32 0.0, %v4221
    %v4223 = vpop.f32.mrb[0].mxu0
    %v4224 = vpop.f32.mrb[0].mxu0
    %v4225 = vadd.f32 0.0, %v4224
    %v4226 = vpop.f32.mrb[0].mxu0
    %4227 = vmatprep.mubr.bf16.mxu0 0
    %4228 = vmatmul.mubr.bf16.gmra.mrb[0].mxu0 %v3011
    %v4229 = vpop.f32.mrb[0].mxu0
    %v4230 = vadd.f32 0.0, %v4229
    %v4231 = vpop.f32.mrb[0].mxu0
    %v4232 = vpop.f32.mrb[0].mxu0
    %v4233 = vadd.f32 0.0, %v4232
    %v4234 = vpop.f32.mrb[0].mxu0
    %4235 = vmatprep.mubr.bf16.mxu0 0
    %4236 = vmatmul.mubr.bf16.gmra.mrb[0].mxu0 %v3012
    %v4237 = vpop.f32.mrb[0].mxu0
    %v4238 = vadd.f32 0.0, %v4237
    %v4239 = vpop.f32.mrb[0].mxu0
    %v4240 = vpop.f32.mrb[0].mxu0
    %v4241 = vadd.f32 0.0, %v4240
    %v4242 = vpop.f32.mrb[0].mxu0
    %4243 = vmatprep.mubr.bf16.mxu0 0
    %4244 = vmatmul.mubr.bf16.gmra.mrb[0].mxu0 %v3013
    %v4245 = vpop.f32.mrb[0].mxu0
    %v4246 = vadd.f32 0.0, %v4245
    %v4247 = vpop.f32.mrb[0].mxu0
    %v4248 = vpop.f32.mrb[0].mxu0
    %v4249 = vadd.f32 0.0, %v4248
    %v4250 = vpop.f32.mrb[0].mxu0
    %4251 = vmatprep.mubr.bf16.mxu0 0
    %4252 = vmatmul.mubr.bf16.gmra.mrb[0].mxu0 %v3014
    %v4253 = vpop.f32.mrb[0].mxu0
    %v4254 = vadd.f32 0.0, %v4253
    %v4255 = vpop.f32.mrb[0].mxu0
    %v4256 = vpop.f32.mrb[0].mxu0
    %v4257 = vpop.f32.mrb[0].mxu0
    %4258 = vdwg.mxu0
    %v4268 = vrot.slane %v4222, 1
    %v4269 = vrot.slane %v4225, 1
    %v4270 = vsel %vm2086, %v4268, %v4269
    %v4271 = vrot.slane %v4230, 1
    %v4272 = vsel %vm2086, %v4269, %v4271
    %v4273 = vrot.slane %v4233, 1
    %v4274 = vsel %vm2086, %v4271, %v4273
    %v4275 = vrot.slane %v4238, 1
    %v4276 = vsel %vm2086, %v4273, %v4275
    %v4277 = vrot.slane %v4241, 1
    %v4278 = vsel %vm2086, %v4275, %v4277
    %v4279 = vrot.slane %v4246, 1
    %v4280 = vsel %vm2086, %v4277, %v4279
    %v4281 = vrot.slane %v4249, 1
    %v4282 = vsel %vm2086, %v4279, %v4281
    %v4283 = vrot.slane %v4254, 1
    %v4284 = vsel %vm2086, %v4281, %v4283
    %v4294 = vsel %vm2086, %v4283, 0.0
    %4295 = vset.pattern.permute.xlu0 5
    %4296 = vperm.xlu0 %4295, %v3015
    %v4297 = vpop.permute.xlu0 %4296
    %4299 = vset.pattern.permute.xlu0 5
    %4300 = vperm.xlu0 %4299, %v3016
    %v4301 = vpop.permute.xlu0 %4300
    %4303 = vset.pattern.permute.xlu0 5
    %4304 = vperm.xlu0 %4303, %v3017
    %v4305 = vpop.permute.xlu0 %4304
    %4307 = vset.pattern.permute.xlu0 5
    %4308 = vperm.xlu0 %4307, %v3018
    %v4309 = vpop.permute.xlu0 %4308
    %4311 = vset.pattern.permute.xlu0 5
    %4312 = vperm.xlu0 %4311, %v3019
    %v4313 = vpop.permute.xlu0 %4312
    %4315 = vset.pattern.permute.xlu0 5
    %4316 = vperm.xlu0 %4315, %v3020
    %v4317 = vpop.permute.xlu0 %4316
    %4319 = vset.pattern.permute.xlu0 5
    %4320 = vperm.xlu0 %4319, %v3021
    %v4321 = vpop.permute.xlu0 %4320
    %4323 = vset.pattern.permute.xlu0 5
    %4324 = vperm.xlu0 %4323, %v3022
    %v4325 = vpop.permute.xlu0 %4324
    %4327 = vset.pattern.permute.xlu0 5
    %4328 = vperm.xlu0 %4327, %v3023
    %v4329 = vpop.permute.xlu0 %4328
    %v4331 = vmul.f32 %v4297, %v4270
    %v4332 = vmul.f32 %v4301, %v4272
    %v4333 = vmul.f32 %v4305, %v4274
    %v4334 = vmul.f32 %v4309, %v4276
    %v4335 = vmul.f32 %v4313, %v4278
    %v4336 = vmul.f32 %v4317, %v4280
    %v4337 = vmul.f32 %v4321, %v4282
    %v4338 = vmul.f32 %v4325, %v4284
    %v4339 = vmul.f32 %v4329, %v4294
    %v4340 = vadd.f32 %v4113, %v4331
    %v4341 = vadd.f32 %v4114, %v4332
    %v4342 = vadd.f32 %v4115, %v4333
    %v4343 = vadd.f32 %v4116, %v4334
    %v4344 = vadd.f32 %v4117, %v4335
    %v4345 = vadd.f32 %v4118, %v4336
    %v4346 = vadd.f32 %v4119, %v4337
    %v4347 = vadd.f32 %v4120, %v4338
    %v4348 = vadd.f32 %v4121, %v4339
    %s4349 = scalar_lea.vmem %s12, 384
    %v4350 = vld [vmem:[%s4349] sm:$0xf]
    %v4351 = vld [vmem:[%s4349 + $0x4] sm:$0xf]
    %v4352 = vld [vmem:[%s4349 + $0x8] sm:$0xf]
    %v4353 = vld [vmem:[%s4349 + $0xc] sm:$0xf]
    %v4354 = vld [vmem:[%s4349 + $0x10] sm:$0xf]
    %v4355 = vld [vmem:[%s4349 + $0x14] sm:$0xf]
    %v4356 = vld [vmem:[%s4349 + $0x18] sm:$0xf]
    %v4357 = vld [vmem:[%s4349 + $0x1c] sm:$0xf]
    %v4358 = vld [vmem:[%s4349 + $0x20] sm:$0xf]
    %v4359 = vld [vmem:[%s4349 + $0x24] sm:$0xf]
    %v4360 = vld [vmem:[%s4349 + $0x28] sm:$0xf]
    %v4361 = vld [vmem:[%s4349 + $0x2c] sm:$0xf]
    %v4362 = vld [vmem:[%s4349 + $0x30] sm:$0xf]
    %v4363 = vld [vmem:[%s4349 + $0x34] sm:$0xf]
    %v4364 = vld [vmem:[%s4349 + $0x38] sm:$0xf]
    %v4365 = vld [vmem:[%s4349 + $0x3c] sm:$0xf]
    %v4382 = vunpack.c.l.b16 %v4350
    %v4383 = vunpack.c.l.b16 %v4351
    %v4384 = vunpack.c.l.b16 %v4352
    %v4385 = vunpack.c.l.b16 %v4353
    %v4386 = vunpack.c.l.b16 %v4354
    %v4387 = vunpack.c.l.b16 %v4355
    %v4388 = vunpack.c.l.b16 %v4356
    %v4389 = vunpack.c.l.b16 %v4357
    %v4390 = vunpack.c.l.b16 %v4358
    %v4391 = vunpack.c.l.b16 %v4359
    %v4392 = vunpack.c.l.b16 %v4360
    %v4393 = vunpack.c.l.b16 %v4361
    %v4394 = vunpack.c.l.b16 %v4362
    %v4395 = vunpack.c.l.b16 %v4363
    %v4396 = vunpack.c.l.b16 %v4364
    %v4397 = vunpack.c.l.b16 %v4365
    %v4398 = vpack.c.b16 %v4383, %v4382
    %v4399 = vpack.c.b16 %v4385, %v4384
    %v4400 = vpack.c.b16 %v4387, %v4386
    %v4401 = vpack.c.b16 %v4389, %v4388
    %v4402 = vpack.c.b16 %v4391, %v4390
    %v4403 = vpack.c.b16 %v4393, %v4392
    %v4404 = vpack.c.b16 %v4395, %v4394
    %v4405 = vpack.c.b16 %v4397, %v4396
    %4414 = vmatprep.subr.bf16.mxu0 0
    %4415 = vmatpush1.bf16.msra.mxu0 %v4398
    %4416 = vmatprep.subr.bf16.mxu0 0
    %4417 = vmatpush1.bf16.msra.mxu0 %v4399
    %4418 = vmatprep.subr.bf16.mxu0 0
    %4419 = vmatpush1.bf16.msra.mxu0 %v4400
    %4420 = vmatprep.subr.bf16.mxu0 0
    %4421 = vmatpush1.bf16.msra.mxu0 %v4401
    %4422 = vmatprep.subr.bf16.mxu0 0
    %4423 = vmatpush1.bf16.msra.mxu0 %v4402
    %4424 = vmatprep.subr.bf16.mxu0 0
    %4425 = vmatpush1.bf16.msra.mxu0 %v4403
    %4426 = vmatprep.subr.bf16.mxu0 0
    %4427 = vmatpush1.bf16.msra.mxu0 %v4404
    %4428 = vmatprep.subr.bf16.mxu0 0
    %4429 = vmatpush1.bf16.msra.mxu0 %v4405
    %4430 = vmatprep.subr.bf16.mxu0 0
    %4431 = vmatpush1.bf16.msra.mxu0 0
    %4432 = vmatprep.subr.bf16.mxu0 0
    %4433 = vmatpush1.bf16.msra.mxu0 0
    %4434 = vmatprep.subr.bf16.mxu0 0
    %4435 = vmatpush1.bf16.msra.mxu0 0
    %4436 = vmatprep.subr.bf16.mxu0 0
    %4437 = vmatpush1.bf16.msra.mxu0 0
    %4438 = vmatprep.subr.bf16.mxu0 0
    %4439 = vmatpush1.bf16.msra.mxu0 0
    %4440 = vmatprep.subr.bf16.mxu0 0
    %4441 = vmatpush1.bf16.msra.mxu0 0
    %4442 = vmatprep.subr.bf16.mxu0 0
    %4443 = vmatpush1.bf16.msra.mxu0 0
    %4444 = vmatprep.subr.bf16.mxu0 0
    %4445 = vmatpush1.bf16.msra.mxu0 0
    %4446 = vmatprep.mubr.bf16.mxu0 0
    %4447 = vmatmul.mubr.bf16.gmra.mrb[0].mxu0 %v3010
    %v4448 = vpop.f32.mrb[0].mxu0
    %v4449 = vadd.f32 0.0, %v4448
    %v4450 = vpop.f32.mrb[0].mxu0
    %v4451 = vpop.f32.mrb[0].mxu0
    %v4452 = vadd.f32 0.0, %v4451
    %v4453 = vpop.f32.mrb[0].mxu0
    %4454 = vmatprep.mubr.bf16.mxu0 0
    %4455 = vmatmul.mubr.bf16.gmra.mrb[0].mxu0 %v3011
    %v4456 = vpop.f32.mrb[0].mxu0
    %v4457 = vadd.f32 0.0, %v4456
    %v4458 = vpop.f32.mrb[0].mxu0
    %v4459 = vpop.f32.mrb[0].mxu0
    %v4460 = vadd.f32 0.0, %v4459
    %v4461 = vpop.f32.mrb[0].mxu0
    %4462 = vmatprep.mubr.bf16.mxu0 0
    %4463 = vmatmul.mubr.bf16.gmra.mrb[0].mxu0 %v3012
    %v4464 = vpop.f32.mrb[0].mxu0
    %v4465 = vadd.f32 0.0, %v4464
    %v4466 = vpop.f32.mrb[0].mxu0
    %v4467 = vpop.f32.mrb[0].mxu0
    %v4468 = vadd.f32 0.0, %v4467
    %v4469 = vpop.f32.mrb[0].mxu0
    %4470 = vmatprep.mubr.bf16.mxu0 0
    %4471 = vmatmul.mubr.bf16.gmra.mrb[0].mxu0 %v3013
    %v4472 = vpop.f32.mrb[0].mxu0
    %v4473 = vadd.f32 0.0, %v4472
    %v4474 = vpop.f32.mrb[0].mxu0
    %v4475 = vpop.f32.mrb[0].mxu0
    %v4476 = vadd.f32 0.0, %v4475
    %v4477 = vpop.f32.mrb[0].mxu0
    %4478 = vmatprep.mubr.bf16.mxu0 0
    %4479 = vmatmul.mubr.bf16.gmra.mrb[0].mxu0 %v3014
    %v4480 = vpop.f32.mrb[0].mxu0
    %v4481 = vadd.f32 0.0, %v4480
    %v4482 = vpop.f32.mrb[0].mxu0
    %v4483 = vpop.f32.mrb[0].mxu0
    %v4484 = vpop.f32.mrb[0].mxu0
    %4485 = vdwg.mxu0
    %v4495 = vrot.slane %v4449, 5
    %v4496 = vrot.slane %v4452, 5
    %v4497 = vsel %vm1274, %v4495, %v4496
    %v4498 = vrot.slane %v4457, 5
    %v4499 = vsel %vm1274, %v4496, %v4498
    %v4500 = vrot.slane %v4460, 5
    %v4501 = vsel %vm1274, %v4498, %v4500
    %v4502 = vrot.slane %v4465, 5
    %v4503 = vsel %vm1274, %v4500, %v4502
    %v4504 = vrot.slane %v4468, 5
    %v4505 = vsel %vm1274, %v4502, %v4504
    %v4506 = vrot.slane %v4473, 5
    %v4507 = vsel %vm1274, %v4504, %v4506
    %v4508 = vrot.slane %v4476, 5
    %v4509 = vsel %vm1274, %v4506, %v4508
    %v4510 = vrot.slane %v4481, 5
    %v4511 = vsel %vm1274, %v4508, %v4510
    %v4521 = vsel %vm1274, %v4510, 0.0
    %4522 = vset.pattern.permute.xlu0 6
    %4523 = vperm.xlu0 %4522, %v3015
    %v4524 = vpop.permute.xlu0 %4523
    %4526 = vset.pattern.permute.xlu0 6
    %4527 = vperm.xlu0 %4526, %v3016
    %v4528 = vpop.permute.xlu0 %4527
    %4530 = vset.pattern.permute.xlu0 6
    %4531 = vperm.xlu0 %4530, %v3017
    %v4532 = vpop.permute.xlu0 %4531
    %4534 = vset.pattern.permute.xlu0 6
    %4535 = vperm.xlu0 %4534, %v3018
    %v4536 = vpop.permute.xlu0 %4535
    %4538 = vset.pattern.permute.xlu0 6
    %4539 = vperm.xlu0 %4538, %v3019
    %v4540 = vpop.permute.xlu0 %4539
    %4542 = vset.pattern.permute.xlu0 6
    %4543 = vperm.xlu0 %4542, %v3020
    %v4544 = vpop.permute.xlu0 %4543
    %4546 = vset.pattern.permute.xlu0 6
    %4547 = vperm.xlu0 %4546, %v3021
    %v4548 = vpop.permute.xlu0 %4547
    %4550 = vset.pattern.permute.xlu0 6
    %4551 = vperm.xlu0 %4550, %v3022
    %v4552 = vpop.permute.xlu0 %4551
    %4554 = vset.pattern.permute.xlu0 6
    %4555 = vperm.xlu0 %4554, %v3023
    %v4556 = vpop.permute.xlu0 %4555
    %v4558 = vmul.f32 %v4524, %v4497
    %v4559 = vmul.f32 %v4528, %v4499
    %v4560 = vmul.f32 %v4532, %v4501
    %v4561 = vmul.f32 %v4536, %v4503
    %v4562 = vmul.f32 %v4540, %v4505
    %v4563 = vmul.f32 %v4544, %v4507
    %v4564 = vmul.f32 %v4548, %v4509
    %v4565 = vmul.f32 %v4552, %v4511
    %v4566 = vmul.f32 %v4556, %v4521
    %v4567 = vadd.f32 %v4340, %v4558
    %v4568 = vadd.f32 %v4341, %v4559
    %v4569 = vadd.f32 %v4342, %v4560
    %v4570 = vadd.f32 %v4343, %v4561
    %v4571 = vadd.f32 %v4344, %v4562
    %v4572 = vadd.f32 %v4345, %v4563
    %v4573 = vadd.f32 %v4346, %v4564
    %v4574 = vadd.f32 %v4347, %v4565
    %v4575 = vadd.f32 %v4348, %v4566
    %s4576 = scalar_lea.vmem %s12, 448
    %v4577 = vld [vmem:[%s4576] sm:$0xf]
    %v4578 = vld [vmem:[%s4576 + $0x4] sm:$0xf]
    %v4579 = vld [vmem:[%s4576 + $0x8] sm:$0xf]
    %v4580 = vld [vmem:[%s4576 + $0xc] sm:$0xf]
    %v4581 = vld [vmem:[%s4576 + $0x10] sm:$0xf]
    %v4582 = vld [vmem:[%s4576 + $0x14] sm:$0xf]
    %v4583 = vld [vmem:[%s4576 + $0x18] sm:$0xf]
    %v4584 = vld [vmem:[%s4576 + $0x1c] sm:$0xf]
    %v4585 = vld [vmem:[%s4576 + $0x20] sm:$0xf]
    %v4586 = vld [vmem:[%s4576 + $0x24] sm:$0xf]
    %v4587 = vld [vmem:[%s4576 + $0x28] sm:$0xf]
    %v4588 = vld [vmem:[%s4576 + $0x2c] sm:$0xf]
    %v4589 = vld [vmem:[%s4576 + $0x30] sm:$0xf]
    %v4590 = vld [vmem:[%s4576 + $0x34] sm:$0xf]
    %v4591 = vld [vmem:[%s4576 + $0x38] sm:$0xf]
    %v4592 = vld [vmem:[%s4576 + $0x3c] sm:$0xf]
    %v4609 = vunpack.c.l.b16 %v4577
    %v4610 = vunpack.c.l.b16 %v4578
    %v4611 = vunpack.c.l.b16 %v4579
    %v4612 = vunpack.c.l.b16 %v4580
    %v4613 = vunpack.c.l.b16 %v4581
    %v4614 = vunpack.c.l.b16 %v4582
    %v4615 = vunpack.c.l.b16 %v4583
    %v4616 = vunpack.c.l.b16 %v4584
    %v4617 = vunpack.c.l.b16 %v4585
    %v4618 = vunpack.c.l.b16 %v4586
    %v4619 = vunpack.c.l.b16 %v4587
    %v4620 = vunpack.c.l.b16 %v4588
    %v4621 = vunpack.c.l.b16 %v4589
    %v4622 = vunpack.c.l.b16 %v4590
    %v4623 = vunpack.c.l.b16 %v4591
    %v4624 = vunpack.c.l.b16 %v4592
    %v4625 = vpack.c.b16 %v4610, %v4609
    %v4626 = vpack.c.b16 %v4612, %v4611
    %v4627 = vpack.c.b16 %v4614, %v4613
    %v4628 = vpack.c.b16 %v4616, %v4615
    %v4629 = vpack.c.b16 %v4618, %v4617
    %v4630 = vpack.c.b16 %v4620, %v4619
    %v4631 = vpack.c.b16 %v4622, %v4621
    %v4632 = vpack.c.b16 %v4624, %v4623
    %4641 = vmatprep.subr.bf16.mxu0 0
    %4642 = vmatpush1.bf16.msra.mxu0 %v4625
    %4643 = vmatprep.subr.bf16.mxu0 0
    %4644 = vmatpush1.bf16.msra.mxu0 %v4626
    %4645 = vmatprep.subr.bf16.mxu0 0
    %4646 = vmatpush1.bf16.msra.mxu0 %v4627
    %4647 = vmatprep.subr.bf16.mxu0 0
    %4648 = vmatpush1.bf16.msra.mxu0 %v4628
    %4649 = vmatprep.subr.bf16.mxu0 0
    %4650 = vmatpush1.bf16.msra.mxu0 %v4629
    %4651 = vmatprep.subr.bf16.mxu0 0
    %4652 = vmatpush1.bf16.msra.mxu0 %v4630
    %4653 = vmatprep.subr.bf16.mxu0 0
    %4654 = vmatpush1.bf16.msra.mxu0 %v4631
    %4655 = vmatprep.subr.bf16.mxu0 0
    %4656 = vmatpush1.bf16.msra.mxu0 %v4632
    %4657 = vmatprep.subr.bf16.mxu0 0
    %4658 = vmatpush1.bf16.msra.mxu0 0
    %4659 = vmatprep.subr.bf16.mxu0 0
    %4660 = vmatpush1.bf16.msra.mxu0 0
    %4661 = vmatprep.subr.bf16.mxu0 0
    %4662 = vmatpush1.bf16.msra.mxu0 0
    %4663 = vmatprep.subr.bf16.mxu0 0
    %4664 = vmatpush1.bf16.msra.mxu0 0
    %4665 = vmatprep.subr.bf16.mxu0 0
    %4666 = vmatpush1.bf16.msra.mxu0 0
    %4667 = vmatprep.subr.bf16.mxu0 0
    %4668 = vmatpush1.bf16.msra.mxu0 0
    %4669 = vmatprep.subr.bf16.mxu0 0
    %4670 = vmatpush1.bf16.msra.mxu0 0
    %4671 = vmatprep.subr.bf16.mxu0 0
    %4672 = vmatpush1.bf16.msra.mxu0 0
    %4673 = vmatprep.mubr.bf16.mxu0 0
    %4674 = vmatmul.mubr.bf16.gmra.mrb[0].mxu0 %v3010
    %v4675 = vpop.f32.mrb[0].mxu0
    %v4676 = vadd.f32 0.0, %v4675
    %v4677 = vpop.f32.mrb[0].mxu0
    %v4678 = vpop.f32.mrb[0].mxu0
    %v4679 = vadd.f32 0.0, %v4678
    %v4680 = vpop.f32.mrb[0].mxu0
    %4681 = vmatprep.mubr.bf16.mxu0 0
    %4682 = vmatmul.mubr.bf16.gmra.mrb[0].mxu0 %v3011
    %v4683 = vpop.f32.mrb[0].mxu0
    %v4684 = vadd.f32 0.0, %v4683
    %v4685 = vpop.f32.mrb[0].mxu0
    %v4686 = vpop.f32.mrb[0].mxu0
    %v4687 = vadd.f32 0.0, %v4686
    %v4688 = vpop.f32.mrb[0].mxu0
    %4689 = vmatprep.mubr.bf16.mxu0 0
    %4690 = vmatmul.mubr.bf16.gmra.mrb[0].mxu0 %v3012
    %v4691 = vpop.f32.mrb[0].mxu0
    %v4692 = vadd.f32 0.0, %v4691
    %v4693 = vpop.f32.mrb[0].mxu0
    %v4694 = vpop.f32.mrb[0].mxu0
    %v4695 = vadd.f32 0.0, %v4694
    %v4696 = vpop.f32.mrb[0].mxu0
    %4697 = vmatprep.mubr.bf16.mxu0 0
    %4698 = vmatmul.mubr.bf16.gmra.mrb[0].mxu0 %v3013
    %v4699 = vpop.f32.mrb[0].mxu0
    %v4700 = vadd.f32 0.0, %v4699
    %v4701 = vpop.f32.mrb[0].mxu0
    %v4702 = vpop.f32.mrb[0].mxu0
    %v4703 = vadd.f32 0.0, %v4702
    %v4704 = vpop.f32.mrb[0].mxu0
    %4705 = vmatprep.mubr.bf16.mxu0 0
    %4706 = vmatmul.mubr.bf16.gmra.mrb[0].mxu0 %v3014
    %v4707 = vpop.f32.mrb[0].mxu0
    %v4708 = vadd.f32 0.0, %v4707
    %v4709 = vpop.f32.mrb[0].mxu0
    %v4710 = vpop.f32.mrb[0].mxu0
    %v4711 = vpop.f32.mrb[0].mxu0
    %4712 = vdwg.mxu0
    %v4722 = vrot.slane %v4676, 6
    %v4723 = vrot.slane %v4679, 6
    %v4724 = vsel %vm635, %v4722, %v4723
    %v4725 = vrot.slane %v4684, 6
    %v4726 = vsel %vm635, %v4723, %v4725
    %v4727 = vrot.slane %v4687, 6
    %v4728 = vsel %vm635, %v4725, %v4727
    %v4729 = vrot.slane %v4692, 6
    %v4730 = vsel %vm635, %v4727, %v4729
    %v4731 = vrot.slane %v4695, 6
    %v4732 = vsel %vm635, %v4729, %v4731
    %v4733 = vrot.slane %v4700, 6
    %v4734 = vsel %vm635, %v4731, %v4733
    %v4735 = vrot.slane %v4703, 6
    %v4736 = vsel %vm635, %v4733, %v4735
    %v4737 = vrot.slane %v4708, 6
    %v4738 = vsel %vm635, %v4735, %v4737
    %v4748 = vsel %vm635, %v4737, 0.0
    %4749 = vset.pattern.permute.xlu0 7
    %4750 = vperm.xlu0 %4749, %v3015
    %v4751 = vpop.permute.xlu0 %4750
    %4753 = vset.pattern.permute.xlu0 7
    %4754 = vperm.xlu0 %4753, %v3016
    %v4755 = vpop.permute.xlu0 %4754
    %4757 = vset.pattern.permute.xlu0 7
    %4758 = vperm.xlu0 %4757, %v3017
    %v4759 = vpop.permute.xlu0 %4758
    %4761 = vset.pattern.permute.xlu0 7
    %4762 = vperm.xlu0 %4761, %v3018
    %v4763 = vpop.permute.xlu0 %4762
    %4765 = vset.pattern.permute.xlu0 7
    %4766 = vperm.xlu0 %4765, %v3019
    %v4767 = vpop.permute.xlu0 %4766
    %4769 = vset.pattern.permute.xlu0 7
    %4770 = vperm.xlu0 %4769, %v3020
    %v4771 = vpop.permute.xlu0 %4770
    %4773 = vset.pattern.permute.xlu0 7
    %4774 = vperm.xlu0 %4773, %v3021
    %v4775 = vpop.permute.xlu0 %4774
    %4777 = vset.pattern.permute.xlu0 7
    %4778 = vperm.xlu0 %4777, %v3022
    %v4779 = vpop.permute.xlu0 %4778
    %4781 = vset.pattern.permute.xlu0 7
    %4782 = vperm.xlu0 %4781, %v3023
    %v4783 = vpop.permute.xlu0 %4782
    %v4785 = vmul.f32 %v4751, %v4724
    %v4786 = vmul.f32 %v4755, %v4726
    %v4787 = vmul.f32 %v4759, %v4728
    %v4788 = vmul.f32 %v4763, %v4730
    %v4789 = vmul.f32 %v4767, %v4732
    %v4790 = vmul.f32 %v4771, %v4734
    %v4791 = vmul.f32 %v4775, %v4736
    %v4792 = vmul.f32 %v4779, %v4738
    %v4793 = vmul.f32 %v4783, %v4748
    %v4794 = vadd.f32 %v4567, %v4785
    %v4795 = vadd.f32 %v4568, %v4786
    %v4796 = vadd.f32 %v4569, %v4787
    %v4797 = vadd.f32 %v4570, %v4788
    %v4798 = vadd.f32 %v4571, %v4789
    %v4799 = vadd.f32 %v4572, %v4790
    %v4800 = vadd.f32 %v4573, %v4791
    %v4801 = vadd.f32 %v4574, %v4792
    %v4802 = vadd.f32 %v4575, %v4793
    %s4803 = scalar_lea.vmem %s12, 512
    %v4804 = vld [vmem:[%s4803] sm:$0xf]
    %v4805 = vld [vmem:[%s4803 + $0x4] sm:$0xf]
    %v4806 = vld [vmem:[%s4803 + $0x8] sm:$0xf]
    %v4807 = vld [vmem:[%s4803 + $0xc] sm:$0xf]
    %v4808 = vld [vmem:[%s4803 + $0x10] sm:$0xf]
    %v4809 = vld [vmem:[%s4803 + $0x14] sm:$0xf]
    %v4810 = vld [vmem:[%s4803 + $0x18] sm:$0xf]
    %v4811 = vld [vmem:[%s4803 + $0x1c] sm:$0xf]
    %v4812 = vld [vmem:[%s4803 + $0x20] sm:$0xf]
    %v4813 = vld [vmem:[%s4803 + $0x24] sm:$0xf]
    %v4814 = vld [vmem:[%s4803 + $0x28] sm:$0xf]
    %v4815 = vld [vmem:[%s4803 + $0x2c] sm:$0xf]
    %v4816 = vld [vmem:[%s4803 + $0x30] sm:$0xf]
    %v4817 = vld [vmem:[%s4803 + $0x34] sm:$0xf]
    %v4818 = vld [vmem:[%s4803 + $0x38] sm:$0xf]
    %v4819 = vld [vmem:[%s4803 + $0x3c] sm:$0xf]
    %v4836 = vunpack.c.l.b16 %v4804
    %v4837 = vunpack.c.l.b16 %v4805
    %v4838 = vunpack.c.l.b16 %v4806
    %v4839 = vunpack.c.l.b16 %v4807
    %v4840 = vunpack.c.l.b16 %v4808
    %v4841 = vunpack.c.l.b16 %v4809
    %v4842 = vunpack.c.l.b16 %v4810
    %v4843 = vunpack.c.l.b16 %v4811
    %v4844 = vunpack.c.l.b16 %v4812
    %v4845 = vunpack.c.l.b16 %v4813
    %v4846 = vunpack.c.l.b16 %v4814
    %v4847 = vunpack.c.l.b16 %v4815
    %v4848 = vunpack.c.l.b16 %v4816
    %v4849 = vunpack.c.l.b16 %v4817
    %v4850 = vunpack.c.l.b16 %v4818
    %v4851 = vunpack.c.l.b16 %v4819
    %v4852 = vpack.c.b16 %v4837, %v4836
    %v4853 = vpack.c.b16 %v4839, %v4838
    %v4854 = vpack.c.b16 %v4841, %v4840
    %v4855 = vpack.c.b16 %v4843, %v4842
    %v4856 = vpack.c.b16 %v4845, %v4844
    %v4857 = vpack.c.b16 %v4847, %v4846
    %v4858 = vpack.c.b16 %v4849, %v4848
    %v4859 = vpack.c.b16 %v4851, %v4850
    %4868 = vmatprep.subr.bf16.mxu0 0
    %4869 = vmatpush1.bf16.msra.mxu0 %v4852
    %4870 = vmatprep.subr.bf16.mxu0 0
    %4871 = vmatpush1.bf16.msra.mxu0 %v4853
    %4872 = vmatprep.subr.bf16.mxu0 0
    %4873 = vmatpush1.bf16.msra.mxu0 %v4854
    %4874 = vmatprep.subr.bf16.mxu0 0
    %4875 = vmatpush1.bf16.msra.mxu0 %v4855
    %4876 = vmatprep.subr.bf16.mxu0 0
    %4877 = vmatpush1.bf16.msra.mxu0 %v4856
    %4878 = vmatprep.subr.bf16.mxu0 0
    %4879 = vmatpush1.bf16.msra.mxu0 %v4857
    %4880 = vmatprep.subr.bf16.mxu0 0
    %4881 = vmatpush1.bf16.msra.mxu0 %v4858
    %4882 = vmatprep.subr.bf16.mxu0 0
    %4883 = vmatpush1.bf16.msra.mxu0 %v4859
    %4884 = vmatprep.subr.bf16.mxu0 0
    %4885 = vmatpush1.bf16.msra.mxu0 0
    %4886 = vmatprep.subr.bf16.mxu0 0
    %4887 = vmatpush1.bf16.msra.mxu0 0
    %4888 = vmatprep.subr.bf16.mxu0 0
    %4889 = vmatpush1.bf16.msra.mxu0 0
    %4890 = vmatprep.subr.bf16.mxu0 0
    %4891 = vmatpush1.bf16.msra.mxu0 0
    %4892 = vmatprep.subr.bf16.mxu0 0
    %4893 = vmatpush1.bf16.msra.mxu0 0
    %4894 = vmatprep.subr.bf16.mxu0 0
    %4895 = vmatpush1.bf16.msra.mxu0 0
    %4896 = vmatprep.subr.bf16.mxu0 0
    %4897 = vmatpush1.bf16.msra.mxu0 0
    %4898 = vmatprep.subr.bf16.mxu0 0
    %4899 = vmatpush1.bf16.msra.mxu0 0
    %4900 = vmatprep.mubr.bf16.mxu0 0
    %4901 = vmatmul.mubr.bf16.gmra.mrb[0].mxu0 %v3010
    %v4902 = vpop.f32.mrb[0].mxu0
    %v4903 = vadd.f32 0.0, %v4902
    %v4904 = vpop.f32.mrb[0].mxu0
    %v4905 = vpop.f32.mrb[0].mxu0
    %v4906 = vadd.f32 0.0, %v4905
    %v4907 = vpop.f32.mrb[0].mxu0
    %4908 = vmatprep.mubr.bf16.mxu0 0
    %4909 = vmatmul.mubr.bf16.gmra.mrb[0].mxu0 %v3011
    %v4910 = vpop.f32.mrb[0].mxu0
    %v4911 = vadd.f32 0.0, %v4910
    %v4912 = vpop.f32.mrb[0].mxu0
    %v4913 = vpop.f32.mrb[0].mxu0
    %v4914 = vadd.f32 0.0, %v4913
    %v4915 = vpop.f32.mrb[0].mxu0
    %4916 = vmatprep.mubr.bf16.mxu0 0
    %4917 = vmatmul.mubr.bf16.gmra.mrb[0].mxu0 %v3012
    %v4918 = vpop.f32.mrb[0].mxu0
    %v4919 = vadd.f32 0.0, %v4918
    %v4920 = vpop.f32.mrb[0].mxu0
    %v4921 = vpop.f32.mrb[0].mxu0
    %v4922 = vadd.f32 0.0, %v4921
    %v4923 = vpop.f32.mrb[0].mxu0
    %4924 = vmatprep.mubr.bf16.mxu0 0
    %4925 = vmatmul.mubr.bf16.gmra.mrb[0].mxu0 %v3013
    %v4926 = vpop.f32.mrb[0].mxu0
    %v4927 = vadd.f32 0.0, %v4926
    %v4928 = vpop.f32.mrb[0].mxu0
    %v4929 = vpop.f32.mrb[0].mxu0
    %v4930 = vadd.f32 0.0, %v4929
    %v4931 = vpop.f32.mrb[0].mxu0
    %4932 = vmatprep.mubr.bf16.mxu0 0
    %4933 = vmatmul.mubr.bf16.gmra.mrb[0].mxu0 %v3014
    %v4934 = vpop.f32.mrb[0].mxu0
    %v4935 = vadd.f32 0.0, %v4934
    %v4936 = vpop.f32.mrb[0].mxu0
    %v4937 = vpop.f32.mrb[0].mxu0
    %v4938 = vpop.f32.mrb[0].mxu0
    %4939 = vdwg.mxu0
    %v4949 = vrot.slane %v4903, 7
    %v4950 = vrot.slane %v4906, 7
    %v4951 = vsel %vm1683, %v4949, %v4950
    %v4952 = vrot.slane %v4911, 7
    %v4953 = vsel %vm1683, %v4950, %v4952
    %v4954 = vrot.slane %v4914, 7
    %v4955 = vsel %vm1683, %v4952, %v4954
    %v4956 = vrot.slane %v4919, 7
    %v4957 = vsel %vm1683, %v4954, %v4956
    %v4958 = vrot.slane %v4922, 7
    %v4959 = vsel %vm1683, %v4956, %v4958
    %v4960 = vrot.slane %v4927, 7
    %v4961 = vsel %vm1683, %v4958, %v4960
    %v4962 = vrot.slane %v4930, 7
    %v4963 = vsel %vm1683, %v4960, %v4962
    %v4964 = vrot.slane %v4935, 7
    %v4965 = vsel %vm1683, %v4962, %v4964
    %v4975 = vsel %vm1683, %v4964, 0.0
    %4976 = vset.pattern.permute.xlu0 8
    %4977 = vperm.xlu0 %4976, %v3015
    %v4978 = vpop.permute.xlu0 %4977
    %4980 = vset.pattern.permute.xlu0 8
    %4981 = vperm.xlu0 %4980, %v3016
    %v4982 = vpop.permute.xlu0 %4981
    %4984 = vset.pattern.permute.xlu0 8
    %4985 = vperm.xlu0 %4984, %v3017
    %v4986 = vpop.permute.xlu0 %4985
    %4988 = vset.pattern.permute.xlu0 8
    %4989 = vperm.xlu0 %4988, %v3018
    %v4990 = vpop.permute.xlu0 %4989
    %4992 = vset.pattern.permute.xlu0 8
    %4993 = vperm.xlu0 %4992, %v3019
    %v4994 = vpop.permute.xlu0 %4993
    %4996 = vset.pattern.permute.xlu0 8
    %4997 = vperm.xlu0 %4996, %v3020
    %v4998 = vpop.permute.xlu0 %4997
    %5000 = vset.pattern.permute.xlu0 8
    %5001 = vperm.xlu0 %5000, %v3021
    %v5002 = vpop.permute.xlu0 %5001
    %5004 = vset.pattern.permute.xlu0 8
    %5005 = vperm.xlu0 %5004, %v3022
    %v5006 = vpop.permute.xlu0 %5005
    %5008 = vset.pattern.permute.xlu0 8
    %5009 = vperm.xlu0 %5008, %v3023
    %v5010 = vpop.permute.xlu0 %5009
    %v5012 = vmul.f32 %v4978, %v4951
    %v5013 = vmul.f32 %v4982, %v4953
    %v5014 = vmul.f32 %v4986, %v4955
    %v5015 = vmul.f32 %v4990, %v4957
    %v5016 = vmul.f32 %v4994, %v4959
    %v5017 = vmul.f32 %v4998, %v4961
    %v5018 = vmul.f32 %v5002, %v4963
    %v5019 = vmul.f32 %v5006, %v4965
    %v5020 = vmul.f32 %v5010, %v4975
    %v5021 = vadd.f32 %v4794, %v5012
    %v5022 = vadd.f32 %v4795, %v5013
    %v5023 = vadd.f32 %v4796, %v5014
    %v5024 = vadd.f32 %v4797, %v5015
    %v5025 = vadd.f32 %v4798, %v5016
    %v5026 = vadd.f32 %v4799, %v5017
    %v5027 = vadd.f32 %v4800, %v5018
    %v5028 = vadd.f32 %v4801, %v5019
    %v5029 = vadd.f32 %v4802, %v5020
    %vm5030 = vcmask 588800
    %v5032 = vsel %vm5030, %v2979, 0
    %v5035 = vsel %vm5030, %v2980, 0
    %v5038 = vsel %vm5030, %v2981, 0
    %v5041 = vsel %vm5030, %v2982, 0
    %v5044 = vsel %vm5030, %v2983, 0
    %v5047 = vsel %vm5030, %v2984, 0
    %v5050 = vsel %vm5030, %v2985, 0
    %v5053 = vsel %vm5030, %v2986, 0
    %v5056 = vsel %vm5030, %v2987, 0
    %v5059 = vsel %vm5030, %v2988, 0
    %v5062 = vsel %vm5030, %v2989, 0
    %v5065 = vsel %vm5030, %v2990, 0
    %v5068 = vsel %vm5030, %v2991, 0
    %v5071 = vsel %vm5030, %v2992, 0
    %v5074 = vsel %vm5030, %v2993, 0
    %v5077 = vsel %vm5030, %v2994, 0
    %v5080 = vsel %vm5030, %v2995, 0
    %v5083 = vsel %vm5030, %v2996, 0
    %v5086 = vsel %vm5030, %v2997, 0
    %v5089 = vsel %vm5030, %v2998, 0
    %v5092 = vsel %vm5030, %v2999, 0
    %v5095 = vsel %vm5030, %v3000, 0
    %v5098 = vsel %vm5030, %v3001, 0
    %v5101 = vsel %vm5030, %v3002, 0
    %v5104 = vsel %vm5030, %v3003, 0
    %v5107 = vsel %vm5030, %v3004, 0
    %v5110 = vsel %vm5030, %v3005, 0
    %v5113 = vsel %vm5030, %v3006, 0
    %v5116 = vsel %vm5030, %v3007, 0
    %v5119 = vsel %vm5030, %v3008, 0
    %v5122 = vsel %vm5030, %v3009, 0
    %5124 = vmatprep.subr.mxu0 0.0
    %5125 = vmatpush1.msra.mxu0 %v5021
    %5126 = vmatprep.subr.mxu0 0.0
    %5127 = vmatpush1.msra.mxu0 %v5022
    %5128 = vmatprep.subr.mxu0 0.0
    %5129 = vmatpush1.msra.mxu0 %v5023
    %5130 = vmatprep.subr.mxu0 0.0
    %5131 = vmatpush1.msra.mxu0 %v5024
    %5132 = vmatprep.subr.mxu0 0.0
    %5133 = vmatpush1.msra.mxu0 %v5025
    %5134 = vmatprep.subr.mxu0 0.0
    %5135 = vmatpush1.msra.mxu0 %v5026
    %5136 = vmatprep.subr.mxu0 0.0
    %5137 = vmatpush1.msra.mxu0 %v5027
    %5138 = vmatprep.subr.mxu0 0.0
    %5139 = vmatpush1.msra.mxu0 %v5028
    %5140 = vmatprep.subr.mxu0 0.0
    %5141 = vmatpush1.msra.mxu0 %v5029
    %5142 = vmatprep.subr.mxu0 0.0
    %5143 = vmatpush1.msra.mxu0 0.0
    %5144 = vmatprep.subr.mxu0 0.0
    %5145 = vmatpush1.msra.mxu0 0.0
    %5146 = vmatprep.subr.mxu0 0.0
    %5147 = vmatpush1.msra.mxu0 0.0
    %5148 = vmatprep.subr.mxu0 0.0
    %5149 = vmatpush1.msra.mxu0 0.0
    %5150 = vmatprep.subr.mxu0 0.0
    %5151 = vmatpush1.msra.mxu0 0.0
    %5152 = vmatprep.subr.mxu0 0.0
    %5153 = vmatpush1.msra.mxu0 0.0
    %5154 = vmatprep.subr.mxu0 0.0
    %5155 = vmatpush1.msra.mxu0 0.0
    %5156 = vmatprep.subr.mxu0 0.0
    %5157 = vmatpush1.msra.mxu0 0.0
    %5158 = vmatprep.subr.mxu0 0.0
    %5159 = vmatpush1.msra.mxu0 0.0
    %5160 = vmatprep.subr.mxu0 0.0
    %5161 = vmatpush1.msra.mxu0 0.0
    %5162 = vmatprep.subr.mxu0 0.0
    %5163 = vmatpush1.msra.mxu0 0.0
    %5164 = vmatprep.subr.mxu0 0.0
    %5165 = vmatpush1.msra.mxu0 0.0
    %5166 = vmatprep.subr.mxu0 0.0
    %5167 = vmatpush1.msra.mxu0 0.0
    %5168 = vmatprep.subr.mxu0 0.0
    %5169 = vmatpush1.msra.mxu0 0.0
    %5170 = vmatprep.subr.mxu0 0.0
    %5171 = vmatpush1.msra.mxu0 0.0
    %5172 = vmatprep.subr.mxu0 0.0
    %5173 = vmatpush1.msra.mxu0 0.0
    %5174 = vmatprep.subr.mxu0 0.0
    %5175 = vmatpush1.msra.mxu0 0.0
    %5176 = vmatprep.subr.mxu0 0.0
    %5177 = vmatpush1.msra.mxu0 0.0
    %5178 = vmatprep.subr.mxu0 0.0
    %5179 = vmatpush1.msra.mxu0 0.0
    %5180 = vmatprep.subr.mxu0 0.0
    %5181 = vmatpush1.msra.mxu0 0.0
    %5182 = vmatprep.subr.mxu0 0.0
    %5183 = vmatpush1.msra.mxu0 0.0
    %5184 = vmatprep.subr.mxu0 0.0
    %5185 = vmatpush1.msra.mxu0 0.0
    %5186 = vmatprep.subr.mxu0 0.0
    %5187 = vmatpush1.msra.mxu0 0.0
    %5188 = vmatprep.mubr.f32.mxu0 0.0
    %5189 = vmatmul.mubr.f32.gmra.mrb[0].mxu0 %v5032
    %v5190 = vpop.f32.mrb[0].mxu0
    %v5191 = vadd.f32 0.0, %v5190
    %v5192 = vpop.f32.mrb[0].mxu0
    %5193 = vmatprep.mubr.f32.mxu0 0.0
    %5194 = vmatmul.mubr.f32.gmra.mrb[0].mxu0 %v5035
    %v5195 = vpop.f32.mrb[0].mxu0
    %v5196 = vadd.f32 0.0, %v5195
    %v5197 = vpop.f32.mrb[0].mxu0
    %5198 = vmatprep.mubr.f32.mxu0 0.0
    %5199 = vmatmul.mubr.f32.gmra.mrb[0].mxu0 %v5038
    %v5200 = vpop.f32.mrb[0].mxu0
    %v5201 = vadd.f32 0.0, %v5200
    %v5202 = vpop.f32.mrb[0].mxu0
    %5203 = vmatprep.mubr.f32.mxu0 0.0
    %5204 = vmatmul.mubr.f32.gmra.mrb[0].mxu0 %v5041
    %v5205 = vpop.f32.mrb[0].mxu0
    %v5206 = vadd.f32 0.0, %v5205
    %v5207 = vpop.f32.mrb[0].mxu0
    %5208 = vmatprep.mubr.f32.mxu0 0.0
    %5209 = vmatmul.mubr.f32.gmra.mrb[0].mxu0 %v5044
    %v5210 = vpop.f32.mrb[0].mxu0
    %v5211 = vadd.f32 0.0, %v5210
    %v5212 = vpop.f32.mrb[0].mxu0
    %5213 = vmatprep.mubr.f32.mxu0 0.0
    %5214 = vmatmul.mubr.f32.gmra.mrb[0].mxu0 %v5047
    %v5215 = vpop.f32.mrb[0].mxu0
    %v5216 = vadd.f32 0.0, %v5215
    %v5217 = vpop.f32.mrb[0].mxu0
    %5218 = vmatprep.mubr.f32.mxu0 0.0
    %5219 = vmatmul.mubr.f32.gmra.mrb[0].mxu0 %v5050
    %v5220 = vpop.f32.mrb[0].mxu0
    %v5221 = vadd.f32 0.0, %v5220
    %v5222 = vpop.f32.mrb[0].mxu0
    %5223 = vmatprep.mubr.f32.mxu0 0.0
    %5224 = vmatmul.mubr.f32.gmra.mrb[0].mxu0 %v5053
    %v5225 = vpop.f32.mrb[0].mxu0
    %v5226 = vadd.f32 0.0, %v5225
    %v5227 = vpop.f32.mrb[0].mxu0
    %5228 = vmatprep.mubr.f32.mxu0 0.0
    %5229 = vmatmul.mubr.f32.gmra.mrb[0].mxu0 %v5056
    %v5230 = vpop.f32.mrb[0].mxu0
    %v5231 = vadd.f32 0.0, %v5230
    %v5232 = vpop.f32.mrb[0].mxu0
    %5233 = vmatprep.mubr.f32.mxu0 0.0
    %5234 = vmatmul.mubr.f32.gmra.mrb[0].mxu0 %v5059
    %v5235 = vpop.f32.mrb[0].mxu0
    %v5236 = vadd.f32 0.0, %v5235
    %v5237 = vpop.f32.mrb[0].mxu0
    %5238 = vmatprep.mubr.f32.mxu0 0.0
    %5239 = vmatmul.mubr.f32.gmra.mrb[0].mxu0 %v5062
    %v5240 = vpop.f32.mrb[0].mxu0
    %v5241 = vadd.f32 0.0, %v5240
    %v5242 = vpop.f32.mrb[0].mxu0
    %5243 = vmatprep.mubr.f32.mxu0 0.0
    %5244 = vmatmul.mubr.f32.gmra.mrb[0].mxu0 %v5065
    %v5245 = vpop.f32.mrb[0].mxu0
    %v5246 = vadd.f32 0.0, %v5245
    %v5247 = vpop.f32.mrb[0].mxu0
    %5248 = vmatprep.mubr.f32.mxu0 0.0
    %5249 = vmatmul.mubr.f32.gmra.mrb[0].mxu0 %v5068
    %v5250 = vpop.f32.mrb[0].mxu0
    %v5251 = vadd.f32 0.0, %v5250
    %v5252 = vpop.f32.mrb[0].mxu0
    %5253 = vmatprep.mubr.f32.mxu0 0.0
    %5254 = vmatmul.mubr.f32.gmra.mrb[0].mxu0 %v5071
    %v5255 = vpop.f32.mrb[0].mxu0
    %v5256 = vadd.f32 0.0, %v5255
    %v5257 = vpop.f32.mrb[0].mxu0
    %5258 = vmatprep.mubr.f32.mxu0 0.0
    %5259 = vmatmul.mubr.f32.gmra.mrb[0].mxu0 %v5074
    %v5260 = vpop.f32.mrb[0].mxu0
    %v5261 = vadd.f32 0.0, %v5260
    %v5262 = vpop.f32.mrb[0].mxu0
    %5263 = vmatprep.mubr.f32.mxu0 0.0
    %5264 = vmatmul.mubr.f32.gmra.mrb[0].mxu0 %v5077
    %v5265 = vpop.f32.mrb[0].mxu0
    %v5266 = vadd.f32 0.0, %v5265
    %v5267 = vpop.f32.mrb[0].mxu0
    %5268 = vmatprep.mubr.f32.mxu0 0.0
    %5269 = vmatmul.mubr.f32.gmra.mrb[0].mxu0 %v5080
    %v5270 = vpop.f32.mrb[0].mxu0
    %v5271 = vadd.f32 0.0, %v5270
    %v5272 = vpop.f32.mrb[0].mxu0
    %5273 = vmatprep.mubr.f32.mxu0 0.0
    %5274 = vmatmul.mubr.f32.gmra.mrb[0].mxu0 %v5083
    %v5275 = vpop.f32.mrb[0].mxu0
    %v5276 = vadd.f32 0.0, %v5275
    %v5277 = vpop.f32.mrb[0].mxu0
    %5278 = vmatprep.mubr.f32.mxu0 0.0
    %5279 = vmatmul.mubr.f32.gmra.mrb[0].mxu0 %v5086
    %v5280 = vpop.f32.mrb[0].mxu0
    %v5281 = vadd.f32 0.0, %v5280
    %v5282 = vpop.f32.mrb[0].mxu0
    %5283 = vmatprep.mubr.f32.mxu0 0.0
    %5284 = vmatmul.mubr.f32.gmra.mrb[0].mxu0 %v5089
    %v5285 = vpop.f32.mrb[0].mxu0
    %v5286 = vadd.f32 0.0, %v5285
    %v5287 = vpop.f32.mrb[0].mxu0
    %5288 = vmatprep.mubr.f32.mxu0 0.0
    %5289 = vmatmul.mubr.f32.gmra.mrb[0].mxu0 %v5092
    %v5290 = vpop.f32.mrb[0].mxu0
    %v5291 = vadd.f32 0.0, %v5290
    %v5292 = vpop.f32.mrb[0].mxu0
    %5293 = vmatprep.mubr.f32.mxu0 0.0
    %5294 = vmatmul.mubr.f32.gmra.mrb[0].mxu0 %v5095
    %v5295 = vpop.f32.mrb[0].mxu0
    %v5296 = vadd.f32 0.0, %v5295
    %v5297 = vpop.f32.mrb[0].mxu0
    %5298 = vmatprep.mubr.f32.mxu0 0.0
    %5299 = vmatmul.mubr.f32.gmra.mrb[0].mxu0 %v5098
    %v5300 = vpop.f32.mrb[0].mxu0
    %v5301 = vadd.f32 0.0, %v5300
    %v5302 = vpop.f32.mrb[0].mxu0
    %5303 = vmatprep.mubr.f32.mxu0 0.0
    %5304 = vmatmul.mubr.f32.gmra.mrb[0].mxu0 %v5101
    %v5305 = vpop.f32.mrb[0].mxu0
    %v5306 = vadd.f32 0.0, %v5305
    %v5307 = vpop.f32.mrb[0].mxu0
    %5308 = vmatprep.mubr.f32.mxu0 0.0
    %5309 = vmatmul.mubr.f32.gmra.mrb[0].mxu0 %v5104
    %v5310 = vpop.f32.mrb[0].mxu0
    %v5311 = vadd.f32 0.0, %v5310
    %v5312 = vpop.f32.mrb[0].mxu0
    %5313 = vmatprep.mubr.f32.mxu0 0.0
    %5314 = vmatmul.mubr.f32.gmra.mrb[0].mxu0 %v5107
    %v5315 = vpop.f32.mrb[0].mxu0
    %v5316 = vadd.f32 0.0, %v5315
    %v5317 = vpop.f32.mrb[0].mxu0
    %5318 = vmatprep.mubr.f32.mxu0 0.0
    %5319 = vmatmul.mubr.f32.gmra.mrb[0].mxu0 %v5110
    %v5320 = vpop.f32.mrb[0].mxu0
    %v5321 = vadd.f32 0.0, %v5320
    %v5322 = vpop.f32.mrb[0].mxu0
    %5323 = vmatprep.mubr.f32.mxu0 0.0
    %5324 = vmatmul.mubr.f32.gmra.mrb[0].mxu0 %v5113
    %v5325 = vpop.f32.mrb[0].mxu0
    %v5326 = vadd.f32 0.0, %v5325
    %v5327 = vpop.f32.mrb[0].mxu0
    %5328 = vmatprep.mubr.f32.mxu0 0.0
    %5329 = vmatmul.mubr.f32.gmra.mrb[0].mxu0 %v5116
    %v5330 = vpop.f32.mrb[0].mxu0
    %v5331 = vadd.f32 0.0, %v5330
    %v5332 = vpop.f32.mrb[0].mxu0
    %5333 = vmatprep.mubr.f32.mxu0 0.0
    %5334 = vmatmul.mubr.f32.gmra.mrb[0].mxu0 %v5119
    %v5335 = vpop.f32.mrb[0].mxu0
    %v5336 = vadd.f32 0.0, %v5335
    %v5337 = vpop.f32.mrb[0].mxu0
    %5338 = vmatprep.mubr.f32.mxu0 0.0
    %5339 = vmatmul.mubr.f32.gmra.mrb[0].mxu0 %v5122
    %v5340 = vpop.f32.mrb[0].mxu0
    %v5341 = vadd.f32 0.0, %v5340
    %v5342 = vpop.f32.mrb[0].mxu0
    %5343 = vdwg.mxu0
    %v5344 = vld [vmem:[%s15] sm:$0x3]
    %vm5345 = vcmask 523264
    %v5346 = vsel %vm5345, %v5191, 0.0
    %v5347 = vsel %vm5345, %v5196, 0.0
    %v5348 = vadd.f32 %v5346, %v5347
    %v5349 = vsel %vm5345, %v5201, 0.0
    %v5350 = vadd.f32 %v5348, %v5349
    %v5351 = vsel %vm5345, %v5206, 0.0
    %v5352 = vadd.f32 %v5350, %v5351
    %v5353 = vsel %vm5345, %v5211, 0.0
    %v5354 = vadd.f32 %v5352, %v5353
    %v5355 = vsel %vm5345, %v5216, 0.0
    %v5356 = vadd.f32 %v5354, %v5355
    %v5357 = vsel %vm5345, %v5221, 0.0
    %v5358 = vadd.f32 %v5356, %v5357
    %v5359 = vsel %vm5345, %v5226, 0.0
    %v5360 = vadd.f32 %v5358, %v5359
    %v5361 = vsel %vm5345, %v5231, 0.0
    %v5362 = vadd.f32 %v5360, %v5361
    %v5363 = vsel %vm5345, %v5236, 0.0
    %v5364 = vadd.f32 %v5362, %v5363
    %v5365 = vsel %vm5345, %v5241, 0.0
    %v5366 = vadd.f32 %v5364, %v5365
    %v5367 = vsel %vm5345, %v5246, 0.0
    %v5368 = vadd.f32 %v5366, %v5367
    %v5369 = vsel %vm5345, %v5251, 0.0
    %v5370 = vadd.f32 %v5368, %v5369
    %v5371 = vsel %vm5345, %v5256, 0.0
    %v5372 = vadd.f32 %v5370, %v5371
    %v5373 = vsel %vm5345, %v5261, 0.0
    %v5374 = vadd.f32 %v5372, %v5373
    %v5375 = vsel %vm5345, %v5266, 0.0
    %v5376 = vadd.f32 %v5374, %v5375
    %v5377 = vsel %vm5345, %v5271, 0.0
    %v5378 = vadd.f32 %v5376, %v5377
    %v5379 = vsel %vm5345, %v5276, 0.0
    %v5380 = vadd.f32 %v5378, %v5379
    %v5381 = vsel %vm5345, %v5281, 0.0
    %v5382 = vadd.f32 %v5380, %v5381
    %v5383 = vsel %vm5345, %v5286, 0.0
    %v5384 = vadd.f32 %v5382, %v5383
    %v5385 = vsel %vm5345, %v5291, 0.0
    %v5386 = vadd.f32 %v5384, %v5385
    %v5387 = vsel %vm5345, %v5296, 0.0
    %v5388 = vadd.f32 %v5386, %v5387
    %v5389 = vsel %vm5345, %v5301, 0.0
    %v5390 = vadd.f32 %v5388, %v5389
    %v5391 = vsel %vm5345, %v5306, 0.0
    %v5392 = vadd.f32 %v5390, %v5391
    %v5393 = vsel %vm5345, %v5311, 0.0
    %v5394 = vadd.f32 %v5392, %v5393
    %v5395 = vsel %vm5345, %v5316, 0.0
    %v5396 = vadd.f32 %v5394, %v5395
    %v5397 = vsel %vm5345, %v5321, 0.0
    %v5398 = vadd.f32 %v5396, %v5397
    %v5399 = vsel %vm5345, %v5326, 0.0
    %v5400 = vadd.f32 %v5398, %v5399
    %v5401 = vsel %vm5345, %v5331, 0.0
    %v5402 = vadd.f32 %v5400, %v5401
    %v5403 = vsel %vm5345, %v5336, 0.0
    %v5404 = vadd.f32 %v5402, %v5403
    %vm5405 = vcmask 517120
    %v5406 = vsel %vm5405, %v5341, 0.0
    %v5407 = vadd.f32 %v5404, %v5406
    %v5408 = vrot.slane %v5407, 4
    %v5409 = vadd.f32 %v5407, %v5408
    %v5410 = vrot.slane %v5409, 2
    %v5411 = vadd.f32 %v5409, %v5410
    %v5412 = vrot.slane %v5411, 1
    %v5413 = vadd.f32 %v5411, %v5412
    %v5414 = vrcp.pop 242.0
    %v5415 = vmul.f32 %v5413, %v5414
    %v5416 = vmul.f32 %v5191, %v5191
    %v5417 = vmul.f32 %v5196, %v5196
    %v5418 = vmul.f32 %v5201, %v5201
    %v5419 = vmul.f32 %v5206, %v5206
    %v5420 = vmul.f32 %v5211, %v5211
    %v5421 = vmul.f32 %v5216, %v5216
    %v5422 = vmul.f32 %v5221, %v5221
    %v5423 = vmul.f32 %v5226, %v5226
    %v5424 = vmul.f32 %v5231, %v5231
    %v5425 = vmul.f32 %v5236, %v5236
    %v5426 = vmul.f32 %v5241, %v5241
    %v5427 = vmul.f32 %v5246, %v5246
    %v5428 = vmul.f32 %v5251, %v5251
    %v5429 = vmul.f32 %v5256, %v5256
    %v5430 = vmul.f32 %v5261, %v5261
    %v5431 = vmul.f32 %v5266, %v5266
    %v5432 = vmul.f32 %v5271, %v5271
    %v5433 = vmul.f32 %v5276, %v5276
    %v5434 = vmul.f32 %v5281, %v5281
    %v5435 = vmul.f32 %v5286, %v5286
    %v5436 = vmul.f32 %v5291, %v5291
    %v5437 = vmul.f32 %v5296, %v5296
    %v5438 = vmul.f32 %v5301, %v5301
    %v5439 = vmul.f32 %v5306, %v5306
    %v5440 = vmul.f32 %v5311, %v5311
    %v5441 = vmul.f32 %v5316, %v5316
    %v5442 = vmul.f32 %v5321, %v5321
    %v5443 = vmul.f32 %v5326, %v5326
    %v5444 = vmul.f32 %v5331, %v5331
    %v5445 = vmul.f32 %v5336, %v5336
    %v5446 = vmul.f32 %v5341, %v5341
    %v5447 = vsel %vm5345, %v5416, 0.0
    %v5448 = vsel %vm5345, %v5417, 0.0
    %v5449 = vadd.f32 %v5447, %v5448
    %v5450 = vsel %vm5345, %v5418, 0.0
    %v5451 = vadd.f32 %v5449, %v5450
    %v5452 = vsel %vm5345, %v5419, 0.0
    %v5453 = vadd.f32 %v5451, %v5452
    %v5454 = vsel %vm5345, %v5420, 0.0
    %v5455 = vadd.f32 %v5453, %v5454
    %v5456 = vsel %vm5345, %v5421, 0.0
    %v5457 = vadd.f32 %v5455, %v5456
    %v5458 = vsel %vm5345, %v5422, 0.0
    %v5459 = vadd.f32 %v5457, %v5458
    %v5460 = vsel %vm5345, %v5423, 0.0
    %v5461 = vadd.f32 %v5459, %v5460
    %v5462 = vsel %vm5345, %v5424, 0.0
    %v5463 = vadd.f32 %v5461, %v5462
    %v5464 = vsel %vm5345, %v5425, 0.0
    %v5465 = vadd.f32 %v5463, %v5464
    %v5466 = vsel %vm5345, %v5426, 0.0
    %v5467 = vadd.f32 %v5465, %v5466
    %v5468 = vsel %vm5345, %v5427, 0.0
    %v5469 = vadd.f32 %v5467, %v5468
    %v5470 = vsel %vm5345, %v5428, 0.0
    %v5471 = vadd.f32 %v5469, %v5470
    %v5472 = vsel %vm5345, %v5429, 0.0
    %v5473 = vadd.f32 %v5471, %v5472
    %v5474 = vsel %vm5345, %v5430, 0.0
    %v5475 = vadd.f32 %v5473, %v5474
    %v5476 = vsel %vm5345, %v5431, 0.0
    %v5477 = vadd.f32 %v5475, %v5476
    %v5478 = vsel %vm5345, %v5432, 0.0
    %v5479 = vadd.f32 %v5477, %v5478
    %v5480 = vsel %vm5345, %v5433, 0.0
    %v5481 = vadd.f32 %v5479, %v5480
    %v5482 = vsel %vm5345, %v5434, 0.0
    %v5483 = vadd.f32 %v5481, %v5482
    %v5484 = vsel %vm5345, %v5435, 0.0
    %v5485 = vadd.f32 %v5483, %v5484
    %v5486 = vsel %vm5345, %v5436, 0.0
    %v5487 = vadd.f32 %v5485, %v5486
    %v5488 = vsel %vm5345, %v5437, 0.0
    %v5489 = vadd.f32 %v5487, %v5488
    %v5490 = vsel %vm5345, %v5438, 0.0
    %v5491 = vadd.f32 %v5489, %v5490
    %v5492 = vsel %vm5345, %v5439, 0.0
    %v5493 = vadd.f32 %v5491, %v5492
    %v5494 = vsel %vm5345, %v5440, 0.0
    %v5495 = vadd.f32 %v5493, %v5494
    %v5496 = vsel %vm5345, %v5441, 0.0
    %v5497 = vadd.f32 %v5495, %v5496
    %v5498 = vsel %vm5345, %v5442, 0.0
    %v5499 = vadd.f32 %v5497, %v5498
    %v5500 = vsel %vm5345, %v5443, 0.0
    %v5501 = vadd.f32 %v5499, %v5500
    %v5502 = vsel %vm5345, %v5444, 0.0
    %v5503 = vadd.f32 %v5501, %v5502
    %v5504 = vsel %vm5345, %v5445, 0.0
    %v5505 = vadd.f32 %v5503, %v5504
    %v5506 = vsel %vm5405, %v5446, 0.0
    %v5507 = vadd.f32 %v5505, %v5506
    %v5508 = vrot.slane %v5507, 4
    %v5509 = vadd.f32 %v5507, %v5508
    %v5510 = vrot.slane %v5509, 2
    %v5511 = vadd.f32 %v5509, %v5510
    %v5512 = vrot.slane %v5511, 1
    %v5513 = vadd.f32 %v5511, %v5512
    %v5514 = vmul.f32 %v5513, %v5414
    %v5515 = vmul.f32 %v5415, %v5415
    %v5516 = vsub.f32 %v5514, %v5515
    %v5517 = vmax.f32 %v5516, 0.0
    %v5518 = vadd.f32 %v5517, 1e-05
    %v5519 = vrsqrt.pop %v5518
    %v5520 = vmul.f32 %v5344, %v5519
    %v5521 = vlaneseq
    %v5522 = vshrl.u32 %v5521, 7
    %v5523 = vsub.s32 0, %v5522
    %v5524 = vrot.slane %v5520, %v5523
    %v5525 = vmul.f32 %v5191, %v5524
    %v5526 = vmul.f32 %v5196, %v5524
    %v5527 = vmul.f32 %v5201, %v5524
    %v5528 = vmul.f32 %v5206, %v5524
    %v5529 = vmul.f32 %v5211, %v5524
    %v5530 = vmul.f32 %v5216, %v5524
    %v5531 = vmul.f32 %v5221, %v5524
    %v5532 = vmul.f32 %v5226, %v5524
    %v5533 = vmul.f32 %v5231, %v5524
    %v5534 = vmul.f32 %v5236, %v5524
    %v5535 = vmul.f32 %v5241, %v5524
    %v5536 = vmul.f32 %v5246, %v5524
    %v5537 = vmul.f32 %v5251, %v5524
    %v5538 = vmul.f32 %v5256, %v5524
    %v5539 = vmul.f32 %v5261, %v5524
    %v5540 = vmul.f32 %v5266, %v5524
    %v5541 = vmul.f32 %v5271, %v5524
    %v5542 = vmul.f32 %v5276, %v5524
    %v5543 = vmul.f32 %v5281, %v5524
    %v5544 = vmul.f32 %v5286, %v5524
    %v5545 = vmul.f32 %v5291, %v5524
    %v5546 = vmul.f32 %v5296, %v5524
    %v5547 = vmul.f32 %v5301, %v5524
    %v5548 = vmul.f32 %v5306, %v5524
    %v5549 = vmul.f32 %v5311, %v5524
    %v5550 = vmul.f32 %v5316, %v5524
    %v5551 = vmul.f32 %v5321, %v5524
    %v5552 = vmul.f32 %v5326, %v5524
    %v5553 = vmul.f32 %v5331, %v5524
    %v5554 = vmul.f32 %v5336, %v5524
    %v5555 = vmul.f32 %v5341, %v5524
    %v5556 = vmul.f32 %v5415, %v5520
    %v5558 = vrot.slane %v5556, 7
    %v5560 = vsub.f32 %v5344, %v5558
    %v5561 = vlaneseq
    %v5562 = vshrl.u32 %v5561, 7
    %v5563 = vsub.s32 1, %v5562
    %v5564 = vrot.slane %v5560, %v5563
    %v5565 = vadd.f32 %v5525, %v5564
    %v5566 = vadd.f32 %v5526, %v5564
    %v5567 = vadd.f32 %v5527, %v5564
    %v5568 = vadd.f32 %v5528, %v5564
    %v5569 = vadd.f32 %v5529, %v5564
    %v5570 = vadd.f32 %v5530, %v5564
    %v5571 = vadd.f32 %v5531, %v5564
    %v5572 = vadd.f32 %v5532, %v5564
    %v5573 = vadd.f32 %v5533, %v5564
    %v5574 = vadd.f32 %v5534, %v5564
    %v5575 = vadd.f32 %v5535, %v5564
    %v5576 = vadd.f32 %v5536, %v5564
    %v5577 = vadd.f32 %v5537, %v5564
    %v5578 = vadd.f32 %v5538, %v5564
    %v5579 = vadd.f32 %v5539, %v5564
    %v5580 = vadd.f32 %v5540, %v5564
    %v5581 = vadd.f32 %v5541, %v5564
    %v5582 = vadd.f32 %v5542, %v5564
    %v5583 = vadd.f32 %v5543, %v5564
    %v5584 = vadd.f32 %v5544, %v5564
    %v5585 = vadd.f32 %v5545, %v5564
    %v5586 = vadd.f32 %v5546, %v5564
    %v5587 = vadd.f32 %v5547, %v5564
    %v5588 = vadd.f32 %v5548, %v5564
    %v5589 = vadd.f32 %v5549, %v5564
    %v5590 = vadd.f32 %v5550, %v5564
    %v5591 = vadd.f32 %v5551, %v5564
    %v5592 = vadd.f32 %v5552, %v5564
    %v5593 = vadd.f32 %v5553, %v5564
    %v5594 = vadd.f32 %v5554, %v5564
    %v5595 = vadd.f32 %v5555, %v5564
    %vm5596 = vcmp.ge.f32.partialorder %v5565, 0.0
    %vm5597 = vcmp.ge.f32.partialorder %v5566, 0.0
    %vm5598 = vcmp.ge.f32.partialorder %v5567, 0.0
    %vm5599 = vcmp.ge.f32.partialorder %v5568, 0.0
    %vm5600 = vcmp.ge.f32.partialorder %v5569, 0.0
    %vm5601 = vcmp.ge.f32.partialorder %v5570, 0.0
    %vm5602 = vcmp.ge.f32.partialorder %v5571, 0.0
    %vm5603 = vcmp.ge.f32.partialorder %v5572, 0.0
    %vm5604 = vcmp.ge.f32.partialorder %v5573, 0.0
    %vm5605 = vcmp.ge.f32.partialorder %v5574, 0.0
    %vm5606 = vcmp.ge.f32.partialorder %v5575, 0.0
    %vm5607 = vcmp.ge.f32.partialorder %v5576, 0.0
    %vm5608 = vcmp.ge.f32.partialorder %v5577, 0.0
    %vm5609 = vcmp.ge.f32.partialorder %v5578, 0.0
    %vm5610 = vcmp.ge.f32.partialorder %v5579, 0.0
    %vm5611 = vcmp.ge.f32.partialorder %v5580, 0.0
    %vm5612 = vcmp.ge.f32.partialorder %v5581, 0.0
    %vm5613 = vcmp.ge.f32.partialorder %v5582, 0.0
    %vm5614 = vcmp.ge.f32.partialorder %v5583, 0.0
    %vm5615 = vcmp.ge.f32.partialorder %v5584, 0.0
    %vm5616 = vcmp.ge.f32.partialorder %v5585, 0.0
    %vm5617 = vcmp.ge.f32.partialorder %v5586, 0.0
    %vm5618 = vcmp.ge.f32.partialorder %v5587, 0.0
    %vm5619 = vcmp.ge.f32.partialorder %v5588, 0.0
    %vm5620 = vcmp.ge.f32.partialorder %v5589, 0.0
    %vm5621 = vcmp.ge.f32.partialorder %v5590, 0.0
    %vm5622 = vcmp.ge.f32.partialorder %v5591, 0.0
    %vm5623 = vcmp.ge.f32.partialorder %v5592, 0.0
    %vm5624 = vcmp.ge.f32.partialorder %v5593, 0.0
    %vm5625 = vcmp.ge.f32.partialorder %v5594, 0.0
    %vm5626 = vcmp.ge.f32.partialorder %v5595, 0.0
    %v5627 = vmul.f32 %v5565, 0.01
    %v5628 = vmul.f32 %v5566, 0.01
    %v5629 = vmul.f32 %v5567, 0.01
    %v5630 = vmul.f32 %v5568, 0.01
    %v5631 = vmul.f32 %v5569, 0.01
    %v5632 = vmul.f32 %v5570, 0.01
    %v5633 = vmul.f32 %v5571, 0.01
    %v5634 = vmul.f32 %v5572, 0.01
    %v5635 = vmul.f32 %v5573, 0.01
    %v5636 = vmul.f32 %v5574, 0.01
    %v5637 = vmul.f32 %v5575, 0.01
    %v5638 = vmul.f32 %v5576, 0.01
    %v5639 = vmul.f32 %v5577, 0.01
    %v5640 = vmul.f32 %v5578, 0.01
    %v5641 = vmul.f32 %v5579, 0.01
    %v5642 = vmul.f32 %v5580, 0.01
    %v5643 = vmul.f32 %v5581, 0.01
    %v5644 = vmul.f32 %v5582, 0.01
    %v5645 = vmul.f32 %v5583, 0.01
    %v5646 = vmul.f32 %v5584, 0.01
    %v5647 = vmul.f32 %v5585, 0.01
    %v5648 = vmul.f32 %v5586, 0.01
    %v5649 = vmul.f32 %v5587, 0.01
    %v5650 = vmul.f32 %v5588, 0.01
    %v5651 = vmul.f32 %v5589, 0.01
    %v5652 = vmul.f32 %v5590, 0.01
    %v5653 = vmul.f32 %v5591, 0.01
    %v5654 = vmul.f32 %v5592, 0.01
    %v5655 = vmul.f32 %v5593, 0.01
    %v5656 = vmul.f32 %v5594, 0.01
    %v5657 = vmul.f32 %v5595, 0.01
    %v5658 = vsel %vm5596, %v5565, %v5627
    %v5659 = vsel %vm5597, %v5566, %v5628
    %v5660 = vsel %vm5598, %v5567, %v5629
    %v5661 = vsel %vm5599, %v5568, %v5630
    %v5662 = vsel %vm5600, %v5569, %v5631
    %v5663 = vsel %vm5601, %v5570, %v5632
    %v5664 = vsel %vm5602, %v5571, %v5633
    %v5665 = vsel %vm5603, %v5572, %v5634
    %v5666 = vsel %vm5604, %v5573, %v5635
    %v5667 = vsel %vm5605, %v5574, %v5636
    %v5668 = vsel %vm5606, %v5575, %v5637
    %v5669 = vsel %vm5607, %v5576, %v5638
    %v5670 = vsel %vm5608, %v5577, %v5639
    %v5671 = vsel %vm5609, %v5578, %v5640
    %v5672 = vsel %vm5610, %v5579, %v5641
    %v5673 = vsel %vm5611, %v5580, %v5642
    %v5674 = vsel %vm5612, %v5581, %v5643
    %v5675 = vsel %vm5613, %v5582, %v5644
    %v5676 = vsel %vm5614, %v5583, %v5645
    %v5677 = vsel %vm5615, %v5584, %v5646
    %v5678 = vsel %vm5616, %v5585, %v5647
    %v5679 = vsel %vm5617, %v5586, %v5648
    %v5680 = vsel %vm5618, %v5587, %v5649
    %v5681 = vsel %vm5619, %v5588, %v5650
    %v5682 = vsel %vm5620, %v5589, %v5651
    %v5683 = vsel %vm5621, %v5590, %v5652
    %v5684 = vsel %vm5622, %v5591, %v5653
    %v5685 = vsel %vm5623, %v5592, %v5654
    %v5686 = vsel %vm5624, %v5593, %v5655
    %v5687 = vsel %vm5625, %v5594, %v5656
    %v5688 = vsel %vm5626, %v5595, %v5657
    %v5689 = vld [vmem:[%s17] sm:$0x1]
    %v5690 = vpack.c.bf16 %v5659, %v5658
    %v5691 = vpack.c.bf16 %v5661, %v5660
    %v5692 = vpack.c.bf16 %v5663, %v5662
    %v5693 = vpack.c.bf16 %v5665, %v5664
    %v5694 = vpack.c.bf16 %v5667, %v5666
    %v5695 = vpack.c.bf16 %v5669, %v5668
    %v5696 = vpack.c.bf16 %v5671, %v5670
    %v5697 = vpack.c.bf16 %v5673, %v5672
    %v5698 = vpack.c.bf16 %v5675, %v5674
    %v5699 = vpack.c.bf16 %v5677, %v5676
    %v5700 = vpack.c.bf16 %v5679, %v5678
    %v5701 = vpack.c.bf16 %v5681, %v5680
    %v5702 = vpack.c.bf16 %v5683, %v5682
    %v5703 = vpack.c.bf16 %v5685, %v5684
    %v5704 = vpack.c.bf16 %v5687, %v5686
    %v5705 = vpack.c.bf16 %v5688, %v5688
    %v5706 = vld [vmem:[%s18] sm:$0xff]
    %v5707 = vld [vmem:[%s18 + $0x8] sm:$0xff]
    %v5708 = vld [vmem:[%s18 + $0x10] sm:$0xff]
    %v5709 = vld [vmem:[%s18 + $0x18] sm:$0xff]
    %v5710 = vld [vmem:[%s18 + $0x20] sm:$0xff]
    %v5711 = vld [vmem:[%s18 + $0x28] sm:$0xff]
    %v5712 = vld [vmem:[%s18 + $0x30] sm:$0xff]
    %v5713 = vld [vmem:[%s18 + $0x38] sm:$0xff]
    %v5714 = vld [vmem:[%s18 + $0x40] sm:$0xff]
    %v5715 = vld [vmem:[%s18 + $0x48] sm:$0xff]
    %v5716 = vld [vmem:[%s18 + $0x50] sm:$0xff]
    %v5717 = vld [vmem:[%s18 + $0x58] sm:$0xff]
    %v5718 = vld [vmem:[%s18 + $0x60] sm:$0xff]
    %v5719 = vld [vmem:[%s18 + $0x68] sm:$0xff]
    %v5720 = vld [vmem:[%s18 + $0x70] sm:$0xff]
    %v5721 = vld [vmem:[%s18 + $0x78] sm:$0xff]
    %v5722 = vld [vmem:[%s18 + $0x80] sm:$0xff]
    %v5723 = vld [vmem:[%s18 + $0x88] sm:$0xff]
    %v5724 = vld [vmem:[%s18 + $0x90] sm:$0xff]
    %v5725 = vld [vmem:[%s18 + $0x98] sm:$0xff]
    %v5726 = vld [vmem:[%s18 + $0xa0] sm:$0xff]
    %v5727 = vld [vmem:[%s18 + $0xa8] sm:$0xff]
    %v5728 = vld [vmem:[%s18 + $0xb0] sm:$0xff]
    %v5729 = vld [vmem:[%s18 + $0xb8] sm:$0xff]
    %v5730 = vld [vmem:[%s18 + $0xc0] sm:$0xff]
    %v5731 = vld [vmem:[%s18 + $0xc8] sm:$0xff]
    %v5732 = vld [vmem:[%s18 + $0xd0] sm:$0xff]
    %v5733 = vld [vmem:[%s18 + $0xd8] sm:$0xff]
    %v5734 = vld [vmem:[%s18 + $0xe0] sm:$0xff]
    %v5735 = vld [vmem:[%s18 + $0xe8] sm:$0xff]
    %v5736 = vld [vmem:[%s18 + $0xf0] sm:$0x3]
    %v5738 = vlaneseq
    %v5739 = vshrl.u32 %v5738, 7
    %v5740 = vsub.s32 0, %v5739
    %v5741 = vrot.slane %v5689, %v5740
    %vm5743 = vcmask 31744
    %5744 = vst.msk [vmem:[%s26] sm:$0xff] %vm5743, %v5741
    %5745 = vst.msk [vmem:[%s26 + $0x8] sm:$0xff] %vm5743, %v5741
    %5746 = vst.msk [vmem:[%s26 + $0x10] sm:$0xff] %vm5743, %v5741
    %5747 = vst.msk [vmem:[%s26 + $0x18] sm:$0xff] %vm5743, %v5741
    %5748 = vst.msk [vmem:[%s26 + $0x20] sm:$0xff] %vm5743, %v5741
    %5749 = vst.msk [vmem:[%s26 + $0x28] sm:$0xff] %vm5743, %v5741
    %5750 = vst.msk [vmem:[%s26 + $0x30] sm:$0xff] %vm5743, %v5741
    %5751 = vst.msk [vmem:[%s26 + $0x38] sm:$0xff] %vm5743, %v5741
    %5752 = vst.msk [vmem:[%s26 + $0x40] sm:$0xff] %vm5743, %v5741
    %5753 = vst.msk [vmem:[%s26 + $0x48] sm:$0xff] %vm5743, %v5741
    %5754 = vst.msk [vmem:[%s26 + $0x50] sm:$0xff] %vm5743, %v5741
    %5755 = vst.msk [vmem:[%s26 + $0x58] sm:$0xff] %vm5743, %v5741
    %5756 = vst.msk [vmem:[%s26 + $0x60] sm:$0xff] %vm5743, %v5741
    %5757 = vst.msk [vmem:[%s26 + $0x68] sm:$0xff] %vm5743, %v5741
    %5758 = vst.msk [vmem:[%s26 + $0x70] sm:$0xff] %vm5743, %v5741
    %5759 = vst.msk [vmem:[%s26 + $0x78] sm:$0xff] %vm5743, %v5741
    %5760 = vst.msk [vmem:[%s26 + $0x80] sm:$0xff] %vm5743, %v5741
    %5761 = vst.msk [vmem:[%s26 + $0x88] sm:$0xff] %vm5743, %v5741
    %5762 = vst.msk [vmem:[%s26 + $0x90] sm:$0xff] %vm5743, %v5741
    %5763 = vst.msk [vmem:[%s26 + $0x98] sm:$0xff] %vm5743, %v5741
    %5764 = vst.msk [vmem:[%s26 + $0xa0] sm:$0xff] %vm5743, %v5741
    %5765 = vst.msk [vmem:[%s26 + $0xa8] sm:$0xff] %vm5743, %v5741
    %5766 = vst.msk [vmem:[%s26 + $0xb0] sm:$0xff] %vm5743, %v5741
    %5767 = vst.msk [vmem:[%s26 + $0xb8] sm:$0xff] %vm5743, %v5741
    %5768 = vst.msk [vmem:[%s26 + $0xc0] sm:$0xff] %vm5743, %v5741
    %5769 = vst.msk [vmem:[%s26 + $0xc8] sm:$0xff] %vm5743, %v5741
    %5770 = vst.msk [vmem:[%s26 + $0xd0] sm:$0xff] %vm5743, %v5741
    %5771 = vst.msk [vmem:[%s26 + $0xd8] sm:$0xff] %vm5743, %v5741
    %5772 = vst.msk [vmem:[%s26 + $0xe0] sm:$0xff] %vm5743, %v5741
    %5773 = vst.msk [vmem:[%s26 + $0xe8] sm:$0xff] %vm5743, %v5741
    %vm5774 = vcmask 25600
    %5775 = vst.msk [vmem:[%s26 + $0xf0] sm:$0x3] %vm5774, %v5741
    %v5776 = vld [vmem:[%s16] sm:$0xf]
    %v5777 = vld [vmem:[%s16 + $0x4] sm:$0xf]
    %v5778 = vld [vmem:[%s16 + $0x8] sm:$0xf]
    %v5779 = vld [vmem:[%s16 + $0xc] sm:$0xf]
    %v5780 = vld [vmem:[%s16 + $0x10] sm:$0xf]
    %v5781 = vld [vmem:[%s16 + $0x14] sm:$0xf]
    %v5782 = vld [vmem:[%s16 + $0x18] sm:$0xf]
    %v5783 = vld [vmem:[%s16 + $0x1c] sm:$0xf]
    %v5792 = vunpack.c.l.b16 %v5776
    %v5793 = vunpack.c.l.b16 %v5777
    %v5794 = vunpack.c.l.b16 %v5778
    %v5795 = vunpack.c.l.b16 %v5779
    %v5796 = vunpack.c.l.b16 %v5780
    %v5797 = vunpack.c.l.b16 %v5781
    %v5798 = vunpack.c.l.b16 %v5782
    %v5799 = vunpack.c.l.b16 %v5783
    %v5800 = vpack.c.b16 %v5793, %v5792
    %v5801 = vpack.c.b16 %v5795, %v5794
    %v5802 = vpack.c.b16 %v5797, %v5796
    %v5803 = vpack.c.b16 %v5799, %v5798
    %v5809 = vsel %vm5345, %v5690, 0
    %v5812 = vsel %vm5345, %v5691, 0
    %v5815 = vsel %vm5345, %v5692, 0
    %v5818 = vsel %vm5345, %v5693, 0
    %v5821 = vsel %vm5345, %v5694, 0
    %v5824 = vsel %vm5345, %v5695, 0
    %v5827 = vsel %vm5345, %v5696, 0
    %v5830 = vsel %vm5345, %v5697, 0
    %v5833 = vsel %vm5345, %v5698, 0
    %v5836 = vsel %vm5345, %v5699, 0
    %v5839 = vsel %vm5345, %v5700, 0
    %v5842 = vsel %vm5345, %v5701, 0
    %v5845 = vsel %vm5345, %v5702, 0
    %v5848 = vsel %vm5345, %v5703, 0
    %v5851 = vsel %vm5345, %v5704, 0
    %v5854 = vsel %vm5345, %v5705, 0
    %5856 = vmatprep.subr.bf16.mxu0 0
    %5857 = vmatpush1.bf16.msra.mxu0 %v5800
    %5858 = vmatprep.subr.bf16.mxu0 0
    %5859 = vmatpush1.bf16.msra.mxu0 %v5801
    %5860 = vmatprep.subr.bf16.mxu0 0
    %5861 = vmatpush1.bf16.msra.mxu0 %v5802
    %5862 = vmatprep.subr.bf16.mxu0 0
    %5863 = vmatpush1.bf16.msra.mxu0 %v5803
    %5864 = vmatprep.subr.bf16.mxu0 0
    %5865 = vmatpush1.bf16.msra.mxu0 0
    %5866 = vmatprep.subr.bf16.mxu0 0
    %5867 = vmatpush1.bf16.msra.mxu0 0
    %5868 = vmatprep.subr.bf16.mxu0 0
    %5869 = vmatpush1.bf16.msra.mxu0 0
    %5870 = vmatprep.subr.bf16.mxu0 0
    %5871 = vmatpush1.bf16.msra.mxu0 0
    %5872 = vmatprep.subr.bf16.mxu0 0
    %5873 = vmatpush1.bf16.msra.mxu0 0
    %5874 = vmatprep.subr.bf16.mxu0 0
    %5875 = vmatpush1.bf16.msra.mxu0 0
    %5876 = vmatprep.subr.bf16.mxu0 0
    %5877 = vmatpush1.bf16.msra.mxu0 0
    %5878 = vmatprep.subr.bf16.mxu0 0
    %5879 = vmatpush1.bf16.msra.mxu0 0
    %5880 = vmatprep.subr.bf16.mxu0 0
    %5881 = vmatpush1.bf16.msra.mxu0 0
    %5882 = vmatprep.subr.bf16.mxu0 0
    %5883 = vmatpush1.bf16.msra.mxu0 0
    %5884 = vmatprep.subr.bf16.mxu0 0
    %5885 = vmatpush1.bf16.msra.mxu0 0
    %5886 = vmatprep.subr.bf16.mxu0 0
    %5887 = vmatpush1.bf16.msra.mxu0 0
    %5888 = vmatprep.mubr.bf16.mxu0 0
    %5889 = vmatmul.mubr.bf16.gmra.mrb[0].mxu0 %v5809
    %v5890 = vpop.f32.mrb[0].mxu0
    %v5891 = vadd.f32 0.0, %v5890
    %v5892 = vpop.f32.mrb[0].mxu0
    %v5893 = vpop.f32.mrb[0].mxu0
    %v5894 = vadd.f32 0.0, %v5893
    %v5895 = vpop.f32.mrb[0].mxu0
    %5896 = vmatprep.mubr.bf16.mxu0 0
    %5897 = vmatmul.mubr.bf16.gmra.mrb[0].mxu0 %v5812
    %v5898 = vpop.f32.mrb[0].mxu0
    %v5899 = vadd.f32 0.0, %v5898
    %v5900 = vpop.f32.mrb[0].mxu0
    %v5901 = vpop.f32.mrb[0].mxu0
    %v5902 = vadd.f32 0.0, %v5901
    %v5903 = vpop.f32.mrb[0].mxu0
    %5904 = vmatprep.mubr.bf16.mxu0 0
    %5905 = vmatmul.mubr.bf16.gmra.mrb[0].mxu0 %v5815
    %v5906 = vpop.f32.mrb[0].mxu0
    %v5907 = vadd.f32 0.0, %v5906
    %v5908 = vpop.f32.mrb[0].mxu0
    %v5909 = vpop.f32.mrb[0].mxu0
    %v5910 = vadd.f32 0.0, %v5909
    %v5911 = vpop.f32.mrb[0].mxu0
    %5912 = vmatprep.mubr.bf16.mxu0 0
    %5913 = vmatmul.mubr.bf16.gmra.mrb[0].mxu0 %v5818
    %v5914 = vpop.f32.mrb[0].mxu0
    %v5915 = vadd.f32 0.0, %v5914
    %v5916 = vpop.f32.mrb[0].mxu0
    %v5917 = vpop.f32.mrb[0].mxu0
    %v5918 = vadd.f32 0.0, %v5917
    %v5919 = vpop.f32.mrb[0].mxu0
    %5920 = vmatprep.mubr.bf16.mxu0 0
    %5921 = vmatmul.mubr.bf16.gmra.mrb[0].mxu0 %v5821
    %v5922 = vpop.f32.mrb[0].mxu0
    %v5923 = vadd.f32 0.0, %v5922
    %v5924 = vpop.f32.mrb[0].mxu0
    %v5925 = vpop.f32.mrb[0].mxu0
    %v5926 = vadd.f32 0.0, %v5925
    %v5927 = vpop.f32.mrb[0].mxu0
    %5928 = vmatprep.mubr.bf16.mxu0 0
    %5929 = vmatmul.mubr.bf16.gmra.mrb[0].mxu0 %v5824
    %v5930 = vpop.f32.mrb[0].mxu0
    %v5931 = vadd.f32 0.0, %v5930
    %v5932 = vpop.f32.mrb[0].mxu0
    %v5933 = vpop.f32.mrb[0].mxu0
    %v5934 = vadd.f32 0.0, %v5933
    %v5935 = vpop.f32.mrb[0].mxu0
    %5936 = vmatprep.mubr.bf16.mxu0 0
    %5937 = vmatmul.mubr.bf16.gmra.mrb[0].mxu0 %v5827
    %v5938 = vpop.f32.mrb[0].mxu0
    %v5939 = vadd.f32 0.0, %v5938
    %v5940 = vpop.f32.mrb[0].mxu0
    %v5941 = vpop.f32.mrb[0].mxu0
    %v5942 = vadd.f32 0.0, %v5941
    %v5943 = vpop.f32.mrb[0].mxu0
    %5944 = vmatprep.mubr.bf16.mxu0 0
    %5945 = vmatmul.mubr.bf16.gmra.mrb[0].mxu0 %v5830
    %v5946 = vpop.f32.mrb[0].mxu0
    %v5947 = vadd.f32 0.0, %v5946
    %v5948 = vpop.f32.mrb[0].mxu0
    %v5949 = vpop.f32.mrb[0].mxu0
    %v5950 = vadd.f32 0.0, %v5949
    %v5951 = vpop.f32.mrb[0].mxu0
    %5952 = vmatprep.mubr.bf16.mxu0 0
    %5953 = vmatmul.mubr.bf16.gmra.mrb[0].mxu0 %v5833
    %v5954 = vpop.f32.mrb[0].mxu0
    %v5955 = vadd.f32 0.0, %v5954
    %v5956 = vpop.f32.mrb[0].mxu0
    %v5957 = vpop.f32.mrb[0].mxu0
    %v5958 = vadd.f32 0.0, %v5957
    %v5959 = vpop.f32.mrb[0].mxu0
    %5960 = vmatprep.mubr.bf16.mxu0 0
    %5961 = vmatmul.mubr.bf16.gmra.mrb[0].mxu0 %v5836
    %v5962 = vpop.f32.mrb[0].mxu0
    %v5963 = vadd.f32 0.0, %v5962
    %v5964 = vpop.f32.mrb[0].mxu0
    %v5965 = vpop.f32.mrb[0].mxu0
    %v5966 = vadd.f32 0.0, %v5965
    %v5967 = vpop.f32.mrb[0].mxu0
    %5968 = vmatprep.mubr.bf16.mxu0 0
    %5969 = vmatmul.mubr.bf16.gmra.mrb[0].mxu0 %v5839
    %v5970 = vpop.f32.mrb[0].mxu0
    %v5971 = vadd.f32 0.0, %v5970
    %v5972 = vpop.f32.mrb[0].mxu0
    %v5973 = vpop.f32.mrb[0].mxu0
    %v5974 = vadd.f32 0.0, %v5973
    %v5975 = vpop.f32.mrb[0].mxu0
    %5976 = vmatprep.mubr.bf16.mxu0 0
    %5977 = vmatmul.mubr.bf16.gmra.mrb[0].mxu0 %v5842
    %v5978 = vpop.f32.mrb[0].mxu0
    %v5979 = vadd.f32 0.0, %v5978
    %v5980 = vpop.f32.mrb[0].mxu0
    %v5981 = vpop.f32.mrb[0].mxu0
    %v5982 = vadd.f32 0.0, %v5981
    %v5983 = vpop.f32.mrb[0].mxu0
    %5984 = vmatprep.mubr.bf16.mxu0 0
    %5985 = vmatmul.mubr.bf16.gmra.mrb[0].mxu0 %v5845
    %v5986 = vpop.f32.mrb[0].mxu0
    %v5987 = vadd.f32 0.0, %v5986
    %v5988 = vpop.f32.mrb[0].mxu0
    %v5989 = vpop.f32.mrb[0].mxu0
    %v5990 = vadd.f32 0.0, %v5989
    %v5991 = vpop.f32.mrb[0].mxu0
    %5992 = vmatprep.mubr.bf16.mxu0 0
    %5993 = vmatmul.mubr.bf16.gmra.mrb[0].mxu0 %v5848
    %v5994 = vpop.f32.mrb[0].mxu0
    %v5995 = vadd.f32 0.0, %v5994
    %v5996 = vpop.f32.mrb[0].mxu0
    %v5997 = vpop.f32.mrb[0].mxu0
    %v5998 = vadd.f32 0.0, %v5997
    %v5999 = vpop.f32.mrb[0].mxu0
    %6000 = vmatprep.mubr.bf16.mxu0 0
    %6001 = vmatmul.mubr.bf16.gmra.mrb[0].mxu0 %v5851
    %v6002 = vpop.f32.mrb[0].mxu0
    %v6003 = vadd.f32 0.0, %v6002
    %v6004 = vpop.f32.mrb[0].mxu0
    %v6005 = vpop.f32.mrb[0].mxu0
    %v6006 = vpop.f32.mrb[0].mxu0
    %6007 = vmatprep.mubr.bf16.mxu0 0
    %6008 = vmatmul.mubr.bf16.gmra.mrb[0].mxu0 %v5854
    %v6009 = vpop.f32.mrb[0].mxu0
    %v6010 = vpop.f32.mrb[0].mxu0
    %v6011 = vpop.f32.mrb[0].mxu0
    %v6012 = vpop.f32.mrb[0].mxu0
    %6013 = vdwg.mxu0
    %v6043 = vrot.slane %v5891, 4
    %v6044 = vrot.slane %v5894, 4
    %v6045 = vsel %vm174, %v6043, %v6044
    %v6046 = vrot.slane %v5899, 4
    %v6047 = vsel %vm174, %v6044, %v6046
    %v6048 = vrot.slane %v5902, 4
    %v6049 = vsel %vm174, %v6046, %v6048
    %v6050 = vrot.slane %v5907, 4
    %v6051 = vsel %vm174, %v6048, %v6050
    %v6052 = vrot.slane %v5910, 4
    %v6053 = vsel %vm174, %v6050, %v6052
    %v6054 = vrot.slane %v5915, 4
    %v6055 = vsel %vm174, %v6052, %v6054
    %v6056 = vrot.slane %v5918, 4
    %v6057 = vsel %vm174, %v6054, %v6056
    %v6058 = vrot.slane %v5923, 4
    %v6059 = vsel %vm174, %v6056, %v6058
    %v6060 = vrot.slane %v5926, 4
    %v6061 = vsel %vm174, %v6058, %v6060
    %v6062 = vrot.slane %v5931, 4
    %v6063 = vsel %vm174, %v6060, %v6062
    %v6064 = vrot.slane %v5934, 4
    %v6065 = vsel %vm174, %v6062, %v6064
    %v6066 = vrot.slane %v5939, 4
    %v6067 = vsel %vm174, %v6064, %v6066
    %v6068 = vrot.slane %v5942, 4
    %v6069 = vsel %vm174, %v6066, %v6068
    %v6070 = vrot.slane %v5947, 4
    %v6071 = vsel %vm174, %v6068, %v6070
    %v6072 = vrot.slane %v5950, 4
    %v6073 = vsel %vm174, %v6070, %v6072
    %v6074 = vrot.slane %v5955, 4
    %v6075 = vsel %vm174, %v6072, %v6074
    %v6076 = vrot.slane %v5958, 4
    %v6077 = vsel %vm174, %v6074, %v6076
    %v6078 = vrot.slane %v5963, 4
    %v6079 = vsel %vm174, %v6076, %v6078
    %v6080 = vrot.slane %v5966, 4
    %v6081 = vsel %vm174, %v6078, %v6080
    %v6082 = vrot.slane %v5971, 4
    %v6083 = vsel %vm174, %v6080, %v6082
    %v6084 = vrot.slane %v5974, 4
    %v6085 = vsel %vm174, %v6082, %v6084
    %v6086 = vrot.slane %v5979, 4
    %v6087 = vsel %vm174, %v6084, %v6086
    %v6088 = vrot.slane %v5982, 4
    %v6089 = vsel %vm174, %v6086, %v6088
    %v6090 = vrot.slane %v5987, 4
    %v6091 = vsel %vm174, %v6088, %v6090
    %v6092 = vrot.slane %v5990, 4
    %v6093 = vsel %vm174, %v6090, %v6092
    %v6094 = vrot.slane %v5995, 4
    %v6095 = vsel %vm174, %v6092, %v6094
    %v6096 = vrot.slane %v5998, 4
    %v6097 = vsel %vm174, %v6094, %v6096
    %v6098 = vrot.slane %v6003, 4
    %v6099 = vsel %vm174, %v6096, %v6098
    %v6130 = vsel %vm174, 0.0, %v6043
    %6132 = vset.pattern.permute.xlu0 0
    %6133 = vperm.xlu0 %6132, %v5706
    %v6134 = vpop.permute.xlu0 %6133
    %6137 = vset.pattern.permute.xlu0 0
    %6138 = vperm.xlu0 %6137, %v5707
    %v6139 = vpop.permute.xlu0 %6138
    %6142 = vset.pattern.permute.xlu0 0
    %6143 = vperm.xlu0 %6142, %v5708
    %v6144 = vpop.permute.xlu0 %6143
    %6147 = vset.pattern.permute.xlu0 0
    %6148 = vperm.xlu0 %6147, %v5709
    %v6149 = vpop.permute.xlu0 %6148
    %6152 = vset.pattern.permute.xlu0 0
    %6153 = vperm.xlu0 %6152, %v5710
    %v6154 = vpop.permute.xlu0 %6153
    %6157 = vset.pattern.permute.xlu0 0
    %6158 = vperm.xlu0 %6157, %v5711
    %v6159 = vpop.permute.xlu0 %6158
    %6162 = vset.pattern.permute.xlu0 0
    %6163 = vperm.xlu0 %6162, %v5712
    %v6164 = vpop.permute.xlu0 %6163
    %6167 = vset.pattern.permute.xlu0 0
    %6168 = vperm.xlu0 %6167, %v5713
    %v6169 = vpop.permute.xlu0 %6168
    %6172 = vset.pattern.permute.xlu0 0
    %6173 = vperm.xlu0 %6172, %v5714
    %v6174 = vpop.permute.xlu0 %6173
    %6177 = vset.pattern.permute.xlu0 0
    %6178 = vperm.xlu0 %6177, %v5715
    %v6179 = vpop.permute.xlu0 %6178
    %6182 = vset.pattern.permute.xlu0 0
    %6183 = vperm.xlu0 %6182, %v5716
    %v6184 = vpop.permute.xlu0 %6183
    %6187 = vset.pattern.permute.xlu0 0
    %6188 = vperm.xlu0 %6187, %v5717
    %v6189 = vpop.permute.xlu0 %6188
    %6192 = vset.pattern.permute.xlu0 0
    %6193 = vperm.xlu0 %6192, %v5718
    %v6194 = vpop.permute.xlu0 %6193
    %6197 = vset.pattern.permute.xlu0 0
    %6198 = vperm.xlu0 %6197, %v5719
    %v6199 = vpop.permute.xlu0 %6198
    %6202 = vset.pattern.permute.xlu0 0
    %6203 = vperm.xlu0 %6202, %v5720
    %v6204 = vpop.permute.xlu0 %6203
    %6207 = vset.pattern.permute.xlu0 0
    %6208 = vperm.xlu0 %6207, %v5721
    %v6209 = vpop.permute.xlu0 %6208
    %6212 = vset.pattern.permute.xlu0 0
    %6213 = vperm.xlu0 %6212, %v5722
    %v6214 = vpop.permute.xlu0 %6213
    %6217 = vset.pattern.permute.xlu0 0
    %6218 = vperm.xlu0 %6217, %v5723
    %v6219 = vpop.permute.xlu0 %6218
    %6222 = vset.pattern.permute.xlu0 0
    %6223 = vperm.xlu0 %6222, %v5724
    %v6224 = vpop.permute.xlu0 %6223
    %6227 = vset.pattern.permute.xlu0 0
    %6228 = vperm.xlu0 %6227, %v5725
    %v6229 = vpop.permute.xlu0 %6228
    %6232 = vset.pattern.permute.xlu0 0
    %6233 = vperm.xlu0 %6232, %v5726
    %v6234 = vpop.permute.xlu0 %6233
    %6237 = vset.pattern.permute.xlu0 0
    %6238 = vperm.xlu0 %6237, %v5727
    %v6239 = vpop.permute.xlu0 %6238
    %6242 = vset.pattern.permute.xlu0 0
    %6243 = vperm.xlu0 %6242, %v5728
    %v6244 = vpop.permute.xlu0 %6243
    %6247 = vset.pattern.permute.xlu0 0
    %6248 = vperm.xlu0 %6247, %v5729
    %v6249 = vpop.permute.xlu0 %6248
    %6252 = vset.pattern.permute.xlu0 0
    %6253 = vperm.xlu0 %6252, %v5730
    %v6254 = vpop.permute.xlu0 %6253
    %6257 = vset.pattern.permute.xlu0 0
    %6258 = vperm.xlu0 %6257, %v5731
    %v6259 = vpop.permute.xlu0 %6258
    %6262 = vset.pattern.permute.xlu0 0
    %6263 = vperm.xlu0 %6262, %v5732
    %v6264 = vpop.permute.xlu0 %6263
    %6267 = vset.pattern.permute.xlu0 0
    %6268 = vperm.xlu0 %6267, %v5733
    %v6269 = vpop.permute.xlu0 %6268
    %6272 = vset.pattern.permute.xlu0 0
    %6273 = vperm.xlu0 %6272, %v5734
    %v6274 = vpop.permute.xlu0 %6273
    %6277 = vset.pattern.permute.xlu0 0
    %6278 = vperm.xlu0 %6277, %v5735
    %v6279 = vpop.permute.xlu0 %6278
    %6282 = vset.pattern.permute.xlu0 0
    %6283 = vperm.xlu0 %6282, %v5736
    %v6284 = vpop.permute.xlu0 %6283
    %v6286 = vmul.f32 %v6134, 0.0
    %v6287 = vmul.f32 %v6139, %v6130
    %v6288 = vmul.f32 %v6144, %v6045
    %v6289 = vmul.f32 %v6149, %v6047
    %v6290 = vmul.f32 %v6154, %v6049
    %v6291 = vmul.f32 %v6159, %v6051
    %v6292 = vmul.f32 %v6164, %v6053
    %v6293 = vmul.f32 %v6169, %v6055
    %v6294 = vmul.f32 %v6174, %v6057
    %v6295 = vmul.f32 %v6179, %v6059
    %v6296 = vmul.f32 %v6184, %v6061
    %v6297 = vmul.f32 %v6189, %v6063
    %v6298 = vmul.f32 %v6194, %v6065
    %v6299 = vmul.f32 %v6199, %v6067
    %v6300 = vmul.f32 %v6204, %v6069
    %v6301 = vmul.f32 %v6209, %v6071
    %v6302 = vmul.f32 %v6214, %v6073
    %v6303 = vmul.f32 %v6219, %v6075
    %v6304 = vmul.f32 %v6224, %v6077
    %v6305 = vmul.f32 %v6229, %v6079
    %v6306 = vmul.f32 %v6234, %v6081
    %v6307 = vmul.f32 %v6239, %v6083
    %v6308 = vmul.f32 %v6244, %v6085
    %v6309 = vmul.f32 %v6249, %v6087
    %v6310 = vmul.f32 %v6254, %v6089
    %v6311 = vmul.f32 %v6259, %v6091
    %v6312 = vmul.f32 %v6264, %v6093
    %v6313 = vmul.f32 %v6269, %v6095
    %v6314 = vmul.f32 %v6274, %v6097
    %v6315 = vmul.f32 %v6279, %v6099
    %v6316 = vmul.f32 %v6284, %v6098
    %v6317 = vld [vmem:[%s26] sm:$0xff]
    %v6318 = vld [vmem:[%s26 + $0x8] sm:$0xff]
    %v6319 = vld [vmem:[%s26 + $0x10] sm:$0xff]
    %v6320 = vld [vmem:[%s26 + $0x18] sm:$0xff]
    %v6321 = vld [vmem:[%s26 + $0x20] sm:$0xff]
    %v6322 = vld [vmem:[%s26 + $0x28] sm:$0xff]
    %v6323 = vld [vmem:[%s26 + $0x30] sm:$0xff]
    %v6324 = vld [vmem:[%s26 + $0x38] sm:$0xff]
    %v6325 = vld [vmem:[%s26 + $0x40] sm:$0xff]
    %v6326 = vld [vmem:[%s26 + $0x48] sm:$0xff]
    %v6327 = vld [vmem:[%s26 + $0x50] sm:$0xff]
    %v6328 = vld [vmem:[%s26 + $0x58] sm:$0xff]
    %v6329 = vld [vmem:[%s26 + $0x60] sm:$0xff]
    %v6330 = vld [vmem:[%s26 + $0x68] sm:$0xff]
    %v6331 = vld [vmem:[%s26 + $0x70] sm:$0xff]
    %v6332 = vld [vmem:[%s26 + $0x78] sm:$0xff]
    %v6333 = vld [vmem:[%s26 + $0x80] sm:$0xff]
    %v6334 = vld [vmem:[%s26 + $0x88] sm:$0xff]
    %v6335 = vld [vmem:[%s26 + $0x90] sm:$0xff]
    %v6336 = vld [vmem:[%s26 + $0x98] sm:$0xff]
    %v6337 = vld [vmem:[%s26 + $0xa0] sm:$0xff]
    %v6338 = vld [vmem:[%s26 + $0xa8] sm:$0xff]
    %v6339 = vld [vmem:[%s26 + $0xb0] sm:$0xff]
    %v6340 = vld [vmem:[%s26 + $0xb8] sm:$0xff]
    %v6341 = vld [vmem:[%s26 + $0xc0] sm:$0xff]
    %v6342 = vld [vmem:[%s26 + $0xc8] sm:$0xff]
    %v6343 = vld [vmem:[%s26 + $0xd0] sm:$0xff]
    %v6344 = vld [vmem:[%s26 + $0xd8] sm:$0xff]
    %v6345 = vld [vmem:[%s26 + $0xe0] sm:$0xff]
    %v6346 = vld [vmem:[%s26 + $0xe8] sm:$0xff]
    %v6347 = vld [vmem:[%s26 + $0xf0] sm:$0x3]
    %v6348 = vadd.f32 %v6317, %v6286
    %v6349 = vadd.f32 %v6318, %v6287
    %v6350 = vadd.f32 %v6319, %v6288
    %v6351 = vadd.f32 %v6320, %v6289
    %v6352 = vadd.f32 %v6321, %v6290
    %v6353 = vadd.f32 %v6322, %v6291
    %v6354 = vadd.f32 %v6323, %v6292
    %v6355 = vadd.f32 %v6324, %v6293
    %v6356 = vadd.f32 %v6325, %v6294
    %v6357 = vadd.f32 %v6326, %v6295
    %v6358 = vadd.f32 %v6327, %v6296
    %v6359 = vadd.f32 %v6328, %v6297
    %v6360 = vadd.f32 %v6329, %v6298
    %v6361 = vadd.f32 %v6330, %v6299
    %v6362 = vadd.f32 %v6331, %v6300
    %v6363 = vadd.f32 %v6332, %v6301
    %v6364 = vadd.f32 %v6333, %v6302
    %v6365 = vadd.f32 %v6334, %v6303
    %v6366 = vadd.f32 %v6335, %v6304
    %v6367 = vadd.f32 %v6336, %v6305
    %v6368 = vadd.f32 %v6337, %v6306
    %v6369 = vadd.f32 %v6338, %v6307
    %v6370 = vadd.f32 %v6339, %v6308
    %v6371 = vadd.f32 %v6340, %v6309
    %v6372 = vadd.f32 %v6341, %v6310
    %v6373 = vadd.f32 %v6342, %v6311
    %v6374 = vadd.f32 %v6343, %v6312
    %v6375 = vadd.f32 %v6344, %v6313
    %v6376 = vadd.f32 %v6345, %v6314
    %v6377 = vadd.f32 %v6346, %v6315
    %v6378 = vadd.f32 %v6347, %v6316
    %6379 = vst.msk [vmem:[%s26] sm:$0xff] %vm5743, %v6348
    %6380 = vst.msk [vmem:[%s26 + $0x8] sm:$0xff] %vm5743, %v6349
    %6381 = vst.msk [vmem:[%s26 + $0x10] sm:$0xff] %vm5743, %v6350
    %6382 = vst.msk [vmem:[%s26 + $0x18] sm:$0xff] %vm5743, %v6351
    %6383 = vst.msk [vmem:[%s26 + $0x20] sm:$0xff] %vm5743, %v6352
    %6384 = vst.msk [vmem:[%s26 + $0x28] sm:$0xff] %vm5743, %v6353
    %6385 = vst.msk [vmem:[%s26 + $0x30] sm:$0xff] %vm5743, %v6354
    %6386 = vst.msk [vmem:[%s26 + $0x38] sm:$0xff] %vm5743, %v6355
    %6387 = vst.msk [vmem:[%s26 + $0x40] sm:$0xff] %vm5743, %v6356
    %6388 = vst.msk [vmem:[%s26 + $0x48] sm:$0xff] %vm5743, %v6357
    %6389 = vst.msk [vmem:[%s26 + $0x50] sm:$0xff] %vm5743, %v6358
    %6390 = vst.msk [vmem:[%s26 + $0x58] sm:$0xff] %vm5743, %v6359
    %6391 = vst.msk [vmem:[%s26 + $0x60] sm:$0xff] %vm5743, %v6360
    %6392 = vst.msk [vmem:[%s26 + $0x68] sm:$0xff] %vm5743, %v6361
    %6393 = vst.msk [vmem:[%s26 + $0x70] sm:$0xff] %vm5743, %v6362
    %6394 = vst.msk [vmem:[%s26 + $0x78] sm:$0xff] %vm5743, %v6363
    %6395 = vst.msk [vmem:[%s26 + $0x80] sm:$0xff] %vm5743, %v6364
    %6396 = vst.msk [vmem:[%s26 + $0x88] sm:$0xff] %vm5743, %v6365
    %6397 = vst.msk [vmem:[%s26 + $0x90] sm:$0xff] %vm5743, %v6366
    %6398 = vst.msk [vmem:[%s26 + $0x98] sm:$0xff] %vm5743, %v6367
    %6399 = vst.msk [vmem:[%s26 + $0xa0] sm:$0xff] %vm5743, %v6368
    %6400 = vst.msk [vmem:[%s26 + $0xa8] sm:$0xff] %vm5743, %v6369
    %6401 = vst.msk [vmem:[%s26 + $0xb0] sm:$0xff] %vm5743, %v6370
    %6402 = vst.msk [vmem:[%s26 + $0xb8] sm:$0xff] %vm5743, %v6371
    %6403 = vst.msk [vmem:[%s26 + $0xc0] sm:$0xff] %vm5743, %v6372
    %6404 = vst.msk [vmem:[%s26 + $0xc8] sm:$0xff] %vm5743, %v6373
    %6405 = vst.msk [vmem:[%s26 + $0xd0] sm:$0xff] %vm5743, %v6374
    %6406 = vst.msk [vmem:[%s26 + $0xd8] sm:$0xff] %vm5743, %v6375
    %6407 = vst.msk [vmem:[%s26 + $0xe0] sm:$0xff] %vm5743, %v6376
    %6408 = vst.msk [vmem:[%s26 + $0xe8] sm:$0xff] %vm5743, %v6377
    %6409 = vst.msk [vmem:[%s26 + $0xf0] sm:$0x3] %vm5774, %v6378
    %s6410 = scalar_lea.vmem %s16, 32
    %v6411 = vld [vmem:[%s6410] sm:$0xf]
    %v6412 = vld [vmem:[%s6410 + $0x4] sm:$0xf]
    %v6413 = vld [vmem:[%s6410 + $0x8] sm:$0xf]
    %v6414 = vld [vmem:[%s6410 + $0xc] sm:$0xf]
    %v6415 = vld [vmem:[%s6410 + $0x10] sm:$0xf]
    %v6416 = vld [vmem:[%s6410 + $0x14] sm:$0xf]
    %v6417 = vld [vmem:[%s6410 + $0x18] sm:$0xf]
    %v6418 = vld [vmem:[%s6410 + $0x1c] sm:$0xf]
    %v6427 = vunpack.c.l.b16 %v6411
    %v6428 = vunpack.c.l.b16 %v6412
    %v6429 = vunpack.c.l.b16 %v6413
    %v6430 = vunpack.c.l.b16 %v6414
    %v6431 = vunpack.c.l.b16 %v6415
    %v6432 = vunpack.c.l.b16 %v6416
    %v6433 = vunpack.c.l.b16 %v6417
    %v6434 = vunpack.c.l.b16 %v6418
    %v6435 = vpack.c.b16 %v6428, %v6427
    %v6436 = vpack.c.b16 %v6430, %v6429
    %v6437 = vpack.c.b16 %v6432, %v6431
    %v6438 = vpack.c.b16 %v6434, %v6433
    %6443 = vmatprep.subr.bf16.mxu0 0
    %6444 = vmatpush1.bf16.msra.mxu0 %v6435
    %6445 = vmatprep.subr.bf16.mxu0 0
    %6446 = vmatpush1.bf16.msra.mxu0 %v6436
    %6447 = vmatprep.subr.bf16.mxu0 0
    %6448 = vmatpush1.bf16.msra.mxu0 %v6437
    %6449 = vmatprep.subr.bf16.mxu0 0
    %6450 = vmatpush1.bf16.msra.mxu0 %v6438
    %6451 = vmatprep.subr.bf16.mxu0 0
    %6452 = vmatpush1.bf16.msra.mxu0 0
    %6453 = vmatprep.subr.bf16.mxu0 0
    %6454 = vmatpush1.bf16.msra.mxu0 0
    %6455 = vmatprep.subr.bf16.mxu0 0
    %6456 = vmatpush1.bf16.msra.mxu0 0
    %6457 = vmatprep.subr.bf16.mxu0 0
    %6458 = vmatpush1.bf16.msra.mxu0 0
    %6459 = vmatprep.subr.bf16.mxu0 0
    %6460 = vmatpush1.bf16.msra.mxu0 0
    %6461 = vmatprep.subr.bf16.mxu0 0
    %6462 = vmatpush1.bf16.msra.mxu0 0
    %6463 = vmatprep.subr.bf16.mxu0 0
    %6464 = vmatpush1.bf16.msra.mxu0 0
    %6465 = vmatprep.subr.bf16.mxu0 0
    %6466 = vmatpush1.bf16.msra.mxu0 0
    %6467 = vmatprep.subr.bf16.mxu0 0
    %6468 = vmatpush1.bf16.msra.mxu0 0
    %6469 = vmatprep.subr.bf16.mxu0 0
    %6470 = vmatpush1.bf16.msra.mxu0 0
    %6471 = vmatprep.subr.bf16.mxu0 0
    %6472 = vmatpush1.bf16.msra.mxu0 0
    %6473 = vmatprep.subr.bf16.mxu0 0
    %6474 = vmatpush1.bf16.msra.mxu0 0
    %6475 = vmatprep.mubr.bf16.mxu0 0
    %6476 = vmatmul.mubr.bf16.gmra.mrb[0].mxu0 %v5809
    %v6477 = vpop.f32.mrb[0].mxu0
    %v6478 = vadd.f32 0.0, %v6477
    %v6479 = vpop.f32.mrb[0].mxu0
    %v6480 = vpop.f32.mrb[0].mxu0
    %v6481 = vadd.f32 0.0, %v6480
    %v6482 = vpop.f32.mrb[0].mxu0
    %6483 = vmatprep.mubr.bf16.mxu0 0
    %6484 = vmatmul.mubr.bf16.gmra.mrb[0].mxu0 %v5812
    %v6485 = vpop.f32.mrb[0].mxu0
    %v6486 = vadd.f32 0.0, %v6485
    %v6487 = vpop.f32.mrb[0].mxu0
    %v6488 = vpop.f32.mrb[0].mxu0
    %v6489 = vadd.f32 0.0, %v6488
    %v6490 = vpop.f32.mrb[0].mxu0
    %6491 = vmatprep.mubr.bf16.mxu0 0
    %6492 = vmatmul.mubr.bf16.gmra.mrb[0].mxu0 %v5815
    %v6493 = vpop.f32.mrb[0].mxu0
    %v6494 = vadd.f32 0.0, %v6493
    %v6495 = vpop.f32.mrb[0].mxu0
    %v6496 = vpop.f32.mrb[0].mxu0
    %v6497 = vadd.f32 0.0, %v6496
    %v6498 = vpop.f32.mrb[0].mxu0
    %6499 = vmatprep.mubr.bf16.mxu0 0
    %6500 = vmatmul.mubr.bf16.gmra.mrb[0].mxu0 %v5818
    %v6501 = vpop.f32.mrb[0].mxu0
    %v6502 = vadd.f32 0.0, %v6501
    %v6503 = vpop.f32.mrb[0].mxu0
    %v6504 = vpop.f32.mrb[0].mxu0
    %v6505 = vadd.f32 0.0, %v6504
    %v6506 = vpop.f32.mrb[0].mxu0
    %6507 = vmatprep.mubr.bf16.mxu0 0
    %6508 = vmatmul.mubr.bf16.gmra.mrb[0].mxu0 %v5821
    %v6509 = vpop.f32.mrb[0].mxu0
    %v6510 = vadd.f32 0.0, %v6509
    %v6511 = vpop.f32.mrb[0].mxu0
    %v6512 = vpop.f32.mrb[0].mxu0
    %v6513 = vadd.f32 0.0, %v6512
    %v6514 = vpop.f32.mrb[0].mxu0
    %6515 = vmatprep.mubr.bf16.mxu0 0
    %6516 = vmatmul.mubr.bf16.gmra.mrb[0].mxu0 %v5824
    %v6517 = vpop.f32.mrb[0].mxu0
    %v6518 = vadd.f32 0.0, %v6517
    %v6519 = vpop.f32.mrb[0].mxu0
    %v6520 = vpop.f32.mrb[0].mxu0
    %v6521 = vadd.f32 0.0, %v6520
    %v6522 = vpop.f32.mrb[0].mxu0
    %6523 = vmatprep.mubr.bf16.mxu0 0
    %6524 = vmatmul.mubr.bf16.gmra.mrb[0].mxu0 %v5827
    %v6525 = vpop.f32.mrb[0].mxu0
    %v6526 = vadd.f32 0.0, %v6525
    %v6527 = vpop.f32.mrb[0].mxu0
    %v6528 = vpop.f32.mrb[0].mxu0
    %v6529 = vadd.f32 0.0, %v6528
    %v6530 = vpop.f32.mrb[0].mxu0
    %6531 = vmatprep.mubr.bf16.mxu0 0
    %6532 = vmatmul.mubr.bf16.gmra.mrb[0].mxu0 %v5830
    %v6533 = vpop.f32.mrb[0].mxu0
    %v6534 = vadd.f32 0.0, %v6533
    %v6535 = vpop.f32.mrb[0].mxu0
    %v6536 = vpop.f32.mrb[0].mxu0
    %v6537 = vadd.f32 0.0, %v6536
    %v6538 = vpop.f32.mrb[0].mxu0
    %6539 = vmatprep.mubr.bf16.mxu0 0
    %6540 = vmatmul.mubr.bf16.gmra.mrb[0].mxu0 %v5833
    %v6541 = vpop.f32.mrb[0].mxu0
    %v6542 = vadd.f32 0.0, %v6541
    %v6543 = vpop.f32.mrb[0].mxu0
    %v6544 = vpop.f32.mrb[0].mxu0
    %v6545 = vadd.f32 0.0, %v6544
    %v6546 = vpop.f32.mrb[0].mxu0
    %6547 = vmatprep.mubr.bf16.mxu0 0
    %6548 = vmatmul.mubr.bf16.gmra.mrb[0].mxu0 %v5836
    %v6549 = vpop.f32.mrb[0].mxu0
    %v6550 = vadd.f32 0.0, %v6549
    %v6551 = vpop.f32.mrb[0].mxu0
    %v6552 = vpop.f32.mrb[0].mxu0
    %v6553 = vadd.f32 0.0, %v6552
    %v6554 = vpop.f32.mrb[0].mxu0
    %6555 = vmatprep.mubr.bf16.mxu0 0
    %6556 = vmatmul.mubr.bf16.gmra.mrb[0].mxu0 %v5839
    %v6557 = vpop.f32.mrb[0].mxu0
    %v6558 = vadd.f32 0.0, %v6557
    %v6559 = vpop.f32.mrb[0].mxu0
    %v6560 = vpop.f32.mrb[0].mxu0
    %v6561 = vadd.f32 0.0, %v6560
    %v6562 = vpop.f32.mrb[0].mxu0
    %6563 = vmatprep.mubr.bf16.mxu0 0
    %6564 = vmatmul.mubr.bf16.gmra.mrb[0].mxu0 %v5842
    %v6565 = vpop.f32.mrb[0].mxu0
    %v6566 = vadd.f32 0.0, %v6565
    %v6567 = vpop.f32.mrb[0].mxu0
    %v6568 = vpop.f32.mrb[0].mxu0
    %v6569 = vadd.f32 0.0, %v6568
    %v6570 = vpop.f32.mrb[0].mxu0
    %6571 = vmatprep.mubr.bf16.mxu0 0
    %6572 = vmatmul.mubr.bf16.gmra.mrb[0].mxu0 %v5845
    %v6573 = vpop.f32.mrb[0].mxu0
    %v6574 = vadd.f32 0.0, %v6573
    %v6575 = vpop.f32.mrb[0].mxu0
    %v6576 = vpop.f32.mrb[0].mxu0
    %v6577 = vadd.f32 0.0, %v6576
    %v6578 = vpop.f32.mrb[0].mxu0
    %6579 = vmatprep.mubr.bf16.mxu0 0
    %6580 = vmatmul.mubr.bf16.gmra.mrb[0].mxu0 %v5848
    %v6581 = vpop.f32.mrb[0].mxu0
    %v6582 = vadd.f32 0.0, %v6581
    %v6583 = vpop.f32.mrb[0].mxu0
    %v6584 = vpop.f32.mrb[0].mxu0
    %v6585 = vadd.f32 0.0, %v6584
    %v6586 = vpop.f32.mrb[0].mxu0
    %6587 = vmatprep.mubr.bf16.mxu0 0
    %6588 = vmatmul.mubr.bf16.gmra.mrb[0].mxu0 %v5851
    %v6589 = vpop.f32.mrb[0].mxu0
    %v6590 = vadd.f32 0.0, %v6589
    %v6591 = vpop.f32.mrb[0].mxu0
    %v6592 = vpop.f32.mrb[0].mxu0
    %v6593 = vpop.f32.mrb[0].mxu0
    %6594 = vmatprep.mubr.bf16.mxu0 0
    %6595 = vmatmul.mubr.bf16.gmra.mrb[0].mxu0 %v5854
    %v6596 = vpop.f32.mrb[0].mxu0
    %v6597 = vpop.f32.mrb[0].mxu0
    %v6598 = vpop.f32.mrb[0].mxu0
    %v6599 = vpop.f32.mrb[0].mxu0
    %6600 = vdwg.mxu0
    %v6630 = vrot.slane %v6478, 5
    %v6631 = vrot.slane %v6481, 5
    %v6632 = vsel %vm1274, %v6630, %v6631
    %v6633 = vrot.slane %v6486, 5
    %v6634 = vsel %vm1274, %v6631, %v6633
    %v6635 = vrot.slane %v6489, 5
    %v6636 = vsel %vm1274, %v6633, %v6635
    %v6637 = vrot.slane %v6494, 5
    %v6638 = vsel %vm1274, %v6635, %v6637
    %v6639 = vrot.slane %v6497, 5
    %v6640 = vsel %vm1274, %v6637, %v6639
    %v6641 = vrot.slane %v6502, 5
    %v6642 = vsel %vm1274, %v6639, %v6641
    %v6643 = vrot.slane %v6505, 5
    %v6644 = vsel %vm1274, %v6641, %v6643
    %v6645 = vrot.slane %v6510, 5
    %v6646 = vsel %vm1274, %v6643, %v6645
    %v6647 = vrot.slane %v6513, 5
    %v6648 = vsel %vm1274, %v6645, %v6647
    %v6649 = vrot.slane %v6518, 5
    %v6650 = vsel %vm1274, %v6647, %v6649
    %v6651 = vrot.slane %v6521, 5
    %v6652 = vsel %vm1274, %v6649, %v6651
    %v6653 = vrot.slane %v6526, 5
    %v6654 = vsel %vm1274, %v6651, %v6653
    %v6655 = vrot.slane %v6529, 5
    %v6656 = vsel %vm1274, %v6653, %v6655
    %v6657 = vrot.slane %v6534, 5
    %v6658 = vsel %vm1274, %v6655, %v6657
    %v6659 = vrot.slane %v6537, 5
    %v6660 = vsel %vm1274, %v6657, %v6659
    %v6661 = vrot.slane %v6542, 5
    %v6662 = vsel %vm1274, %v6659, %v6661
    %v6663 = vrot.slane %v6545, 5
    %v6664 = vsel %vm1274, %v6661, %v6663
    %v6665 = vrot.slane %v6550, 5
    %v6666 = vsel %vm1274, %v6663, %v6665
    %v6667 = vrot.slane %v6553, 5
    %v6668 = vsel %vm1274, %v6665, %v6667
    %v6669 = vrot.slane %v6558, 5
    %v6670 = vsel %vm1274, %v6667, %v6669
    %v6671 = vrot.slane %v6561, 5
    %v6672 = vsel %vm1274, %v6669, %v6671
    %v6673 = vrot.slane %v6566, 5
    %v6674 = vsel %vm1274, %v6671, %v6673
    %v6675 = vrot.slane %v6569, 5
    %v6676 = vsel %vm1274, %v6673, %v6675
    %v6677 = vrot.slane %v6574, 5
    %v6678 = vsel %vm1274, %v6675, %v6677
    %v6679 = vrot.slane %v6577, 5
    %v6680 = vsel %vm1274, %v6677, %v6679
    %v6681 = vrot.slane %v6582, 5
    %v6682 = vsel %vm1274, %v6679, %v6681
    %v6683 = vrot.slane %v6585, 5
    %v6684 = vsel %vm1274, %v6681, %v6683
    %v6685 = vrot.slane %v6590, 5
    %v6686 = vsel %vm1274, %v6683, %v6685
    %v6717 = vsel %vm1274, 0.0, %v6630
    %6718 = vset.pattern.permute.xlu0 1
    %6719 = vperm.xlu0 %6718, %v5706
    %v6720 = vpop.permute.xlu0 %6719
    %6722 = vset.pattern.permute.xlu0 1
    %6723 = vperm.xlu0 %6722, %v5707
    %v6724 = vpop.permute.xlu0 %6723
    %6726 = vset.pattern.permute.xlu0 1
    %6727 = vperm.xlu0 %6726, %v5708
    %v6728 = vpop.permute.xlu0 %6727
    %6730 = vset.pattern.permute.xlu0 1
    %6731 = vperm.xlu0 %6730, %v5709
    %v6732 = vpop.permute.xlu0 %6731
    %6734 = vset.pattern.permute.xlu0 1
    %6735 = vperm.xlu0 %6734, %v5710
    %v6736 = vpop.permute.xlu0 %6735
    %6738 = vset.pattern.permute.xlu0 1
    %6739 = vperm.xlu0 %6738, %v5711
    %v6740 = vpop.permute.xlu0 %6739
    %6742 = vset.pattern.permute.xlu0 1
    %6743 = vperm.xlu0 %6742, %v5712
    %v6744 = vpop.permute.xlu0 %6743
    %6746 = vset.pattern.permute.xlu0 1
    %6747 = vperm.xlu0 %6746, %v5713
    %v6748 = vpop.permute.xlu0 %6747
    %6750 = vset.pattern.permute.xlu0 1
    %6751 = vperm.xlu0 %6750, %v5714
    %v6752 = vpop.permute.xlu0 %6751
    %6754 = vset.pattern.permute.xlu0 1
    %6755 = vperm.xlu0 %6754, %v5715
    %v6756 = vpop.permute.xlu0 %6755
    %6758 = vset.pattern.permute.xlu0 1
    %6759 = vperm.xlu0 %6758, %v5716
    %v6760 = vpop.permute.xlu0 %6759
    %6762 = vset.pattern.permute.xlu0 1
    %6763 = vperm.xlu0 %6762, %v5717
    %v6764 = vpop.permute.xlu0 %6763
    %6766 = vset.pattern.permute.xlu0 1
    %6767 = vperm.xlu0 %6766, %v5718
    %v6768 = vpop.permute.xlu0 %6767
    %6770 = vset.pattern.permute.xlu0 1
    %6771 = vperm.xlu0 %6770, %v5719
    %v6772 = vpop.permute.xlu0 %6771
    %6774 = vset.pattern.permute.xlu0 1
    %6775 = vperm.xlu0 %6774, %v5720
    %v6776 = vpop.permute.xlu0 %6775
    %6778 = vset.pattern.permute.xlu0 1
    %6779 = vperm.xlu0 %6778, %v5721
    %v6780 = vpop.permute.xlu0 %6779
    %6782 = vset.pattern.permute.xlu0 1
    %6783 = vperm.xlu0 %6782, %v5722
    %v6784 = vpop.permute.xlu0 %6783
    %6786 = vset.pattern.permute.xlu0 1
    %6787 = vperm.xlu0 %6786, %v5723
    %v6788 = vpop.permute.xlu0 %6787
    %6790 = vset.pattern.permute.xlu0 1
    %6791 = vperm.xlu0 %6790, %v5724
    %v6792 = vpop.permute.xlu0 %6791
    %6794 = vset.pattern.permute.xlu0 1
    %6795 = vperm.xlu0 %6794, %v5725
    %v6796 = vpop.permute.xlu0 %6795
    %6798 = vset.pattern.permute.xlu0 1
    %6799 = vperm.xlu0 %6798, %v5726
    %v6800 = vpop.permute.xlu0 %6799
    %6802 = vset.pattern.permute.xlu0 1
    %6803 = vperm.xlu0 %6802, %v5727
    %v6804 = vpop.permute.xlu0 %6803
    %6806 = vset.pattern.permute.xlu0 1
    %6807 = vperm.xlu0 %6806, %v5728
    %v6808 = vpop.permute.xlu0 %6807
    %6810 = vset.pattern.permute.xlu0 1
    %6811 = vperm.xlu0 %6810, %v5729
    %v6812 = vpop.permute.xlu0 %6811
    %6814 = vset.pattern.permute.xlu0 1
    %6815 = vperm.xlu0 %6814, %v5730
    %v6816 = vpop.permute.xlu0 %6815
    %6818 = vset.pattern.permute.xlu0 1
    %6819 = vperm.xlu0 %6818, %v5731
    %v6820 = vpop.permute.xlu0 %6819
    %6822 = vset.pattern.permute.xlu0 1
    %6823 = vperm.xlu0 %6822, %v5732
    %v6824 = vpop.permute.xlu0 %6823
    %6826 = vset.pattern.permute.xlu0 1
    %6827 = vperm.xlu0 %6826, %v5733
    %v6828 = vpop.permute.xlu0 %6827
    %6830 = vset.pattern.permute.xlu0 1
    %6831 = vperm.xlu0 %6830, %v5734
    %v6832 = vpop.permute.xlu0 %6831
    %6834 = vset.pattern.permute.xlu0 1
    %6835 = vperm.xlu0 %6834, %v5735
    %v6836 = vpop.permute.xlu0 %6835
    %6838 = vset.pattern.permute.xlu0 1
    %6839 = vperm.xlu0 %6838, %v5736
    %v6840 = vpop.permute.xlu0 %6839
    %v6842 = vmul.f32 %v6720, 0.0
    %v6843 = vmul.f32 %v6724, %v6717
    %v6844 = vmul.f32 %v6728, %v6632
    %v6845 = vmul.f32 %v6732, %v6634
    %v6846 = vmul.f32 %v6736, %v6636
    %v6847 = vmul.f32 %v6740, %v6638
    %v6848 = vmul.f32 %v6744, %v6640
    %v6849 = vmul.f32 %v6748, %v6642
    %v6850 = vmul.f32 %v6752, %v6644
    %v6851 = vmul.f32 %v6756, %v6646
    %v6852 = vmul.f32 %v6760, %v6648
    %v6853 = vmul.f32 %v6764, %v6650
    %v6854 = vmul.f32 %v6768, %v6652
    %v6855 = vmul.f32 %v6772, %v6654
    %v6856 = vmul.f32 %v6776, %v6656
    %v6857 = vmul.f32 %v6780, %v6658
    %v6858 = vmul.f32 %v6784, %v6660
    %v6859 = vmul.f32 %v6788, %v6662
    %v6860 = vmul.f32 %v6792, %v6664
    %v6861 = vmul.f32 %v6796, %v6666
    %v6862 = vmul.f32 %v6800, %v6668
    %v6863 = vmul.f32 %v6804, %v6670
    %v6864 = vmul.f32 %v6808, %v6672
    %v6865 = vmul.f32 %v6812, %v6674
    %v6866 = vmul.f32 %v6816, %v6676
    %v6867 = vmul.f32 %v6820, %v6678
    %v6868 = vmul.f32 %v6824, %v6680
    %v6869 = vmul.f32 %v6828, %v6682
    %v6870 = vmul.f32 %v6832, %v6684
    %v6871 = vmul.f32 %v6836, %v6686
    %v6872 = vmul.f32 %v6840, %v6685
    %v6873 = vld [vmem:[%s26] sm:$0xff]
    %v6874 = vld [vmem:[%s26 + $0x8] sm:$0xff]
    %v6875 = vld [vmem:[%s26 + $0x10] sm:$0xff]
    %v6876 = vld [vmem:[%s26 + $0x18] sm:$0xff]
    %v6877 = vld [vmem:[%s26 + $0x20] sm:$0xff]
    %v6878 = vld [vmem:[%s26 + $0x28] sm:$0xff]
    %v6879 = vld [vmem:[%s26 + $0x30] sm:$0xff]
    %v6880 = vld [vmem:[%s26 + $0x38] sm:$0xff]
    %v6881 = vld [vmem:[%s26 + $0x40] sm:$0xff]
    %v6882 = vld [vmem:[%s26 + $0x48] sm:$0xff]
    %v6883 = vld [vmem:[%s26 + $0x50] sm:$0xff]
    %v6884 = vld [vmem:[%s26 + $0x58] sm:$0xff]
    %v6885 = vld [vmem:[%s26 + $0x60] sm:$0xff]
    %v6886 = vld [vmem:[%s26 + $0x68] sm:$0xff]
    %v6887 = vld [vmem:[%s26 + $0x70] sm:$0xff]
    %v6888 = vld [vmem:[%s26 + $0x78] sm:$0xff]
    %v6889 = vld [vmem:[%s26 + $0x80] sm:$0xff]
    %v6890 = vld [vmem:[%s26 + $0x88] sm:$0xff]
    %v6891 = vld [vmem:[%s26 + $0x90] sm:$0xff]
    %v6892 = vld [vmem:[%s26 + $0x98] sm:$0xff]
    %v6893 = vld [vmem:[%s26 + $0xa0] sm:$0xff]
    %v6894 = vld [vmem:[%s26 + $0xa8] sm:$0xff]
    %v6895 = vld [vmem:[%s26 + $0xb0] sm:$0xff]
    %v6896 = vld [vmem:[%s26 + $0xb8] sm:$0xff]
    %v6897 = vld [vmem:[%s26 + $0xc0] sm:$0xff]
    %v6898 = vld [vmem:[%s26 + $0xc8] sm:$0xff]
    %v6899 = vld [vmem:[%s26 + $0xd0] sm:$0xff]
    %v6900 = vld [vmem:[%s26 + $0xd8] sm:$0xff]
    %v6901 = vld [vmem:[%s26 + $0xe0] sm:$0xff]
    %v6902 = vld [vmem:[%s26 + $0xe8] sm:$0xff]
    %v6903 = vld [vmem:[%s26 + $0xf0] sm:$0x3]
    %v6904 = vadd.f32 %v6873, %v6842
    %v6905 = vadd.f32 %v6874, %v6843
    %v6906 = vadd.f32 %v6875, %v6844
    %v6907 = vadd.f32 %v6876, %v6845
    %v6908 = vadd.f32 %v6877, %v6846
    %v6909 = vadd.f32 %v6878, %v6847
    %v6910 = vadd.f32 %v6879, %v6848
    %v6911 = vadd.f32 %v6880, %v6849
    %v6912 = vadd.f32 %v6881, %v6850
    %v6913 = vadd.f32 %v6882, %v6851
    %v6914 = vadd.f32 %v6883, %v6852
    %v6915 = vadd.f32 %v6884, %v6853
    %v6916 = vadd.f32 %v6885, %v6854
    %v6917 = vadd.f32 %v6886, %v6855
    %v6918 = vadd.f32 %v6887, %v6856
    %v6919 = vadd.f32 %v6888, %v6857
    %v6920 = vadd.f32 %v6889, %v6858
    %v6921 = vadd.f32 %v6890, %v6859
    %v6922 = vadd.f32 %v6891, %v6860
    %v6923 = vadd.f32 %v6892, %v6861
    %v6924 = vadd.f32 %v6893, %v6862
    %v6925 = vadd.f32 %v6894, %v6863
    %v6926 = vadd.f32 %v6895, %v6864
    %v6927 = vadd.f32 %v6896, %v6865
    %v6928 = vadd.f32 %v6897, %v6866
    %v6929 = vadd.f32 %v6898, %v6867
    %v6930 = vadd.f32 %v6899, %v6868
    %v6931 = vadd.f32 %v6900, %v6869
    %v6932 = vadd.f32 %v6901, %v6870
    %v6933 = vadd.f32 %v6902, %v6871
    %v6934 = vadd.f32 %v6903, %v6872
    %6935 = vst.msk [vmem:[%s26] sm:$0xff] %vm5743, %v6904
    %6936 = vst.msk [vmem:[%s26 + $0x8] sm:$0xff] %vm5743, %v6905
    %6937 = vst.msk [vmem:[%s26 + $0x10] sm:$0xff] %vm5743, %v6906
    %6938 = vst.msk [vmem:[%s26 + $0x18] sm:$0xff] %vm5743, %v6907
    %6939 = vst.msk [vmem:[%s26 + $0x20] sm:$0xff] %vm5743, %v6908
    %6940 = vst.msk [vmem:[%s26 + $0x28] sm:$0xff] %vm5743, %v6909
    %6941 = vst.msk [vmem:[%s26 + $0x30] sm:$0xff] %vm5743, %v6910
    %6942 = vst.msk [vmem:[%s26 + $0x38] sm:$0xff] %vm5743, %v6911
    %6943 = vst.msk [vmem:[%s26 + $0x40] sm:$0xff] %vm5743, %v6912
    %6944 = vst.msk [vmem:[%s26 + $0x48] sm:$0xff] %vm5743, %v6913
    %6945 = vst.msk [vmem:[%s26 + $0x50] sm:$0xff] %vm5743, %v6914
    %6946 = vst.msk [vmem:[%s26 + $0x58] sm:$0xff] %vm5743, %v6915
    %6947 = vst.msk [vmem:[%s26 + $0x60] sm:$0xff] %vm5743, %v6916
    %6948 = vst.msk [vmem:[%s26 + $0x68] sm:$0xff] %vm5743, %v6917
    %6949 = vst.msk [vmem:[%s26 + $0x70] sm:$0xff] %vm5743, %v6918
    %6950 = vst.msk [vmem:[%s26 + $0x78] sm:$0xff] %vm5743, %v6919
    %6951 = vst.msk [vmem:[%s26 + $0x80] sm:$0xff] %vm5743, %v6920
    %6952 = vst.msk [vmem:[%s26 + $0x88] sm:$0xff] %vm5743, %v6921
    %6953 = vst.msk [vmem:[%s26 + $0x90] sm:$0xff] %vm5743, %v6922
    %6954 = vst.msk [vmem:[%s26 + $0x98] sm:$0xff] %vm5743, %v6923
    %6955 = vst.msk [vmem:[%s26 + $0xa0] sm:$0xff] %vm5743, %v6924
    %6956 = vst.msk [vmem:[%s26 + $0xa8] sm:$0xff] %vm5743, %v6925
    %6957 = vst.msk [vmem:[%s26 + $0xb0] sm:$0xff] %vm5743, %v6926
    %6958 = vst.msk [vmem:[%s26 + $0xb8] sm:$0xff] %vm5743, %v6927
    %6959 = vst.msk [vmem:[%s26 + $0xc0] sm:$0xff] %vm5743, %v6928
    %6960 = vst.msk [vmem:[%s26 + $0xc8] sm:$0xff] %vm5743, %v6929
    %6961 = vst.msk [vmem:[%s26 + $0xd0] sm:$0xff] %vm5743, %v6930
    %6962 = vst.msk [vmem:[%s26 + $0xd8] sm:$0xff] %vm5743, %v6931
    %6963 = vst.msk [vmem:[%s26 + $0xe0] sm:$0xff] %vm5743, %v6932
    %6964 = vst.msk [vmem:[%s26 + $0xe8] sm:$0xff] %vm5743, %v6933
    %6965 = vst.msk [vmem:[%s26 + $0xf0] sm:$0x3] %vm5774, %v6934
    %s6966 = scalar_lea.vmem %s16, 64
    %v6967 = vld [vmem:[%s6966] sm:$0xf]
    %v6968 = vld [vmem:[%s6966 + $0x4] sm:$0xf]
    %v6969 = vld [vmem:[%s6966 + $0x8] sm:$0xf]
    %v6970 = vld [vmem:[%s6966 + $0xc] sm:$0xf]
    %v6971 = vld [vmem:[%s6966 + $0x10] sm:$0xf]
    %v6972 = vld [vmem:[%s6966 + $0x14] sm:$0xf]
    %v6973 = vld [vmem:[%s6966 + $0x18] sm:$0xf]
    %v6974 = vld [vmem:[%s6966 + $0x1c] sm:$0xf]
    %v6983 = vunpack.c.l.b16 %v6967
    %v6984 = vunpack.c.l.b16 %v6968
    %v6985 = vunpack.c.l.b16 %v6969
    %v6986 = vunpack.c.l.b16 %v6970
    %v6987 = vunpack.c.l.b16 %v6971
    %v6988 = vunpack.c.l.b16 %v6972
    %v6989 = vunpack.c.l.b16 %v6973
    %v6990 = vunpack.c.l.b16 %v6974
    %v6991 = vpack.c.b16 %v6984, %v6983
    %v6992 = vpack.c.b16 %v6986, %v6985
    %v6993 = vpack.c.b16 %v6988, %v6987
    %v6994 = vpack.c.b16 %v6990, %v6989
    %6999 = vmatprep.subr.bf16.mxu0 0
    %7000 = vmatpush1.bf16.msra.mxu0 %v6991
    %7001 = vmatprep.subr.bf16.mxu0 0
    %7002 = vmatpush1.bf16.msra.mxu0 %v6992
    %7003 = vmatprep.subr.bf16.mxu0 0
    %7004 = vmatpush1.bf16.msra.mxu0 %v6993
    %7005 = vmatprep.subr.bf16.mxu0 0
    %7006 = vmatpush1.bf16.msra.mxu0 %v6994
    %7007 = vmatprep.subr.bf16.mxu0 0
    %7008 = vmatpush1.bf16.msra.mxu0 0
    %7009 = vmatprep.subr.bf16.mxu0 0
    %7010 = vmatpush1.bf16.msra.mxu0 0
    %7011 = vmatprep.subr.bf16.mxu0 0
    %7012 = vmatpush1.bf16.msra.mxu0 0
    %7013 = vmatprep.subr.bf16.mxu0 0
    %7014 = vmatpush1.bf16.msra.mxu0 0
    %7015 = vmatprep.subr.bf16.mxu0 0
    %7016 = vmatpush1.bf16.msra.mxu0 0
    %7017 = vmatprep.subr.bf16.mxu0 0
    %7018 = vmatpush1.bf16.msra.mxu0 0
    %7019 = vmatprep.subr.bf16.mxu0 0
    %7020 = vmatpush1.bf16.msra.mxu0 0
    %7021 = vmatprep.subr.bf16.mxu0 0
    %7022 = vmatpush1.bf16.msra.mxu0 0
    %7023 = vmatprep.subr.bf16.mxu0 0
    %7024 = vmatpush1.bf16.msra.mxu0 0
    %7025 = vmatprep.subr.bf16.mxu0 0
    %7026 = vmatpush1.bf16.msra.mxu0 0
    %7027 = vmatprep.subr.bf16.mxu0 0
    %7028 = vmatpush1.bf16.msra.mxu0 0
    %7029 = vmatprep.subr.bf16.mxu0 0
    %7030 = vmatpush1.bf16.msra.mxu0 0
    %7031 = vmatprep.mubr.bf16.mxu0 0
    %7032 = vmatmul.mubr.bf16.gmra.mrb[0].mxu0 %v5809
    %v7033 = vpop.f32.mrb[0].mxu0
    %v7034 = vadd.f32 0.0, %v7033
    %v7035 = vpop.f32.mrb[0].mxu0
    %v7036 = vpop.f32.mrb[0].mxu0
    %v7037 = vadd.f32 0.0, %v7036
    %v7038 = vpop.f32.mrb[0].mxu0
    %7039 = vmatprep.mubr.bf16.mxu0 0
    %7040 = vmatmul.mubr.bf16.gmra.mrb[0].mxu0 %v5812
    %v7041 = vpop.f32.mrb[0].mxu0
    %v7042 = vadd.f32 0.0, %v7041
    %v7043 = vpop.f32.mrb[0].mxu0
    %v7044 = vpop.f32.mrb[0].mxu0
    %v7045 = vadd.f32 0.0, %v7044
    %v7046 = vpop.f32.mrb[0].mxu0
    %7047 = vmatprep.mubr.bf16.mxu0 0
    %7048 = vmatmul.mubr.bf16.gmra.mrb[0].mxu0 %v5815
    %v7049 = vpop.f32.mrb[0].mxu0
    %v7050 = vadd.f32 0.0, %v7049
    %v7051 = vpop.f32.mrb[0].mxu0
    %v7052 = vpop.f32.mrb[0].mxu0
    %v7053 = vadd.f32 0.0, %v7052
    %v7054 = vpop.f32.mrb[0].mxu0
    %7055 = vmatprep.mubr.bf16.mxu0 0
    %7056 = vmatmul.mubr.bf16.gmra.mrb[0].mxu0 %v5818
    %v7057 = vpop.f32.mrb[0].mxu0
    %v7058 = vadd.f32 0.0, %v7057
    %v7059 = vpop.f32.mrb[0].mxu0
    %v7060 = vpop.f32.mrb[0].mxu0
    %v7061 = vadd.f32 0.0, %v7060
    %v7062 = vpop.f32.mrb[0].mxu0
    %7063 = vmatprep.mubr.bf16.mxu0 0
    %7064 = vmatmul.mubr.bf16.gmra.mrb[0].mxu0 %v5821
    %v7065 = vpop.f32.mrb[0].mxu0
    %v7066 = vadd.f32 0.0, %v7065
    %v7067 = vpop.f32.mrb[0].mxu0
    %v7068 = vpop.f32.mrb[0].mxu0
    %v7069 = vadd.f32 0.0, %v7068
    %v7070 = vpop.f32.mrb[0].mxu0
    %7071 = vmatprep.mubr.bf16.mxu0 0
    %7072 = vmatmul.mubr.bf16.gmra.mrb[0].mxu0 %v5824
    %v7073 = vpop.f32.mrb[0].mxu0
    %v7074 = vadd.f32 0.0, %v7073
    %v7075 = vpop.f32.mrb[0].mxu0
    %v7076 = vpop.f32.mrb[0].mxu0
    %v7077 = vadd.f32 0.0, %v7076
    %v7078 = vpop.f32.mrb[0].mxu0
    %7079 = vmatprep.mubr.bf16.mxu0 0
    %7080 = vmatmul.mubr.bf16.gmra.mrb[0].mxu0 %v5827
    %v7081 = vpop.f32.mrb[0].mxu0
    %v7082 = vadd.f32 0.0, %v7081
    %v7083 = vpop.f32.mrb[0].mxu0
    %v7084 = vpop.f32.mrb[0].mxu0
    %v7085 = vadd.f32 0.0, %v7084
    %v7086 = vpop.f32.mrb[0].mxu0
    %7087 = vmatprep.mubr.bf16.mxu0 0
    %7088 = vmatmul.mubr.bf16.gmra.mrb[0].mxu0 %v5830
    %v7089 = vpop.f32.mrb[0].mxu0
    %v7090 = vadd.f32 0.0, %v7089
    %v7091 = vpop.f32.mrb[0].mxu0
    %v7092 = vpop.f32.mrb[0].mxu0
    %v7093 = vadd.f32 0.0, %v7092
    %v7094 = vpop.f32.mrb[0].mxu0
    %7095 = vmatprep.mubr.bf16.mxu0 0
    %7096 = vmatmul.mubr.bf16.gmra.mrb[0].mxu0 %v5833
    %v7097 = vpop.f32.mrb[0].mxu0
    %v7098 = vadd.f32 0.0, %v7097
    %v7099 = vpop.f32.mrb[0].mxu0
    %v7100 = vpop.f32.mrb[0].mxu0
    %v7101 = vadd.f32 0.0, %v7100
    %v7102 = vpop.f32.mrb[0].mxu0
    %7103 = vmatprep.mubr.bf16.mxu0 0
    %7104 = vmatmul.mubr.bf16.gmra.mrb[0].mxu0 %v5836
    %v7105 = vpop.f32.mrb[0].mxu0
    %v7106 = vadd.f32 0.0, %v7105
    %v7107 = vpop.f32.mrb[0].mxu0
    %v7108 = vpop.f32.mrb[0].mxu0
    %v7109 = vadd.f32 0.0, %v7108
    %v7110 = vpop.f32.mrb[0].mxu0
    %7111 = vmatprep.mubr.bf16.mxu0 0
    %7112 = vmatmul.mubr.bf16.gmra.mrb[0].mxu0 %v5839
    %v7113 = vpop.f32.mrb[0].mxu0
    %v7114 = vadd.f32 0.0, %v7113
    %v7115 = vpop.f32.mrb[0].mxu0
    %v7116 = vpop.f32.mrb[0].mxu0
    %v7117 = vadd.f32 0.0, %v7116
    %v7118 = vpop.f32.mrb[0].mxu0
    %7119 = vmatprep.mubr.bf16.mxu0 0
    %7120 = vmatmul.mubr.bf16.gmra.mrb[0].mxu0 %v5842
    %v7121 = vpop.f32.mrb[0].mxu0
    %v7122 = vadd.f32 0.0, %v7121
    %v7123 = vpop.f32.mrb[0].mxu0
    %v7124 = vpop.f32.mrb[0].mxu0
    %v7125 = vadd.f32 0.0, %v7124
    %v7126 = vpop.f32.mrb[0].mxu0
    %7127 = vmatprep.mubr.bf16.mxu0 0
    %7128 = vmatmul.mubr.bf16.gmra.mrb[0].mxu0 %v5845
    %v7129 = vpop.f32.mrb[0].mxu0
    %v7130 = vadd.f32 0.0, %v7129
    %v7131 = vpop.f32.mrb[0].mxu0
    %v7132 = vpop.f32.mrb[0].mxu0
    %v7133 = vadd.f32 0.0, %v7132
    %v7134 = vpop.f32.mrb[0].mxu0
    %7135 = vmatprep.mubr.bf16.mxu0 0
    %7136 = vmatmul.mubr.bf16.gmra.mrb[0].mxu0 %v5848
    %v7137 = vpop.f32.mrb[0].mxu0
    %v7138 = vadd.f32 0.0, %v7137
    %v7139 = vpop.f32.mrb[0].mxu0
    %v7140 = vpop.f32.mrb[0].mxu0
    %v7141 = vadd.f32 0.0, %v7140
    %v7142 = vpop.f32.mrb[0].mxu0
    %7143 = vmatprep.mubr.bf16.mxu0 0
    %7144 = vmatmul.mubr.bf16.gmra.mrb[0].mxu0 %v5851
    %v7145 = vpop.f32.mrb[0].mxu0
    %v7146 = vadd.f32 0.0, %v7145
    %v7147 = vpop.f32.mrb[0].mxu0
    %v7148 = vpop.f32.mrb[0].mxu0
    %v7149 = vpop.f32.mrb[0].mxu0
    %7150 = vmatprep.mubr.bf16.mxu0 0
    %7151 = vmatmul.mubr.bf16.gmra.mrb[0].mxu0 %v5854
    %v7152 = vpop.f32.mrb[0].mxu0
    %v7153 = vpop.f32.mrb[0].mxu0
    %v7154 = vpop.f32.mrb[0].mxu0
    %v7155 = vpop.f32.mrb[0].mxu0
    %7156 = vdwg.mxu0
    %v7186 = vrot.slane %v7034, 6
    %v7187 = vrot.slane %v7037, 6
    %v7188 = vsel %vm635, %v7186, %v7187
    %v7189 = vrot.slane %v7042, 6
    %v7190 = vsel %vm635, %v7187, %v7189
    %v7191 = vrot.slane %v7045, 6
    %v7192 = vsel %vm635, %v7189, %v7191
    %v7193 = vrot.slane %v7050, 6
    %v7194 = vsel %vm635, %v7191, %v7193
    %v7195 = vrot.slane %v7053, 6
    %v7196 = vsel %vm635, %v7193, %v7195
    %v7197 = vrot.slane %v7058, 6
    %v7198 = vsel %vm635, %v7195, %v7197
    %v7199 = vrot.slane %v7061, 6
    %v7200 = vsel %vm635, %v7197, %v7199
    %v7201 = vrot.slane %v7066, 6
    %v7202 = vsel %vm635, %v7199, %v7201
    %v7203 = vrot.slane %v7069, 6
    %v7204 = vsel %vm635, %v7201, %v7203
    %v7205 = vrot.slane %v7074, 6
    %v7206 = vsel %vm635, %v7203, %v7205
    %v7207 = vrot.slane %v7077, 6
    %v7208 = vsel %vm635, %v7205, %v7207
    %v7209 = vrot.slane %v7082, 6
    %v7210 = vsel %vm635, %v7207, %v7209
    %v7211 = vrot.slane %v7085, 6
    %v7212 = vsel %vm635, %v7209, %v7211
    %v7213 = vrot.slane %v7090, 6
    %v7214 = vsel %vm635, %v7211, %v7213
    %v7215 = vrot.slane %v7093, 6
    %v7216 = vsel %vm635, %v7213, %v7215
    %v7217 = vrot.slane %v7098, 6
    %v7218 = vsel %vm635, %v7215, %v7217
    %v7219 = vrot.slane %v7101, 6
    %v7220 = vsel %vm635, %v7217, %v7219
    %v7221 = vrot.slane %v7106, 6
    %v7222 = vsel %vm635, %v7219, %v7221
    %v7223 = vrot.slane %v7109, 6
    %v7224 = vsel %vm635, %v7221, %v7223
    %v7225 = vrot.slane %v7114, 6
    %v7226 = vsel %vm635, %v7223, %v7225
    %v7227 = vrot.slane %v7117, 6
    %v7228 = vsel %vm635, %v7225, %v7227
    %v7229 = vrot.slane %v7122, 6
    %v7230 = vsel %vm635, %v7227, %v7229
    %v7231 = vrot.slane %v7125, 6
    %v7232 = vsel %vm635, %v7229, %v7231
    %v7233 = vrot.slane %v7130, 6
    %v7234 = vsel %vm635, %v7231, %v7233
    %v7235 = vrot.slane %v7133, 6
    %v7236 = vsel %vm635, %v7233, %v7235
    %v7237 = vrot.slane %v7138, 6
    %v7238 = vsel %vm635, %v7235, %v7237
    %v7239 = vrot.slane %v7141, 6
    %v7240 = vsel %vm635, %v7237, %v7239
    %v7241 = vrot.slane %v7146, 6
    %v7242 = vsel %vm635, %v7239, %v7241
    %v7273 = vsel %vm635, 0.0, %v7186
    %7274 = vset.pattern.permute.xlu0 2
    %7275 = vperm.xlu0 %7274, %v5706
    %v7276 = vpop.permute.xlu0 %7275
    %7278 = vset.pattern.permute.xlu0 2
    %7279 = vperm.xlu0 %7278, %v5707
    %v7280 = vpop.permute.xlu0 %7279
    %7282 = vset.pattern.permute.xlu0 2
    %7283 = vperm.xlu0 %7282, %v5708
    %v7284 = vpop.permute.xlu0 %7283
    %7286 = vset.pattern.permute.xlu0 2
    %7287 = vperm.xlu0 %7286, %v5709
    %v7288 = vpop.permute.xlu0 %7287
    %7290 = vset.pattern.permute.xlu0 2
    %7291 = vperm.xlu0 %7290, %v5710
    %v7292 = vpop.permute.xlu0 %7291
    %7294 = vset.pattern.permute.xlu0 2
    %7295 = vperm.xlu0 %7294, %v5711
    %v7296 = vpop.permute.xlu0 %7295
    %7298 = vset.pattern.permute.xlu0 2
    %7299 = vperm.xlu0 %7298, %v5712
    %v7300 = vpop.permute.xlu0 %7299
    %7302 = vset.pattern.permute.xlu0 2
    %7303 = vperm.xlu0 %7302, %v5713
    %v7304 = vpop.permute.xlu0 %7303
    %7306 = vset.pattern.permute.xlu0 2
    %7307 = vperm.xlu0 %7306, %v5714
    %v7308 = vpop.permute.xlu0 %7307
    %7310 = vset.pattern.permute.xlu0 2
    %7311 = vperm.xlu0 %7310, %v5715
    %v7312 = vpop.permute.xlu0 %7311
    %7314 = vset.pattern.permute.xlu0 2
    %7315 = vperm.xlu0 %7314, %v5716
    %v7316 = vpop.permute.xlu0 %7315
    %7318 = vset.pattern.permute.xlu0 2
    %7319 = vperm.xlu0 %7318, %v5717
    %v7320 = vpop.permute.xlu0 %7319
    %7322 = vset.pattern.permute.xlu0 2
    %7323 = vperm.xlu0 %7322, %v5718
    %v7324 = vpop.permute.xlu0 %7323
    %7326 = vset.pattern.permute.xlu0 2
    %7327 = vperm.xlu0 %7326, %v5719
    %v7328 = vpop.permute.xlu0 %7327
    %7330 = vset.pattern.permute.xlu0 2
    %7331 = vperm.xlu0 %7330, %v5720
    %v7332 = vpop.permute.xlu0 %7331
    %7334 = vset.pattern.permute.xlu0 2
    %7335 = vperm.xlu0 %7334, %v5721
    %v7336 = vpop.permute.xlu0 %7335
    %7338 = vset.pattern.permute.xlu0 2
    %7339 = vperm.xlu0 %7338, %v5722
    %v7340 = vpop.permute.xlu0 %7339
    %7342 = vset.pattern.permute.xlu0 2
    %7343 = vperm.xlu0 %7342, %v5723
    %v7344 = vpop.permute.xlu0 %7343
    %7346 = vset.pattern.permute.xlu0 2
    %7347 = vperm.xlu0 %7346, %v5724
    %v7348 = vpop.permute.xlu0 %7347
    %7350 = vset.pattern.permute.xlu0 2
    %7351 = vperm.xlu0 %7350, %v5725
    %v7352 = vpop.permute.xlu0 %7351
    %7354 = vset.pattern.permute.xlu0 2
    %7355 = vperm.xlu0 %7354, %v5726
    %v7356 = vpop.permute.xlu0 %7355
    %7358 = vset.pattern.permute.xlu0 2
    %7359 = vperm.xlu0 %7358, %v5727
    %v7360 = vpop.permute.xlu0 %7359
    %7362 = vset.pattern.permute.xlu0 2
    %7363 = vperm.xlu0 %7362, %v5728
    %v7364 = vpop.permute.xlu0 %7363
    %7366 = vset.pattern.permute.xlu0 2
    %7367 = vperm.xlu0 %7366, %v5729
    %v7368 = vpop.permute.xlu0 %7367
    %7370 = vset.pattern.permute.xlu0 2
    %7371 = vperm.xlu0 %7370, %v5730
    %v7372 = vpop.permute.xlu0 %7371
    %7374 = vset.pattern.permute.xlu0 2
    %7375 = vperm.xlu0 %7374, %v5731
    %v7376 = vpop.permute.xlu0 %7375
    %7378 = vset.pattern.permute.xlu0 2
    %7379 = vperm.xlu0 %7378, %v5732
    %v7380 = vpop.permute.xlu0 %7379
    %7382 = vset.pattern.permute.xlu0 2
    %7383 = vperm.xlu0 %7382, %v5733
    %v7384 = vpop.permute.xlu0 %7383
    %7386 = vset.pattern.permute.xlu0 2
    %7387 = vperm.xlu0 %7386, %v5734
    %v7388 = vpop.permute.xlu0 %7387
    %7390 = vset.pattern.permute.xlu0 2
    %7391 = vperm.xlu0 %7390, %v5735
    %v7392 = vpop.permute.xlu0 %7391
    %7394 = vset.pattern.permute.xlu0 2
    %7395 = vperm.xlu0 %7394, %v5736
    %v7396 = vpop.permute.xlu0 %7395
    %v7398 = vmul.f32 %v7276, 0.0
    %v7399 = vmul.f32 %v7280, %v7273
    %v7400 = vmul.f32 %v7284, %v7188
    %v7401 = vmul.f32 %v7288, %v7190
    %v7402 = vmul.f32 %v7292, %v7192
    %v7403 = vmul.f32 %v7296, %v7194
    %v7404 = vmul.f32 %v7300, %v7196
    %v7405 = vmul.f32 %v7304, %v7198
    %v7406 = vmul.f32 %v7308, %v7200
    %v7407 = vmul.f32 %v7312, %v7202
    %v7408 = vmul.f32 %v7316, %v7204
    %v7409 = vmul.f32 %v7320, %v7206
    %v7410 = vmul.f32 %v7324, %v7208
    %v7411 = vmul.f32 %v7328, %v7210
    %v7412 = vmul.f32 %v7332, %v7212
    %v7413 = vmul.f32 %v7336, %v7214
    %v7414 = vmul.f32 %v7340, %v7216
    %v7415 = vmul.f32 %v7344, %v7218
    %v7416 = vmul.f32 %v7348, %v7220
    %v7417 = vmul.f32 %v7352, %v7222
    %v7418 = vmul.f32 %v7356, %v7224
    %v7419 = vmul.f32 %v7360, %v7226
    %v7420 = vmul.f32 %v7364, %v7228
    %v7421 = vmul.f32 %v7368, %v7230
    %v7422 = vmul.f32 %v7372, %v7232
    %v7423 = vmul.f32 %v7376, %v7234
    %v7424 = vmul.f32 %v7380, %v7236
    %v7425 = vmul.f32 %v7384, %v7238
    %v7426 = vmul.f32 %v7388, %v7240
    %v7427 = vmul.f32 %v7392, %v7242
    %v7428 = vmul.f32 %v7396, %v7241
    %v7429 = vld [vmem:[%s26] sm:$0xff]
    %v7430 = vld [vmem:[%s26 + $0x8] sm:$0xff]
    %v7431 = vld [vmem:[%s26 + $0x10] sm:$0xff]
    %v7432 = vld [vmem:[%s26 + $0x18] sm:$0xff]
    %v7433 = vld [vmem:[%s26 + $0x20] sm:$0xff]
    %v7434 = vld [vmem:[%s26 + $0x28] sm:$0xff]
    %v7435 = vld [vmem:[%s26 + $0x30] sm:$0xff]
    %v7436 = vld [vmem:[%s26 + $0x38] sm:$0xff]
    %v7437 = vld [vmem:[%s26 + $0x40] sm:$0xff]
    %v7438 = vld [vmem:[%s26 + $0x48] sm:$0xff]
    %v7439 = vld [vmem:[%s26 + $0x50] sm:$0xff]
    %v7440 = vld [vmem:[%s26 + $0x58] sm:$0xff]
    %v7441 = vld [vmem:[%s26 + $0x60] sm:$0xff]
    %v7442 = vld [vmem:[%s26 + $0x68] sm:$0xff]
    %v7443 = vld [vmem:[%s26 + $0x70] sm:$0xff]
    %v7444 = vld [vmem:[%s26 + $0x78] sm:$0xff]
    %v7445 = vld [vmem:[%s26 + $0x80] sm:$0xff]
    %v7446 = vld [vmem:[%s26 + $0x88] sm:$0xff]
    %v7447 = vld [vmem:[%s26 + $0x90] sm:$0xff]
    %v7448 = vld [vmem:[%s26 + $0x98] sm:$0xff]
    %v7449 = vld [vmem:[%s26 + $0xa0] sm:$0xff]
    %v7450 = vld [vmem:[%s26 + $0xa8] sm:$0xff]
    %v7451 = vld [vmem:[%s26 + $0xb0] sm:$0xff]
    %v7452 = vld [vmem:[%s26 + $0xb8] sm:$0xff]
    %v7453 = vld [vmem:[%s26 + $0xc0] sm:$0xff]
    %v7454 = vld [vmem:[%s26 + $0xc8] sm:$0xff]
    %v7455 = vld [vmem:[%s26 + $0xd0] sm:$0xff]
    %v7456 = vld [vmem:[%s26 + $0xd8] sm:$0xff]
    %v7457 = vld [vmem:[%s26 + $0xe0] sm:$0xff]
    %v7458 = vld [vmem:[%s26 + $0xe8] sm:$0xff]
    %v7459 = vld [vmem:[%s26 + $0xf0] sm:$0x3]
    %v7460 = vadd.f32 %v7429, %v7398
    %v7461 = vadd.f32 %v7430, %v7399
    %v7462 = vadd.f32 %v7431, %v7400
    %v7463 = vadd.f32 %v7432, %v7401
    %v7464 = vadd.f32 %v7433, %v7402
    %v7465 = vadd.f32 %v7434, %v7403
    %v7466 = vadd.f32 %v7435, %v7404
    %v7467 = vadd.f32 %v7436, %v7405
    %v7468 = vadd.f32 %v7437, %v7406
    %v7469 = vadd.f32 %v7438, %v7407
    %v7470 = vadd.f32 %v7439, %v7408
    %v7471 = vadd.f32 %v7440, %v7409
    %v7472 = vadd.f32 %v7441, %v7410
    %v7473 = vadd.f32 %v7442, %v7411
    %v7474 = vadd.f32 %v7443, %v7412
    %v7475 = vadd.f32 %v7444, %v7413
    %v7476 = vadd.f32 %v7445, %v7414
    %v7477 = vadd.f32 %v7446, %v7415
    %v7478 = vadd.f32 %v7447, %v7416
    %v7479 = vadd.f32 %v7448, %v7417
    %v7480 = vadd.f32 %v7449, %v7418
    %v7481 = vadd.f32 %v7450, %v7419
    %v7482 = vadd.f32 %v7451, %v7420
    %v7483 = vadd.f32 %v7452, %v7421
    %v7484 = vadd.f32 %v7453, %v7422
    %v7485 = vadd.f32 %v7454, %v7423
    %v7486 = vadd.f32 %v7455, %v7424
    %v7487 = vadd.f32 %v7456, %v7425
    %v7488 = vadd.f32 %v7457, %v7426
    %v7489 = vadd.f32 %v7458, %v7427
    %v7490 = vadd.f32 %v7459, %v7428
    %7491 = vst.msk [vmem:[%s26] sm:$0xff] %vm5743, %v7460
    %7492 = vst.msk [vmem:[%s26 + $0x8] sm:$0xff] %vm5743, %v7461
    %7493 = vst.msk [vmem:[%s26 + $0x10] sm:$0xff] %vm5743, %v7462
    %7494 = vst.msk [vmem:[%s26 + $0x18] sm:$0xff] %vm5743, %v7463
    %7495 = vst.msk [vmem:[%s26 + $0x20] sm:$0xff] %vm5743, %v7464
    %7496 = vst.msk [vmem:[%s26 + $0x28] sm:$0xff] %vm5743, %v7465
    %7497 = vst.msk [vmem:[%s26 + $0x30] sm:$0xff] %vm5743, %v7466
    %7498 = vst.msk [vmem:[%s26 + $0x38] sm:$0xff] %vm5743, %v7467
    %7499 = vst.msk [vmem:[%s26 + $0x40] sm:$0xff] %vm5743, %v7468
    %7500 = vst.msk [vmem:[%s26 + $0x48] sm:$0xff] %vm5743, %v7469
    %7501 = vst.msk [vmem:[%s26 + $0x50] sm:$0xff] %vm5743, %v7470
    %7502 = vst.msk [vmem:[%s26 + $0x58] sm:$0xff] %vm5743, %v7471
    %7503 = vst.msk [vmem:[%s26 + $0x60] sm:$0xff] %vm5743, %v7472
    %7504 = vst.msk [vmem:[%s26 + $0x68] sm:$0xff] %vm5743, %v7473
    %7505 = vst.msk [vmem:[%s26 + $0x70] sm:$0xff] %vm5743, %v7474
    %7506 = vst.msk [vmem:[%s26 + $0x78] sm:$0xff] %vm5743, %v7475
    %7507 = vst.msk [vmem:[%s26 + $0x80] sm:$0xff] %vm5743, %v7476
    %7508 = vst.msk [vmem:[%s26 + $0x88] sm:$0xff] %vm5743, %v7477
    %7509 = vst.msk [vmem:[%s26 + $0x90] sm:$0xff] %vm5743, %v7478
    %7510 = vst.msk [vmem:[%s26 + $0x98] sm:$0xff] %vm5743, %v7479
    %7511 = vst.msk [vmem:[%s26 + $0xa0] sm:$0xff] %vm5743, %v7480
    %7512 = vst.msk [vmem:[%s26 + $0xa8] sm:$0xff] %vm5743, %v7481
    %7513 = vst.msk [vmem:[%s26 + $0xb0] sm:$0xff] %vm5743, %v7482
    %7514 = vst.msk [vmem:[%s26 + $0xb8] sm:$0xff] %vm5743, %v7483
    %7515 = vst.msk [vmem:[%s26 + $0xc0] sm:$0xff] %vm5743, %v7484
    %7516 = vst.msk [vmem:[%s26 + $0xc8] sm:$0xff] %vm5743, %v7485
    %7517 = vst.msk [vmem:[%s26 + $0xd0] sm:$0xff] %vm5743, %v7486
    %7518 = vst.msk [vmem:[%s26 + $0xd8] sm:$0xff] %vm5743, %v7487
    %7519 = vst.msk [vmem:[%s26 + $0xe0] sm:$0xff] %vm5743, %v7488
    %7520 = vst.msk [vmem:[%s26 + $0xe8] sm:$0xff] %vm5743, %v7489
    %7521 = vst.msk [vmem:[%s26 + $0xf0] sm:$0x3] %vm5774, %v7490
    %s7522 = scalar_lea.vmem %s16, 96
    %v7523 = vld [vmem:[%s7522] sm:$0xf]
    %v7524 = vld [vmem:[%s7522 + $0x4] sm:$0xf]
    %v7525 = vld [vmem:[%s7522 + $0x8] sm:$0xf]
    %v7526 = vld [vmem:[%s7522 + $0xc] sm:$0xf]
    %v7527 = vld [vmem:[%s7522 + $0x10] sm:$0xf]
    %v7528 = vld [vmem:[%s7522 + $0x14] sm:$0xf]
    %v7529 = vld [vmem:[%s7522 + $0x18] sm:$0xf]
    %v7530 = vld [vmem:[%s7522 + $0x1c] sm:$0xf]
    %v7539 = vunpack.c.l.b16 %v7523
    %v7540 = vunpack.c.l.b16 %v7524
    %v7541 = vunpack.c.l.b16 %v7525
    %v7542 = vunpack.c.l.b16 %v7526
    %v7543 = vunpack.c.l.b16 %v7527
    %v7544 = vunpack.c.l.b16 %v7528
    %v7545 = vunpack.c.l.b16 %v7529
    %v7546 = vunpack.c.l.b16 %v7530
    %v7547 = vpack.c.b16 %v7540, %v7539
    %v7548 = vpack.c.b16 %v7542, %v7541
    %v7549 = vpack.c.b16 %v7544, %v7543
    %v7550 = vpack.c.b16 %v7546, %v7545
    %7555 = vmatprep.subr.bf16.mxu0 0
    %7556 = vmatpush1.bf16.msra.mxu0 %v7547
    %7557 = vmatprep.subr.bf16.mxu0 0
    %7558 = vmatpush1.bf16.msra.mxu0 %v7548
    %7559 = vmatprep.subr.bf16.mxu0 0
    %7560 = vmatpush1.bf16.msra.mxu0 %v7549
    %7561 = vmatprep.subr.bf16.mxu0 0
    %7562 = vmatpush1.bf16.msra.mxu0 %v7550
    %7563 = vmatprep.subr.bf16.mxu0 0
    %7564 = vmatpush1.bf16.msra.mxu0 0
    %7565 = vmatprep.subr.bf16.mxu0 0
    %7566 = vmatpush1.bf16.msra.mxu0 0
    %7567 = vmatprep.subr.bf16.mxu0 0
    %7568 = vmatpush1.bf16.msra.mxu0 0
    %7569 = vmatprep.subr.bf16.mxu0 0
    %7570 = vmatpush1.bf16.msra.mxu0 0
    %7571 = vmatprep.subr.bf16.mxu0 0
    %7572 = vmatpush1.bf16.msra.mxu0 0
    %7573 = vmatprep.subr.bf16.mxu0 0
    %7574 = vmatpush1.bf16.msra.mxu0 0
    %7575 = vmatprep.subr.bf16.mxu0 0
    %7576 = vmatpush1.bf16.msra.mxu0 0
    %7577 = vmatprep.subr.bf16.mxu0 0
    %7578 = vmatpush1.bf16.msra.mxu0 0
    %7579 = vmatprep.subr.bf16.mxu0 0
    %7580 = vmatpush1.bf16.msra.mxu0 0
    %7581 = vmatprep.subr.bf16.mxu0 0
    %7582 = vmatpush1.bf16.msra.mxu0 0
    %7583 = vmatprep.subr.bf16.mxu0 0
    %7584 = vmatpush1.bf16.msra.mxu0 0
    %7585 = vmatprep.subr.bf16.mxu0 0
    %7586 = vmatpush1.bf16.msra.mxu0 0
    %7587 = vmatprep.mubr.bf16.mxu0 0
    %7588 = vmatmul.mubr.bf16.gmra.mrb[0].mxu0 %v5809
    %v7589 = vpop.f32.mrb[0].mxu0
    %v7590 = vadd.f32 0.0, %v7589
    %v7591 = vpop.f32.mrb[0].mxu0
    %v7592 = vpop.f32.mrb[0].mxu0
    %v7593 = vadd.f32 0.0, %v7592
    %v7594 = vpop.f32.mrb[0].mxu0
    %7595 = vmatprep.mubr.bf16.mxu0 0
    %7596 = vmatmul.mubr.bf16.gmra.mrb[0].mxu0 %v5812
    %v7597 = vpop.f32.mrb[0].mxu0
    %v7598 = vadd.f32 0.0, %v7597
    %v7599 = vpop.f32.mrb[0].mxu0
    %v7600 = vpop.f32.mrb[0].mxu0
    %v7601 = vadd.f32 0.0, %v7600
    %v7602 = vpop.f32.mrb[0].mxu0
    %7603 = vmatprep.mubr.bf16.mxu0 0
    %7604 = vmatmul.mubr.bf16.gmra.mrb[0].mxu0 %v5815
    %v7605 = vpop.f32.mrb[0].mxu0
    %v7606 = vadd.f32 0.0, %v7605
    %v7607 = vpop.f32.mrb[0].mxu0
    %v7608 = vpop.f32.mrb[0].mxu0
    %v7609 = vadd.f32 0.0, %v7608
    %v7610 = vpop.f32.mrb[0].mxu0
    %7611 = vmatprep.mubr.bf16.mxu0 0
    %7612 = vmatmul.mubr.bf16.gmra.mrb[0].mxu0 %v5818
    %v7613 = vpop.f32.mrb[0].mxu0
    %v7614 = vadd.f32 0.0, %v7613
    %v7615 = vpop.f32.mrb[0].mxu0
    %v7616 = vpop.f32.mrb[0].mxu0
    %v7617 = vadd.f32 0.0, %v7616
    %v7618 = vpop.f32.mrb[0].mxu0
    %7619 = vmatprep.mubr.bf16.mxu0 0
    %7620 = vmatmul.mubr.bf16.gmra.mrb[0].mxu0 %v5821
    %v7621 = vpop.f32.mrb[0].mxu0
    %v7622 = vadd.f32 0.0, %v7621
    %v7623 = vpop.f32.mrb[0].mxu0
    %v7624 = vpop.f32.mrb[0].mxu0
    %v7625 = vadd.f32 0.0, %v7624
    %v7626 = vpop.f32.mrb[0].mxu0
    %7627 = vmatprep.mubr.bf16.mxu0 0
    %7628 = vmatmul.mubr.bf16.gmra.mrb[0].mxu0 %v5824
    %v7629 = vpop.f32.mrb[0].mxu0
    %v7630 = vadd.f32 0.0, %v7629
    %v7631 = vpop.f32.mrb[0].mxu0
    %v7632 = vpop.f32.mrb[0].mxu0
    %v7633 = vadd.f32 0.0, %v7632
    %v7634 = vpop.f32.mrb[0].mxu0
    %7635 = vmatprep.mubr.bf16.mxu0 0
    %7636 = vmatmul.mubr.bf16.gmra.mrb[0].mxu0 %v5827
    %v7637 = vpop.f32.mrb[0].mxu0
    %v7638 = vadd.f32 0.0, %v7637
    %v7639 = vpop.f32.mrb[0].mxu0
    %v7640 = vpop.f32.mrb[0].mxu0
    %v7641 = vadd.f32 0.0, %v7640
    %v7642 = vpop.f32.mrb[0].mxu0
    %7643 = vmatprep.mubr.bf16.mxu0 0
    %7644 = vmatmul.mubr.bf16.gmra.mrb[0].mxu0 %v5830
    %v7645 = vpop.f32.mrb[0].mxu0
    %v7646 = vadd.f32 0.0, %v7645
    %v7647 = vpop.f32.mrb[0].mxu0
    %v7648 = vpop.f32.mrb[0].mxu0
    %v7649 = vadd.f32 0.0, %v7648
    %v7650 = vpop.f32.mrb[0].mxu0
    %7651 = vmatprep.mubr.bf16.mxu0 0
    %7652 = vmatmul.mubr.bf16.gmra.mrb[0].mxu0 %v5833
    %v7653 = vpop.f32.mrb[0].mxu0
    %v7654 = vadd.f32 0.0, %v7653
    %v7655 = vpop.f32.mrb[0].mxu0
    %v7656 = vpop.f32.mrb[0].mxu0
    %v7657 = vadd.f32 0.0, %v7656
    %v7658 = vpop.f32.mrb[0].mxu0
    %7659 = vmatprep.mubr.bf16.mxu0 0
    %7660 = vmatmul.mubr.bf16.gmra.mrb[0].mxu0 %v5836
    %v7661 = vpop.f32.mrb[0].mxu0
    %v7662 = vadd.f32 0.0, %v7661
    %v7663 = vpop.f32.mrb[0].mxu0
    %v7664 = vpop.f32.mrb[0].mxu0
    %v7665 = vadd.f32 0.0, %v7664
    %v7666 = vpop.f32.mrb[0].mxu0
    %7667 = vmatprep.mubr.bf16.mxu0 0
    %7668 = vmatmul.mubr.bf16.gmra.mrb[0].mxu0 %v5839
    %v7669 = vpop.f32.mrb[0].mxu0
    %v7670 = vadd.f32 0.0, %v7669
    %v7671 = vpop.f32.mrb[0].mxu0
    %v7672 = vpop.f32.mrb[0].mxu0
    %v7673 = vadd.f32 0.0, %v7672
    %v7674 = vpop.f32.mrb[0].mxu0
    %7675 = vmatprep.mubr.bf16.mxu0 0
    %7676 = vmatmul.mubr.bf16.gmra.mrb[0].mxu0 %v5842
    %v7677 = vpop.f32.mrb[0].mxu0
    %v7678 = vadd.f32 0.0, %v7677
    %v7679 = vpop.f32.mrb[0].mxu0
    %v7680 = vpop.f32.mrb[0].mxu0
    %v7681 = vadd.f32 0.0, %v7680
    %v7682 = vpop.f32.mrb[0].mxu0
    %7683 = vmatprep.mubr.bf16.mxu0 0
    %7684 = vmatmul.mubr.bf16.gmra.mrb[0].mxu0 %v5845
    %v7685 = vpop.f32.mrb[0].mxu0
    %v7686 = vadd.f32 0.0, %v7685
    %v7687 = vpop.f32.mrb[0].mxu0
    %v7688 = vpop.f32.mrb[0].mxu0
    %v7689 = vadd.f32 0.0, %v7688
    %v7690 = vpop.f32.mrb[0].mxu0
    %7691 = vmatprep.mubr.bf16.mxu0 0
    %7692 = vmatmul.mubr.bf16.gmra.mrb[0].mxu0 %v5848
    %v7693 = vpop.f32.mrb[0].mxu0
    %v7694 = vadd.f32 0.0, %v7693
    %v7695 = vpop.f32.mrb[0].mxu0
    %v7696 = vpop.f32.mrb[0].mxu0
    %v7697 = vadd.f32 0.0, %v7696
    %v7698 = vpop.f32.mrb[0].mxu0
    %7699 = vmatprep.mubr.bf16.mxu0 0
    %7700 = vmatmul.mubr.bf16.gmra.mrb[0].mxu0 %v5851
    %v7701 = vpop.f32.mrb[0].mxu0
    %v7702 = vadd.f32 0.0, %v7701
    %v7703 = vpop.f32.mrb[0].mxu0
    %v7704 = vpop.f32.mrb[0].mxu0
    %v7705 = vadd.f32 0.0, %v7704
    %v7706 = vpop.f32.mrb[0].mxu0
    %7707 = vmatprep.mubr.bf16.mxu0 0
    %7708 = vmatmul.mubr.bf16.gmra.mrb[0].mxu0 %v5854
    %v7709 = vpop.f32.mrb[0].mxu0
    %v7710 = vadd.f32 0.0, %v7709
    %v7711 = vpop.f32.mrb[0].mxu0
    %v7712 = vpop.f32.mrb[0].mxu0
    %v7713 = vpop.f32.mrb[0].mxu0
    %7714 = vdwg.mxu0
    %v7746 = vrot.slane %v7590, 7
    %v7747 = vrot.slane %v7593, 7
    %v7748 = vsel %vm1683, %v7746, %v7747
    %v7749 = vrot.slane %v7598, 7
    %v7750 = vsel %vm1683, %v7747, %v7749
    %v7751 = vrot.slane %v7601, 7
    %v7752 = vsel %vm1683, %v7749, %v7751
    %v7753 = vrot.slane %v7606, 7
    %v7754 = vsel %vm1683, %v7751, %v7753
    %v7755 = vrot.slane %v7609, 7
    %v7756 = vsel %vm1683, %v7753, %v7755
    %v7757 = vrot.slane %v7614, 7
    %v7758 = vsel %vm1683, %v7755, %v7757
    %v7759 = vrot.slane %v7617, 7
    %v7760 = vsel %vm1683, %v7757, %v7759
    %v7761 = vrot.slane %v7622, 7
    %v7762 = vsel %vm1683, %v7759, %v7761
    %v7763 = vrot.slane %v7625, 7
    %v7764 = vsel %vm1683, %v7761, %v7763
    %v7765 = vrot.slane %v7630, 7
    %v7766 = vsel %vm1683, %v7763, %v7765
    %v7767 = vrot.slane %v7633, 7
    %v7768 = vsel %vm1683, %v7765, %v7767
    %v7769 = vrot.slane %v7638, 7
    %v7770 = vsel %vm1683, %v7767, %v7769
    %v7771 = vrot.slane %v7641, 7
    %v7772 = vsel %vm1683, %v7769, %v7771
    %v7773 = vrot.slane %v7646, 7
    %v7774 = vsel %vm1683, %v7771, %v7773
    %v7775 = vrot.slane %v7649, 7
    %v7776 = vsel %vm1683, %v7773, %v7775
    %v7777 = vrot.slane %v7654, 7
    %v7778 = vsel %vm1683, %v7775, %v7777
    %v7779 = vrot.slane %v7657, 7
    %v7780 = vsel %vm1683, %v7777, %v7779
    %v7781 = vrot.slane %v7662, 7
    %v7782 = vsel %vm1683, %v7779, %v7781
    %v7783 = vrot.slane %v7665, 7
    %v7784 = vsel %vm1683, %v7781, %v7783
    %v7785 = vrot.slane %v7670, 7
    %v7786 = vsel %vm1683, %v7783, %v7785
    %v7787 = vrot.slane %v7673, 7
    %v7788 = vsel %vm1683, %v7785, %v7787
    %v7789 = vrot.slane %v7678, 7
    %v7790 = vsel %vm1683, %v7787, %v7789
    %v7791 = vrot.slane %v7681, 7
    %v7792 = vsel %vm1683, %v7789, %v7791
    %v7793 = vrot.slane %v7686, 7
    %v7794 = vsel %vm1683, %v7791, %v7793
    %v7795 = vrot.slane %v7689, 7
    %v7796 = vsel %vm1683, %v7793, %v7795
    %v7797 = vrot.slane %v7694, 7
    %v7798 = vsel %vm1683, %v7795, %v7797
    %v7799 = vrot.slane %v7697, 7
    %v7800 = vsel %vm1683, %v7797, %v7799
    %v7801 = vrot.slane %v7702, 7
    %v7802 = vsel %vm1683, %v7799, %v7801
    %v7803 = vrot.slane %v7705, 7
    %v7804 = vsel %vm1683, %v7801, %v7803
    %v7805 = vrot.slane %v7710, 7
    %v7806 = vsel %vm1683, %v7803, %v7805
    %v7838 = vsel %vm1683, 0.0, %v7746
    %7839 = vset.pattern.permute.xlu0 3
    %7840 = vperm.xlu0 %7839, %v5706
    %v7841 = vpop.permute.xlu0 %7840
    %7843 = vset.pattern.permute.xlu0 3
    %7844 = vperm.xlu0 %7843, %v5707
    %v7845 = vpop.permute.xlu0 %7844
    %7847 = vset.pattern.permute.xlu0 3
    %7848 = vperm.xlu0 %7847, %v5708
    %v7849 = vpop.permute.xlu0 %7848
    %7851 = vset.pattern.permute.xlu0 3
    %7852 = vperm.xlu0 %7851, %v5709
    %v7853 = vpop.permute.xlu0 %7852
    %7855 = vset.pattern.permute.xlu0 3
    %7856 = vperm.xlu0 %7855, %v5710
    %v7857 = vpop.permute.xlu0 %7856
    %7859 = vset.pattern.permute.xlu0 3
    %7860 = vperm.xlu0 %7859, %v5711
    %v7861 = vpop.permute.xlu0 %7860
    %7863 = vset.pattern.permute.xlu0 3
    %7864 = vperm.xlu0 %7863, %v5712
    %v7865 = vpop.permute.xlu0 %7864
    %7867 = vset.pattern.permute.xlu0 3
    %7868 = vperm.xlu0 %7867, %v5713
    %v7869 = vpop.permute.xlu0 %7868
    %7871 = vset.pattern.permute.xlu0 3
    %7872 = vperm.xlu0 %7871, %v5714
    %v7873 = vpop.permute.xlu0 %7872
    %7875 = vset.pattern.permute.xlu0 3
    %7876 = vperm.xlu0 %7875, %v5715
    %v7877 = vpop.permute.xlu0 %7876
    %7879 = vset.pattern.permute.xlu0 3
    %7880 = vperm.xlu0 %7879, %v5716
    %v7881 = vpop.permute.xlu0 %7880
    %7883 = vset.pattern.permute.xlu0 3
    %7884 = vperm.xlu0 %7883, %v5717
    %v7885 = vpop.permute.xlu0 %7884
    %7887 = vset.pattern.permute.xlu0 3
    %7888 = vperm.xlu0 %7887, %v5718
    %v7889 = vpop.permute.xlu0 %7888
    %7891 = vset.pattern.permute.xlu0 3
    %7892 = vperm.xlu0 %7891, %v5719
    %v7893 = vpop.permute.xlu0 %7892
    %7895 = vset.pattern.permute.xlu0 3
    %7896 = vperm.xlu0 %7895, %v5720
    %v7897 = vpop.permute.xlu0 %7896
    %7899 = vset.pattern.permute.xlu0 3
    %7900 = vperm.xlu0 %7899, %v5721
    %v7901 = vpop.permute.xlu0 %7900
    %7903 = vset.pattern.permute.xlu0 3
    %7904 = vperm.xlu0 %7903, %v5722
    %v7905 = vpop.permute.xlu0 %7904
    %7907 = vset.pattern.permute.xlu0 3
    %7908 = vperm.xlu0 %7907, %v5723
    %v7909 = vpop.permute.xlu0 %7908
    %7911 = vset.pattern.permute.xlu0 3
    %7912 = vperm.xlu0 %7911, %v5724
    %v7913 = vpop.permute.xlu0 %7912
    %7915 = vset.pattern.permute.xlu0 3
    %7916 = vperm.xlu0 %7915, %v5725
    %v7917 = vpop.permute.xlu0 %7916
    %7919 = vset.pattern.permute.xlu0 3
    %7920 = vperm.xlu0 %7919, %v5726
    %v7921 = vpop.permute.xlu0 %7920
    %7923 = vset.pattern.permute.xlu0 3
    %7924 = vperm.xlu0 %7923, %v5727
    %v7925 = vpop.permute.xlu0 %7924
    %7927 = vset.pattern.permute.xlu0 3
    %7928 = vperm.xlu0 %7927, %v5728
    %v7929 = vpop.permute.xlu0 %7928
    %7931 = vset.pattern.permute.xlu0 3
    %7932 = vperm.xlu0 %7931, %v5729
    %v7933 = vpop.permute.xlu0 %7932
    %7935 = vset.pattern.permute.xlu0 3
    %7936 = vperm.xlu0 %7935, %v5730
    %v7937 = vpop.permute.xlu0 %7936
    %7939 = vset.pattern.permute.xlu0 3
    %7940 = vperm.xlu0 %7939, %v5731
    %v7941 = vpop.permute.xlu0 %7940
    %7943 = vset.pattern.permute.xlu0 3
    %7944 = vperm.xlu0 %7943, %v5732
    %v7945 = vpop.permute.xlu0 %7944
    %7947 = vset.pattern.permute.xlu0 3
    %7948 = vperm.xlu0 %7947, %v5733
    %v7949 = vpop.permute.xlu0 %7948
    %7951 = vset.pattern.permute.xlu0 3
    %7952 = vperm.xlu0 %7951, %v5734
    %v7953 = vpop.permute.xlu0 %7952
    %7955 = vset.pattern.permute.xlu0 3
    %7956 = vperm.xlu0 %7955, %v5735
    %v7957 = vpop.permute.xlu0 %7956
    %7959 = vset.pattern.permute.xlu0 3
    %7960 = vperm.xlu0 %7959, %v5736
    %v7961 = vpop.permute.xlu0 %7960
    %v7963 = vmul.f32 %v7841, %v7838
    %v7964 = vmul.f32 %v7845, %v7748
    %v7965 = vmul.f32 %v7849, %v7750
    %v7966 = vmul.f32 %v7853, %v7752
    %v7967 = vmul.f32 %v7857, %v7754
    %v7968 = vmul.f32 %v7861, %v7756
    %v7969 = vmul.f32 %v7865, %v7758
    %v7970 = vmul.f32 %v7869, %v7760
    %v7971 = vmul.f32 %v7873, %v7762
    %v7972 = vmul.f32 %v7877, %v7764
    %v7973 = vmul.f32 %v7881, %v7766
    %v7974 = vmul.f32 %v7885, %v7768
    %v7975 = vmul.f32 %v7889, %v7770
    %v7976 = vmul.f32 %v7893, %v7772
    %v7977 = vmul.f32 %v7897, %v7774
    %v7978 = vmul.f32 %v7901, %v7776
    %v7979 = vmul.f32 %v7905, %v7778
    %v7980 = vmul.f32 %v7909, %v7780
    %v7981 = vmul.f32 %v7913, %v7782
    %v7982 = vmul.f32 %v7917, %v7784
    %v7983 = vmul.f32 %v7921, %v7786
    %v7984 = vmul.f32 %v7925, %v7788
    %v7985 = vmul.f32 %v7929, %v7790
    %v7986 = vmul.f32 %v7933, %v7792
    %v7987 = vmul.f32 %v7937, %v7794
    %v7988 = vmul.f32 %v7941, %v7796
    %v7989 = vmul.f32 %v7945, %v7798
    %v7990 = vmul.f32 %v7949, %v7800
    %v7991 = vmul.f32 %v7953, %v7802
    %v7992 = vmul.f32 %v7957, %v7804
    %v7993 = vmul.f32 %v7961, %v7806
    %v7994 = vld [vmem:[%s26] sm:$0xff]
    %v7995 = vld [vmem:[%s26 + $0x8] sm:$0xff]
    %v7996 = vld [vmem:[%s26 + $0x10] sm:$0xff]
    %v7997 = vld [vmem:[%s26 + $0x18] sm:$0xff]
    %v7998 = vld [vmem:[%s26 + $0x20] sm:$0xff]
    %v7999 = vld [vmem:[%s26 + $0x28] sm:$0xff]
    %v8000 = vld [vmem:[%s26 + $0x30] sm:$0xff]
    %v8001 = vld [vmem:[%s26 + $0x38] sm:$0xff]
    %v8002 = vld [vmem:[%s26 + $0x40] sm:$0xff]
    %v8003 = vld [vmem:[%s26 + $0x48] sm:$0xff]
    %v8004 = vld [vmem:[%s26 + $0x50] sm:$0xff]
    %v8005 = vld [vmem:[%s26 + $0x58] sm:$0xff]
    %v8006 = vld [vmem:[%s26 + $0x60] sm:$0xff]
    %v8007 = vld [vmem:[%s26 + $0x68] sm:$0xff]
    %v8008 = vld [vmem:[%s26 + $0x70] sm:$0xff]
    %v8009 = vld [vmem:[%s26 + $0x78] sm:$0xff]
    %v8010 = vld [vmem:[%s26 + $0x80] sm:$0xff]
    %v8011 = vld [vmem:[%s26 + $0x88] sm:$0xff]
    %v8012 = vld [vmem:[%s26 + $0x90] sm:$0xff]
    %v8013 = vld [vmem:[%s26 + $0x98] sm:$0xff]
    %v8014 = vld [vmem:[%s26 + $0xa0] sm:$0xff]
    %v8015 = vld [vmem:[%s26 + $0xa8] sm:$0xff]
    %v8016 = vld [vmem:[%s26 + $0xb0] sm:$0xff]
    %v8017 = vld [vmem:[%s26 + $0xb8] sm:$0xff]
    %v8018 = vld [vmem:[%s26 + $0xc0] sm:$0xff]
    %v8019 = vld [vmem:[%s26 + $0xc8] sm:$0xff]
    %v8020 = vld [vmem:[%s26 + $0xd0] sm:$0xff]
    %v8021 = vld [vmem:[%s26 + $0xd8] sm:$0xff]
    %v8022 = vld [vmem:[%s26 + $0xe0] sm:$0xff]
    %v8023 = vld [vmem:[%s26 + $0xe8] sm:$0xff]
    %v8024 = vld [vmem:[%s26 + $0xf0] sm:$0x3]
    %v8025 = vadd.f32 %v7994, %v7963
    %v8026 = vadd.f32 %v7995, %v7964
    %v8027 = vadd.f32 %v7996, %v7965
    %v8028 = vadd.f32 %v7997, %v7966
    %v8029 = vadd.f32 %v7998, %v7967
    %v8030 = vadd.f32 %v7999, %v7968
    %v8031 = vadd.f32 %v8000, %v7969
    %v8032 = vadd.f32 %v8001, %v7970
    %v8033 = vadd.f32 %v8002, %v7971
    %v8034 = vadd.f32 %v8003, %v7972
    %v8035 = vadd.f32 %v8004, %v7973
    %v8036 = vadd.f32 %v8005, %v7974
    %v8037 = vadd.f32 %v8006, %v7975
    %v8038 = vadd.f32 %v8007, %v7976
    %v8039 = vadd.f32 %v8008, %v7977
    %v8040 = vadd.f32 %v8009, %v7978
    %v8041 = vadd.f32 %v8010, %v7979
    %v8042 = vadd.f32 %v8011, %v7980
    %v8043 = vadd.f32 %v8012, %v7981
    %v8044 = vadd.f32 %v8013, %v7982
    %v8045 = vadd.f32 %v8014, %v7983
    %v8046 = vadd.f32 %v8015, %v7984
    %v8047 = vadd.f32 %v8016, %v7985
    %v8048 = vadd.f32 %v8017, %v7986
    %v8049 = vadd.f32 %v8018, %v7987
    %v8050 = vadd.f32 %v8019, %v7988
    %v8051 = vadd.f32 %v8020, %v7989
    %v8052 = vadd.f32 %v8021, %v7990
    %v8053 = vadd.f32 %v8022, %v7991
    %v8054 = vadd.f32 %v8023, %v7992
    %v8055 = vadd.f32 %v8024, %v7993
    %8056 = vst.msk [vmem:[%s26] sm:$0xff] %vm5743, %v8025
    %8057 = vst.msk [vmem:[%s26 + $0x8] sm:$0xff] %vm5743, %v8026
    %8058 = vst.msk [vmem:[%s26 + $0x10] sm:$0xff] %vm5743, %v8027
    %8059 = vst.msk [vmem:[%s26 + $0x18] sm:$0xff] %vm5743, %v8028
    %8060 = vst.msk [vmem:[%s26 + $0x20] sm:$0xff] %vm5743, %v8029
    %8061 = vst.msk [vmem:[%s26 + $0x28] sm:$0xff] %vm5743, %v8030
    %8062 = vst.msk [vmem:[%s26 + $0x30] sm:$0xff] %vm5743, %v8031
    %8063 = vst.msk [vmem:[%s26 + $0x38] sm:$0xff] %vm5743, %v8032
    %8064 = vst.msk [vmem:[%s26 + $0x40] sm:$0xff] %vm5743, %v8033
    %8065 = vst.msk [vmem:[%s26 + $0x48] sm:$0xff] %vm5743, %v8034
    %8066 = vst.msk [vmem:[%s26 + $0x50] sm:$0xff] %vm5743, %v8035
    %8067 = vst.msk [vmem:[%s26 + $0x58] sm:$0xff] %vm5743, %v8036
    %8068 = vst.msk [vmem:[%s26 + $0x60] sm:$0xff] %vm5743, %v8037
    %8069 = vst.msk [vmem:[%s26 + $0x68] sm:$0xff] %vm5743, %v8038
    %8070 = vst.msk [vmem:[%s26 + $0x70] sm:$0xff] %vm5743, %v8039
    %8071 = vst.msk [vmem:[%s26 + $0x78] sm:$0xff] %vm5743, %v8040
    %8072 = vst.msk [vmem:[%s26 + $0x80] sm:$0xff] %vm5743, %v8041
    %8073 = vst.msk [vmem:[%s26 + $0x88] sm:$0xff] %vm5743, %v8042
    %8074 = vst.msk [vmem:[%s26 + $0x90] sm:$0xff] %vm5743, %v8043
    %8075 = vst.msk [vmem:[%s26 + $0x98] sm:$0xff] %vm5743, %v8044
    %8076 = vst.msk [vmem:[%s26 + $0xa0] sm:$0xff] %vm5743, %v8045
    %8077 = vst.msk [vmem:[%s26 + $0xa8] sm:$0xff] %vm5743, %v8046
    %8078 = vst.msk [vmem:[%s26 + $0xb0] sm:$0xff] %vm5743, %v8047
    %8079 = vst.msk [vmem:[%s26 + $0xb8] sm:$0xff] %vm5743, %v8048
    %8080 = vst.msk [vmem:[%s26 + $0xc0] sm:$0xff] %vm5743, %v8049
    %8081 = vst.msk [vmem:[%s26 + $0xc8] sm:$0xff] %vm5743, %v8050
    %8082 = vst.msk [vmem:[%s26 + $0xd0] sm:$0xff] %vm5743, %v8051
    %8083 = vst.msk [vmem:[%s26 + $0xd8] sm:$0xff] %vm5743, %v8052
    %8084 = vst.msk [vmem:[%s26 + $0xe0] sm:$0xff] %vm5743, %v8053
    %8085 = vst.msk [vmem:[%s26 + $0xe8] sm:$0xff] %vm5743, %v8054
    %8086 = vst.msk [vmem:[%s26 + $0xf0] sm:$0x3] %vm5774, %v8055
    %s8087 = scalar_lea.vmem %s16, 128
    %v8088 = vld [vmem:[%s8087] sm:$0xf]
    %v8089 = vld [vmem:[%s8087 + $0x4] sm:$0xf]
    %v8090 = vld [vmem:[%s8087 + $0x8] sm:$0xf]
    %v8091 = vld [vmem:[%s8087 + $0xc] sm:$0xf]
    %v8092 = vld [vmem:[%s8087 + $0x10] sm:$0xf]
    %v8093 = vld [vmem:[%s8087 + $0x14] sm:$0xf]
    %v8094 = vld [vmem:[%s8087 + $0x18] sm:$0xf]
    %v8095 = vld [vmem:[%s8087 + $0x1c] sm:$0xf]
    %v8104 = vunpack.c.l.b16 %v8088
    %v8105 = vunpack.c.l.b16 %v8089
    %v8106 = vunpack.c.l.b16 %v8090
    %v8107 = vunpack.c.l.b16 %v8091
    %v8108 = vunpack.c.l.b16 %v8092
    %v8109 = vunpack.c.l.b16 %v8093
    %v8110 = vunpack.c.l.b16 %v8094
    %v8111 = vunpack.c.l.b16 %v8095
    %v8112 = vpack.c.b16 %v8105, %v8104
    %v8113 = vpack.c.b16 %v8107, %v8106
    %v8114 = vpack.c.b16 %v8109, %v8108
    %v8115 = vpack.c.b16 %v8111, %v8110
    %8120 = vmatprep.subr.bf16.mxu0 0
    %8121 = vmatpush1.bf16.msra.mxu0 %v8112
    %8122 = vmatprep.subr.bf16.mxu0 0
    %8123 = vmatpush1.bf16.msra.mxu0 %v8113
    %8124 = vmatprep.subr.bf16.mxu0 0
    %8125 = vmatpush1.bf16.msra.mxu0 %v8114
    %8126 = vmatprep.subr.bf16.mxu0 0
    %8127 = vmatpush1.bf16.msra.mxu0 %v8115
    %8128 = vmatprep.subr.bf16.mxu0 0
    %8129 = vmatpush1.bf16.msra.mxu0 0
    %8130 = vmatprep.subr.bf16.mxu0 0
    %8131 = vmatpush1.bf16.msra.mxu0 0
    %8132 = vmatprep.subr.bf16.mxu0 0
    %8133 = vmatpush1.bf16.msra.mxu0 0
    %8134 = vmatprep.subr.bf16.mxu0 0
    %8135 = vmatpush1.bf16.msra.mxu0 0
    %8136 = vmatprep.subr.bf16.mxu0 0
    %8137 = vmatpush1.bf16.msra.mxu0 0
    %8138 = vmatprep.subr.bf16.mxu0 0
    %8139 = vmatpush1.bf16.msra.mxu0 0
    %8140 = vmatprep.subr.bf16.mxu0 0
    %8141 = vmatpush1.bf16.msra.mxu0 0
    %8142 = vmatprep.subr.bf16.mxu0 0
    %8143 = vmatpush1.bf16.msra.mxu0 0
    %8144 = vmatprep.subr.bf16.mxu0 0
    %8145 = vmatpush1.bf16.msra.mxu0 0
    %8146 = vmatprep.subr.bf16.mxu0 0
    %8147 = vmatpush1.bf16.msra.mxu0 0
    %8148 = vmatprep.subr.bf16.mxu0 0
    %8149 = vmatpush1.bf16.msra.mxu0 0
    %8150 = vmatprep.subr.bf16.mxu0 0
    %8151 = vmatpush1.bf16.msra.mxu0 0
    %8152 = vmatprep.mubr.bf16.mxu0 0
    %8153 = vmatmul.mubr.bf16.gmra.mrb[0].mxu0 %v5809
    %v8154 = vpop.f32.mrb[0].mxu0
    %v8155 = vadd.f32 0.0, %v8154
    %v8156 = vpop.f32.mrb[0].mxu0
    %v8157 = vpop.f32.mrb[0].mxu0
    %v8158 = vadd.f32 0.0, %v8157
    %v8159 = vpop.f32.mrb[0].mxu0
    %8160 = vmatprep.mubr.bf16.mxu0 0
    %8161 = vmatmul.mubr.bf16.gmra.mrb[0].mxu0 %v5812
    %v8162 = vpop.f32.mrb[0].mxu0
    %v8163 = vadd.f32 0.0, %v8162
    %v8164 = vpop.f32.mrb[0].mxu0
    %v8165 = vpop.f32.mrb[0].mxu0
    %v8166 = vadd.f32 0.0, %v8165
    %v8167 = vpop.f32.mrb[0].mxu0
    %8168 = vmatprep.mubr.bf16.mxu0 0
    %8169 = vmatmul.mubr.bf16.gmra.mrb[0].mxu0 %v5815
    %v8170 = vpop.f32.mrb[0].mxu0
    %v8171 = vadd.f32 0.0, %v8170
    %v8172 = vpop.f32.mrb[0].mxu0
    %v8173 = vpop.f32.mrb[0].mxu0
    %v8174 = vadd.f32 0.0, %v8173
    %v8175 = vpop.f32.mrb[0].mxu0
    %8176 = vmatprep.mubr.bf16.mxu0 0
    %8177 = vmatmul.mubr.bf16.gmra.mrb[0].mxu0 %v5818
    %v8178 = vpop.f32.mrb[0].mxu0
    %v8179 = vadd.f32 0.0, %v8178
    %v8180 = vpop.f32.mrb[0].mxu0
    %v8181 = vpop.f32.mrb[0].mxu0
    %v8182 = vadd.f32 0.0, %v8181
    %v8183 = vpop.f32.mrb[0].mxu0
    %8184 = vmatprep.mubr.bf16.mxu0 0
    %8185 = vmatmul.mubr.bf16.gmra.mrb[0].mxu0 %v5821
    %v8186 = vpop.f32.mrb[0].mxu0
    %v8187 = vadd.f32 0.0, %v8186
    %v8188 = vpop.f32.mrb[0].mxu0
    %v8189 = vpop.f32.mrb[0].mxu0
    %v8190 = vadd.f32 0.0, %v8189
    %v8191 = vpop.f32.mrb[0].mxu0
    %8192 = vmatprep.mubr.bf16.mxu0 0
    %8193 = vmatmul.mubr.bf16.gmra.mrb[0].mxu0 %v5824
    %v8194 = vpop.f32.mrb[0].mxu0
    %v8195 = vadd.f32 0.0, %v8194
    %v8196 = vpop.f32.mrb[0].mxu0
    %v8197 = vpop.f32.mrb[0].mxu0
    %v8198 = vadd.f32 0.0, %v8197
    %v8199 = vpop.f32.mrb[0].mxu0
    %8200 = vmatprep.mubr.bf16.mxu0 0
    %8201 = vmatmul.mubr.bf16.gmra.mrb[0].mxu0 %v5827
    %v8202 = vpop.f32.mrb[0].mxu0
    %v8203 = vadd.f32 0.0, %v8202
    %v8204 = vpop.f32.mrb[0].mxu0
    %v8205 = vpop.f32.mrb[0].mxu0
    %v8206 = vadd.f32 0.0, %v8205
    %v8207 = vpop.f32.mrb[0].mxu0
    %8208 = vmatprep.mubr.bf16.mxu0 0
    %8209 = vmatmul.mubr.bf16.gmra.mrb[0].mxu0 %v5830
    %v8210 = vpop.f32.mrb[0].mxu0
    %v8211 = vadd.f32 0.0, %v8210
    %v8212 = vpop.f32.mrb[0].mxu0
    %v8213 = vpop.f32.mrb[0].mxu0
    %v8214 = vadd.f32 0.0, %v8213
    %v8215 = vpop.f32.mrb[0].mxu0
    %8216 = vmatprep.mubr.bf16.mxu0 0
    %8217 = vmatmul.mubr.bf16.gmra.mrb[0].mxu0 %v5833
    %v8218 = vpop.f32.mrb[0].mxu0
    %v8219 = vadd.f32 0.0, %v8218
    %v8220 = vpop.f32.mrb[0].mxu0
    %v8221 = vpop.f32.mrb[0].mxu0
    %v8222 = vadd.f32 0.0, %v8221
    %v8223 = vpop.f32.mrb[0].mxu0
    %8224 = vmatprep.mubr.bf16.mxu0 0
    %8225 = vmatmul.mubr.bf16.gmra.mrb[0].mxu0 %v5836
    %v8226 = vpop.f32.mrb[0].mxu0
    %v8227 = vadd.f32 0.0, %v8226
    %v8228 = vpop.f32.mrb[0].mxu0
    %v8229 = vpop.f32.mrb[0].mxu0
    %v8230 = vadd.f32 0.0, %v8229
    %v8231 = vpop.f32.mrb[0].mxu0
    %8232 = vmatprep.mubr.bf16.mxu0 0
    %8233 = vmatmul.mubr.bf16.gmra.mrb[0].mxu0 %v5839
    %v8234 = vpop.f32.mrb[0].mxu0
    %v8235 = vadd.f32 0.0, %v8234
    %v8236 = vpop.f32.mrb[0].mxu0
    %v8237 = vpop.f32.mrb[0].mxu0
    %v8238 = vadd.f32 0.0, %v8237
    %v8239 = vpop.f32.mrb[0].mxu0
    %8240 = vmatprep.mubr.bf16.mxu0 0
    %8241 = vmatmul.mubr.bf16.gmra.mrb[0].mxu0 %v5842
    %v8242 = vpop.f32.mrb[0].mxu0
    %v8243 = vadd.f32 0.0, %v8242
    %v8244 = vpop.f32.mrb[0].mxu0
    %v8245 = vpop.f32.mrb[0].mxu0
    %v8246 = vadd.f32 0.0, %v8245
    %v8247 = vpop.f32.mrb[0].mxu0
    %8248 = vmatprep.mubr.bf16.mxu0 0
    %8249 = vmatmul.mubr.bf16.gmra.mrb[0].mxu0 %v5845
    %v8250 = vpop.f32.mrb[0].mxu0
    %v8251 = vadd.f32 0.0, %v8250
    %v8252 = vpop.f32.mrb[0].mxu0
    %v8253 = vpop.f32.mrb[0].mxu0
    %v8254 = vadd.f32 0.0, %v8253
    %v8255 = vpop.f32.mrb[0].mxu0
    %8256 = vmatprep.mubr.bf16.mxu0 0
    %8257 = vmatmul.mubr.bf16.gmra.mrb[0].mxu0 %v5848
    %v8258 = vpop.f32.mrb[0].mxu0
    %v8259 = vadd.f32 0.0, %v8258
    %v8260 = vpop.f32.mrb[0].mxu0
    %v8261 = vpop.f32.mrb[0].mxu0
    %v8262 = vadd.f32 0.0, %v8261
    %v8263 = vpop.f32.mrb[0].mxu0
    %8264 = vmatprep.mubr.bf16.mxu0 0
    %8265 = vmatmul.mubr.bf16.gmra.mrb[0].mxu0 %v5851
    %v8266 = vpop.f32.mrb[0].mxu0
    %v8267 = vadd.f32 0.0, %v8266
    %v8268 = vpop.f32.mrb[0].mxu0
    %v8269 = vpop.f32.mrb[0].mxu0
    %v8270 = vadd.f32 0.0, %v8269
    %v8271 = vpop.f32.mrb[0].mxu0
    %8272 = vmatprep.mubr.bf16.mxu0 0
    %8273 = vmatmul.mubr.bf16.gmra.mrb[0].mxu0 %v5854
    %v8274 = vpop.f32.mrb[0].mxu0
    %v8275 = vadd.f32 0.0, %v8274
    %v8276 = vpop.f32.mrb[0].mxu0
    %v8277 = vpop.f32.mrb[0].mxu0
    %v8278 = vpop.f32.mrb[0].mxu0
    %8279 = vdwg.mxu0
    %8280 = vset.pattern.permute.xlu0 4
    %8281 = vperm.xlu0 %8280, %v5706
    %v8282 = vpop.permute.xlu0 %8281
    %8284 = vset.pattern.permute.xlu0 4
    %8285 = vperm.xlu0 %8284, %v5707
    %v8286 = vpop.permute.xlu0 %8285
    %8288 = vset.pattern.permute.xlu0 4
    %8289 = vperm.xlu0 %8288, %v5708
    %v8290 = vpop.permute.xlu0 %8289
    %8292 = vset.pattern.permute.xlu0 4
    %8293 = vperm.xlu0 %8292, %v5709
    %v8294 = vpop.permute.xlu0 %8293
    %8296 = vset.pattern.permute.xlu0 4
    %8297 = vperm.xlu0 %8296, %v5710
    %v8298 = vpop.permute.xlu0 %8297
    %8300 = vset.pattern.permute.xlu0 4
    %8301 = vperm.xlu0 %8300, %v5711
    %v8302 = vpop.permute.xlu0 %8301
    %8304 = vset.pattern.permute.xlu0 4
    %8305 = vperm.xlu0 %8304, %v5712
    %v8306 = vpop.permute.xlu0 %8305
    %8308 = vset.pattern.permute.xlu0 4
    %8309 = vperm.xlu0 %8308, %v5713
    %v8310 = vpop.permute.xlu0 %8309
    %8312 = vset.pattern.permute.xlu0 4
    %8313 = vperm.xlu0 %8312, %v5714
    %v8314 = vpop.permute.xlu0 %8313
    %8316 = vset.pattern.permute.xlu0 4
    %8317 = vperm.xlu0 %8316, %v5715
    %v8318 = vpop.permute.xlu0 %8317
    %8320 = vset.pattern.permute.xlu0 4
    %8321 = vperm.xlu0 %8320, %v5716
    %v8322 = vpop.permute.xlu0 %8321
    %8324 = vset.pattern.permute.xlu0 4
    %8325 = vperm.xlu0 %8324, %v5717
    %v8326 = vpop.permute.xlu0 %8325
    %8328 = vset.pattern.permute.xlu0 4
    %8329 = vperm.xlu0 %8328, %v5718
    %v8330 = vpop.permute.xlu0 %8329
    %8332 = vset.pattern.permute.xlu0 4
    %8333 = vperm.xlu0 %8332, %v5719
    %v8334 = vpop.permute.xlu0 %8333
    %8336 = vset.pattern.permute.xlu0 4
    %8337 = vperm.xlu0 %8336, %v5720
    %v8338 = vpop.permute.xlu0 %8337
    %8340 = vset.pattern.permute.xlu0 4
    %8341 = vperm.xlu0 %8340, %v5721
    %v8342 = vpop.permute.xlu0 %8341
    %8344 = vset.pattern.permute.xlu0 4
    %8345 = vperm.xlu0 %8344, %v5722
    %v8346 = vpop.permute.xlu0 %8345
    %8348 = vset.pattern.permute.xlu0 4
    %8349 = vperm.xlu0 %8348, %v5723
    %v8350 = vpop.permute.xlu0 %8349
    %8352 = vset.pattern.permute.xlu0 4
    %8353 = vperm.xlu0 %8352, %v5724
    %v8354 = vpop.permute.xlu0 %8353
    %8356 = vset.pattern.permute.xlu0 4
    %8357 = vperm.xlu0 %8356, %v5725
    %v8358 = vpop.permute.xlu0 %8357
    %8360 = vset.pattern.permute.xlu0 4
    %8361 = vperm.xlu0 %8360, %v5726
    %v8362 = vpop.permute.xlu0 %8361
    %8364 = vset.pattern.permute.xlu0 4
    %8365 = vperm.xlu0 %8364, %v5727
    %v8366 = vpop.permute.xlu0 %8365
    %8368 = vset.pattern.permute.xlu0 4
    %8369 = vperm.xlu0 %8368, %v5728
    %v8370 = vpop.permute.xlu0 %8369
    %8372 = vset.pattern.permute.xlu0 4
    %8373 = vperm.xlu0 %8372, %v5729
    %v8374 = vpop.permute.xlu0 %8373
    %8376 = vset.pattern.permute.xlu0 4
    %8377 = vperm.xlu0 %8376, %v5730
    %v8378 = vpop.permute.xlu0 %8377
    %8380 = vset.pattern.permute.xlu0 4
    %8381 = vperm.xlu0 %8380, %v5731
    %v8382 = vpop.permute.xlu0 %8381
    %8384 = vset.pattern.permute.xlu0 4
    %8385 = vperm.xlu0 %8384, %v5732
    %v8386 = vpop.permute.xlu0 %8385
    %8388 = vset.pattern.permute.xlu0 4
    %8389 = vperm.xlu0 %8388, %v5733
    %v8390 = vpop.permute.xlu0 %8389
    %8392 = vset.pattern.permute.xlu0 4
    %8393 = vperm.xlu0 %8392, %v5734
    %v8394 = vpop.permute.xlu0 %8393
    %8396 = vset.pattern.permute.xlu0 4
    %8397 = vperm.xlu0 %8396, %v5735
    %v8398 = vpop.permute.xlu0 %8397
    %8400 = vset.pattern.permute.xlu0 4
    %8401 = vperm.xlu0 %8400, %v5736
    %v8402 = vpop.permute.xlu0 %8401
    %v8404 = vmul.f32 %v8282, %v8155
    %v8405 = vmul.f32 %v8286, %v8158
    %v8406 = vmul.f32 %v8290, %v8163
    %v8407 = vmul.f32 %v8294, %v8166
    %v8408 = vmul.f32 %v8298, %v8171
    %v8409 = vmul.f32 %v8302, %v8174
    %v8410 = vmul.f32 %v8306, %v8179
    %v8411 = vmul.f32 %v8310, %v8182
    %v8412 = vmul.f32 %v8314, %v8187
    %v8413 = vmul.f32 %v8318, %v8190
    %v8414 = vmul.f32 %v8322, %v8195
    %v8415 = vmul.f32 %v8326, %v8198
    %v8416 = vmul.f32 %v8330, %v8203
    %v8417 = vmul.f32 %v8334, %v8206
    %v8418 = vmul.f32 %v8338, %v8211
    %v8419 = vmul.f32 %v8342, %v8214
    %v8420 = vmul.f32 %v8346, %v8219
    %v8421 = vmul.f32 %v8350, %v8222
    %v8422 = vmul.f32 %v8354, %v8227
    %v8423 = vmul.f32 %v8358, %v8230
    %v8424 = vmul.f32 %v8362, %v8235
    %v8425 = vmul.f32 %v8366, %v8238
    %v8426 = vmul.f32 %v8370, %v8243
    %v8427 = vmul.f32 %v8374, %v8246
    %v8428 = vmul.f32 %v8378, %v8251
    %v8429 = vmul.f32 %v8382, %v8254
    %v8430 = vmul.f32 %v8386, %v8259
    %v8431 = vmul.f32 %v8390, %v8262
    %v8432 = vmul.f32 %v8394, %v8267
    %v8433 = vmul.f32 %v8398, %v8270
    %v8434 = vmul.f32 %v8402, %v8275
    %v8435 = vld [vmem:[%s26] sm:$0xff]
    %v8436 = vld [vmem:[%s26 + $0x8] sm:$0xff]
    %v8437 = vld [vmem:[%s26 + $0x10] sm:$0xff]
    %v8438 = vld [vmem:[%s26 + $0x18] sm:$0xff]
    %v8439 = vld [vmem:[%s26 + $0x20] sm:$0xff]
    %v8440 = vld [vmem:[%s26 + $0x28] sm:$0xff]
    %v8441 = vld [vmem:[%s26 + $0x30] sm:$0xff]
    %v8442 = vld [vmem:[%s26 + $0x38] sm:$0xff]
    %v8443 = vld [vmem:[%s26 + $0x40] sm:$0xff]
    %v8444 = vld [vmem:[%s26 + $0x48] sm:$0xff]
    %v8445 = vld [vmem:[%s26 + $0x50] sm:$0xff]
    %v8446 = vld [vmem:[%s26 + $0x58] sm:$0xff]
    %v8447 = vld [vmem:[%s26 + $0x60] sm:$0xff]
    %v8448 = vld [vmem:[%s26 + $0x68] sm:$0xff]
    %v8449 = vld [vmem:[%s26 + $0x70] sm:$0xff]
    %v8450 = vld [vmem:[%s26 + $0x78] sm:$0xff]
    %v8451 = vld [vmem:[%s26 + $0x80] sm:$0xff]
    %v8452 = vld [vmem:[%s26 + $0x88] sm:$0xff]
    %v8453 = vld [vmem:[%s26 + $0x90] sm:$0xff]
    %v8454 = vld [vmem:[%s26 + $0x98] sm:$0xff]
    %v8455 = vld [vmem:[%s26 + $0xa0] sm:$0xff]
    %v8456 = vld [vmem:[%s26 + $0xa8] sm:$0xff]
    %v8457 = vld [vmem:[%s26 + $0xb0] sm:$0xff]
    %v8458 = vld [vmem:[%s26 + $0xb8] sm:$0xff]
    %v8459 = vld [vmem:[%s26 + $0xc0] sm:$0xff]
    %v8460 = vld [vmem:[%s26 + $0xc8] sm:$0xff]
    %v8461 = vld [vmem:[%s26 + $0xd0] sm:$0xff]
    %v8462 = vld [vmem:[%s26 + $0xd8] sm:$0xff]
    %v8463 = vld [vmem:[%s26 + $0xe0] sm:$0xff]
    %v8464 = vld [vmem:[%s26 + $0xe8] sm:$0xff]
    %v8465 = vld [vmem:[%s26 + $0xf0] sm:$0x3]
    %v8466 = vadd.f32 %v8435, %v8404
    %v8467 = vadd.f32 %v8436, %v8405
    %v8468 = vadd.f32 %v8437, %v8406
    %v8469 = vadd.f32 %v8438, %v8407
    %v8470 = vadd.f32 %v8439, %v8408
    %v8471 = vadd.f32 %v8440, %v8409
    %v8472 = vadd.f32 %v8441, %v8410
    %v8473 = vadd.f32 %v8442, %v8411
    %v8474 = vadd.f32 %v8443, %v8412
    %v8475 = vadd.f32 %v8444, %v8413
    %v8476 = vadd.f32 %v8445, %v8414
    %v8477 = vadd.f32 %v8446, %v8415
    %v8478 = vadd.f32 %v8447, %v8416
    %v8479 = vadd.f32 %v8448, %v8417
    %v8480 = vadd.f32 %v8449, %v8418
    %v8481 = vadd.f32 %v8450, %v8419
    %v8482 = vadd.f32 %v8451, %v8420
    %v8483 = vadd.f32 %v8452, %v8421
    %v8484 = vadd.f32 %v8453, %v8422
    %v8485 = vadd.f32 %v8454, %v8423
    %v8486 = vadd.f32 %v8455, %v8424
    %v8487 = vadd.f32 %v8456, %v8425
    %v8488 = vadd.f32 %v8457, %v8426
    %v8489 = vadd.f32 %v8458, %v8427
    %v8490 = vadd.f32 %v8459, %v8428
    %v8491 = vadd.f32 %v8460, %v8429
    %v8492 = vadd.f32 %v8461, %v8430
    %v8493 = vadd.f32 %v8462, %v8431
    %v8494 = vadd.f32 %v8463, %v8432
    %v8495 = vadd.f32 %v8464, %v8433
    %v8496 = vadd.f32 %v8465, %v8434
    %8497 = vst.msk [vmem:[%s26] sm:$0xff] %vm5743, %v8466
    %8498 = vst.msk [vmem:[%s26 + $0x8] sm:$0xff] %vm5743, %v8467
    %8499 = vst.msk [vmem:[%s26 + $0x10] sm:$0xff] %vm5743, %v8468
    %8500 = vst.msk [vmem:[%s26 + $0x18] sm:$0xff] %vm5743, %v8469
    %8501 = vst.msk [vmem:[%s26 + $0x20] sm:$0xff] %vm5743, %v8470
    %8502 = vst.msk [vmem:[%s26 + $0x28] sm:$0xff] %vm5743, %v8471
    %8503 = vst.msk [vmem:[%s26 + $0x30] sm:$0xff] %vm5743, %v8472
    %8504 = vst.msk [vmem:[%s26 + $0x38] sm:$0xff] %vm5743, %v8473
    %8505 = vst.msk [vmem:[%s26 + $0x40] sm:$0xff] %vm5743, %v8474
    %8506 = vst.msk [vmem:[%s26 + $0x48] sm:$0xff] %vm5743, %v8475
    %8507 = vst.msk [vmem:[%s26 + $0x50] sm:$0xff] %vm5743, %v8476
    %8508 = vst.msk [vmem:[%s26 + $0x58] sm:$0xff] %vm5743, %v8477
    %8509 = vst.msk [vmem:[%s26 + $0x60] sm:$0xff] %vm5743, %v8478
    %8510 = vst.msk [vmem:[%s26 + $0x68] sm:$0xff] %vm5743, %v8479
    %8511 = vst.msk [vmem:[%s26 + $0x70] sm:$0xff] %vm5743, %v8480
    %8512 = vst.msk [vmem:[%s26 + $0x78] sm:$0xff] %vm5743, %v8481
    %8513 = vst.msk [vmem:[%s26 + $0x80] sm:$0xff] %vm5743, %v8482
    %8514 = vst.msk [vmem:[%s26 + $0x88] sm:$0xff] %vm5743, %v8483
    %8515 = vst.msk [vmem:[%s26 + $0x90] sm:$0xff] %vm5743, %v8484
    %8516 = vst.msk [vmem:[%s26 + $0x98] sm:$0xff] %vm5743, %v8485
    %8517 = vst.msk [vmem:[%s26 + $0xa0] sm:$0xff] %vm5743, %v8486
    %8518 = vst.msk [vmem:[%s26 + $0xa8] sm:$0xff] %vm5743, %v8487
    %8519 = vst.msk [vmem:[%s26 + $0xb0] sm:$0xff] %vm5743, %v8488
    %8520 = vst.msk [vmem:[%s26 + $0xb8] sm:$0xff] %vm5743, %v8489
    %8521 = vst.msk [vmem:[%s26 + $0xc0] sm:$0xff] %vm5743, %v8490
    %8522 = vst.msk [vmem:[%s26 + $0xc8] sm:$0xff] %vm5743, %v8491
    %8523 = vst.msk [vmem:[%s26 + $0xd0] sm:$0xff] %vm5743, %v8492
    %8524 = vst.msk [vmem:[%s26 + $0xd8] sm:$0xff] %vm5743, %v8493
    %8525 = vst.msk [vmem:[%s26 + $0xe0] sm:$0xff] %vm5743, %v8494
    %8526 = vst.msk [vmem:[%s26 + $0xe8] sm:$0xff] %vm5743, %v8495
    %8527 = vst.msk [vmem:[%s26 + $0xf0] sm:$0x3] %vm5774, %v8496
    %s8528 = scalar_lea.vmem %s16, 160
    %v8529 = vld [vmem:[%s8528] sm:$0xf]
    %v8530 = vld [vmem:[%s8528 + $0x4] sm:$0xf]
    %v8531 = vld [vmem:[%s8528 + $0x8] sm:$0xf]
    %v8532 = vld [vmem:[%s8528 + $0xc] sm:$0xf]
    %v8533 = vld [vmem:[%s8528 + $0x10] sm:$0xf]
    %v8534 = vld [vmem:[%s8528 + $0x14] sm:$0xf]
    %v8535 = vld [vmem:[%s8528 + $0x18] sm:$0xf]
    %v8536 = vld [vmem:[%s8528 + $0x1c] sm:$0xf]
    %v8545 = vunpack.c.l.b16 %v8529
    %v8546 = vunpack.c.l.b16 %v8530
    %v8547 = vunpack.c.l.b16 %v8531
    %v8548 = vunpack.c.l.b16 %v8532
    %v8549 = vunpack.c.l.b16 %v8533
    %v8550 = vunpack.c.l.b16 %v8534
    %v8551 = vunpack.c.l.b16 %v8535
    %v8552 = vunpack.c.l.b16 %v8536
    %v8553 = vpack.c.b16 %v8546, %v8545
    %v8554 = vpack.c.b16 %v8548, %v8547
    %v8555 = vpack.c.b16 %v8550, %v8549
    %v8556 = vpack.c.b16 %v8552, %v8551
    %8561 = vmatprep.subr.bf16.mxu0 0
    %8562 = vmatpush1.bf16.msra.mxu0 %v8553
    %8563 = vmatprep.subr.bf16.mxu0 0
    %8564 = vmatpush1.bf16.msra.mxu0 %v8554
    %8565 = vmatprep.subr.bf16.mxu0 0
    %8566 = vmatpush1.bf16.msra.mxu0 %v8555
    %8567 = vmatprep.subr.bf16.mxu0 0
    %8568 = vmatpush1.bf16.msra.mxu0 %v8556
    %8569 = vmatprep.subr.bf16.mxu0 0
    %8570 = vmatpush1.bf16.msra.mxu0 0
    %8571 = vmatprep.subr.bf16.mxu0 0
    %8572 = vmatpush1.bf16.msra.mxu0 0
    %8573 = vmatprep.subr.bf16.mxu0 0
    %8574 = vmatpush1.bf16.msra.mxu0 0
    %8575 = vmatprep.subr.bf16.mxu0 0
    %8576 = vmatpush1.bf16.msra.mxu0 0
    %8577 = vmatprep.subr.bf16.mxu0 0
    %8578 = vmatpush1.bf16.msra.mxu0 0
    %8579 = vmatprep.subr.bf16.mxu0 0
    %8580 = vmatpush1.bf16.msra.mxu0 0
    %8581 = vmatprep.subr.bf16.mxu0 0
    %8582 = vmatpush1.bf16.msra.mxu0 0
    %8583 = vmatprep.subr.bf16.mxu0 0
    %8584 = vmatpush1.bf16.msra.mxu0 0
    %8585 = vmatprep.subr.bf16.mxu0 0
    %8586 = vmatpush1.bf16.msra.mxu0 0
    %8587 = vmatprep.subr.bf16.mxu0 0
    %8588 = vmatpush1.bf16.msra.mxu0 0
    %8589 = vmatprep.subr.bf16.mxu0 0
    %8590 = vmatpush1.bf16.msra.mxu0 0
    %8591 = vmatprep.subr.bf16.mxu0 0
    %8592 = vmatpush1.bf16.msra.mxu0 0
    %8593 = vmatprep.mubr.bf16.mxu0 0
    %8594 = vmatmul.mubr.bf16.gmra.mrb[0].mxu0 %v5809
    %v8595 = vpop.f32.mrb[0].mxu0
    %v8596 = vadd.f32 0.0, %v8595
    %v8597 = vpop.f32.mrb[0].mxu0
    %v8598 = vpop.f32.mrb[0].mxu0
    %v8599 = vadd.f32 0.0, %v8598
    %v8600 = vpop.f32.mrb[0].mxu0
    %8601 = vmatprep.mubr.bf16.mxu0 0
    %8602 = vmatmul.mubr.bf16.gmra.mrb[0].mxu0 %v5812
    %v8603 = vpop.f32.mrb[0].mxu0
    %v8604 = vadd.f32 0.0, %v8603
    %v8605 = vpop.f32.mrb[0].mxu0
    %v8606 = vpop.f32.mrb[0].mxu0
    %v8607 = vadd.f32 0.0, %v8606
    %v8608 = vpop.f32.mrb[0].mxu0
    %8609 = vmatprep.mubr.bf16.mxu0 0
    %8610 = vmatmul.mubr.bf16.gmra.mrb[0].mxu0 %v5815
    %v8611 = vpop.f32.mrb[0].mxu0
    %v8612 = vadd.f32 0.0, %v8611
    %v8613 = vpop.f32.mrb[0].mxu0
    %v8614 = vpop.f32.mrb[0].mxu0
    %v8615 = vadd.f32 0.0, %v8614
    %v8616 = vpop.f32.mrb[0].mxu0
    %8617 = vmatprep.mubr.bf16.mxu0 0
    %8618 = vmatmul.mubr.bf16.gmra.mrb[0].mxu0 %v5818
    %v8619 = vpop.f32.mrb[0].mxu0
    %v8620 = vadd.f32 0.0, %v8619
    %v8621 = vpop.f32.mrb[0].mxu0
    %v8622 = vpop.f32.mrb[0].mxu0
    %v8623 = vadd.f32 0.0, %v8622
    %v8624 = vpop.f32.mrb[0].mxu0
    %8625 = vmatprep.mubr.bf16.mxu0 0
    %8626 = vmatmul.mubr.bf16.gmra.mrb[0].mxu0 %v5821
    %v8627 = vpop.f32.mrb[0].mxu0
    %v8628 = vadd.f32 0.0, %v8627
    %v8629 = vpop.f32.mrb[0].mxu0
    %v8630 = vpop.f32.mrb[0].mxu0
    %v8631 = vadd.f32 0.0, %v8630
    %v8632 = vpop.f32.mrb[0].mxu0
    %8633 = vmatprep.mubr.bf16.mxu0 0
    %8634 = vmatmul.mubr.bf16.gmra.mrb[0].mxu0 %v5824
    %v8635 = vpop.f32.mrb[0].mxu0
    %v8636 = vadd.f32 0.0, %v8635
    %v8637 = vpop.f32.mrb[0].mxu0
    %v8638 = vpop.f32.mrb[0].mxu0
    %v8639 = vadd.f32 0.0, %v8638
    %v8640 = vpop.f32.mrb[0].mxu0
    %8641 = vmatprep.mubr.bf16.mxu0 0
    %8642 = vmatmul.mubr.bf16.gmra.mrb[0].mxu0 %v5827
    %v8643 = vpop.f32.mrb[0].mxu0
    %v8644 = vadd.f32 0.0, %v8643
    %v8645 = vpop.f32.mrb[0].mxu0
    %v8646 = vpop.f32.mrb[0].mxu0
    %v8647 = vadd.f32 0.0, %v8646
    %v8648 = vpop.f32.mrb[0].mxu0
    %8649 = vmatprep.mubr.bf16.mxu0 0
    %8650 = vmatmul.mubr.bf16.gmra.mrb[0].mxu0 %v5830
    %v8651 = vpop.f32.mrb[0].mxu0
    %v8652 = vadd.f32 0.0, %v8651
    %v8653 = vpop.f32.mrb[0].mxu0
    %v8654 = vpop.f32.mrb[0].mxu0
    %v8655 = vadd.f32 0.0, %v8654
    %v8656 = vpop.f32.mrb[0].mxu0
    %8657 = vmatprep.mubr.bf16.mxu0 0
    %8658 = vmatmul.mubr.bf16.gmra.mrb[0].mxu0 %v5833
    %v8659 = vpop.f32.mrb[0].mxu0
    %v8660 = vadd.f32 0.0, %v8659
    %v8661 = vpop.f32.mrb[0].mxu0
    %v8662 = vpop.f32.mrb[0].mxu0
    %v8663 = vadd.f32 0.0, %v8662
    %v8664 = vpop.f32.mrb[0].mxu0
    %8665 = vmatprep.mubr.bf16.mxu0 0
    %8666 = vmatmul.mubr.bf16.gmra.mrb[0].mxu0 %v5836
    %v8667 = vpop.f32.mrb[0].mxu0
    %v8668 = vadd.f32 0.0, %v8667
    %v8669 = vpop.f32.mrb[0].mxu0
    %v8670 = vpop.f32.mrb[0].mxu0
    %v8671 = vadd.f32 0.0, %v8670
    %v8672 = vpop.f32.mrb[0].mxu0
    %8673 = vmatprep.mubr.bf16.mxu0 0
    %8674 = vmatmul.mubr.bf16.gmra.mrb[0].mxu0 %v5839
    %v8675 = vpop.f32.mrb[0].mxu0
    %v8676 = vadd.f32 0.0, %v8675
    %v8677 = vpop.f32.mrb[0].mxu0
    %v8678 = vpop.f32.mrb[0].mxu0
    %v8679 = vadd.f32 0.0, %v8678
    %v8680 = vpop.f32.mrb[0].mxu0
    %8681 = vmatprep.mubr.bf16.mxu0 0
    %8682 = vmatmul.mubr.bf16.gmra.mrb[0].mxu0 %v5842
    %v8683 = vpop.f32.mrb[0].mxu0
    %v8684 = vadd.f32 0.0, %v8683
    %v8685 = vpop.f32.mrb[0].mxu0
    %v8686 = vpop.f32.mrb[0].mxu0
    %v8687 = vadd.f32 0.0, %v8686
    %v8688 = vpop.f32.mrb[0].mxu0
    %8689 = vmatprep.mubr.bf16.mxu0 0
    %8690 = vmatmul.mubr.bf16.gmra.mrb[0].mxu0 %v5845
    %v8691 = vpop.f32.mrb[0].mxu0
    %v8692 = vadd.f32 0.0, %v8691
    %v8693 = vpop.f32.mrb[0].mxu0
    %v8694 = vpop.f32.mrb[0].mxu0
    %v8695 = vadd.f32 0.0, %v8694
    %v8696 = vpop.f32.mrb[0].mxu0
    %8697 = vmatprep.mubr.bf16.mxu0 0
    %8698 = vmatmul.mubr.bf16.gmra.mrb[0].mxu0 %v5848
    %v8699 = vpop.f32.mrb[0].mxu0
    %v8700 = vadd.f32 0.0, %v8699
    %v8701 = vpop.f32.mrb[0].mxu0
    %v8702 = vpop.f32.mrb[0].mxu0
    %v8703 = vadd.f32 0.0, %v8702
    %v8704 = vpop.f32.mrb[0].mxu0
    %8705 = vmatprep.mubr.bf16.mxu0 0
    %8706 = vmatmul.mubr.bf16.gmra.mrb[0].mxu0 %v5851
    %v8707 = vpop.f32.mrb[0].mxu0
    %v8708 = vadd.f32 0.0, %v8707
    %v8709 = vpop.f32.mrb[0].mxu0
    %v8710 = vpop.f32.mrb[0].mxu0
    %v8711 = vadd.f32 0.0, %v8710
    %v8712 = vpop.f32.mrb[0].mxu0
    %8713 = vmatprep.mubr.bf16.mxu0 0
    %8714 = vmatmul.mubr.bf16.gmra.mrb[0].mxu0 %v5854
    %v8715 = vpop.f32.mrb[0].mxu0
    %v8716 = vadd.f32 0.0, %v8715
    %v8717 = vpop.f32.mrb[0].mxu0
    %v8718 = vpop.f32.mrb[0].mxu0
    %v8719 = vpop.f32.mrb[0].mxu0
    %8720 = vdwg.mxu0
    %v8752 = vrot.slane %v8596, 1
    %v8753 = vrot.slane %v8599, 1
    %v8754 = vsel %vm2086, %v8752, %v8753
    %v8755 = vrot.slane %v8604, 1
    %v8756 = vsel %vm2086, %v8753, %v8755
    %v8757 = vrot.slane %v8607, 1
    %v8758 = vsel %vm2086, %v8755, %v8757
    %v8759 = vrot.slane %v8612, 1
    %v8760 = vsel %vm2086, %v8757, %v8759
    %v8761 = vrot.slane %v8615, 1
    %v8762 = vsel %vm2086, %v8759, %v8761
    %v8763 = vrot.slane %v8620, 1
    %v8764 = vsel %vm2086, %v8761, %v8763
    %v8765 = vrot.slane %v8623, 1
    %v8766 = vsel %vm2086, %v8763, %v8765
    %v8767 = vrot.slane %v8628, 1
    %v8768 = vsel %vm2086, %v8765, %v8767
    %v8769 = vrot.slane %v8631, 1
    %v8770 = vsel %vm2086, %v8767, %v8769
    %v8771 = vrot.slane %v8636, 1
    %v8772 = vsel %vm2086, %v8769, %v8771
    %v8773 = vrot.slane %v8639, 1
    %v8774 = vsel %vm2086, %v8771, %v8773
    %v8775 = vrot.slane %v8644, 1
    %v8776 = vsel %vm2086, %v8773, %v8775
    %v8777 = vrot.slane %v8647, 1
    %v8778 = vsel %vm2086, %v8775, %v8777
    %v8779 = vrot.slane %v8652, 1
    %v8780 = vsel %vm2086, %v8777, %v8779
    %v8781 = vrot.slane %v8655, 1
    %v8782 = vsel %vm2086, %v8779, %v8781
    %v8783 = vrot.slane %v8660, 1
    %v8784 = vsel %vm2086, %v8781, %v8783
    %v8785 = vrot.slane %v8663, 1
    %v8786 = vsel %vm2086, %v8783, %v8785
    %v8787 = vrot.slane %v8668, 1
    %v8788 = vsel %vm2086, %v8785, %v8787
    %v8789 = vrot.slane %v8671, 1
    %v8790 = vsel %vm2086, %v8787, %v8789
    %v8791 = vrot.slane %v8676, 1
    %v8792 = vsel %vm2086, %v8789, %v8791
    %v8793 = vrot.slane %v8679, 1
    %v8794 = vsel %vm2086, %v8791, %v8793
    %v8795 = vrot.slane %v8684, 1
    %v8796 = vsel %vm2086, %v8793, %v8795
    %v8797 = vrot.slane %v8687, 1
    %v8798 = vsel %vm2086, %v8795, %v8797
    %v8799 = vrot.slane %v8692, 1
    %v8800 = vsel %vm2086, %v8797, %v8799
    %v8801 = vrot.slane %v8695, 1
    %v8802 = vsel %vm2086, %v8799, %v8801
    %v8803 = vrot.slane %v8700, 1
    %v8804 = vsel %vm2086, %v8801, %v8803
    %v8805 = vrot.slane %v8703, 1
    %v8806 = vsel %vm2086, %v8803, %v8805
    %v8807 = vrot.slane %v8708, 1
    %v8808 = vsel %vm2086, %v8805, %v8807
    %v8809 = vrot.slane %v8711, 1
    %v8810 = vsel %vm2086, %v8807, %v8809
    %v8811 = vrot.slane %v8716, 1
    %v8812 = vsel %vm2086, %v8809, %v8811
    %v8844 = vsel %vm1683, %v8811, 0.0
    %8845 = vset.pattern.permute.xlu0 5
    %8846 = vperm.xlu0 %8845, %v5706
    %v8847 = vpop.permute.xlu0 %8846
    %8849 = vset.pattern.permute.xlu0 5
    %8850 = vperm.xlu0 %8849, %v5707
    %v8851 = vpop.permute.xlu0 %8850
    %8853 = vset.pattern.permute.xlu0 5
    %8854 = vperm.xlu0 %8853, %v5708
    %v8855 = vpop.permute.xlu0 %8854
    %8857 = vset.pattern.permute.xlu0 5
    %8858 = vperm.xlu0 %8857, %v5709
    %v8859 = vpop.permute.xlu0 %8858
    %8861 = vset.pattern.permute.xlu0 5
    %8862 = vperm.xlu0 %8861, %v5710
    %v8863 = vpop.permute.xlu0 %8862
    %8865 = vset.pattern.permute.xlu0 5
    %8866 = vperm.xlu0 %8865, %v5711
    %v8867 = vpop.permute.xlu0 %8866
    %8869 = vset.pattern.permute.xlu0 5
    %8870 = vperm.xlu0 %8869, %v5712
    %v8871 = vpop.permute.xlu0 %8870
    %8873 = vset.pattern.permute.xlu0 5
    %8874 = vperm.xlu0 %8873, %v5713
    %v8875 = vpop.permute.xlu0 %8874
    %8877 = vset.pattern.permute.xlu0 5
    %8878 = vperm.xlu0 %8877, %v5714
    %v8879 = vpop.permute.xlu0 %8878
    %8881 = vset.pattern.permute.xlu0 5
    %8882 = vperm.xlu0 %8881, %v5715
    %v8883 = vpop.permute.xlu0 %8882
    %8885 = vset.pattern.permute.xlu0 5
    %8886 = vperm.xlu0 %8885, %v5716
    %v8887 = vpop.permute.xlu0 %8886
    %8889 = vset.pattern.permute.xlu0 5
    %8890 = vperm.xlu0 %8889, %v5717
    %v8891 = vpop.permute.xlu0 %8890
    %8893 = vset.pattern.permute.xlu0 5
    %8894 = vperm.xlu0 %8893, %v5718
    %v8895 = vpop.permute.xlu0 %8894
    %8897 = vset.pattern.permute.xlu0 5
    %8898 = vperm.xlu0 %8897, %v5719
    %v8899 = vpop.permute.xlu0 %8898
    %8901 = vset.pattern.permute.xlu0 5
    %8902 = vperm.xlu0 %8901, %v5720
    %v8903 = vpop.permute.xlu0 %8902
    %8905 = vset.pattern.permute.xlu0 5
    %8906 = vperm.xlu0 %8905, %v5721
    %v8907 = vpop.permute.xlu0 %8906
    %8909 = vset.pattern.permute.xlu0 5
    %8910 = vperm.xlu0 %8909, %v5722
    %v8911 = vpop.permute.xlu0 %8910
    %8913 = vset.pattern.permute.xlu0 5
    %8914 = vperm.xlu0 %8913, %v5723
    %v8915 = vpop.permute.xlu0 %8914
    %8917 = vset.pattern.permute.xlu0 5
    %8918 = vperm.xlu0 %8917, %v5724
    %v8919 = vpop.permute.xlu0 %8918
    %8921 = vset.pattern.permute.xlu0 5
    %8922 = vperm.xlu0 %8921, %v5725
    %v8923 = vpop.permute.xlu0 %8922
    %8925 = vset.pattern.permute.xlu0 5
    %8926 = vperm.xlu0 %8925, %v5726
    %v8927 = vpop.permute.xlu0 %8926
    %8929 = vset.pattern.permute.xlu0 5
    %8930 = vperm.xlu0 %8929, %v5727
    %v8931 = vpop.permute.xlu0 %8930
    %8933 = vset.pattern.permute.xlu0 5
    %8934 = vperm.xlu0 %8933, %v5728
    %v8935 = vpop.permute.xlu0 %8934
    %8937 = vset.pattern.permute.xlu0 5
    %8938 = vperm.xlu0 %8937, %v5729
    %v8939 = vpop.permute.xlu0 %8938
    %8941 = vset.pattern.permute.xlu0 5
    %8942 = vperm.xlu0 %8941, %v5730
    %v8943 = vpop.permute.xlu0 %8942
    %8945 = vset.pattern.permute.xlu0 5
    %8946 = vperm.xlu0 %8945, %v5731
    %v8947 = vpop.permute.xlu0 %8946
    %8949 = vset.pattern.permute.xlu0 5
    %8950 = vperm.xlu0 %8949, %v5732
    %v8951 = vpop.permute.xlu0 %8950
    %8953 = vset.pattern.permute.xlu0 5
    %8954 = vperm.xlu0 %8953, %v5733
    %v8955 = vpop.permute.xlu0 %8954
    %8957 = vset.pattern.permute.xlu0 5
    %8958 = vperm.xlu0 %8957, %v5734
    %v8959 = vpop.permute.xlu0 %8958
    %8961 = vset.pattern.permute.xlu0 5
    %8962 = vperm.xlu0 %8961, %v5735
    %v8963 = vpop.permute.xlu0 %8962
    %8965 = vset.pattern.permute.xlu0 5
    %8966 = vperm.xlu0 %8965, %v5736
    %v8967 = vpop.permute.xlu0 %8966
    %v8969 = vmul.f32 %v8847, %v8754
    %v8970 = vmul.f32 %v8851, %v8756
    %v8971 = vmul.f32 %v8855, %v8758
    %v8972 = vmul.f32 %v8859, %v8760
    %v8973 = vmul.f32 %v8863, %v8762
    %v8974 = vmul.f32 %v8867, %v8764
    %v8975 = vmul.f32 %v8871, %v8766
    %v8976 = vmul.f32 %v8875, %v8768
    %v8977 = vmul.f32 %v8879, %v8770
    %v8978 = vmul.f32 %v8883, %v8772
    %v8979 = vmul.f32 %v8887, %v8774
    %v8980 = vmul.f32 %v8891, %v8776
    %v8981 = vmul.f32 %v8895, %v8778
    %v8982 = vmul.f32 %v8899, %v8780
    %v8983 = vmul.f32 %v8903, %v8782
    %v8984 = vmul.f32 %v8907, %v8784
    %v8985 = vmul.f32 %v8911, %v8786
    %v8986 = vmul.f32 %v8915, %v8788
    %v8987 = vmul.f32 %v8919, %v8790
    %v8988 = vmul.f32 %v8923, %v8792
    %v8989 = vmul.f32 %v8927, %v8794
    %v8990 = vmul.f32 %v8931, %v8796
    %v8991 = vmul.f32 %v8935, %v8798
    %v8992 = vmul.f32 %v8939, %v8800
    %v8993 = vmul.f32 %v8943, %v8802
    %v8994 = vmul.f32 %v8947, %v8804
    %v8995 = vmul.f32 %v8951, %v8806
    %v8996 = vmul.f32 %v8955, %v8808
    %v8997 = vmul.f32 %v8959, %v8810
    %v8998 = vmul.f32 %v8963, %v8812
    %v8999 = vmul.f32 %v8967, %v8844
    %v9000 = vld [vmem:[%s26] sm:$0xff]
    %v9001 = vld [vmem:[%s26 + $0x8] sm:$0xff]
    %v9002 = vld [vmem:[%s26 + $0x10] sm:$0xff]
    %v9003 = vld [vmem:[%s26 + $0x18] sm:$0xff]
    %v9004 = vld [vmem:[%s26 + $0x20] sm:$0xff]
    %v9005 = vld [vmem:[%s26 + $0x28] sm:$0xff]
    %v9006 = vld [vmem:[%s26 + $0x30] sm:$0xff]
    %v9007 = vld [vmem:[%s26 + $0x38] sm:$0xff]
    %v9008 = vld [vmem:[%s26 + $0x40] sm:$0xff]
    %v9009 = vld [vmem:[%s26 + $0x48] sm:$0xff]
    %v9010 = vld [vmem:[%s26 + $0x50] sm:$0xff]
    %v9011 = vld [vmem:[%s26 + $0x58] sm:$0xff]
    %v9012 = vld [vmem:[%s26 + $0x60] sm:$0xff]
    %v9013 = vld [vmem:[%s26 + $0x68] sm:$0xff]
    %v9014 = vld [vmem:[%s26 + $0x70] sm:$0xff]
    %v9015 = vld [vmem:[%s26 + $0x78] sm:$0xff]
    %v9016 = vld [vmem:[%s26 + $0x80] sm:$0xff]
    %v9017 = vld [vmem:[%s26 + $0x88] sm:$0xff]
    %v9018 = vld [vmem:[%s26 + $0x90] sm:$0xff]
    %v9019 = vld [vmem:[%s26 + $0x98] sm:$0xff]
    %v9020 = vld [vmem:[%s26 + $0xa0] sm:$0xff]
    %v9021 = vld [vmem:[%s26 + $0xa8] sm:$0xff]
    %v9022 = vld [vmem:[%s26 + $0xb0] sm:$0xff]
    %v9023 = vld [vmem:[%s26 + $0xb8] sm:$0xff]
    %v9024 = vld [vmem:[%s26 + $0xc0] sm:$0xff]
    %v9025 = vld [vmem:[%s26 + $0xc8] sm:$0xff]
    %v9026 = vld [vmem:[%s26 + $0xd0] sm:$0xff]
    %v9027 = vld [vmem:[%s26 + $0xd8] sm:$0xff]
    %v9028 = vld [vmem:[%s26 + $0xe0] sm:$0xff]
    %v9029 = vld [vmem:[%s26 + $0xe8] sm:$0xff]
    %v9030 = vld [vmem:[%s26 + $0xf0] sm:$0x3]
    %v9031 = vadd.f32 %v9000, %v8969
    %v9032 = vadd.f32 %v9001, %v8970
    %v9033 = vadd.f32 %v9002, %v8971
    %v9034 = vadd.f32 %v9003, %v8972
    %v9035 = vadd.f32 %v9004, %v8973
    %v9036 = vadd.f32 %v9005, %v8974
    %v9037 = vadd.f32 %v9006, %v8975
    %v9038 = vadd.f32 %v9007, %v8976
    %v9039 = vadd.f32 %v9008, %v8977
    %v9040 = vadd.f32 %v9009, %v8978
    %v9041 = vadd.f32 %v9010, %v8979
    %v9042 = vadd.f32 %v9011, %v8980
    %v9043 = vadd.f32 %v9012, %v8981
    %v9044 = vadd.f32 %v9013, %v8982
    %v9045 = vadd.f32 %v9014, %v8983
    %v9046 = vadd.f32 %v9015, %v8984
    %v9047 = vadd.f32 %v9016, %v8985
    %v9048 = vadd.f32 %v9017, %v8986
    %v9049 = vadd.f32 %v9018, %v8987
    %v9050 = vadd.f32 %v9019, %v8988
    %v9051 = vadd.f32 %v9020, %v8989
    %v9052 = vadd.f32 %v9021, %v8990
    %v9053 = vadd.f32 %v9022, %v8991
    %v9054 = vadd.f32 %v9023, %v8992
    %v9055 = vadd.f32 %v9024, %v8993
    %v9056 = vadd.f32 %v9025, %v8994
    %v9057 = vadd.f32 %v9026, %v8995
    %v9058 = vadd.f32 %v9027, %v8996
    %v9059 = vadd.f32 %v9028, %v8997
    %v9060 = vadd.f32 %v9029, %v8998
    %v9061 = vadd.f32 %v9030, %v8999
    %9062 = vst.msk [vmem:[%s26] sm:$0xff] %vm5743, %v9031
    %9063 = vst.msk [vmem:[%s26 + $0x8] sm:$0xff] %vm5743, %v9032
    %9064 = vst.msk [vmem:[%s26 + $0x10] sm:$0xff] %vm5743, %v9033
    %9065 = vst.msk [vmem:[%s26 + $0x18] sm:$0xff] %vm5743, %v9034
    %9066 = vst.msk [vmem:[%s26 + $0x20] sm:$0xff] %vm5743, %v9035
    %9067 = vst.msk [vmem:[%s26 + $0x28] sm:$0xff] %vm5743, %v9036
    %9068 = vst.msk [vmem:[%s26 + $0x30] sm:$0xff] %vm5743, %v9037
    %9069 = vst.msk [vmem:[%s26 + $0x38] sm:$0xff] %vm5743, %v9038
    %9070 = vst.msk [vmem:[%s26 + $0x40] sm:$0xff] %vm5743, %v9039
    %9071 = vst.msk [vmem:[%s26 + $0x48] sm:$0xff] %vm5743, %v9040
    %9072 = vst.msk [vmem:[%s26 + $0x50] sm:$0xff] %vm5743, %v9041
    %9073 = vst.msk [vmem:[%s26 + $0x58] sm:$0xff] %vm5743, %v9042
    %9074 = vst.msk [vmem:[%s26 + $0x60] sm:$0xff] %vm5743, %v9043
    %9075 = vst.msk [vmem:[%s26 + $0x68] sm:$0xff] %vm5743, %v9044
    %9076 = vst.msk [vmem:[%s26 + $0x70] sm:$0xff] %vm5743, %v9045
    %9077 = vst.msk [vmem:[%s26 + $0x78] sm:$0xff] %vm5743, %v9046
    %9078 = vst.msk [vmem:[%s26 + $0x80] sm:$0xff] %vm5743, %v9047
    %9079 = vst.msk [vmem:[%s26 + $0x88] sm:$0xff] %vm5743, %v9048
    %9080 = vst.msk [vmem:[%s26 + $0x90] sm:$0xff] %vm5743, %v9049
    %9081 = vst.msk [vmem:[%s26 + $0x98] sm:$0xff] %vm5743, %v9050
    %9082 = vst.msk [vmem:[%s26 + $0xa0] sm:$0xff] %vm5743, %v9051
    %9083 = vst.msk [vmem:[%s26 + $0xa8] sm:$0xff] %vm5743, %v9052
    %9084 = vst.msk [vmem:[%s26 + $0xb0] sm:$0xff] %vm5743, %v9053
    %9085 = vst.msk [vmem:[%s26 + $0xb8] sm:$0xff] %vm5743, %v9054
    %9086 = vst.msk [vmem:[%s26 + $0xc0] sm:$0xff] %vm5743, %v9055
    %9087 = vst.msk [vmem:[%s26 + $0xc8] sm:$0xff] %vm5743, %v9056
    %9088 = vst.msk [vmem:[%s26 + $0xd0] sm:$0xff] %vm5743, %v9057
    %9089 = vst.msk [vmem:[%s26 + $0xd8] sm:$0xff] %vm5743, %v9058
    %9090 = vst.msk [vmem:[%s26 + $0xe0] sm:$0xff] %vm5743, %v9059
    %9091 = vst.msk [vmem:[%s26 + $0xe8] sm:$0xff] %vm5743, %v9060
    %9092 = vst.msk [vmem:[%s26 + $0xf0] sm:$0x3] %vm5774, %v9061
    %s9093 = scalar_lea.vmem %s16, 192
    %v9094 = vld [vmem:[%s9093] sm:$0xf]
    %v9095 = vld [vmem:[%s9093 + $0x4] sm:$0xf]
    %v9096 = vld [vmem:[%s9093 + $0x8] sm:$0xf]
    %v9097 = vld [vmem:[%s9093 + $0xc] sm:$0xf]
    %v9098 = vld [vmem:[%s9093 + $0x10] sm:$0xf]
    %v9099 = vld [vmem:[%s9093 + $0x14] sm:$0xf]
    %v9100 = vld [vmem:[%s9093 + $0x18] sm:$0xf]
    %v9101 = vld [vmem:[%s9093 + $0x1c] sm:$0xf]
    %v9110 = vunpack.c.l.b16 %v9094
    %v9111 = vunpack.c.l.b16 %v9095
    %v9112 = vunpack.c.l.b16 %v9096
    %v9113 = vunpack.c.l.b16 %v9097
    %v9114 = vunpack.c.l.b16 %v9098
    %v9115 = vunpack.c.l.b16 %v9099
    %v9116 = vunpack.c.l.b16 %v9100
    %v9117 = vunpack.c.l.b16 %v9101
    %v9118 = vpack.c.b16 %v9111, %v9110
    %v9119 = vpack.c.b16 %v9113, %v9112
    %v9120 = vpack.c.b16 %v9115, %v9114
    %v9121 = vpack.c.b16 %v9117, %v9116
    %9126 = vmatprep.subr.bf16.mxu0 0
    %9127 = vmatpush1.bf16.msra.mxu0 %v9118
    %9128 = vmatprep.subr.bf16.mxu0 0
    %9129 = vmatpush1.bf16.msra.mxu0 %v9119
    %9130 = vmatprep.subr.bf16.mxu0 0
    %9131 = vmatpush1.bf16.msra.mxu0 %v9120
    %9132 = vmatprep.subr.bf16.mxu0 0
    %9133 = vmatpush1.bf16.msra.mxu0 %v9121
    %9134 = vmatprep.subr.bf16.mxu0 0
    %9135 = vmatpush1.bf16.msra.mxu0 0
    %9136 = vmatprep.subr.bf16.mxu0 0
    %9137 = vmatpush1.bf16.msra.mxu0 0
    %9138 = vmatprep.subr.bf16.mxu0 0
    %9139 = vmatpush1.bf16.msra.mxu0 0
    %9140 = vmatprep.subr.bf16.mxu0 0
    %9141 = vmatpush1.bf16.msra.mxu0 0
    %9142 = vmatprep.subr.bf16.mxu0 0
    %9143 = vmatpush1.bf16.msra.mxu0 0
    %9144 = vmatprep.subr.bf16.mxu0 0
    %9145 = vmatpush1.bf16.msra.mxu0 0
    %9146 = vmatprep.subr.bf16.mxu0 0
    %9147 = vmatpush1.bf16.msra.mxu0 0
    %9148 = vmatprep.subr.bf16.mxu0 0
    %9149 = vmatpush1.bf16.msra.mxu0 0
    %9150 = vmatprep.subr.bf16.mxu0 0
    %9151 = vmatpush1.bf16.msra.mxu0 0
    %9152 = vmatprep.subr.bf16.mxu0 0
    %9153 = vmatpush1.bf16.msra.mxu0 0
    %9154 = vmatprep.subr.bf16.mxu0 0
    %9155 = vmatpush1.bf16.msra.mxu0 0
    %9156 = vmatprep.subr.bf16.mxu0 0
    %9157 = vmatpush1.bf16.msra.mxu0 0
    %9158 = vmatprep.mubr.bf16.mxu0 0
    %9159 = vmatmul.mubr.bf16.gmra.mrb[0].mxu0 %v5809
    %v9160 = vpop.f32.mrb[0].mxu0
    %v9161 = vpop.f32.mrb[0].mxu0
    %v9162 = vpop.f32.mrb[0].mxu0
    %v9163 = vadd.f32 0.0, %v9162
    %v9164 = vpop.f32.mrb[0].mxu0
    %9165 = vmatprep.mubr.bf16.mxu0 0
    %9166 = vmatmul.mubr.bf16.gmra.mrb[0].mxu0 %v5812
    %v9167 = vpop.f32.mrb[0].mxu0
    %v9168 = vadd.f32 0.0, %v9167
    %v9169 = vpop.f32.mrb[0].mxu0
    %v9170 = vpop.f32.mrb[0].mxu0
    %v9171 = vadd.f32 0.0, %v9170
    %v9172 = vpop.f32.mrb[0].mxu0
    %9173 = vmatprep.mubr.bf16.mxu0 0
    %9174 = vmatmul.mubr.bf16.gmra.mrb[0].mxu0 %v5815
    %v9175 = vpop.f32.mrb[0].mxu0
    %v9176 = vadd.f32 0.0, %v9175
    %v9177 = vpop.f32.mrb[0].mxu0
    %v9178 = vpop.f32.mrb[0].mxu0
    %v9179 = vadd.f32 0.0, %v9178
    %v9180 = vpop.f32.mrb[0].mxu0
    %9181 = vmatprep.mubr.bf16.mxu0 0
    %9182 = vmatmul.mubr.bf16.gmra.mrb[0].mxu0 %v5818
    %v9183 = vpop.f32.mrb[0].mxu0
    %v9184 = vadd.f32 0.0, %v9183
    %v9185 = vpop.f32.mrb[0].mxu0
    %v9186 = vpop.f32.mrb[0].mxu0
    %v9187 = vadd.f32 0.0, %v9186
    %v9188 = vpop.f32.mrb[0].mxu0
    %9189 = vmatprep.mubr.bf16.mxu0 0
    %9190 = vmatmul.mubr.bf16.gmra.mrb[0].mxu0 %v5821
    %v9191 = vpop.f32.mrb[0].mxu0
    %v9192 = vadd.f32 0.0, %v9191
    %v9193 = vpop.f32.mrb[0].mxu0
    %v9194 = vpop.f32.mrb[0].mxu0
    %v9195 = vadd.f32 0.0, %v9194
    %v9196 = vpop.f32.mrb[0].mxu0
    %9197 = vmatprep.mubr.bf16.mxu0 0
    %9198 = vmatmul.mubr.bf16.gmra.mrb[0].mxu0 %v5824
    %v9199 = vpop.f32.mrb[0].mxu0
    %v9200 = vadd.f32 0.0, %v9199
    %v9201 = vpop.f32.mrb[0].mxu0
    %v9202 = vpop.f32.mrb[0].mxu0
    %v9203 = vadd.f32 0.0, %v9202
    %v9204 = vpop.f32.mrb[0].mxu0
    %9205 = vmatprep.mubr.bf16.mxu0 0
    %9206 = vmatmul.mubr.bf16.gmra.mrb[0].mxu0 %v5827
    %v9207 = vpop.f32.mrb[0].mxu0
    %v9208 = vadd.f32 0.0, %v9207
    %v9209 = vpop.f32.mrb[0].mxu0
    %v9210 = vpop.f32.mrb[0].mxu0
    %v9211 = vadd.f32 0.0, %v9210
    %v9212 = vpop.f32.mrb[0].mxu0
    %9213 = vmatprep.mubr.bf16.mxu0 0
    %9214 = vmatmul.mubr.bf16.gmra.mrb[0].mxu0 %v5830
    %v9215 = vpop.f32.mrb[0].mxu0
    %v9216 = vadd.f32 0.0, %v9215
    %v9217 = vpop.f32.mrb[0].mxu0
    %v9218 = vpop.f32.mrb[0].mxu0
    %v9219 = vadd.f32 0.0, %v9218
    %v9220 = vpop.f32.mrb[0].mxu0
    %9221 = vmatprep.mubr.bf16.mxu0 0
    %9222 = vmatmul.mubr.bf16.gmra.mrb[0].mxu0 %v5833
    %v9223 = vpop.f32.mrb[0].mxu0
    %v9224 = vadd.f32 0.0, %v9223
    %v9225 = vpop.f32.mrb[0].mxu0
    %v9226 = vpop.f32.mrb[0].mxu0
    %v9227 = vadd.f32 0.0, %v9226
    %v9228 = vpop.f32.mrb[0].mxu0
    %9229 = vmatprep.mubr.bf16.mxu0 0
    %9230 = vmatmul.mubr.bf16.gmra.mrb[0].mxu0 %v5836
    %v9231 = vpop.f32.mrb[0].mxu0
    %v9232 = vadd.f32 0.0, %v9231
    %v9233 = vpop.f32.mrb[0].mxu0
    %v9234 = vpop.f32.mrb[0].mxu0
    %v9235 = vadd.f32 0.0, %v9234
    %v9236 = vpop.f32.mrb[0].mxu0
    %9237 = vmatprep.mubr.bf16.mxu0 0
    %9238 = vmatmul.mubr.bf16.gmra.mrb[0].mxu0 %v5839
    %v9239 = vpop.f32.mrb[0].mxu0
    %v9240 = vadd.f32 0.0, %v9239
    %v9241 = vpop.f32.mrb[0].mxu0
    %v9242 = vpop.f32.mrb[0].mxu0
    %v9243 = vadd.f32 0.0, %v9242
    %v9244 = vpop.f32.mrb[0].mxu0
    %9245 = vmatprep.mubr.bf16.mxu0 0
    %9246 = vmatmul.mubr.bf16.gmra.mrb[0].mxu0 %v5842
    %v9247 = vpop.f32.mrb[0].mxu0
    %v9248 = vadd.f32 0.0, %v9247
    %v9249 = vpop.f32.mrb[0].mxu0
    %v9250 = vpop.f32.mrb[0].mxu0
    %v9251 = vadd.f32 0.0, %v9250
    %v9252 = vpop.f32.mrb[0].mxu0
    %9253 = vmatprep.mubr.bf16.mxu0 0
    %9254 = vmatmul.mubr.bf16.gmra.mrb[0].mxu0 %v5845
    %v9255 = vpop.f32.mrb[0].mxu0
    %v9256 = vadd.f32 0.0, %v9255
    %v9257 = vpop.f32.mrb[0].mxu0
    %v9258 = vpop.f32.mrb[0].mxu0
    %v9259 = vadd.f32 0.0, %v9258
    %v9260 = vpop.f32.mrb[0].mxu0
    %9261 = vmatprep.mubr.bf16.mxu0 0
    %9262 = vmatmul.mubr.bf16.gmra.mrb[0].mxu0 %v5848
    %v9263 = vpop.f32.mrb[0].mxu0
    %v9264 = vadd.f32 0.0, %v9263
    %v9265 = vpop.f32.mrb[0].mxu0
    %v9266 = vpop.f32.mrb[0].mxu0
    %v9267 = vadd.f32 0.0, %v9266
    %v9268 = vpop.f32.mrb[0].mxu0
    %9269 = vmatprep.mubr.bf16.mxu0 0
    %9270 = vmatmul.mubr.bf16.gmra.mrb[0].mxu0 %v5851
    %v9271 = vpop.f32.mrb[0].mxu0
    %v9272 = vadd.f32 0.0, %v9271
    %v9273 = vpop.f32.mrb[0].mxu0
    %v9274 = vpop.f32.mrb[0].mxu0
    %v9275 = vadd.f32 0.0, %v9274
    %v9276 = vpop.f32.mrb[0].mxu0
    %9277 = vmatprep.mubr.bf16.mxu0 0
    %9278 = vmatmul.mubr.bf16.gmra.mrb[0].mxu0 %v5854
    %v9279 = vpop.f32.mrb[0].mxu0
    %v9280 = vadd.f32 0.0, %v9279
    %v9281 = vpop.f32.mrb[0].mxu0
    %v9282 = vpop.f32.mrb[0].mxu0
    %v9283 = vpop.f32.mrb[0].mxu0
    %9284 = vdwg.mxu0
    %v9315 = vrot.slane %v9163, 2
    %v9316 = vrot.slane %v9168, 2
    %v9317 = vsel %vm2294, %v9315, %v9316
    %v9318 = vrot.slane %v9171, 2
    %v9319 = vsel %vm2294, %v9316, %v9318
    %v9320 = vrot.slane %v9176, 2
    %v9321 = vsel %vm2294, %v9318, %v9320
    %v9322 = vrot.slane %v9179, 2
    %v9323 = vsel %vm2294, %v9320, %v9322
    %v9324 = vrot.slane %v9184, 2
    %v9325 = vsel %vm2294, %v9322, %v9324
    %v9326 = vrot.slane %v9187, 2
    %v9327 = vsel %vm2294, %v9324, %v9326
    %v9328 = vrot.slane %v9192, 2
    %v9329 = vsel %vm2294, %v9326, %v9328
    %v9330 = vrot.slane %v9195, 2
    %v9331 = vsel %vm2294, %v9328, %v9330
    %v9332 = vrot.slane %v9200, 2
    %v9333 = vsel %vm2294, %v9330, %v9332
    %v9334 = vrot.slane %v9203, 2
    %v9335 = vsel %vm2294, %v9332, %v9334
    %v9336 = vrot.slane %v9208, 2
    %v9337 = vsel %vm2294, %v9334, %v9336
    %v9338 = vrot.slane %v9211, 2
    %v9339 = vsel %vm2294, %v9336, %v9338
    %v9340 = vrot.slane %v9216, 2
    %v9341 = vsel %vm2294, %v9338, %v9340
    %v9342 = vrot.slane %v9219, 2
    %v9343 = vsel %vm2294, %v9340, %v9342
    %v9344 = vrot.slane %v9224, 2
    %v9345 = vsel %vm2294, %v9342, %v9344
    %v9346 = vrot.slane %v9227, 2
    %v9347 = vsel %vm2294, %v9344, %v9346
    %v9348 = vrot.slane %v9232, 2
    %v9349 = vsel %vm2294, %v9346, %v9348
    %v9350 = vrot.slane %v9235, 2
    %v9351 = vsel %vm2294, %v9348, %v9350
    %v9352 = vrot.slane %v9240, 2
    %v9353 = vsel %vm2294, %v9350, %v9352
    %v9354 = vrot.slane %v9243, 2
    %v9355 = vsel %vm2294, %v9352, %v9354
    %v9356 = vrot.slane %v9248, 2
    %v9357 = vsel %vm2294, %v9354, %v9356
    %v9358 = vrot.slane %v9251, 2
    %v9359 = vsel %vm2294, %v9356, %v9358
    %v9360 = vrot.slane %v9256, 2
    %v9361 = vsel %vm2294, %v9358, %v9360
    %v9362 = vrot.slane %v9259, 2
    %v9363 = vsel %vm2294, %v9360, %v9362
    %v9364 = vrot.slane %v9264, 2
    %v9365 = vsel %vm2294, %v9362, %v9364
    %v9366 = vrot.slane %v9267, 2
    %v9367 = vsel %vm2294, %v9364, %v9366
    %v9368 = vrot.slane %v9272, 2
    %v9369 = vsel %vm2294, %v9366, %v9368
    %v9370 = vrot.slane %v9275, 2
    %v9371 = vsel %vm2294, %v9368, %v9370
    %v9372 = vrot.slane %v9280, 2
    %v9373 = vsel %vm2294, %v9370, %v9372
    %9403 = vset.pattern.permute.xlu0 6
    %9404 = vperm.xlu0 %9403, %v5706
    %v9405 = vpop.permute.xlu0 %9404
    %9407 = vset.pattern.permute.xlu0 6
    %9408 = vperm.xlu0 %9407, %v5707
    %v9409 = vpop.permute.xlu0 %9408
    %9411 = vset.pattern.permute.xlu0 6
    %9412 = vperm.xlu0 %9411, %v5708
    %v9413 = vpop.permute.xlu0 %9412
    %9415 = vset.pattern.permute.xlu0 6
    %9416 = vperm.xlu0 %9415, %v5709
    %v9417 = vpop.permute.xlu0 %9416
    %9419 = vset.pattern.permute.xlu0 6
    %9420 = vperm.xlu0 %9419, %v5710
    %v9421 = vpop.permute.xlu0 %9420
    %9423 = vset.pattern.permute.xlu0 6
    %9424 = vperm.xlu0 %9423, %v5711
    %v9425 = vpop.permute.xlu0 %9424
    %9427 = vset.pattern.permute.xlu0 6
    %9428 = vperm.xlu0 %9427, %v5712
    %v9429 = vpop.permute.xlu0 %9428
    %9431 = vset.pattern.permute.xlu0 6
    %9432 = vperm.xlu0 %9431, %v5713
    %v9433 = vpop.permute.xlu0 %9432
    %9435 = vset.pattern.permute.xlu0 6
    %9436 = vperm.xlu0 %9435, %v5714
    %v9437 = vpop.permute.xlu0 %9436
    %9439 = vset.pattern.permute.xlu0 6
    %9440 = vperm.xlu0 %9439, %v5715
    %v9441 = vpop.permute.xlu0 %9440
    %9443 = vset.pattern.permute.xlu0 6
    %9444 = vperm.xlu0 %9443, %v5716
    %v9445 = vpop.permute.xlu0 %9444
    %9447 = vset.pattern.permute.xlu0 6
    %9448 = vperm.xlu0 %9447, %v5717
    %v9449 = vpop.permute.xlu0 %9448
    %9451 = vset.pattern.permute.xlu0 6
    %9452 = vperm.xlu0 %9451, %v5718
    %v9453 = vpop.permute.xlu0 %9452
    %9455 = vset.pattern.permute.xlu0 6
    %9456 = vperm.xlu0 %9455, %v5719
    %v9457 = vpop.permute.xlu0 %9456
    %9459 = vset.pattern.permute.xlu0 6
    %9460 = vperm.xlu0 %9459, %v5720
    %v9461 = vpop.permute.xlu0 %9460
    %9463 = vset.pattern.permute.xlu0 6
    %9464 = vperm.xlu0 %9463, %v5721
    %v9465 = vpop.permute.xlu0 %9464
    %9467 = vset.pattern.permute.xlu0 6
    %9468 = vperm.xlu0 %9467, %v5722
    %v9469 = vpop.permute.xlu0 %9468
    %9471 = vset.pattern.permute.xlu0 6
    %9472 = vperm.xlu0 %9471, %v5723
    %v9473 = vpop.permute.xlu0 %9472
    %9475 = vset.pattern.permute.xlu0 6
    %9476 = vperm.xlu0 %9475, %v5724
    %v9477 = vpop.permute.xlu0 %9476
    %9479 = vset.pattern.permute.xlu0 6
    %9480 = vperm.xlu0 %9479, %v5725
    %v9481 = vpop.permute.xlu0 %9480
    %9483 = vset.pattern.permute.xlu0 6
    %9484 = vperm.xlu0 %9483, %v5726
    %v9485 = vpop.permute.xlu0 %9484
    %9487 = vset.pattern.permute.xlu0 6
    %9488 = vperm.xlu0 %9487, %v5727
    %v9489 = vpop.permute.xlu0 %9488
    %9491 = vset.pattern.permute.xlu0 6
    %9492 = vperm.xlu0 %9491, %v5728
    %v9493 = vpop.permute.xlu0 %9492
    %9495 = vset.pattern.permute.xlu0 6
    %9496 = vperm.xlu0 %9495, %v5729
    %v9497 = vpop.permute.xlu0 %9496
    %9499 = vset.pattern.permute.xlu0 6
    %9500 = vperm.xlu0 %9499, %v5730
    %v9501 = vpop.permute.xlu0 %9500
    %9503 = vset.pattern.permute.xlu0 6
    %9504 = vperm.xlu0 %9503, %v5731
    %v9505 = vpop.permute.xlu0 %9504
    %9507 = vset.pattern.permute.xlu0 6
    %9508 = vperm.xlu0 %9507, %v5732
    %v9509 = vpop.permute.xlu0 %9508
    %9511 = vset.pattern.permute.xlu0 6
    %9512 = vperm.xlu0 %9511, %v5733
    %v9513 = vpop.permute.xlu0 %9512
    %9515 = vset.pattern.permute.xlu0 6
    %9516 = vperm.xlu0 %9515, %v5734
    %v9517 = vpop.permute.xlu0 %9516
    %9519 = vset.pattern.permute.xlu0 6
    %9520 = vperm.xlu0 %9519, %v5735
    %v9521 = vpop.permute.xlu0 %9520
    %9523 = vset.pattern.permute.xlu0 6
    %9524 = vperm.xlu0 %9523, %v5736
    %v9525 = vpop.permute.xlu0 %9524
    %v9527 = vmul.f32 %v9405, %v9317
    %v9528 = vmul.f32 %v9409, %v9319
    %v9529 = vmul.f32 %v9413, %v9321
    %v9530 = vmul.f32 %v9417, %v9323
    %v9531 = vmul.f32 %v9421, %v9325
    %v9532 = vmul.f32 %v9425, %v9327
    %v9533 = vmul.f32 %v9429, %v9329
    %v9534 = vmul.f32 %v9433, %v9331
    %v9535 = vmul.f32 %v9437, %v9333
    %v9536 = vmul.f32 %v9441, %v9335
    %v9537 = vmul.f32 %v9445, %v9337
    %v9538 = vmul.f32 %v9449, %v9339
    %v9539 = vmul.f32 %v9453, %v9341
    %v9540 = vmul.f32 %v9457, %v9343
    %v9541 = vmul.f32 %v9461, %v9345
    %v9542 = vmul.f32 %v9465, %v9347
    %v9543 = vmul.f32 %v9469, %v9349
    %v9544 = vmul.f32 %v9473, %v9351
    %v9545 = vmul.f32 %v9477, %v9353
    %v9546 = vmul.f32 %v9481, %v9355
    %v9547 = vmul.f32 %v9485, %v9357
    %v9548 = vmul.f32 %v9489, %v9359
    %v9549 = vmul.f32 %v9493, %v9361
    %v9550 = vmul.f32 %v9497, %v9363
    %v9551 = vmul.f32 %v9501, %v9365
    %v9552 = vmul.f32 %v9505, %v9367
    %v9553 = vmul.f32 %v9509, %v9369
    %v9554 = vmul.f32 %v9513, %v9371
    %v9555 = vmul.f32 %v9517, %v9373
    %v9556 = vmul.f32 %v9521, 0.0
    %v9557 = vmul.f32 %v9525, 0.0
    %v9558 = vld [vmem:[%s26] sm:$0xff]
    %v9559 = vld [vmem:[%s26 + $0x8] sm:$0xff]
    %v9560 = vld [vmem:[%s26 + $0x10] sm:$0xff]
    %v9561 = vld [vmem:[%s26 + $0x18] sm:$0xff]
    %v9562 = vld [vmem:[%s26 + $0x20] sm:$0xff]
    %v9563 = vld [vmem:[%s26 + $0x28] sm:$0xff]
    %v9564 = vld [vmem:[%s26 + $0x30] sm:$0xff]
    %v9565 = vld [vmem:[%s26 + $0x38] sm:$0xff]
    %v9566 = vld [vmem:[%s26 + $0x40] sm:$0xff]
    %v9567 = vld [vmem:[%s26 + $0x48] sm:$0xff]
    %v9568 = vld [vmem:[%s26 + $0x50] sm:$0xff]
    %v9569 = vld [vmem:[%s26 + $0x58] sm:$0xff]
    %v9570 = vld [vmem:[%s26 + $0x60] sm:$0xff]
    %v9571 = vld [vmem:[%s26 + $0x68] sm:$0xff]
    %v9572 = vld [vmem:[%s26 + $0x70] sm:$0xff]
    %v9573 = vld [vmem:[%s26 + $0x78] sm:$0xff]
    %v9574 = vld [vmem:[%s26 + $0x80] sm:$0xff]
    %v9575 = vld [vmem:[%s26 + $0x88] sm:$0xff]
    %v9576 = vld [vmem:[%s26 + $0x90] sm:$0xff]
    %v9577 = vld [vmem:[%s26 + $0x98] sm:$0xff]
    %v9578 = vld [vmem:[%s26 + $0xa0] sm:$0xff]
    %v9579 = vld [vmem:[%s26 + $0xa8] sm:$0xff]
    %v9580 = vld [vmem:[%s26 + $0xb0] sm:$0xff]
    %v9581 = vld [vmem:[%s26 + $0xb8] sm:$0xff]
    %v9582 = vld [vmem:[%s26 + $0xc0] sm:$0xff]
    %v9583 = vld [vmem:[%s26 + $0xc8] sm:$0xff]
    %v9584 = vld [vmem:[%s26 + $0xd0] sm:$0xff]
    %v9585 = vld [vmem:[%s26 + $0xd8] sm:$0xff]
    %v9586 = vld [vmem:[%s26 + $0xe0] sm:$0xff]
    %v9587 = vld [vmem:[%s26 + $0xe8] sm:$0xff]
    %v9588 = vld [vmem:[%s26 + $0xf0] sm:$0x3]
    %v9589 = vadd.f32 %v9558, %v9527
    %v9590 = vadd.f32 %v9559, %v9528
    %v9591 = vadd.f32 %v9560, %v9529
    %v9592 = vadd.f32 %v9561, %v9530
    %v9593 = vadd.f32 %v9562, %v9531
    %v9594 = vadd.f32 %v9563, %v9532
    %v9595 = vadd.f32 %v9564, %v9533
    %v9596 = vadd.f32 %v9565, %v9534
    %v9597 = vadd.f32 %v9566, %v9535
    %v9598 = vadd.f32 %v9567, %v9536
    %v9599 = vadd.f32 %v9568, %v9537
    %v9600 = vadd.f32 %v9569, %v9538
    %v9601 = vadd.f32 %v9570, %v9539
    %v9602 = vadd.f32 %v9571, %v9540
    %v9603 = vadd.f32 %v9572, %v9541
    %v9604 = vadd.f32 %v9573, %v9542
    %v9605 = vadd.f32 %v9574, %v9543
    %v9606 = vadd.f32 %v9575, %v9544
    %v9607 = vadd.f32 %v9576, %v9545
    %v9608 = vadd.f32 %v9577, %v9546
    %v9609 = vadd.f32 %v9578, %v9547
    %v9610 = vadd.f32 %v9579, %v9548
    %v9611 = vadd.f32 %v9580, %v9549
    %v9612 = vadd.f32 %v9581, %v9550
    %v9613 = vadd.f32 %v9582, %v9551
    %v9614 = vadd.f32 %v9583, %v9552
    %v9615 = vadd.f32 %v9584, %v9553
    %v9616 = vadd.f32 %v9585, %v9554
    %v9617 = vadd.f32 %v9586, %v9555
    %v9618 = vadd.f32 %v9587, %v9556
    %v9619 = vadd.f32 %v9588, %v9557
    %9620 = vst.msk [vmem:[%s26] sm:$0xff] %vm5743, %v9589
    %9621 = vst.msk [vmem:[%s26 + $0x8] sm:$0xff] %vm5743, %v9590
    %9622 = vst.msk [vmem:[%s26 + $0x10] sm:$0xff] %vm5743, %v9591
    %9623 = vst.msk [vmem:[%s26 + $0x18] sm:$0xff] %vm5743, %v9592
    %9624 = vst.msk [vmem:[%s26 + $0x20] sm:$0xff] %vm5743, %v9593
    %9625 = vst.msk [vmem:[%s26 + $0x28] sm:$0xff] %vm5743, %v9594
    %9626 = vst.msk [vmem:[%s26 + $0x30] sm:$0xff] %vm5743, %v9595
    %9627 = vst.msk [vmem:[%s26 + $0x38] sm:$0xff] %vm5743, %v9596
    %9628 = vst.msk [vmem:[%s26 + $0x40] sm:$0xff] %vm5743, %v9597
    %9629 = vst.msk [vmem:[%s26 + $0x48] sm:$0xff] %vm5743, %v9598
    %9630 = vst.msk [vmem:[%s26 + $0x50] sm:$0xff] %vm5743, %v9599
    %9631 = vst.msk [vmem:[%s26 + $0x58] sm:$0xff] %vm5743, %v9600
    %9632 = vst.msk [vmem:[%s26 + $0x60] sm:$0xff] %vm5743, %v9601
    %9633 = vst.msk [vmem:[%s26 + $0x68] sm:$0xff] %vm5743, %v9602
    %9634 = vst.msk [vmem:[%s26 + $0x70] sm:$0xff] %vm5743, %v9603
    %9635 = vst.msk [vmem:[%s26 + $0x78] sm:$0xff] %vm5743, %v9604
    %9636 = vst.msk [vmem:[%s26 + $0x80] sm:$0xff] %vm5743, %v9605
    %9637 = vst.msk [vmem:[%s26 + $0x88] sm:$0xff] %vm5743, %v9606
    %9638 = vst.msk [vmem:[%s26 + $0x90] sm:$0xff] %vm5743, %v9607
    %9639 = vst.msk [vmem:[%s26 + $0x98] sm:$0xff] %vm5743, %v9608
    %9640 = vst.msk [vmem:[%s26 + $0xa0] sm:$0xff] %vm5743, %v9609
    %9641 = vst.msk [vmem:[%s26 + $0xa8] sm:$0xff] %vm5743, %v9610
    %9642 = vst.msk [vmem:[%s26 + $0xb0] sm:$0xff] %vm5743, %v9611
    %9643 = vst.msk [vmem:[%s26 + $0xb8] sm:$0xff] %vm5743, %v9612
    %9644 = vst.msk [vmem:[%s26 + $0xc0] sm:$0xff] %vm5743, %v9613
    %9645 = vst.msk [vmem:[%s26 + $0xc8] sm:$0xff] %vm5743, %v9614
    %9646 = vst.msk [vmem:[%s26 + $0xd0] sm:$0xff] %vm5743, %v9615
    %9647 = vst.msk [vmem:[%s26 + $0xd8] sm:$0xff] %vm5743, %v9616
    %9648 = vst.msk [vmem:[%s26 + $0xe0] sm:$0xff] %vm5743, %v9617
    %9649 = vst.msk [vmem:[%s26 + $0xe8] sm:$0xff] %vm5743, %v9618
    %9650 = vst.msk [vmem:[%s26 + $0xf0] sm:$0x3] %vm5774, %v9619
    %s9651 = scalar_lea.vmem %s16, 224
    %v9652 = vld [vmem:[%s9651] sm:$0xf]
    %v9653 = vld [vmem:[%s9651 + $0x4] sm:$0xf]
    %v9654 = vld [vmem:[%s9651 + $0x8] sm:$0xf]
    %v9655 = vld [vmem:[%s9651 + $0xc] sm:$0xf]
    %v9656 = vld [vmem:[%s9651 + $0x10] sm:$0xf]
    %v9657 = vld [vmem:[%s9651 + $0x14] sm:$0xf]
    %v9658 = vld [vmem:[%s9651 + $0x18] sm:$0xf]
    %v9659 = vld [vmem:[%s9651 + $0x1c] sm:$0xf]
    %v9668 = vunpack.c.l.b16 %v9652
    %v9669 = vunpack.c.l.b16 %v9653
    %v9670 = vunpack.c.l.b16 %v9654
    %v9671 = vunpack.c.l.b16 %v9655
    %v9672 = vunpack.c.l.b16 %v9656
    %v9673 = vunpack.c.l.b16 %v9657
    %v9674 = vunpack.c.l.b16 %v9658
    %v9675 = vunpack.c.l.b16 %v9659
    %v9676 = vpack.c.b16 %v9669, %v9668
    %v9677 = vpack.c.b16 %v9671, %v9670
    %v9678 = vpack.c.b16 %v9673, %v9672
    %v9679 = vpack.c.b16 %v9675, %v9674
    %9684 = vmatprep.subr.bf16.mxu0 0
    %9685 = vmatpush1.bf16.msra.mxu0 %v9676
    %9686 = vmatprep.subr.bf16.mxu0 0
    %9687 = vmatpush1.bf16.msra.mxu0 %v9677
    %9688 = vmatprep.subr.bf16.mxu0 0
    %9689 = vmatpush1.bf16.msra.mxu0 %v9678
    %9690 = vmatprep.subr.bf16.mxu0 0
    %9691 = vmatpush1.bf16.msra.mxu0 %v9679
    %9692 = vmatprep.subr.bf16.mxu0 0
    %9693 = vmatpush1.bf16.msra.mxu0 0
    %9694 = vmatprep.subr.bf16.mxu0 0
    %9695 = vmatpush1.bf16.msra.mxu0 0
    %9696 = vmatprep.subr.bf16.mxu0 0
    %9697 = vmatpush1.bf16.msra.mxu0 0
    %9698 = vmatprep.subr.bf16.mxu0 0
    %9699 = vmatpush1.bf16.msra.mxu0 0
    %9700 = vmatprep.subr.bf16.mxu0 0
    %9701 = vmatpush1.bf16.msra.mxu0 0
    %9702 = vmatprep.subr.bf16.mxu0 0
    %9703 = vmatpush1.bf16.msra.mxu0 0
    %9704 = vmatprep.subr.bf16.mxu0 0
    %9705 = vmatpush1.bf16.msra.mxu0 0
    %9706 = vmatprep.subr.bf16.mxu0 0
    %9707 = vmatpush1.bf16.msra.mxu0 0
    %9708 = vmatprep.subr.bf16.mxu0 0
    %9709 = vmatpush1.bf16.msra.mxu0 0
    %9710 = vmatprep.subr.bf16.mxu0 0
    %9711 = vmatpush1.bf16.msra.mxu0 0
    %9712 = vmatprep.subr.bf16.mxu0 0
    %9713 = vmatpush1.bf16.msra.mxu0 0
    %9714 = vmatprep.subr.bf16.mxu0 0
    %9715 = vmatpush1.bf16.msra.mxu0 0
    %9716 = vmatprep.mubr.bf16.mxu0 0
    %9717 = vmatmul.mubr.bf16.gmra.mrb[0].mxu0 %v5809
    %v9718 = vpop.f32.mrb[0].mxu0
    %v9719 = vpop.f32.mrb[0].mxu0
    %v9720 = vpop.f32.mrb[0].mxu0
    %v9721 = vadd.f32 0.0, %v9720
    %v9722 = vpop.f32.mrb[0].mxu0
    %9723 = vmatprep.mubr.bf16.mxu0 0
    %9724 = vmatmul.mubr.bf16.gmra.mrb[0].mxu0 %v5812
    %v9725 = vpop.f32.mrb[0].mxu0
    %v9726 = vadd.f32 0.0, %v9725
    %v9727 = vpop.f32.mrb[0].mxu0
    %v9728 = vpop.f32.mrb[0].mxu0
    %v9729 = vadd.f32 0.0, %v9728
    %v9730 = vpop.f32.mrb[0].mxu0
    %9731 = vmatprep.mubr.bf16.mxu0 0
    %9732 = vmatmul.mubr.bf16.gmra.mrb[0].mxu0 %v5815
    %v9733 = vpop.f32.mrb[0].mxu0
    %v9734 = vadd.f32 0.0, %v9733
    %v9735 = vpop.f32.mrb[0].mxu0
    %v9736 = vpop.f32.mrb[0].mxu0
    %v9737 = vadd.f32 0.0, %v9736
    %v9738 = vpop.f32.mrb[0].mxu0
    %9739 = vmatprep.mubr.bf16.mxu0 0
    %9740 = vmatmul.mubr.bf16.gmra.mrb[0].mxu0 %v5818
    %v9741 = vpop.f32.mrb[0].mxu0
    %v9742 = vadd.f32 0.0, %v9741
    %v9743 = vpop.f32.mrb[0].mxu0
    %v9744 = vpop.f32.mrb[0].mxu0
    %v9745 = vadd.f32 0.0, %v9744
    %v9746 = vpop.f32.mrb[0].mxu0
    %9747 = vmatprep.mubr.bf16.mxu0 0
    %9748 = vmatmul.mubr.bf16.gmra.mrb[0].mxu0 %v5821
    %v9749 = vpop.f32.mrb[0].mxu0
    %v9750 = vadd.f32 0.0, %v9749
    %v9751 = vpop.f32.mrb[0].mxu0
    %v9752 = vpop.f32.mrb[0].mxu0
    %v9753 = vadd.f32 0.0, %v9752
    %v9754 = vpop.f32.mrb[0].mxu0
    %9755 = vmatprep.mubr.bf16.mxu0 0
    %9756 = vmatmul.mubr.bf16.gmra.mrb[0].mxu0 %v5824
    %v9757 = vpop.f32.mrb[0].mxu0
    %v9758 = vadd.f32 0.0, %v9757
    %v9759 = vpop.f32.mrb[0].mxu0
    %v9760 = vpop.f32.mrb[0].mxu0
    %v9761 = vadd.f32 0.0, %v9760
    %v9762 = vpop.f32.mrb[0].mxu0
    %9763 = vmatprep.mubr.bf16.mxu0 0
    %9764 = vmatmul.mubr.bf16.gmra.mrb[0].mxu0 %v5827
    %v9765 = vpop.f32.mrb[0].mxu0
    %v9766 = vadd.f32 0.0, %v9765
    %v9767 = vpop.f32.mrb[0].mxu0
    %v9768 = vpop.f32.mrb[0].mxu0
    %v9769 = vadd.f32 0.0, %v9768
    %v9770 = vpop.f32.mrb[0].mxu0
    %9771 = vmatprep.mubr.bf16.mxu0 0
    %9772 = vmatmul.mubr.bf16.gmra.mrb[0].mxu0 %v5830
    %v9773 = vpop.f32.mrb[0].mxu0
    %v9774 = vadd.f32 0.0, %v9773
    %v9775 = vpop.f32.mrb[0].mxu0
    %v9776 = vpop.f32.mrb[0].mxu0
    %v9777 = vadd.f32 0.0, %v9776
    %v9778 = vpop.f32.mrb[0].mxu0
    %9779 = vmatprep.mubr.bf16.mxu0 0
    %9780 = vmatmul.mubr.bf16.gmra.mrb[0].mxu0 %v5833
    %v9781 = vpop.f32.mrb[0].mxu0
    %v9782 = vadd.f32 0.0, %v9781
    %v9783 = vpop.f32.mrb[0].mxu0
    %v9784 = vpop.f32.mrb[0].mxu0
    %v9785 = vadd.f32 0.0, %v9784
    %v9786 = vpop.f32.mrb[0].mxu0
    %9787 = vmatprep.mubr.bf16.mxu0 0
    %9788 = vmatmul.mubr.bf16.gmra.mrb[0].mxu0 %v5836
    %v9789 = vpop.f32.mrb[0].mxu0
    %v9790 = vadd.f32 0.0, %v9789
    %v9791 = vpop.f32.mrb[0].mxu0
    %v9792 = vpop.f32.mrb[0].mxu0
    %v9793 = vadd.f32 0.0, %v9792
    %v9794 = vpop.f32.mrb[0].mxu0
    %9795 = vmatprep.mubr.bf16.mxu0 0
    %9796 = vmatmul.mubr.bf16.gmra.mrb[0].mxu0 %v5839
    %v9797 = vpop.f32.mrb[0].mxu0
    %v9798 = vadd.f32 0.0, %v9797
    %v9799 = vpop.f32.mrb[0].mxu0
    %v9800 = vpop.f32.mrb[0].mxu0
    %v9801 = vadd.f32 0.0, %v9800
    %v9802 = vpop.f32.mrb[0].mxu0
    %9803 = vmatprep.mubr.bf16.mxu0 0
    %9804 = vmatmul.mubr.bf16.gmra.mrb[0].mxu0 %v5842
    %v9805 = vpop.f32.mrb[0].mxu0
    %v9806 = vadd.f32 0.0, %v9805
    %v9807 = vpop.f32.mrb[0].mxu0
    %v9808 = vpop.f32.mrb[0].mxu0
    %v9809 = vadd.f32 0.0, %v9808
    %v9810 = vpop.f32.mrb[0].mxu0
    %9811 = vmatprep.mubr.bf16.mxu0 0
    %9812 = vmatmul.mubr.bf16.gmra.mrb[0].mxu0 %v5845
    %v9813 = vpop.f32.mrb[0].mxu0
    %v9814 = vadd.f32 0.0, %v9813
    %v9815 = vpop.f32.mrb[0].mxu0
    %v9816 = vpop.f32.mrb[0].mxu0
    %v9817 = vadd.f32 0.0, %v9816
    %v9818 = vpop.f32.mrb[0].mxu0
    %9819 = vmatprep.mubr.bf16.mxu0 0
    %9820 = vmatmul.mubr.bf16.gmra.mrb[0].mxu0 %v5848
    %v9821 = vpop.f32.mrb[0].mxu0
    %v9822 = vadd.f32 0.0, %v9821
    %v9823 = vpop.f32.mrb[0].mxu0
    %v9824 = vpop.f32.mrb[0].mxu0
    %v9825 = vadd.f32 0.0, %v9824
    %v9826 = vpop.f32.mrb[0].mxu0
    %9827 = vmatprep.mubr.bf16.mxu0 0
    %9828 = vmatmul.mubr.bf16.gmra.mrb[0].mxu0 %v5851
    %v9829 = vpop.f32.mrb[0].mxu0
    %v9830 = vadd.f32 0.0, %v9829
    %v9831 = vpop.f32.mrb[0].mxu0
    %v9832 = vpop.f32.mrb[0].mxu0
    %v9833 = vadd.f32 0.0, %v9832
    %v9834 = vpop.f32.mrb[0].mxu0
    %9835 = vmatprep.mubr.bf16.mxu0 0
    %9836 = vmatmul.mubr.bf16.gmra.mrb[0].mxu0 %v5854
    %v9837 = vpop.f32.mrb[0].mxu0
    %v9838 = vadd.f32 0.0, %v9837
    %v9839 = vpop.f32.mrb[0].mxu0
    %v9840 = vpop.f32.mrb[0].mxu0
    %v9841 = vpop.f32.mrb[0].mxu0
    %9842 = vdwg.mxu0
    %v9873 = vrot.slane %v9721, 3
    %v9874 = vrot.slane %v9726, 3
    %v9875 = vsel %vm2500, %v9873, %v9874
    %v9876 = vrot.slane %v9729, 3
    %v9877 = vsel %vm2500, %v9874, %v9876
    %v9878 = vrot.slane %v9734, 3
    %v9879 = vsel %vm2500, %v9876, %v9878
    %v9880 = vrot.slane %v9737, 3
    %v9881 = vsel %vm2500, %v9878, %v9880
    %v9882 = vrot.slane %v9742, 3
    %v9883 = vsel %vm2500, %v9880, %v9882
    %v9884 = vrot.slane %v9745, 3
    %v9885 = vsel %vm2500, %v9882, %v9884
    %v9886 = vrot.slane %v9750, 3
    %v9887 = vsel %vm2500, %v9884, %v9886
    %v9888 = vrot.slane %v9753, 3
    %v9889 = vsel %vm2500, %v9886, %v9888
    %v9890 = vrot.slane %v9758, 3
    %v9891 = vsel %vm2500, %v9888, %v9890
    %v9892 = vrot.slane %v9761, 3
    %v9893 = vsel %vm2500, %v9890, %v9892
    %v9894 = vrot.slane %v9766, 3
    %v9895 = vsel %vm2500, %v9892, %v9894
    %v9896 = vrot.slane %v9769, 3
    %v9897 = vsel %vm2500, %v9894, %v9896
    %v9898 = vrot.slane %v9774, 3
    %v9899 = vsel %vm2500, %v9896, %v9898
    %v9900 = vrot.slane %v9777, 3
    %v9901 = vsel %vm2500, %v9898, %v9900
    %v9902 = vrot.slane %v9782, 3
    %v9903 = vsel %vm2500, %v9900, %v9902
    %v9904 = vrot.slane %v9785, 3
    %v9905 = vsel %vm2500, %v9902, %v9904
    %v9906 = vrot.slane %v9790, 3
    %v9907 = vsel %vm2500, %v9904, %v9906
    %v9908 = vrot.slane %v9793, 3
    %v9909 = vsel %vm2500, %v9906, %v9908
    %v9910 = vrot.slane %v9798, 3
    %v9911 = vsel %vm2500, %v9908, %v9910
    %v9912 = vrot.slane %v9801, 3
    %v9913 = vsel %vm2500, %v9910, %v9912
    %v9914 = vrot.slane %v9806, 3
    %v9915 = vsel %vm2500, %v9912, %v9914
    %v9916 = vrot.slane %v9809, 3
    %v9917 = vsel %vm2500, %v9914, %v9916
    %v9918 = vrot.slane %v9814, 3
    %v9919 = vsel %vm2500, %v9916, %v9918
    %v9920 = vrot.slane %v9817, 3
    %v9921 = vsel %vm2500, %v9918, %v9920
    %v9922 = vrot.slane %v9822, 3
    %v9923 = vsel %vm2500, %v9920, %v9922
    %v9924 = vrot.slane %v9825, 3
    %v9925 = vsel %vm2500, %v9922, %v9924
    %v9926 = vrot.slane %v9830, 3
    %v9927 = vsel %vm2500, %v9924, %v9926
    %v9928 = vrot.slane %v9833, 3
    %v9929 = vsel %vm2500, %v9926, %v9928
    %v9930 = vrot.slane %v9838, 3
    %v9931 = vsel %vm2500, %v9928, %v9930
    %v9961 = vsel %vm2086, %v9931, 0.0
    %9962 = vset.pattern.permute.xlu0 7
    %9963 = vperm.xlu0 %9962, %v5706
    %v9964 = vpop.permute.xlu0 %9963
    %9966 = vset.pattern.permute.xlu0 7
    %9967 = vperm.xlu0 %9966, %v5707
    %v9968 = vpop.permute.xlu0 %9967
    %9970 = vset.pattern.permute.xlu0 7
    %9971 = vperm.xlu0 %9970, %v5708
    %v9972 = vpop.permute.xlu0 %9971
    %9974 = vset.pattern.permute.xlu0 7
    %9975 = vperm.xlu0 %9974, %v5709
    %v9976 = vpop.permute.xlu0 %9975
    %9978 = vset.pattern.permute.xlu0 7
    %9979 = vperm.xlu0 %9978, %v5710
    %v9980 = vpop.permute.xlu0 %9979
    %9982 = vset.pattern.permute.xlu0 7
    %9983 = vperm.xlu0 %9982, %v5711
    %v9984 = vpop.permute.xlu0 %9983
    %9986 = vset.pattern.permute.xlu0 7
    %9987 = vperm.xlu0 %9986, %v5712
    %v9988 = vpop.permute.xlu0 %9987
    %9990 = vset.pattern.permute.xlu0 7
    %9991 = vperm.xlu0 %9990, %v5713
    %v9992 = vpop.permute.xlu0 %9991
    %9994 = vset.pattern.permute.xlu0 7
    %9995 = vperm.xlu0 %9994, %v5714
    %v9996 = vpop.permute.xlu0 %9995
    %9998 = vset.pattern.permute.xlu0 7
    %9999 = vperm.xlu0 %9998, %v5715
    %v10000 = vpop.permute.xlu0 %9999
    %10002 = vset.pattern.permute.xlu0 7
    %10003 = vperm.xlu0 %10002, %v5716
    %v10004 = vpop.permute.xlu0 %10003
    %10006 = vset.pattern.permute.xlu0 7
    %10007 = vperm.xlu0 %10006, %v5717
    %v10008 = vpop.permute.xlu0 %10007
    %10010 = vset.pattern.permute.xlu0 7
    %10011 = vperm.xlu0 %10010, %v5718
    %v10012 = vpop.permute.xlu0 %10011
    %10014 = vset.pattern.permute.xlu0 7
    %10015 = vperm.xlu0 %10014, %v5719
    %v10016 = vpop.permute.xlu0 %10015
    %10018 = vset.pattern.permute.xlu0 7
    %10019 = vperm.xlu0 %10018, %v5720
    %v10020 = vpop.permute.xlu0 %10019
    %10022 = vset.pattern.permute.xlu0 7
    %10023 = vperm.xlu0 %10022, %v5721
    %v10024 = vpop.permute.xlu0 %10023
    %10026 = vset.pattern.permute.xlu0 7
    %10027 = vperm.xlu0 %10026, %v5722
    %v10028 = vpop.permute.xlu0 %10027
    %10030 = vset.pattern.permute.xlu0 7
    %10031 = vperm.xlu0 %10030, %v5723
    %v10032 = vpop.permute.xlu0 %10031
    %10034 = vset.pattern.permute.xlu0 7
    %10035 = vperm.xlu0 %10034, %v5724
    %v10036 = vpop.permute.xlu0 %10035
    %10038 = vset.pattern.permute.xlu0 7
    %10039 = vperm.xlu0 %10038, %v5725
    %v10040 = vpop.permute.xlu0 %10039
    %10042 = vset.pattern.permute.xlu0 7
    %10043 = vperm.xlu0 %10042, %v5726
    %v10044 = vpop.permute.xlu0 %10043
    %10046 = vset.pattern.permute.xlu0 7
    %10047 = vperm.xlu0 %10046, %v5727
    %v10048 = vpop.permute.xlu0 %10047
    %10050 = vset.pattern.permute.xlu0 7
    %10051 = vperm.xlu0 %10050, %v5728
    %v10052 = vpop.permute.xlu0 %10051
    %10054 = vset.pattern.permute.xlu0 7
    %10055 = vperm.xlu0 %10054, %v5729
    %v10056 = vpop.permute.xlu0 %10055
    %10058 = vset.pattern.permute.xlu0 7
    %10059 = vperm.xlu0 %10058, %v5730
    %v10060 = vpop.permute.xlu0 %10059
    %10062 = vset.pattern.permute.xlu0 7
    %10063 = vperm.xlu0 %10062, %v5731
    %v10064 = vpop.permute.xlu0 %10063
    %10066 = vset.pattern.permute.xlu0 7
    %10067 = vperm.xlu0 %10066, %v5732
    %v10068 = vpop.permute.xlu0 %10067
    %10070 = vset.pattern.permute.xlu0 7
    %10071 = vperm.xlu0 %10070, %v5733
    %v10072 = vpop.permute.xlu0 %10071
    %10074 = vset.pattern.permute.xlu0 7
    %10075 = vperm.xlu0 %10074, %v5734
    %v10076 = vpop.permute.xlu0 %10075
    %10078 = vset.pattern.permute.xlu0 7
    %10079 = vperm.xlu0 %10078, %v5735
    %v10080 = vpop.permute.xlu0 %10079
    %10082 = vset.pattern.permute.xlu0 7
    %10083 = vperm.xlu0 %10082, %v5736
    %v10084 = vpop.permute.xlu0 %10083
    %v10086 = vmul.f32 %v9964, %v9875
    %v10087 = vmul.f32 %v9968, %v9877
    %v10088 = vmul.f32 %v9972, %v9879
    %v10089 = vmul.f32 %v9976, %v9881
    %v10090 = vmul.f32 %v9980, %v9883
    %v10091 = vmul.f32 %v9984, %v9885
    %v10092 = vmul.f32 %v9988, %v9887
    %v10093 = vmul.f32 %v9992, %v9889
    %v10094 = vmul.f32 %v9996, %v9891
    %v10095 = vmul.f32 %v10000, %v9893
    %v10096 = vmul.f32 %v10004, %v9895
    %v10097 = vmul.f32 %v10008, %v9897
    %v10098 = vmul.f32 %v10012, %v9899
    %v10099 = vmul.f32 %v10016, %v9901
    %v10100 = vmul.f32 %v10020, %v9903
    %v10101 = vmul.f32 %v10024, %v9905
    %v10102 = vmul.f32 %v10028, %v9907
    %v10103 = vmul.f32 %v10032, %v9909
    %v10104 = vmul.f32 %v10036, %v9911
    %v10105 = vmul.f32 %v10040, %v9913
    %v10106 = vmul.f32 %v10044, %v9915
    %v10107 = vmul.f32 %v10048, %v9917
    %v10108 = vmul.f32 %v10052, %v9919
    %v10109 = vmul.f32 %v10056, %v9921
    %v10110 = vmul.f32 %v10060, %v9923
    %v10111 = vmul.f32 %v10064, %v9925
    %v10112 = vmul.f32 %v10068, %v9927
    %v10113 = vmul.f32 %v10072, %v9929
    %v10114 = vmul.f32 %v10076, %v9961
    %v10115 = vmul.f32 %v10080, 0.0
    %v10116 = vmul.f32 %v10084, 0.0
    %v10117 = vld [vmem:[%s26] sm:$0xff]
    %v10118 = vld [vmem:[%s26 + $0x8] sm:$0xff]
    %v10119 = vld [vmem:[%s26 + $0x10] sm:$0xff]
    %v10120 = vld [vmem:[%s26 + $0x18] sm:$0xff]
    %v10121 = vld [vmem:[%s26 + $0x20] sm:$0xff]
    %v10122 = vld [vmem:[%s26 + $0x28] sm:$0xff]
    %v10123 = vld [vmem:[%s26 + $0x30] sm:$0xff]
    %v10124 = vld [vmem:[%s26 + $0x38] sm:$0xff]
    %v10125 = vld [vmem:[%s26 + $0x40] sm:$0xff]
    %v10126 = vld [vmem:[%s26 + $0x48] sm:$0xff]
    %v10127 = vld [vmem:[%s26 + $0x50] sm:$0xff]
    %v10128 = vld [vmem:[%s26 + $0x58] sm:$0xff]
    %v10129 = vld [vmem:[%s26 + $0x60] sm:$0xff]
    %v10130 = vld [vmem:[%s26 + $0x68] sm:$0xff]
    %v10131 = vld [vmem:[%s26 + $0x70] sm:$0xff]
    %v10132 = vld [vmem:[%s26 + $0x78] sm:$0xff]
    %v10133 = vld [vmem:[%s26 + $0x80] sm:$0xff]
    %v10134 = vld [vmem:[%s26 + $0x88] sm:$0xff]
    %v10135 = vld [vmem:[%s26 + $0x90] sm:$0xff]
    %v10136 = vld [vmem:[%s26 + $0x98] sm:$0xff]
    %v10137 = vld [vmem:[%s26 + $0xa0] sm:$0xff]
    %v10138 = vld [vmem:[%s26 + $0xa8] sm:$0xff]
    %v10139 = vld [vmem:[%s26 + $0xb0] sm:$0xff]
    %v10140 = vld [vmem:[%s26 + $0xb8] sm:$0xff]
    %v10141 = vld [vmem:[%s26 + $0xc0] sm:$0xff]
    %v10142 = vld [vmem:[%s26 + $0xc8] sm:$0xff]
    %v10143 = vld [vmem:[%s26 + $0xd0] sm:$0xff]
    %v10144 = vld [vmem:[%s26 + $0xd8] sm:$0xff]
    %v10145 = vld [vmem:[%s26 + $0xe0] sm:$0xff]
    %v10146 = vld [vmem:[%s26 + $0xe8] sm:$0xff]
    %v10147 = vld [vmem:[%s26 + $0xf0] sm:$0x3]
    %v10148 = vadd.f32 %v10117, %v10086
    %v10149 = vadd.f32 %v10118, %v10087
    %v10150 = vadd.f32 %v10119, %v10088
    %v10151 = vadd.f32 %v10120, %v10089
    %v10152 = vadd.f32 %v10121, %v10090
    %v10153 = vadd.f32 %v10122, %v10091
    %v10154 = vadd.f32 %v10123, %v10092
    %v10155 = vadd.f32 %v10124, %v10093
    %v10156 = vadd.f32 %v10125, %v10094
    %v10157 = vadd.f32 %v10126, %v10095
    %v10158 = vadd.f32 %v10127, %v10096
    %v10159 = vadd.f32 %v10128, %v10097
    %v10160 = vadd.f32 %v10129, %v10098
    %v10161 = vadd.f32 %v10130, %v10099
    %v10162 = vadd.f32 %v10131, %v10100
    %v10163 = vadd.f32 %v10132, %v10101
    %v10164 = vadd.f32 %v10133, %v10102
    %v10165 = vadd.f32 %v10134, %v10103
    %v10166 = vadd.f32 %v10135, %v10104
    %v10167 = vadd.f32 %v10136, %v10105
    %v10168 = vadd.f32 %v10137, %v10106
    %v10169 = vadd.f32 %v10138, %v10107
    %v10170 = vadd.f32 %v10139, %v10108
    %v10171 = vadd.f32 %v10140, %v10109
    %v10172 = vadd.f32 %v10141, %v10110
    %v10173 = vadd.f32 %v10142, %v10111
    %v10174 = vadd.f32 %v10143, %v10112
    %v10175 = vadd.f32 %v10144, %v10113
    %v10176 = vadd.f32 %v10145, %v10114
    %v10177 = vadd.f32 %v10146, %v10115
    %v10178 = vadd.f32 %v10147, %v10116
    %10179 = vst.msk [vmem:[%s26] sm:$0xff] %vm5743, %v10148
    %10180 = vst.msk [vmem:[%s26 + $0x8] sm:$0xff] %vm5743, %v10149
    %10181 = vst.msk [vmem:[%s26 + $0x10] sm:$0xff] %vm5743, %v10150
    %10182 = vst.msk [vmem:[%s26 + $0x18] sm:$0xff] %vm5743, %v10151
    %10183 = vst.msk [vmem:[%s26 + $0x20] sm:$0xff] %vm5743, %v10152
    %10184 = vst.msk [vmem:[%s26 + $0x28] sm:$0xff] %vm5743, %v10153
    %10185 = vst.msk [vmem:[%s26 + $0x30] sm:$0xff] %vm5743, %v10154
    %10186 = vst.msk [vmem:[%s26 + $0x38] sm:$0xff] %vm5743, %v10155
    %10187 = vst.msk [vmem:[%s26 + $0x40] sm:$0xff] %vm5743, %v10156
    %10188 = vst.msk [vmem:[%s26 + $0x48] sm:$0xff] %vm5743, %v10157
    %10189 = vst.msk [vmem:[%s26 + $0x50] sm:$0xff] %vm5743, %v10158
    %10190 = vst.msk [vmem:[%s26 + $0x58] sm:$0xff] %vm5743, %v10159
    %10191 = vst.msk [vmem:[%s26 + $0x60] sm:$0xff] %vm5743, %v10160
    %10192 = vst.msk [vmem:[%s26 + $0x68] sm:$0xff] %vm5743, %v10161
    %10193 = vst.msk [vmem:[%s26 + $0x70] sm:$0xff] %vm5743, %v10162
    %10194 = vst.msk [vmem:[%s26 + $0x78] sm:$0xff] %vm5743, %v10163
    %10195 = vst.msk [vmem:[%s26 + $0x80] sm:$0xff] %vm5743, %v10164
    %10196 = vst.msk [vmem:[%s26 + $0x88] sm:$0xff] %vm5743, %v10165
    %10197 = vst.msk [vmem:[%s26 + $0x90] sm:$0xff] %vm5743, %v10166
    %10198 = vst.msk [vmem:[%s26 + $0x98] sm:$0xff] %vm5743, %v10167
    %10199 = vst.msk [vmem:[%s26 + $0xa0] sm:$0xff] %vm5743, %v10168
    %10200 = vst.msk [vmem:[%s26 + $0xa8] sm:$0xff] %vm5743, %v10169
    %10201 = vst.msk [vmem:[%s26 + $0xb0] sm:$0xff] %vm5743, %v10170
    %10202 = vst.msk [vmem:[%s26 + $0xb8] sm:$0xff] %vm5743, %v10171
    %10203 = vst.msk [vmem:[%s26 + $0xc0] sm:$0xff] %vm5743, %v10172
    %10204 = vst.msk [vmem:[%s26 + $0xc8] sm:$0xff] %vm5743, %v10173
    %10205 = vst.msk [vmem:[%s26 + $0xd0] sm:$0xff] %vm5743, %v10174
    %10206 = vst.msk [vmem:[%s26 + $0xd8] sm:$0xff] %vm5743, %v10175
    %10207 = vst.msk [vmem:[%s26 + $0xe0] sm:$0xff] %vm5743, %v10176
    %10208 = vst.msk [vmem:[%s26 + $0xe8] sm:$0xff] %vm5743, %v10177
    %10209 = vst.msk [vmem:[%s26 + $0xf0] sm:$0x3] %vm5774, %v10178
    %s10210 = scalar_lea.vmem %s16, 256
    %v10211 = vld [vmem:[%s10210] sm:$0xf]
    %v10212 = vld [vmem:[%s10210 + $0x4] sm:$0xf]
    %v10213 = vld [vmem:[%s10210 + $0x8] sm:$0xf]
    %v10214 = vld [vmem:[%s10210 + $0xc] sm:$0xf]
    %v10215 = vld [vmem:[%s10210 + $0x10] sm:$0xf]
    %v10216 = vld [vmem:[%s10210 + $0x14] sm:$0xf]
    %v10217 = vld [vmem:[%s10210 + $0x18] sm:$0xf]
    %v10218 = vld [vmem:[%s10210 + $0x1c] sm:$0xf]
    %v10227 = vunpack.c.l.b16 %v10211
    %v10228 = vunpack.c.l.b16 %v10212
    %v10229 = vunpack.c.l.b16 %v10213
    %v10230 = vunpack.c.l.b16 %v10214
    %v10231 = vunpack.c.l.b16 %v10215
    %v10232 = vunpack.c.l.b16 %v10216
    %v10233 = vunpack.c.l.b16 %v10217
    %v10234 = vunpack.c.l.b16 %v10218
    %v10235 = vpack.c.b16 %v10228, %v10227
    %v10236 = vpack.c.b16 %v10230, %v10229
    %v10237 = vpack.c.b16 %v10232, %v10231
    %v10238 = vpack.c.b16 %v10234, %v10233
    %10243 = vmatprep.subr.bf16.mxu0 0
    %10244 = vmatpush1.bf16.msra.mxu0 %v10235
    %10245 = vmatprep.subr.bf16.mxu0 0
    %10246 = vmatpush1.bf16.msra.mxu0 %v10236
    %10247 = vmatprep.subr.bf16.mxu0 0
    %10248 = vmatpush1.bf16.msra.mxu0 %v10237
    %10249 = vmatprep.subr.bf16.mxu0 0
    %10250 = vmatpush1.bf16.msra.mxu0 %v10238
    %10251 = vmatprep.subr.bf16.mxu0 0
    %10252 = vmatpush1.bf16.msra.mxu0 0
    %10253 = vmatprep.subr.bf16.mxu0 0
    %10254 = vmatpush1.bf16.msra.mxu0 0
    %10255 = vmatprep.subr.bf16.mxu0 0
    %10256 = vmatpush1.bf16.msra.mxu0 0
    %10257 = vmatprep.subr.bf16.mxu0 0
    %10258 = vmatpush1.bf16.msra.mxu0 0
    %10259 = vmatprep.subr.bf16.mxu0 0
    %10260 = vmatpush1.bf16.msra.mxu0 0
    %10261 = vmatprep.subr.bf16.mxu0 0
    %10262 = vmatpush1.bf16.msra.mxu0 0
    %10263 = vmatprep.subr.bf16.mxu0 0
    %10264 = vmatpush1.bf16.msra.mxu0 0
    %10265 = vmatprep.subr.bf16.mxu0 0
    %10266 = vmatpush1.bf16.msra.mxu0 0
    %10267 = vmatprep.subr.bf16.mxu0 0
    %10268 = vmatpush1.bf16.msra.mxu0 0
    %10269 = vmatprep.subr.bf16.mxu0 0
    %10270 = vmatpush1.bf16.msra.mxu0 0
    %10271 = vmatprep.subr.bf16.mxu0 0
    %10272 = vmatpush1.bf16.msra.mxu0 0
    %10273 = vmatprep.subr.bf16.mxu0 0
    %10274 = vmatpush1.bf16.msra.mxu0 0
    %10275 = vmatprep.mubr.bf16.mxu0 0
    %10276 = vmatmul.mubr.bf16.gmra.mrb[0].mxu0 %v5809
    %v10277 = vpop.f32.mrb[0].mxu0
    %v10278 = vpop.f32.mrb[0].mxu0
    %v10279 = vpop.f32.mrb[0].mxu0
    %v10280 = vadd.f32 0.0, %v10279
    %v10281 = vpop.f32.mrb[0].mxu0
    %10282 = vmatprep.mubr.bf16.mxu0 0
    %10283 = vmatmul.mubr.bf16.gmra.mrb[0].mxu0 %v5812
    %v10284 = vpop.f32.mrb[0].mxu0
    %v10285 = vadd.f32 0.0, %v10284
    %v10286 = vpop.f32.mrb[0].mxu0
    %v10287 = vpop.f32.mrb[0].mxu0
    %v10288 = vadd.f32 0.0, %v10287
    %v10289 = vpop.f32.mrb[0].mxu0
    %10290 = vmatprep.mubr.bf16.mxu0 0
    %10291 = vmatmul.mubr.bf16.gmra.mrb[0].mxu0 %v5815
    %v10292 = vpop.f32.mrb[0].mxu0
    %v10293 = vadd.f32 0.0, %v10292
    %v10294 = vpop.f32.mrb[0].mxu0
    %v10295 = vpop.f32.mrb[0].mxu0
    %v10296 = vadd.f32 0.0, %v10295
    %v10297 = vpop.f32.mrb[0].mxu0
    %10298 = vmatprep.mubr.bf16.mxu0 0
    %10299 = vmatmul.mubr.bf16.gmra.mrb[0].mxu0 %v5818
    %v10300 = vpop.f32.mrb[0].mxu0
    %v10301 = vadd.f32 0.0, %v10300
    %v10302 = vpop.f32.mrb[0].mxu0
    %v10303 = vpop.f32.mrb[0].mxu0
    %v10304 = vadd.f32 0.0, %v10303
    %v10305 = vpop.f32.mrb[0].mxu0
    %10306 = vmatprep.mubr.bf16.mxu0 0
    %10307 = vmatmul.mubr.bf16.gmra.mrb[0].mxu0 %v5821
    %v10308 = vpop.f32.mrb[0].mxu0
    %v10309 = vadd.f32 0.0, %v10308
    %v10310 = vpop.f32.mrb[0].mxu0
    %v10311 = vpop.f32.mrb[0].mxu0
    %v10312 = vadd.f32 0.0, %v10311
    %v10313 = vpop.f32.mrb[0].mxu0
    %10314 = vmatprep.mubr.bf16.mxu0 0
    %10315 = vmatmul.mubr.bf16.gmra.mrb[0].mxu0 %v5824
    %v10316 = vpop.f32.mrb[0].mxu0
    %v10317 = vadd.f32 0.0, %v10316
    %v10318 = vpop.f32.mrb[0].mxu0
    %v10319 = vpop.f32.mrb[0].mxu0
    %v10320 = vadd.f32 0.0, %v10319
    %v10321 = vpop.f32.mrb[0].mxu0
    %10322 = vmatprep.mubr.bf16.mxu0 0
    %10323 = vmatmul.mubr.bf16.gmra.mrb[0].mxu0 %v5827
    %v10324 = vpop.f32.mrb[0].mxu0
    %v10325 = vadd.f32 0.0, %v10324
    %v10326 = vpop.f32.mrb[0].mxu0
    %v10327 = vpop.f32.mrb[0].mxu0
    %v10328 = vadd.f32 0.0, %v10327
    %v10329 = vpop.f32.mrb[0].mxu0
    %10330 = vmatprep.mubr.bf16.mxu0 0
    %10331 = vmatmul.mubr.bf16.gmra.mrb[0].mxu0 %v5830
    %v10332 = vpop.f32.mrb[0].mxu0
    %v10333 = vadd.f32 0.0, %v10332
    %v10334 = vpop.f32.mrb[0].mxu0
    %v10335 = vpop.f32.mrb[0].mxu0
    %v10336 = vadd.f32 0.0, %v10335
    %v10337 = vpop.f32.mrb[0].mxu0
    %10338 = vmatprep.mubr.bf16.mxu0 0
    %10339 = vmatmul.mubr.bf16.gmra.mrb[0].mxu0 %v5833
    %v10340 = vpop.f32.mrb[0].mxu0
    %v10341 = vadd.f32 0.0, %v10340
    %v10342 = vpop.f32.mrb[0].mxu0
    %v10343 = vpop.f32.mrb[0].mxu0
    %v10344 = vadd.f32 0.0, %v10343
    %v10345 = vpop.f32.mrb[0].mxu0
    %10346 = vmatprep.mubr.bf16.mxu0 0
    %10347 = vmatmul.mubr.bf16.gmra.mrb[0].mxu0 %v5836
    %v10348 = vpop.f32.mrb[0].mxu0
    %v10349 = vadd.f32 0.0, %v10348
    %v10350 = vpop.f32.mrb[0].mxu0
    %v10351 = vpop.f32.mrb[0].mxu0
    %v10352 = vadd.f32 0.0, %v10351
    %v10353 = vpop.f32.mrb[0].mxu0
    %10354 = vmatprep.mubr.bf16.mxu0 0
    %10355 = vmatmul.mubr.bf16.gmra.mrb[0].mxu0 %v5839
    %v10356 = vpop.f32.mrb[0].mxu0
    %v10357 = vadd.f32 0.0, %v10356
    %v10358 = vpop.f32.mrb[0].mxu0
    %v10359 = vpop.f32.mrb[0].mxu0
    %v10360 = vadd.f32 0.0, %v10359
    %v10361 = vpop.f32.mrb[0].mxu0
    %10362 = vmatprep.mubr.bf16.mxu0 0
    %10363 = vmatmul.mubr.bf16.gmra.mrb[0].mxu0 %v5842
    %v10364 = vpop.f32.mrb[0].mxu0
    %v10365 = vadd.f32 0.0, %v10364
    %v10366 = vpop.f32.mrb[0].mxu0
    %v10367 = vpop.f32.mrb[0].mxu0
    %v10368 = vadd.f32 0.0, %v10367
    %v10369 = vpop.f32.mrb[0].mxu0
    %10370 = vmatprep.mubr.bf16.mxu0 0
    %10371 = vmatmul.mubr.bf16.gmra.mrb[0].mxu0 %v5845
    %v10372 = vpop.f32.mrb[0].mxu0
    %v10373 = vadd.f32 0.0, %v10372
    %v10374 = vpop.f32.mrb[0].mxu0
    %v10375 = vpop.f32.mrb[0].mxu0
    %v10376 = vadd.f32 0.0, %v10375
    %v10377 = vpop.f32.mrb[0].mxu0
    %10378 = vmatprep.mubr.bf16.mxu0 0
    %10379 = vmatmul.mubr.bf16.gmra.mrb[0].mxu0 %v5848
    %v10380 = vpop.f32.mrb[0].mxu0
    %v10381 = vadd.f32 0.0, %v10380
    %v10382 = vpop.f32.mrb[0].mxu0
    %v10383 = vpop.f32.mrb[0].mxu0
    %v10384 = vadd.f32 0.0, %v10383
    %v10385 = vpop.f32.mrb[0].mxu0
    %10386 = vmatprep.mubr.bf16.mxu0 0
    %10387 = vmatmul.mubr.bf16.gmra.mrb[0].mxu0 %v5851
    %v10388 = vpop.f32.mrb[0].mxu0
    %v10389 = vadd.f32 0.0, %v10388
    %v10390 = vpop.f32.mrb[0].mxu0
    %v10391 = vpop.f32.mrb[0].mxu0
    %v10392 = vadd.f32 0.0, %v10391
    %v10393 = vpop.f32.mrb[0].mxu0
    %10394 = vmatprep.mubr.bf16.mxu0 0
    %10395 = vmatmul.mubr.bf16.gmra.mrb[0].mxu0 %v5854
    %v10396 = vpop.f32.mrb[0].mxu0
    %v10397 = vadd.f32 0.0, %v10396
    %v10398 = vpop.f32.mrb[0].mxu0
    %v10399 = vpop.f32.mrb[0].mxu0
    %v10400 = vpop.f32.mrb[0].mxu0
    %10401 = vdwg.mxu0
    %v10432 = vrot.slane %v10280, 4
    %v10433 = vrot.slane %v10285, 4
    %v10434 = vsel %vm174, %v10432, %v10433
    %v10435 = vrot.slane %v10288, 4
    %v10436 = vsel %vm174, %v10433, %v10435
    %v10437 = vrot.slane %v10293, 4
    %v10438 = vsel %vm174, %v10435, %v10437
    %v10439 = vrot.slane %v10296, 4
    %v10440 = vsel %vm174, %v10437, %v10439
    %v10441 = vrot.slane %v10301, 4
    %v10442 = vsel %vm174, %v10439, %v10441
    %v10443 = vrot.slane %v10304, 4
    %v10444 = vsel %vm174, %v10441, %v10443
    %v10445 = vrot.slane %v10309, 4
    %v10446 = vsel %vm174, %v10443, %v10445
    %v10447 = vrot.slane %v10312, 4
    %v10448 = vsel %vm174, %v10445, %v10447
    %v10449 = vrot.slane %v10317, 4
    %v10450 = vsel %vm174, %v10447, %v10449
    %v10451 = vrot.slane %v10320, 4
    %v10452 = vsel %vm174, %v10449, %v10451
    %v10453 = vrot.slane %v10325, 4
    %v10454 = vsel %vm174, %v10451, %v10453
    %v10455 = vrot.slane %v10328, 4
    %v10456 = vsel %vm174, %v10453, %v10455
    %v10457 = vrot.slane %v10333, 4
    %v10458 = vsel %vm174, %v10455, %v10457
    %v10459 = vrot.slane %v10336, 4
    %v10460 = vsel %vm174, %v10457, %v10459
    %v10461 = vrot.slane %v10341, 4
    %v10462 = vsel %vm174, %v10459, %v10461
    %v10463 = vrot.slane %v10344, 4
    %v10464 = vsel %vm174, %v10461, %v10463
    %v10465 = vrot.slane %v10349, 4
    %v10466 = vsel %vm174, %v10463, %v10465
    %v10467 = vrot.slane %v10352, 4
    %v10468 = vsel %vm174, %v10465, %v10467
    %v10469 = vrot.slane %v10357, 4
    %v10470 = vsel %vm174, %v10467, %v10469
    %v10471 = vrot.slane %v10360, 4
    %v10472 = vsel %vm174, %v10469, %v10471
    %v10473 = vrot.slane %v10365, 4
    %v10474 = vsel %vm174, %v10471, %v10473
    %v10475 = vrot.slane %v10368, 4
    %v10476 = vsel %vm174, %v10473, %v10475
    %v10477 = vrot.slane %v10373, 4
    %v10478 = vsel %vm174, %v10475, %v10477
    %v10479 = vrot.slane %v10376, 4
    %v10480 = vsel %vm174, %v10477, %v10479
    %v10481 = vrot.slane %v10381, 4
    %v10482 = vsel %vm174, %v10479, %v10481
    %v10483 = vrot.slane %v10384, 4
    %v10484 = vsel %vm174, %v10481, %v10483
    %v10485 = vrot.slane %v10389, 4
    %v10486 = vsel %vm174, %v10483, %v10485
    %v10487 = vrot.slane %v10392, 4
    %v10488 = vsel %vm174, %v10485, %v10487
    %v10489 = vrot.slane %v10397, 4
    %v10490 = vsel %vm174, %v10487, %v10489
    %v10520 = vsel %vm2294, %v10490, 0.0
    %10521 = vset.pattern.permute.xlu0 8
    %10522 = vperm.xlu0 %10521, %v5706
    %v10523 = vpop.permute.xlu0 %10522
    %10525 = vset.pattern.permute.xlu0 8
    %10526 = vperm.xlu0 %10525, %v5707
    %v10527 = vpop.permute.xlu0 %10526
    %10529 = vset.pattern.permute.xlu0 8
    %10530 = vperm.xlu0 %10529, %v5708
    %v10531 = vpop.permute.xlu0 %10530
    %10533 = vset.pattern.permute.xlu0 8
    %10534 = vperm.xlu0 %10533, %v5709
    %v10535 = vpop.permute.xlu0 %10534
    %10537 = vset.pattern.permute.xlu0 8
    %10538 = vperm.xlu0 %10537, %v5710
    %v10539 = vpop.permute.xlu0 %10538
    %10541 = vset.pattern.permute.xlu0 8
    %10542 = vperm.xlu0 %10541, %v5711
    %v10543 = vpop.permute.xlu0 %10542
    %10545 = vset.pattern.permute.xlu0 8
    %10546 = vperm.xlu0 %10545, %v5712
    %v10547 = vpop.permute.xlu0 %10546
    %10549 = vset.pattern.permute.xlu0 8
    %10550 = vperm.xlu0 %10549, %v5713
    %v10551 = vpop.permute.xlu0 %10550
    %10553 = vset.pattern.permute.xlu0 8
    %10554 = vperm.xlu0 %10553, %v5714
    %v10555 = vpop.permute.xlu0 %10554
    %10557 = vset.pattern.permute.xlu0 8
    %10558 = vperm.xlu0 %10557, %v5715
    %v10559 = vpop.permute.xlu0 %10558
    %10561 = vset.pattern.permute.xlu0 8
    %10562 = vperm.xlu0 %10561, %v5716
    %v10563 = vpop.permute.xlu0 %10562
    %10565 = vset.pattern.permute.xlu0 8
    %10566 = vperm.xlu0 %10565, %v5717
    %v10567 = vpop.permute.xlu0 %10566
    %10569 = vset.pattern.permute.xlu0 8
    %10570 = vperm.xlu0 %10569, %v5718
    %v10571 = vpop.permute.xlu0 %10570
    %10573 = vset.pattern.permute.xlu0 8
    %10574 = vperm.xlu0 %10573, %v5719
    %v10575 = vpop.permute.xlu0 %10574
    %10577 = vset.pattern.permute.xlu0 8
    %10578 = vperm.xlu0 %10577, %v5720
    %v10579 = vpop.permute.xlu0 %10578
    %10581 = vset.pattern.permute.xlu0 8
    %10582 = vperm.xlu0 %10581, %v5721
    %v10583 = vpop.permute.xlu0 %10582
    %10585 = vset.pattern.permute.xlu0 8
    %10586 = vperm.xlu0 %10585, %v5722
    %v10587 = vpop.permute.xlu0 %10586
    %10589 = vset.pattern.permute.xlu0 8
    %10590 = vperm.xlu0 %10589, %v5723
    %v10591 = vpop.permute.xlu0 %10590
    %10593 = vset.pattern.permute.xlu0 8
    %10594 = vperm.xlu0 %10593, %v5724
    %v10595 = vpop.permute.xlu0 %10594
    %10597 = vset.pattern.permute.xlu0 8
    %10598 = vperm.xlu0 %10597, %v5725
    %v10599 = vpop.permute.xlu0 %10598
    %10601 = vset.pattern.permute.xlu0 8
    %10602 = vperm.xlu0 %10601, %v5726
    %v10603 = vpop.permute.xlu0 %10602
    %10605 = vset.pattern.permute.xlu0 8
    %10606 = vperm.xlu0 %10605, %v5727
    %v10607 = vpop.permute.xlu0 %10606
    %10609 = vset.pattern.permute.xlu0 8
    %10610 = vperm.xlu0 %10609, %v5728
    %v10611 = vpop.permute.xlu0 %10610
    %10613 = vset.pattern.permute.xlu0 8
    %10614 = vperm.xlu0 %10613, %v5729
    %v10615 = vpop.permute.xlu0 %10614
    %10617 = vset.pattern.permute.xlu0 8
    %10618 = vperm.xlu0 %10617, %v5730
    %v10619 = vpop.permute.xlu0 %10618
    %10621 = vset.pattern.permute.xlu0 8
    %10622 = vperm.xlu0 %10621, %v5731
    %v10623 = vpop.permute.xlu0 %10622
    %10625 = vset.pattern.permute.xlu0 8
    %10626 = vperm.xlu0 %10625, %v5732
    %v10627 = vpop.permute.xlu0 %10626
    %10629 = vset.pattern.permute.xlu0 8
    %10630 = vperm.xlu0 %10629, %v5733
    %v10631 = vpop.permute.xlu0 %10630
    %10633 = vset.pattern.permute.xlu0 8
    %10634 = vperm.xlu0 %10633, %v5734
    %v10635 = vpop.permute.xlu0 %10634
    %10637 = vset.pattern.permute.xlu0 8
    %10638 = vperm.xlu0 %10637, %v5735
    %v10639 = vpop.permute.xlu0 %10638
    %10641 = vset.pattern.permute.xlu0 8
    %10642 = vperm.xlu0 %10641, %v5736
    %v10643 = vpop.permute.xlu0 %10642
    %v10645 = vmul.f32 %v10523, %v10434
    %v10646 = vmul.f32 %v10527, %v10436
    %v10647 = vmul.f32 %v10531, %v10438
    %v10648 = vmul.f32 %v10535, %v10440
    %v10649 = vmul.f32 %v10539, %v10442
    %v10650 = vmul.f32 %v10543, %v10444
    %v10651 = vmul.f32 %v10547, %v10446
    %v10652 = vmul.f32 %v10551, %v10448
    %v10653 = vmul.f32 %v10555, %v10450
    %v10654 = vmul.f32 %v10559, %v10452
    %v10655 = vmul.f32 %v10563, %v10454
    %v10656 = vmul.f32 %v10567, %v10456
    %v10657 = vmul.f32 %v10571, %v10458
    %v10658 = vmul.f32 %v10575, %v10460
    %v10659 = vmul.f32 %v10579, %v10462
    %v10660 = vmul.f32 %v10583, %v10464
    %v10661 = vmul.f32 %v10587, %v10466
    %v10662 = vmul.f32 %v10591, %v10468
    %v10663 = vmul.f32 %v10595, %v10470
    %v10664 = vmul.f32 %v10599, %v10472
    %v10665 = vmul.f32 %v10603, %v10474
    %v10666 = vmul.f32 %v10607, %v10476
    %v10667 = vmul.f32 %v10611, %v10478
    %v10668 = vmul.f32 %v10615, %v10480
    %v10669 = vmul.f32 %v10619, %v10482
    %v10670 = vmul.f32 %v10623, %v10484
    %v10671 = vmul.f32 %v10627, %v10486
    %v10672 = vmul.f32 %v10631, %v10488
    %v10673 = vmul.f32 %v10635, %v10520
    %v10674 = vmul.f32 %v10639, 0.0
    %v10675 = vmul.f32 %v10643, 0.0
    %v10676 = vld [vmem:[%s26] sm:$0xff]
    %v10677 = vld [vmem:[%s26 + $0x8] sm:$0xff]
    %v10678 = vld [vmem:[%s26 + $0x10] sm:$0xff]
    %v10679 = vld [vmem:[%s26 + $0x18] sm:$0xff]
    %v10680 = vld [vmem:[%s26 + $0x20] sm:$0xff]
    %v10681 = vld [vmem:[%s26 + $0x28] sm:$0xff]
    %v10682 = vld [vmem:[%s26 + $0x30] sm:$0xff]
    %v10683 = vld [vmem:[%s26 + $0x38] sm:$0xff]
    %v10684 = vld [vmem:[%s26 + $0x40] sm:$0xff]
    %v10685 = vld [vmem:[%s26 + $0x48] sm:$0xff]
    %v10686 = vld [vmem:[%s26 + $0x50] sm:$0xff]
    %v10687 = vld [vmem:[%s26 + $0x58] sm:$0xff]
    %v10688 = vld [vmem:[%s26 + $0x60] sm:$0xff]
    %v10689 = vld [vmem:[%s26 + $0x68] sm:$0xff]
    %v10690 = vld [vmem:[%s26 + $0x70] sm:$0xff]
    %v10691 = vld [vmem:[%s26 + $0x78] sm:$0xff]
    %v10692 = vld [vmem:[%s26 + $0x80] sm:$0xff]
    %v10693 = vld [vmem:[%s26 + $0x88] sm:$0xff]
    %v10694 = vld [vmem:[%s26 + $0x90] sm:$0xff]
    %v10695 = vld [vmem:[%s26 + $0x98] sm:$0xff]
    %v10696 = vld [vmem:[%s26 + $0xa0] sm:$0xff]
    %v10697 = vld [vmem:[%s26 + $0xa8] sm:$0xff]
    %v10698 = vld [vmem:[%s26 + $0xb0] sm:$0xff]
    %v10699 = vld [vmem:[%s26 + $0xb8] sm:$0xff]
    %v10700 = vld [vmem:[%s26 + $0xc0] sm:$0xff]
    %v10701 = vld [vmem:[%s26 + $0xc8] sm:$0xff]
    %v10702 = vld [vmem:[%s26 + $0xd0] sm:$0xff]
    %v10703 = vld [vmem:[%s26 + $0xd8] sm:$0xff]
    %v10704 = vld [vmem:[%s26 + $0xe0] sm:$0xff]
    %v10705 = vld [vmem:[%s26 + $0xe8] sm:$0xff]
    %v10706 = vld [vmem:[%s26 + $0xf0] sm:$0x3]
    %v10707 = vadd.f32 %v10676, %v10645
    %v10708 = vadd.f32 %v10677, %v10646
    %v10709 = vadd.f32 %v10678, %v10647
    %v10710 = vadd.f32 %v10679, %v10648
    %v10711 = vadd.f32 %v10680, %v10649
    %v10712 = vadd.f32 %v10681, %v10650
    %v10713 = vadd.f32 %v10682, %v10651
    %v10714 = vadd.f32 %v10683, %v10652
    %v10715 = vadd.f32 %v10684, %v10653
    %v10716 = vadd.f32 %v10685, %v10654
    %v10717 = vadd.f32 %v10686, %v10655
    %v10718 = vadd.f32 %v10687, %v10656
    %v10719 = vadd.f32 %v10688, %v10657
    %v10720 = vadd.f32 %v10689, %v10658
    %v10721 = vadd.f32 %v10690, %v10659
    %v10722 = vadd.f32 %v10691, %v10660
    %v10723 = vadd.f32 %v10692, %v10661
    %v10724 = vadd.f32 %v10693, %v10662
    %v10725 = vadd.f32 %v10694, %v10663
    %v10726 = vadd.f32 %v10695, %v10664
    %v10727 = vadd.f32 %v10696, %v10665
    %v10728 = vadd.f32 %v10697, %v10666
    %v10729 = vadd.f32 %v10698, %v10667
    %v10730 = vadd.f32 %v10699, %v10668
    %v10731 = vadd.f32 %v10700, %v10669
    %v10732 = vadd.f32 %v10701, %v10670
    %v10733 = vadd.f32 %v10702, %v10671
    %v10734 = vadd.f32 %v10703, %v10672
    %v10735 = vadd.f32 %v10704, %v10673
    %v10736 = vadd.f32 %v10705, %v10674
    %v10737 = vadd.f32 %v10706, %v10675
    %10738 = vst.msk [vmem:[%s26] sm:$0xff] %vm5743, %v10707
    %10739 = vst.msk [vmem:[%s26 + $0x8] sm:$0xff] %vm5743, %v10708
    %10740 = vst.msk [vmem:[%s26 + $0x10] sm:$0xff] %vm5743, %v10709
    %10741 = vst.msk [vmem:[%s26 + $0x18] sm:$0xff] %vm5743, %v10710
    %10742 = vst.msk [vmem:[%s26 + $0x20] sm:$0xff] %vm5743, %v10711
    %10743 = vst.msk [vmem:[%s26 + $0x28] sm:$0xff] %vm5743, %v10712
    %10744 = vst.msk [vmem:[%s26 + $0x30] sm:$0xff] %vm5743, %v10713
    %10745 = vst.msk [vmem:[%s26 + $0x38] sm:$0xff] %vm5743, %v10714
    %10746 = vst.msk [vmem:[%s26 + $0x40] sm:$0xff] %vm5743, %v10715
    %10747 = vst.msk [vmem:[%s26 + $0x48] sm:$0xff] %vm5743, %v10716
    %10748 = vst.msk [vmem:[%s26 + $0x50] sm:$0xff] %vm5743, %v10717
    %10749 = vst.msk [vmem:[%s26 + $0x58] sm:$0xff] %vm5743, %v10718
    %10750 = vst.msk [vmem:[%s26 + $0x60] sm:$0xff] %vm5743, %v10719
    %10751 = vst.msk [vmem:[%s26 + $0x68] sm:$0xff] %vm5743, %v10720
    %10752 = vst.msk [vmem:[%s26 + $0x70] sm:$0xff] %vm5743, %v10721
    %10753 = vst.msk [vmem:[%s26 + $0x78] sm:$0xff] %vm5743, %v10722
    %10754 = vst.msk [vmem:[%s26 + $0x80] sm:$0xff] %vm5743, %v10723
    %10755 = vst.msk [vmem:[%s26 + $0x88] sm:$0xff] %vm5743, %v10724
    %10756 = vst.msk [vmem:[%s26 + $0x90] sm:$0xff] %vm5743, %v10725
    %10757 = vst.msk [vmem:[%s26 + $0x98] sm:$0xff] %vm5743, %v10726
    %10758 = vst.msk [vmem:[%s26 + $0xa0] sm:$0xff] %vm5743, %v10727
    %10759 = vst.msk [vmem:[%s26 + $0xa8] sm:$0xff] %vm5743, %v10728
    %10760 = vst.msk [vmem:[%s26 + $0xb0] sm:$0xff] %vm5743, %v10729
    %10761 = vst.msk [vmem:[%s26 + $0xb8] sm:$0xff] %vm5743, %v10730
    %10762 = vst.msk [vmem:[%s26 + $0xc0] sm:$0xff] %vm5743, %v10731
    %10763 = vst.msk [vmem:[%s26 + $0xc8] sm:$0xff] %vm5743, %v10732
    %10764 = vst.msk [vmem:[%s26 + $0xd0] sm:$0xff] %vm5743, %v10733
    %10765 = vst.msk [vmem:[%s26 + $0xd8] sm:$0xff] %vm5743, %v10734
    %10766 = vst.msk [vmem:[%s26 + $0xe0] sm:$0xff] %vm5743, %v10735
    %10767 = vst.msk [vmem:[%s26 + $0xe8] sm:$0xff] %vm5743, %v10736
    %10768 = vst.msk [vmem:[%s26 + $0xf0] sm:$0x3] %vm5774, %v10737
    %v10769 = vld [vmem:[%s19] sm:$0xff]
    %v10770 = vld [vmem:[%s19 + $0x8] sm:$0xff]
    %v10771 = vld [vmem:[%s19 + $0x10] sm:$0xff]
    %v10772 = vld [vmem:[%s19 + $0x18] sm:$0xff]
    %v10773 = vld [vmem:[%s20] sm:$0x1]
    %v10775 = vlaneseq
    %v10776 = vshrl.u32 %v10775, 7
    %v10777 = vsub.s32 0, %v10776
    %v10778 = vrot.slane %v10773, %v10777
    %v10781 = vsel %vm550, %v320, 0
    %10783 = vmatprep.subr.mxu0 0.0
    %10784 = vmatpush1.msra.mxu0 %v10769
    %10785 = vmatprep.subr.mxu0 0.0
    %10786 = vmatpush1.msra.mxu0 %v10770
    %10787 = vmatprep.subr.mxu0 0.0
    %10788 = vmatpush1.msra.mxu0 %v10771
    %10789 = vmatprep.subr.mxu0 0.0
    %10790 = vmatpush1.msra.mxu0 %v10772
    %10791 = vmatprep.subr.mxu0 0.0
    %10792 = vmatpush1.msra.mxu0 0.0
    %10793 = vmatprep.subr.mxu0 0.0
    %10794 = vmatpush1.msra.mxu0 0.0
    %10795 = vmatprep.subr.mxu0 0.0
    %10796 = vmatpush1.msra.mxu0 0.0
    %10797 = vmatprep.subr.mxu0 0.0
    %10798 = vmatpush1.msra.mxu0 0.0
    %10799 = vmatprep.subr.mxu0 0.0
    %10800 = vmatpush1.msra.mxu0 0.0
    %10801 = vmatprep.subr.mxu0 0.0
    %10802 = vmatpush1.msra.mxu0 0.0
    %10803 = vmatprep.subr.mxu0 0.0
    %10804 = vmatpush1.msra.mxu0 0.0
    %10805 = vmatprep.subr.mxu0 0.0
    %10806 = vmatpush1.msra.mxu0 0.0
    %10807 = vmatprep.subr.mxu0 0.0
    %10808 = vmatpush1.msra.mxu0 0.0
    %10809 = vmatprep.subr.mxu0 0.0
    %10810 = vmatpush1.msra.mxu0 0.0
    %10811 = vmatprep.subr.mxu0 0.0
    %10812 = vmatpush1.msra.mxu0 0.0
    %10813 = vmatprep.subr.mxu0 0.0
    %10814 = vmatpush1.msra.mxu0 0.0
    %10815 = vmatprep.subr.mxu0 0.0
    %10816 = vmatpush1.msra.mxu0 0.0
    %10817 = vmatprep.subr.mxu0 0.0
    %10818 = vmatpush1.msra.mxu0 0.0
    %10819 = vmatprep.subr.mxu0 0.0
    %10820 = vmatpush1.msra.mxu0 0.0
    %10821 = vmatprep.subr.mxu0 0.0
    %10822 = vmatpush1.msra.mxu0 0.0
    %10823 = vmatprep.subr.mxu0 0.0
    %10824 = vmatpush1.msra.mxu0 0.0
    %10825 = vmatprep.subr.mxu0 0.0
    %10826 = vmatpush1.msra.mxu0 0.0
    %10827 = vmatprep.subr.mxu0 0.0
    %10828 = vmatpush1.msra.mxu0 0.0
    %10829 = vmatprep.subr.mxu0 0.0
    %10830 = vmatpush1.msra.mxu0 0.0
    %10831 = vmatprep.subr.mxu0 0.0
    %10832 = vmatpush1.msra.mxu0 0.0
    %10833 = vmatprep.subr.mxu0 0.0
    %10834 = vmatpush1.msra.mxu0 0.0
    %10835 = vmatprep.subr.mxu0 0.0
    %10836 = vmatpush1.msra.mxu0 0.0
    %10837 = vmatprep.subr.mxu0 0.0
    %10838 = vmatpush1.msra.mxu0 0.0
    %10839 = vmatprep.subr.mxu0 0.0
    %10840 = vmatpush1.msra.mxu0 0.0
    %10841 = vmatprep.subr.mxu0 0.0
    %10842 = vmatpush1.msra.mxu0 0.0
    %10843 = vmatprep.subr.mxu0 0.0
    %10844 = vmatpush1.msra.mxu0 0.0
    %10845 = vmatprep.subr.mxu0 0.0
    %10846 = vmatpush1.msra.mxu0 0.0
    %10847 = vmatprep.mubr.f32.mxu0 0.0
    %10848 = vmatmul.mubr.f32.gmra.mrb[0].mxu0 %v10781
    %v10849 = vpop.f32.mrb[0].mxu0
    %v10850 = vadd.f32 %v10778, %v10849
    %v10851 = vpop.f32.mrb[0].mxu0
    %10852 = vdwg.mxu0
    %vm10853 = vcmp.ge.f32.partialorder %v10850, 0.0
    %v10854 = vmul.f32 %v10850, 0.01
    %v10855 = vsel %vm10853, %v10850, %v10854
    %v10856 = vld [vmem:[%s21] sm:$0xff]
    %v10857 = vld [vmem:[%s21 + $0x8] sm:$0xff]
    %v10858 = vld [vmem:[%s21 + $0x10] sm:$0xff]
    %v10859 = vld [vmem:[%s21 + $0x18] sm:$0xff]
    %v10860 = vld [vmem:[%s21 + $0x20] sm:$0xff]
    %v10861 = vld [vmem:[%s21 + $0x28] sm:$0xff]
    %v10862 = vld [vmem:[%s21 + $0x30] sm:$0xff]
    %v10863 = vld [vmem:[%s21 + $0x38] sm:$0xff]
    %v10864 = vld [vmem:[%s22] sm:$0x1]
    %v10866 = vlaneseq
    %v10867 = vshrl.u32 %v10866, 7
    %v10868 = vsub.s32 0, %v10867
    %v10869 = vrot.slane %v10864, %v10868
    %v10872 = vsel %vm5345, %v10855, 0
    %10874 = vmatprep.subr.mxu0 0.0
    %10875 = vmatpush1.msra.mxu0 %v10856
    %10876 = vmatprep.subr.mxu0 0.0
    %10877 = vmatpush1.msra.mxu0 %v10857
    %10878 = vmatprep.subr.mxu0 0.0
    %10879 = vmatpush1.msra.mxu0 %v10858
    %10880 = vmatprep.subr.mxu0 0.0
    %10881 = vmatpush1.msra.mxu0 %v10859
    %10882 = vmatprep.subr.mxu0 0.0
    %10883 = vmatpush1.msra.mxu0 %v10860
    %10884 = vmatprep.subr.mxu0 0.0
    %10885 = vmatpush1.msra.mxu0 %v10861
    %10886 = vmatprep.subr.mxu0 0.0
    %10887 = vmatpush1.msra.mxu0 %v10862
    %10888 = vmatprep.subr.mxu0 0.0
    %10889 = vmatpush1.msra.mxu0 %v10863
    %10890 = vmatprep.subr.mxu0 0.0
    %10891 = vmatpush1.msra.mxu0 0.0
    %10892 = vmatprep.subr.mxu0 0.0
    %10893 = vmatpush1.msra.mxu0 0.0
    %10894 = vmatprep.subr.mxu0 0.0
    %10895 = vmatpush1.msra.mxu0 0.0
    %10896 = vmatprep.subr.mxu0 0.0
    %10897 = vmatpush1.msra.mxu0 0.0
    %10898 = vmatprep.subr.mxu0 0.0
    %10899 = vmatpush1.msra.mxu0 0.0
    %10900 = vmatprep.subr.mxu0 0.0
    %10901 = vmatpush1.msra.mxu0 0.0
    %10902 = vmatprep.subr.mxu0 0.0
    %10903 = vmatpush1.msra.mxu0 0.0
    %10904 = vmatprep.subr.mxu0 0.0
    %10905 = vmatpush1.msra.mxu0 0.0
    %10906 = vmatprep.subr.mxu0 0.0
    %10907 = vmatpush1.msra.mxu0 0.0
    %10908 = vmatprep.subr.mxu0 0.0
    %10909 = vmatpush1.msra.mxu0 0.0
    %10910 = vmatprep.subr.mxu0 0.0
    %10911 = vmatpush1.msra.mxu0 0.0
    %10912 = vmatprep.subr.mxu0 0.0
    %10913 = vmatpush1.msra.mxu0 0.0
    %10914 = vmatprep.subr.mxu0 0.0
    %10915 = vmatpush1.msra.mxu0 0.0
    %10916 = vmatprep.subr.mxu0 0.0
    %10917 = vmatpush1.msra.mxu0 0.0
    %10918 = vmatprep.subr.mxu0 0.0
    %10919 = vmatpush1.msra.mxu0 0.0
    %10920 = vmatprep.subr.mxu0 0.0
    %10921 = vmatpush1.msra.mxu0 0.0
    %10922 = vmatprep.subr.mxu0 0.0
    %10923 = vmatpush1.msra.mxu0 0.0
    %10924 = vmatprep.subr.mxu0 0.0
    %10925 = vmatpush1.msra.mxu0 0.0
    %10926 = vmatprep.subr.mxu0 0.0
    %10927 = vmatpush1.msra.mxu0 0.0
    %10928 = vmatprep.subr.mxu0 0.0
    %10929 = vmatpush1.msra.mxu0 0.0
    %10930 = vmatprep.subr.mxu0 0.0
    %10931 = vmatpush1.msra.mxu0 0.0
    %10932 = vmatprep.subr.mxu0 0.0
    %10933 = vmatpush1.msra.mxu0 0.0
    %10934 = vmatprep.subr.mxu0 0.0
    %10935 = vmatpush1.msra.mxu0 0.0
    %10936 = vmatprep.subr.mxu0 0.0
    %10937 = vmatpush1.msra.mxu0 0.0
    %10938 = vmatprep.mubr.f32.mxu0 0.0
    %10939 = vmatmul.mubr.f32.gmra.mrb[0].mxu0 %v10872
    %v10940 = vpop.f32.mrb[0].mxu0
    %v10941 = vadd.f32 %v10869, %v10940
    %v10942 = vpop.f32.mrb[0].mxu0
    %10943 = vdwg.mxu0
    %vm10944 = vcmask 33792
    %10945 = vst.msk [vmem:[#allocation6] sm:$0x3] %vm10944, %v10941
    // Predicated region
    $region94: #{dsn_forward.1} parent=1 // pred_check
      _
    $region95: #{dsn_forward.1} parent=1 // pred_check_branch
      %10947 = sbr.rel (0) target = $region97
    $region96: #{dsn_forward.1} parent=1 // pred_region
      %s10949 = ssub.s32 32, 32
      %10950 = vsyncadd [#allocation3], %s10949
      %s10952 = sshll.u32 [#allocation2], 4
      %s10953 = int_to_ptr.vmem [resolvable:$true] %s10952
      %10955 = dma.vmem_to_hbm [thread:$0]  %s10953, 32, %s23, [#allocation3]
    $region97: #{dsn_forward.1} parent=1 // pred_fallthru
      _
    // Predicated region
    $region98: #{dsn_forward.1} parent=1 // pred_check
      _
    $region99: #{dsn_forward.1} parent=1 // pred_check_branch
      %10957 = sbr.rel (0) target = $region101
    $region100: #{dsn_forward.1} parent=1 // pred_region
      %s10959 = ssub.s32 32, 32
      %10960 = vsyncadd [#allocation5], %s10959
      %s10962 = sshll.u32 [#allocation4], 4
      %s10963 = int_to_ptr.vmem [resolvable:$true] %s10962
      %10965 = dma.vmem_to_hbm [thread:$0]  %s10963, 32, %s24, [#allocation5]
    $region101: #{dsn_forward.1} parent=1 // pred_fallthru
      _
    // Predicated region
    $region102: #{dsn_forward.1} parent=1 // pred_check
      _
    $region103: #{dsn_forward.1} parent=1 // pred_check_branch
      %10967 = sbr.rel (0) target = $region105
    $region104: #{dsn_forward.1} parent=1 // pred_region
      %s10969 = ssub.s32 32, 32
      %10970 = vsyncadd [#allocation5], %s10969
      %s10972 = sshll.u32 [#allocation6], 4
      %s10973 = int_to_ptr.vmem [resolvable:$true] %s10972
      %10975 = dma.vmem_to_hbm [thread:$0]  %s10973, 32, %s25, [#allocation5]
    $region105: #{dsn_forward.1} parent=1 // pred_fallthru
      _
    // Predicated region
    $region106: #{dsn_forward.1} parent=1 // pred_check
      _
    $region107: #{dsn_forward.1} parent=1 // pred_check_branch
      %10977 = sbr.rel (0) target = $region109
    $region108: #{dsn_forward.1} parent=1 // pred_region
      _
    $region109: #{dsn_forward.1} parent=1 // pred_fallthru
      _
    // Predicated region
    $region110: #{dsn_forward.1} parent=1 // pred_check
      _
    $region111: #{dsn_forward.1} parent=1 // pred_check_branch
      %10979 = sbr.rel (0) target = $region113
    $region112: #{dsn_forward.1} parent=1 // pred_region
      %10980 = dma.done [#allocation3], 32
    $region113: #{dsn_forward.1} parent=1 // pred_fallthru
      _
    // Predicated region
    $region114: #{dsn_forward.1} parent=1 // pred_check
      _
    $region115: #{dsn_forward.1} parent=1 // pred_check_branch
      %10982 = sbr.rel (0) target = $region117
    $region116: #{dsn_forward.1} parent=1 // pred_region
      %10983 = dma.done [#allocation5], 32
    $region117: #{dsn_forward.1} parent=1 // pred_fallthru
      _
    // Predicated region
    $region118: #{dsn_forward.1} parent=1 // pred_check
      _
    $region119: #{dsn_forward.1} parent=1 // pred_check_branch
      %10985 = sbr.rel (0) target = $region121
    $region120: #{dsn_forward.1} parent=1 // pred_region
      %10986 = dma.done [#allocation5], 32
    $region121: #{dsn_forward.1} parent=1 // pred_fallthru
      _
    // Predicated region
    $region122: #{dsn_forward.1} parent=1 // pred_check
      _
    $region123: #{dsn_forward.1} parent=1 // pred_check_branch
      %10988 = sbr.rel (0) target = $region125
    $region124: #{dsn_forward.1} parent=1 // pred_region
      _
    $region125: #{dsn_forward.1} parent=1 // pred_fallthru
      _
    %10989 = vsyncpa [#allocation3], 1
    %10990 = vsyncpa [#allocation5], 1

</llo_original>
